<compile_context>
chip_gen: v6e
topology: v6e:2x2x1
jax: 0.10.0
libtpu: 0.0.40
codegen_flags: <defaults>
</compile_context>

<pallas_src>
import functools

import jax
import jax.numpy as jnp
import numpy as np
from jax.experimental import pallas as pl
from jax.experimental.pallas import tpu as pltpu


def _round_up(x, m):
    return ((x + m - 1) // m) * m


# ----------------------------------------------------------------------------
# Glue: bilinear upsample (align_corners=True), matching torch.nn.Upsample.
# ----------------------------------------------------------------------------
def upsample_bilinear_x2_align_corners(x):  # x: (N, C, H, W) float32
    N, C, H, W = x.shape
    Ho, Wo = 2 * H, 2 * W

    def src_coords(n_in, n_out):
        if n_in == 1:
            return jnp.zeros((n_out,), jnp.float32)
        return jnp.arange(n_out, dtype=jnp.float32) * (n_in - 1) / (n_out - 1)

    ys = src_coords(H, Ho)
    xs = src_coords(W, Wo)
    y0 = jnp.clip(jnp.floor(ys).astype(jnp.int32), 0, H - 1)
    y1 = jnp.clip(y0 + 1, 0, H - 1)
    wy = ys - y0.astype(jnp.float32)
    x0 = jnp.clip(jnp.floor(xs).astype(jnp.int32), 0, W - 1)
    x1 = jnp.clip(x0 + 1, 0, W - 1)
    wx = xs - x0.astype(jnp.float32)

    top = x[:, :, y0, :]
    bot = x[:, :, y1, :]
    v = top * (1.0 - wy)[None, None, :, None] + bot * wy[None, None, :, None]
    left = v[:, :, :, x0]
    right = v[:, :, :, x1]
    return left * (1.0 - wx)[None, None, None, :] + right * wx[None, None, None, :]


# ----------------------------------------------------------------------------
# Pallas kernel: fused (Conv3x3 -> BN(eval) -> ReLU) x 2 on one image.
#
# Flat layouts (per image, channels on the lane axis, Wp = aligned row width):
#   slab : (PADN, 3*Cin) = zero-padded (H+2, Wp) rows flattened row-major, the
#          3 dx column shifts stacked on the lane axis (built by the wrapper;
#          the [x2, x1up] channel concat is fused into the same slab).
#   mid  : (3, PADN, Cmid) padded intermediate, one plane per conv2 dx shift,
#          so every conv2 tap is a sublane-aligned slice.
#   out  : (H*W, Cout) compact (only valid columns are stored).
# ----------------------------------------------------------------------------
def _double_conv_kernel(s_ref, w1_ref, b1_ref, w2_ref, b2_ref, out_ref,
                        mid_ref, *, H, W, Wp):
    HPW = H * Wp
    PADN = mid_ref.shape[1]
    Cmid = mid_ref.shape[2]
    dot_dtype = w2_ref.dtype

    # --- conv1: dx taps are pre-stacked into the contraction dim (K = 3*Cin);
    # the 3 dy taps are sublane-aligned slices. Register accumulation (no VMEM
    # ref RMW). BN1 scale is already folded into w1. ---
    acc = jnp.dot(s_ref[0:HPW, :], w1_ref[0],
                  preferred_element_type=jnp.float32)
    for dy in range(1, 3):
        acc = acc + jnp.dot(s_ref[dy * Wp:dy * Wp + HPW, :], w1_ref[dy],
                            preferred_element_type=jnp.float32)
    y1 = jnp.maximum(acc + b1_ref[...], 0.0)                 # (HPW, Cmid) f32

    # --- zero the alignment/garbage columns (w >= W) so they act as conv2's
    # zero padding. Mask built in-kernel (no HBM mask input). Integer mod is
    # avoided on purpose: exact float floor-division instead. ---
    r = jax.lax.broadcasted_iota(jnp.int32, (HPW, Cmid), 0).astype(jnp.float32)
    q = jnp.floor((r + 0.5) * (1.0 / Wp))
    col = r - q * Wp
    y1 = jnp.where(col < (W - 0.5), y1, 0.0)

    # --- re-pad the intermediate in VMEM: 3 planes, one per conv2 dx shift,
    # so every conv2 tap below is a sublane-aligned slice (only the dx!=1
    # stores need a one-sublane shift, the intrinsic cost of the shift). ---
    for dx in range(3):
        off = Wp + 1 - dx
        mid_ref[dx, 0:off, :] = jnp.zeros((off, Cmid), jnp.float32)
        mid_ref[dx, off:off + HPW, :] = y1
        mid_ref[dx, off + HPW:PADN, :] = jnp.zeros((PADN - off - HPW, Cmid),
                                                   jnp.float32)

    # --- conv2: 9 taps, aligned slices, register accumulation. BN2 scale is
    # folded into w2; epilogue (bias + ReLU) stays in f32. ---
    acc = None
    for dy in range(3):
        for dx in range(3):
            src = mid_ref[dx, dy * Wp:dy * Wp + HPW, :].astype(dot_dtype)
            v = jnp.dot(src, w2_ref[dy * 3 + dx],
                        preferred_element_type=jnp.float32)
            acc = v if acc is None else acc + v
    y2 = jnp.maximum(acc + b2_ref[...], 0.0).astype(out_ref.dtype)

    # --- compact output: store only the W valid columns of each row, so the
    # wrapper needs no post-kernel slice pass over the output. ---
    # TODO(synk): for large H fold this unrolled loop into a row-tiled grid.
    for h in range(H):
        out_ref[h * W:(h + 1) * W, :] = y2[h * Wp:h * Wp + W, :]


def double_conv_pallas(slab, w1k, b1, w2k, b2, *, H, W, Wp):
    """slab: (N, PADN, 3*Cin) flat dx-stacked padded input. -> (N, H*W, Cout)."""
    N, PADN, K1 = slab.shape
    Cin = K1 // 3
    Cmid = w1k.shape[2]
    Cout = w2k.shape[2]
    HW = H * W
    HPW = H * Wp

    kernel = functools.partial(_double_conv_kernel, H=H, W=W, Wp=Wp)

    flops = 2 * N * HPW * 9 * (Cin * Cmid + Cmid * Cout)
    bytes_accessed = (slab.size * slab.dtype.itemsize
                      + 4 * N * HW * Cout
                      + w1k.size * w1k.dtype.itemsize
                      + w2k.size * w2k.dtype.itemsize
                      + 4 * (Cmid + Cout))

    return pl.pallas_call(
        kernel,
        out_shape=jax.ShapeDtypeStruct((N, HW, Cout), jnp.float32),
        grid=(N,),
        in_specs=[
            pl.BlockSpec((None, PADN, K1), lambda n: (n, 0, 0)),
            # TODO(synk): single-buffer (pl.Buffered(1)) these constant-index
            # weight/bias specs for production channel counts on v7x.
            pl.BlockSpec((3, K1, Cmid), lambda n: (0, 0, 0)),
            pl.BlockSpec((1, Cmid), lambda n: (0, 0)),
            pl.BlockSpec((9, Cmid, Cout), lambda n: (0, 0, 0)),
            pl.BlockSpec((1, Cout), lambda n: (0, 0)),
        ],
        out_specs=pl.BlockSpec((None, HW, Cout), lambda n: (n, 0, 0)),
        scratch_shapes=[pltpu.VMEM((3, PADN, Cmid), jnp.float32)],
        compiler_params=pltpu.CompilerParams(
            dimension_semantics=("parallel",),
            vmem_limit_bytes=32 * 1024 * 1024),
        cost_estimate=pl.CostEstimate(flops=int(flops), transcendentals=0,
                                      bytes_accessed=int(bytes_accessed)),
    )(slab, w1k, b1, w2k, b2)


# ----------------------------------------------------------------------------
# The `Up` forward: upsample (XLA) + fused concat/pad/double-conv (kernel).
# ----------------------------------------------------------------------------
def up_forward(x1, x2, params, *, compute_dtype=jnp.float32):
    """x1, x2: NCHW float32. Returns NCHW float32.

    compute_dtype: dtype of the MXU operands (jnp.bfloat16 recommended on
    v6e/v7x); accumulation and the bias+ReLU epilogue stay in float32.
    """
    N, C1 = x1.shape[0], x1.shape[1]
    C2, H, W = x2.shape[1], x2.shape[2], x2.shape[3]
    Cin = C1 + C2

    # Row width of the flat layout, padded so every dy-tap slice in the kernel
    # is sublane-tile aligned (8 rows for f32 operands, 16 for bf16).
    itemsize = jnp.finfo(compute_dtype).bits // 8
    row_align = 8 * (4 // itemsize)
    Wp = _round_up(W + 2, row_align)
    PADN = (H + 2) * Wp

    # --- upsample x1 (bilinear x2, align_corners=True) and pad to x2's size.
    # (Assumes x2 is at least as large as the upsampled x1, like the module.)
    x1u = upsample_bilinear_x2_align_corners(x1)
    diffY = H - x1u.shape[2]
    diffX = W - x1u.shape[3]
    x1u = jnp.pad(x1u, ((0, 0), (0, 0),
                        (diffY // 2, diffY - diffY // 2),
                        (diffX // 2, diffX - diffX // 2)))

    # --- build the dx-stacked, sublane-aligned input slab: channel concat,
    # NHWC, zero-pad H/W by 1, align row width to Wp, then stack the 3 dx
    # column shifts on the channel (lane) axis -> conv1 is 3 aligned matmuls
    # with K = 3*Cin. The concat never exists as a separate layout pass.
    x = jnp.concatenate([x2, x1u], axis=1)                    # (N, Cin, H, W)
    x = jnp.transpose(x, (0, 2, 3, 1))                        # (N, H, W, Cin)
    x = jnp.pad(x, ((0, 0), (1, 1), (1, Wp - W + 1), (0, 0)))  # (N,H+2,Wp+2,Cin)
    slab = jnp.concatenate([x[:, :, dx:dx + Wp, :] for dx in range(3)],
                           axis=-1)                           # (N,H+2,Wp,3*Cin)
    slab = slab.reshape(N, PADN, 3 * Cin).astype(compute_dtype)

    w1k = params["w1k"].astype(compute_dtype)
    w2k = params["w2k"].astype(compute_dtype)

    y = double_conv_pallas(slab, w1k, params["b1"], w2k, params["b2"],
                           H=H, W=W, Wp=Wp)                   # (N, H*W, Cout)
    y = y.reshape(N, H, W, -1)
    return jnp.transpose(y, (0, 3, 1, 2))                     # NCHW


# ----------------------------------------------------------------------------
# Deterministic parameter construction and pure-JAX reference.
# ----------------------------------------------------------------------------
def make_params(key, in_channels, out_channels):
    mid_channels = in_channels // 2
    eps = 1e-5
    ks = jax.random.split(key, 8)
    # PyTorch conv weight layout: OIHW
    W1 = jax.random.normal(ks[0], (mid_channels, in_channels, 3, 3), jnp.float32) * 0.2
    W2 = jax.random.normal(ks[1], (out_channels, mid_channels, 3, 3), jnp.float32) * 0.2
    g1 = 1.0 + 0.1 * jax.random.normal(ks[2], (mid_channels,), jnp.float32)
    be1 = 0.1 * jax.random.normal(ks[3], (mid_channels,), jnp.float32)
    rm1 = 0.1 * jax.random.normal(ks[4], (mid_channels,), jnp.float32)
    rv1 = jnp.abs(jax.random.normal(ks[5], (mid_channels,), jnp.float32)) + 0.5
    g2 = 1.0 + 0.1 * jax.random.normal(ks[6], (out_channels,), jnp.float32)
    be2 = 0.1 * jax.random.normal(ks[7], (out_channels,), jnp.float32)
    rm2 = jnp.zeros((out_channels,), jnp.float32)
    rv2 = jnp.ones((out_channels,), jnp.float32)

    s1 = g1 / jnp.sqrt(rv1 + eps)
    b1 = be1 - rm1 * s1
    s2 = g2 / jnp.sqrt(rv2 + eps)
    b2 = be2 - rm2 * s2

    # conv1 weights for the kernel: (dy, dx*Cin + c, Cmid), BN1 scale folded.
    w1k = jnp.transpose(W1, (2, 3, 1, 0)).reshape(3, 3 * in_channels, mid_channels)
    w1k = w1k * s1[None, None, :]
    # conv2 weights for the kernel: (dy*3 + dx, Cmid, Cout), BN2 scale folded.
    w2k = jnp.transpose(W2, (2, 3, 1, 0)).reshape(9, mid_channels, out_channels)
    w2k = w2k * s2[None, None, :]

    return {
        "W1": W1, "W2": W2,
        "w1k": w1k, "w2k": w2k,
        "s1": s1.reshape(1, -1), "b1": b1.reshape(1, -1),
        "s2": s2.reshape(1, -1), "b2": b2.reshape(1, -1),
    }


def up_forward_reference(x1, x2, params):
    x1u = upsample_bilinear_x2_align_corners(x1)
    diffY = x2.shape[2] - x1u.shape[2]
    diffX = x2.shape[3] - x1u.shape[3]
    x1u = jnp.pad(x1u, ((0, 0), (0, 0),
                        (diffY // 2, diffY - diffY // 2),
                        (diffX // 2, diffX - diffX // 2)))
    x = jnp.concatenate([x2, x1u], axis=1)

    dn = ("NCHW", "OIHW", "NCHW")
    y = jax.lax.conv_general_dilated(x, params["W1"], (1, 1), ((1, 1), (1, 1)),
                                     dimension_numbers=dn)
    s1 = params["s1"].reshape(-1); b1 = params["b1"].reshape(-1)
    y = jnp.maximum(y * s1[None, :, None, None] + b1[None, :, None, None], 0.0)
    y = jax.lax.conv_general_dilated(y, params["W2"], (1, 1), ((1, 1), (1, 1)),
                                     dimension_numbers=dn)
    s2 = params["s2"].reshape(-1); b2 = params["b2"].reshape(-1)
    y = jnp.maximum(y * s2[None, :, None, None] + b2[None, :, None, None], 0.0)
    return y


if __name__ == "__main__":
    key = jax.random.PRNGKey(0)
    k1, k2, kp = jax.random.split(key, 3)

    # Up(in_channels=8, out_channels=4): x1 (deep feature) has 4 channels at
    # half resolution, x2 (skip) has 4 channels at full resolution.
    N, C_half, Hsz, Wsz = 2, 4, 16, 16
    in_channels, out_channels = 2 * C_half, 4

    x1 = jax.random.normal(k1, (N, C_half, Hsz // 2, Wsz // 2), jnp.float32)
    x2 = jax.random.normal(k2, (N, C_half, Hsz, Wsz), jnp.float32)
    params = make_params(kp, in_channels, out_channels)

    ref = jax.block_until_ready(up_forward_reference(x1, x2, params))

    # f32 MXU operands: tight check against the f32 reference.
    out = jax.block_until_ready(up_forward(x1, x2, params))
    np.testing.assert_allclose(np.asarray(out), np.asarray(ref),
                               rtol=1e-3, atol=1e-3)
    assert out.shape == (N, out_channels, Hsz, Wsz)

    # bf16 MXU operands (recommended on v6e/v7x): f32 accumulation + epilogue,
    # looser tolerance against the f32 reference.
    out_bf16 = jax.block_until_ready(
        up_forward(x1, x2, params, compute_dtype=jnp.bfloat16))
    np.testing.assert_allclose(np.asarray(out_bf16), np.asarray(ref),
                               rtol=1e-1, atol=1e-1)

    print("KERNEL_OK")
</pallas_src>

<mosaic_0001>
module attributes {stable_mosaic.version = 11 : i64} {
  func.func @_double_conv_kernel(%arg0: i32, %arg1: memref<1x432x24xf32, #tpu.memory_space<vmem>>, %arg2: memref<3x24x4xf32, #tpu.memory_space<vmem>>, %arg3: memref<1x4xf32, #tpu.memory_space<vmem>>, %arg4: memref<9x4x4xf32, #tpu.memory_space<vmem>>, %arg5: memref<1x4xf32, #tpu.memory_space<vmem>>, %arg6: memref<1x256x4xf32, #tpu.memory_space<vmem>>, %arg7: memref<3x432x4xf32, #tpu.memory_space<vmem>>) attributes {dimension_semantics = [#tpu.dimension_semantics<parallel>], iteration_bounds = array<i64: 2>, scalar_prefetch = 0 : i64, scratch_operands = 1 : i64, tpu.core_type = #tpu.core_type<tc>, window_params = [{transform_indices = @transform_0, window_bounds = array<i64: 1, 432, 24>}, {pipeline_mode = #tpu.pipeline_mode<synchronous>, transform_indices = @transform_1, window_bounds = array<i64: 3, 24, 4>}, {pipeline_mode = #tpu.pipeline_mode<synchronous>, transform_indices = @transform_2, window_bounds = array<i64: 1, 4>}, {pipeline_mode = #tpu.pipeline_mode<synchronous>, transform_indices = @transform_3, window_bounds = array<i64: 9, 4, 4>}, {pipeline_mode = #tpu.pipeline_mode<synchronous>, transform_indices = @transform_4, window_bounds = array<i64: 1, 4>}, {transform_indices = @transform_5, window_bounds = array<i64: 1, 256, 4>}]} {
    %c0 = arith.constant 0 : index
    %c0_0 = arith.constant 0 : index
    %c0_1 = arith.constant 0 : index
    %0 = vector.load %arg1[%c0, %c0_0, %c0_1] : memref<1x432x24xf32, #tpu.memory_space<vmem>>, vector<1x384x24xf32>
    %1 = vector.shape_cast %0 : vector<1x384x24xf32> to vector<384x24xf32>
    %c0_2 = arith.constant 0 : index
    %c0_3 = arith.constant 0 : index
    %c0_4 = arith.constant 0 : index
    %2 = vector.load %arg2[%c0_2, %c0_3, %c0_4] : memref<3x24x4xf32, #tpu.memory_space<vmem>>, vector<1x24x4xf32>
    %3 = vector.shape_cast %2 : vector<1x24x4xf32> to vector<24x4xf32>
    %cst = arith.constant dense<0.000000e+00> : vector<384x4xf32>
    %4 = tpu.matmul %1, %3, %cst {dimension_numbers = #tpu.dot_dimension_numbers<[1], [0], [0], [1], [0, 0, 1, 1], [], []>} : vector<384x24xf32>, vector<24x4xf32>, vector<384x4xf32> -> vector<384x4xf32>
    %c0_5 = arith.constant 0 : index
    %c24 = arith.constant 24 : index
    %c0_6 = arith.constant 0 : index
    %5 = vector.load %arg1[%c0_5, %c24, %c0_6] : memref<1x432x24xf32, #tpu.memory_space<vmem>>, vector<1x384x24xf32>
    %6 = vector.shape_cast %5 : vector<1x384x24xf32> to vector<384x24xf32>
    %c1 = arith.constant 1 : index
    %c0_7 = arith.constant 0 : index
    %c0_8 = arith.constant 0 : index
    %7 = vector.load %arg2[%c1, %c0_7, %c0_8] : memref<3x24x4xf32, #tpu.memory_space<vmem>>, vector<1x24x4xf32>
    %8 = vector.shape_cast %7 : vector<1x24x4xf32> to vector<24x4xf32>
    %cst_9 = arith.constant dense<0.000000e+00> : vector<384x4xf32>
    %9 = tpu.matmul %6, %8, %cst_9 {dimension_numbers = #tpu.dot_dimension_numbers<[1], [0], [0], [1], [0, 0, 1, 1], [], []>} : vector<384x24xf32>, vector<24x4xf32>, vector<384x4xf32> -> vector<384x4xf32>
    %10 = arith.addf %4, %9 : vector<384x4xf32>
    %c0_10 = arith.constant 0 : index
    %c48 = arith.constant 48 : index
    %c0_11 = arith.constant 0 : index
    %11 = vector.load %arg1[%c0_10, %c48, %c0_11] : memref<1x432x24xf32, #tpu.memory_space<vmem>>, vector<1x384x24xf32>
    %12 = vector.shape_cast %11 : vector<1x384x24xf32> to vector<384x24xf32>
    %c2 = arith.constant 2 : index
    %c0_12 = arith.constant 0 : index
    %c0_13 = arith.constant 0 : index
    %13 = vector.load %arg2[%c2, %c0_12, %c0_13] : memref<3x24x4xf32, #tpu.memory_space<vmem>>, vector<1x24x4xf32>
    %14 = vector.shape_cast %13 : vector<1x24x4xf32> to vector<24x4xf32>
    %cst_14 = arith.constant dense<0.000000e+00> : vector<384x4xf32>
    %15 = tpu.matmul %12, %14, %cst_14 {dimension_numbers = #tpu.dot_dimension_numbers<[1], [0], [0], [1], [0, 0, 1, 1], [], []>} : vector<384x24xf32>, vector<24x4xf32>, vector<384x4xf32> -> vector<384x4xf32>
    %16 = arith.addf %10, %15 : vector<384x4xf32>
    %c0_15 = arith.constant 0 : index
    %c0_16 = arith.constant 0 : index
    %17 = vector.load %arg3[%c0_15, %c0_16] : memref<1x4xf32, #tpu.memory_space<vmem>>, vector<1x4xf32>
    %18 = vector.broadcast %17 : vector<1x4xf32> to vector<384x4xf32>
    %19 = arith.addf %16, %18 : vector<384x4xf32>
    %cst_17 = arith.constant 0.000000e+00 : f32
    %20 = vector.broadcast %cst_17 : f32 to vector<384x4xf32>
    %21 = arith.maximumf %19, %20 : vector<384x4xf32>
    %22 = tpu.iota {dimensions = array<i32: 0>} : vector<384x4xi32>
    %23 = arith.sitofp %22 : vector<384x4xi32> to vector<384x4xf32>
    %cst_18 = arith.constant 5.000000e-01 : f32
    %24 = vector.broadcast %cst_18 : f32 to vector<384x4xf32>
    %25 = arith.addf %23, %24 : vector<384x4xf32>
    %cst_19 = arith.constant 0.0416666679 : f32
    %26 = vector.broadcast %cst_19 : f32 to vector<384x4xf32>
    %27 = arith.mulf %25, %26 : vector<384x4xf32>
    %28 = math.floor %27 : vector<384x4xf32>
    %cst_20 = arith.constant 2.400000e+01 : f32
    %29 = vector.broadcast %cst_20 : f32 to vector<384x4xf32>
    %30 = arith.mulf %28, %29 : vector<384x4xf32>
    %31 = arith.subf %23, %30 : vector<384x4xf32>
    %cst_21 = arith.constant 1.550000e+01 : f32
    %32 = vector.broadcast %cst_21 : f32 to vector<384x4xf32>
    %33 = arith.cmpf olt, %31, %32 : vector<384x4xf32>
    %cst_22 = arith.constant 0.000000e+00 : f32
    %34 = vector.broadcast %cst_22 : f32 to vector<384x4xf32>
    %35 = arith.select %33, %21, %34 : vector<384x4xi1>, vector<384x4xf32>
    %cst_23 = arith.constant 0.000000e+00 : f32
    %36 = vector.broadcast %cst_23 : f32 to vector<25x4xf32>
    %c0_24 = arith.constant 0 : index
    %c0_25 = arith.constant 0 : index
    %c0_26 = arith.constant 0 : index
    %37 = vector.load %arg7[%c0_24, %c0_25, %c0_26] : memref<3x432x4xf32, #tpu.memory_space<vmem>>, vector<1x25x4xf32>
    %38 = vector.shape_cast %37 : vector<1x25x4xf32> to vector<25x4xf32>
    %39 = vector.shape_cast %36 : vector<25x4xf32> to vector<1x25x4xf32>
    tpu.vector_store %arg7[%c0_24, %c0_25, %c0_26], %39 {strides = array<i32>} : memref<3x432x4xf32, #tpu.memory_space<vmem>>, vector<1x25x4xf32>,
    %c0_27 = arith.constant 0 : index
    %c25 = arith.constant 25 : index
    %c0_28 = arith.constant 0 : index
    %40 = vector.load %arg7[%c0_27, %c25, %c0_28] : memref<3x432x4xf32, #tpu.memory_space<vmem>>, vector<1x384x4xf32>
    %41 = vector.shape_cast %40 : vector<1x384x4xf32> to vector<384x4xf32>
    %42 = vector.shape_cast %35 : vector<384x4xf32> to vector<1x384x4xf32>
    tpu.vector_store %arg7[%c0_27, %c25, %c0_28], %42 {strides = array<i32>} : memref<3x432x4xf32, #tpu.memory_space<vmem>>, vector<1x384x4xf32>,
    %cst_29 = arith.constant 0.000000e+00 : f32
    %43 = vector.broadcast %cst_29 : f32 to vector<23x4xf32>
    %c0_30 = arith.constant 0 : index
    %c409 = arith.constant 409 : index
    %c0_31 = arith.constant 0 : index
    %44 = vector.load %arg7[%c0_30, %c409, %c0_31] : memref<3x432x4xf32, #tpu.memory_space<vmem>>, vector<1x23x4xf32>
    %45 = vector.shape_cast %44 : vector<1x23x4xf32> to vector<23x4xf32>
    %46 = vector.shape_cast %43 : vector<23x4xf32> to vector<1x23x4xf32>
    tpu.vector_store %arg7[%c0_30, %c409, %c0_31], %46 {strides = array<i32>} : memref<3x432x4xf32, #tpu.memory_space<vmem>>, vector<1x23x4xf32>,
    %cst_32 = arith.constant 0.000000e+00 : f32
    %47 = vector.broadcast %cst_32 : f32 to vector<24x4xf32>
    %c1_33 = arith.constant 1 : index
    %c0_34 = arith.constant 0 : index
    %c0_35 = arith.constant 0 : index
    %48 = vector.load %arg7[%c1_33, %c0_34, %c0_35] : memref<3x432x4xf32, #tpu.memory_space<vmem>>, vector<1x24x4xf32>
    %49 = vector.shape_cast %48 : vector<1x24x4xf32> to vector<24x4xf32>
    %50 = vector.shape_cast %47 : vector<24x4xf32> to vector<1x24x4xf32>
    tpu.vector_store %arg7[%c1_33, %c0_34, %c0_35], %50 {strides = array<i32>} : memref<3x432x4xf32, #tpu.memory_space<vmem>>, vector<1x24x4xf32>,
    %c1_36 = arith.constant 1 : index
    %c24_37 = arith.constant 24 : index
    %c0_38 = arith.constant 0 : index
    %51 = vector.load %arg7[%c1_36, %c24_37, %c0_38] : memref<3x432x4xf32, #tpu.memory_space<vmem>>, vector<1x384x4xf32>
    %52 = vector.shape_cast %51 : vector<1x384x4xf32> to vector<384x4xf32>
    %53 = vector.shape_cast %35 : vector<384x4xf32> to vector<1x384x4xf32>
    tpu.vector_store %arg7[%c1_36, %c24_37, %c0_38], %53 {strides = array<i32>} : memref<3x432x4xf32, #tpu.memory_space<vmem>>, vector<1x384x4xf32>,
    %cst_39 = arith.constant 0.000000e+00 : f32
    %54 = vector.broadcast %cst_39 : f32 to vector<24x4xf32>
    %c1_40 = arith.constant 1 : index
    %c408 = arith.constant 408 : index
    %c0_41 = arith.constant 0 : index
    %55 = vector.load %arg7[%c1_40, %c408, %c0_41] : memref<3x432x4xf32, #tpu.memory_space<vmem>>, vector<1x24x4xf32>
    %56 = vector.shape_cast %55 : vector<1x24x4xf32> to vector<24x4xf32>
    %57 = vector.shape_cast %54 : vector<24x4xf32> to vector<1x24x4xf32>
    tpu.vector_store %arg7[%c1_40, %c408, %c0_41], %57 {strides = array<i32>} : memref<3x432x4xf32, #tpu.memory_space<vmem>>, vector<1x24x4xf32>,
    %cst_42 = arith.constant 0.000000e+00 : f32
    %58 = vector.broadcast %cst_42 : f32 to vector<23x4xf32>
    %c2_43 = arith.constant 2 : index
    %c0_44 = arith.constant 0 : index
    %c0_45 = arith.constant 0 : index
    %59 = vector.load %arg7[%c2_43, %c0_44, %c0_45] : memref<3x432x4xf32, #tpu.memory_space<vmem>>, vector<1x23x4xf32>
    %60 = vector.shape_cast %59 : vector<1x23x4xf32> to vector<23x4xf32>
    %61 = vector.shape_cast %58 : vector<23x4xf32> to vector<1x23x4xf32>
    tpu.vector_store %arg7[%c2_43, %c0_44, %c0_45], %61 {strides = array<i32>} : memref<3x432x4xf32, #tpu.memory_space<vmem>>, vector<1x23x4xf32>,
    %c2_46 = arith.constant 2 : index
    %c23 = arith.constant 23 : index
    %c0_47 = arith.constant 0 : index
    %62 = vector.load %arg7[%c2_46, %c23, %c0_47] : memref<3x432x4xf32, #tpu.memory_space<vmem>>, vector<1x384x4xf32>
    %63 = vector.shape_cast %62 : vector<1x384x4xf32> to vector<384x4xf32>
    %64 = vector.shape_cast %35 : vector<384x4xf32> to vector<1x384x4xf32>
    tpu.vector_store %arg7[%c2_46, %c23, %c0_47], %64 {strides = array<i32>} : memref<3x432x4xf32, #tpu.memory_space<vmem>>, vector<1x384x4xf32>,
    %cst_48 = arith.constant 0.000000e+00 : f32
    %65 = vector.broadcast %cst_48 : f32 to vector<25x4xf32>
    %c2_49 = arith.constant 2 : index
    %c407 = arith.constant 407 : index
    %c0_50 = arith.constant 0 : index
    %66 = vector.load %arg7[%c2_49, %c407, %c0_50] : memref<3x432x4xf32, #tpu.memory_space<vmem>>, vector<1x25x4xf32>
    %67 = vector.shape_cast %66 : vector<1x25x4xf32> to vector<25x4xf32>
    %68 = vector.shape_cast %65 : vector<25x4xf32> to vector<1x25x4xf32>
    tpu.vector_store %arg7[%c2_49, %c407, %c0_50], %68 {strides = array<i32>} : memref<3x432x4xf32, #tpu.memory_space<vmem>>, vector<1x25x4xf32>,
    %c0_51 = arith.constant 0 : index
    %c0_52 = arith.constant 0 : index
    %c0_53 = arith.constant 0 : index
    %69 = vector.load %arg7[%c0_51, %c0_52, %c0_53] : memref<3x432x4xf32, #tpu.memory_space<vmem>>, vector<1x384x4xf32>
    %70 = vector.shape_cast %69 : vector<1x384x4xf32> to vector<384x4xf32>
    %c0_54 = arith.constant 0 : index
    %c0_55 = arith.constant 0 : index
    %c0_56 = arith.constant 0 : index
    %71 = vector.load %arg4[%c0_54, %c0_55, %c0_56] : memref<9x4x4xf32, #tpu.memory_space<vmem>>, vector<1x4x4xf32>
    %72 = vector.shape_cast %71 : vector<1x4x4xf32> to vector<4x4xf32>
    %cst_57 = arith.constant dense<0.000000e+00> : vector<384x4xf32>
    %73 = tpu.matmul %70, %72, %cst_57 {dimension_numbers = #tpu.dot_dimension_numbers<[1], [0], [0], [1], [0, 0, 1, 1], [], []>} : vector<384x4xf32>, vector<4x4xf32>, vector<384x4xf32> -> vector<384x4xf32>
    %c1_58 = arith.constant 1 : index
    %c0_59 = arith.constant 0 : index
    %c0_60 = arith.constant 0 : index
    %74 = vector.load %arg7[%c1_58, %c0_59, %c0_60] : memref<3x432x4xf32, #tpu.memory_space<vmem>>, vector<1x384x4xf32>
    %75 = vector.shape_cast %74 : vector<1x384x4xf32> to vector<384x4xf32>
    %c1_61 = arith.constant 1 : index
    %c0_62 = arith.constant 0 : index
    %c0_63 = arith.constant 0 : index
    %76 = vector.load %arg4[%c1_61, %c0_62, %c0_63] : memref<9x4x4xf32, #tpu.memory_space<vmem>>, vector<1x4x4xf32>
    %77 = vector.shape_cast %76 : vector<1x4x4xf32> to vector<4x4xf32>
    %cst_64 = arith.constant dense<0.000000e+00> : vector<384x4xf32>
    %78 = tpu.matmul %75, %77, %cst_64 {dimension_numbers = #tpu.dot_dimension_numbers<[1], [0], [0], [1], [0, 0, 1, 1], [], []>} : vector<384x4xf32>, vector<4x4xf32>, vector<384x4xf32> -> vector<384x4xf32>
    %79 = arith.addf %73, %78 : vector<384x4xf32>
    %c2_65 = arith.constant 2 : index
    %c0_66 = arith.constant 0 : index
    %c0_67 = arith.constant 0 : index
    %80 = vector.load %arg7[%c2_65, %c0_66, %c0_67] : memref<3x432x4xf32, #tpu.memory_space<vmem>>, vector<1x384x4xf32>
    %81 = vector.shape_cast %80 : vector<1x384x4xf32> to vector<384x4xf32>
    %c2_68 = arith.constant 2 : index
    %c0_69 = arith.constant 0 : index
    %c0_70 = arith.constant 0 : index
    %82 = vector.load %arg4[%c2_68, %c0_69, %c0_70] : memref<9x4x4xf32, #tpu.memory_space<vmem>>, vector<1x4x4xf32>
    %83 = vector.shape_cast %82 : vector<1x4x4xf32> to vector<4x4xf32>
    %cst_71 = arith.constant dense<0.000000e+00> : vector<384x4xf32>
    %84 = tpu.matmul %81, %83, %cst_71 {dimension_numbers = #tpu.dot_dimension_numbers<[1], [0], [0], [1], [0, 0, 1, 1], [], []>} : vector<384x4xf32>, vector<4x4xf32>, vector<384x4xf32> -> vector<384x4xf32>
    %85 = arith.addf %79, %84 : vector<384x4xf32>
    %c0_72 = arith.constant 0 : index
    %c24_73 = arith.constant 24 : index
    %c0_74 = arith.constant 0 : index
    %86 = vector.load %arg7[%c0_72, %c24_73, %c0_74] : memref<3x432x4xf32, #tpu.memory_space<vmem>>, vector<1x384x4xf32>
    %87 = vector.shape_cast %86 : vector<1x384x4xf32> to vector<384x4xf32>
    %c3 = arith.constant 3 : index
    %c0_75 = arith.constant 0 : index
    %c0_76 = arith.constant 0 : index
    %88 = vector.load %arg4[%c3, %c0_75, %c0_76] : memref<9x4x4xf32, #tpu.memory_space<vmem>>, vector<1x4x4xf32>
    %89 = vector.shape_cast %88 : vector<1x4x4xf32> to vector<4x4xf32>
    %cst_77 = arith.constant dense<0.000000e+00> : vector<384x4xf32>
    %90 = tpu.matmul %87, %89, %cst_77 {dimension_numbers = #tpu.dot_dimension_numbers<[1], [0], [0], [1], [0, 0, 1, 1], [], []>} : vector<384x4xf32>, vector<4x4xf32>, vector<384x4xf32> -> vector<384x4xf32>
    %91 = arith.addf %85, %90 : vector<384x4xf32>
    %c1_78 = arith.constant 1 : index
    %c24_79 = arith.constant 24 : index
    %c0_80 = arith.constant 0 : index
    %92 = vector.load %arg7[%c1_78, %c24_79, %c0_80] : memref<3x432x4xf32, #tpu.memory_space<vmem>>, vector<1x384x4xf32>
    %93 = vector.shape_cast %92 : vector<1x384x4xf32> to vector<384x4xf32>
    %c4 = arith.constant 4 : index
    %c0_81 = arith.constant 0 : index
    %c0_82 = arith.constant 0 : index
    %94 = vector.load %arg4[%c4, %c0_81, %c0_82] : memref<9x4x4xf32, #tpu.memory_space<vmem>>, vector<1x4x4xf32>
    %95 = vector.shape_cast %94 : vector<1x4x4xf32> to vector<4x4xf32>
    %cst_83 = arith.constant dense<0.000000e+00> : vector<384x4xf32>
    %96 = tpu.matmul %93, %95, %cst_83 {dimension_numbers = #tpu.dot_dimension_numbers<[1], [0], [0], [1], [0, 0, 1, 1], [], []>} : vector<384x4xf32>, vector<4x4xf32>, vector<384x4xf32> -> vector<384x4xf32>
    %97 = arith.addf %91, %96 : vector<384x4xf32>
    %c2_84 = arith.constant 2 : index
    %c24_85 = arith.constant 24 : index
    %c0_86 = arith.constant 0 : index
    %98 = vector.load %arg7[%c2_84, %c24_85, %c0_86] : memref<3x432x4xf32, #tpu.memory_space<vmem>>, vector<1x384x4xf32>
    %99 = vector.shape_cast %98 : vector<1x384x4xf32> to vector<384x4xf32>
    %c5 = arith.constant 5 : index
    %c0_87 = arith.constant 0 : index
    %c0_88 = arith.constant 0 : index
    %100 = vector.load %arg4[%c5, %c0_87, %c0_88] : memref<9x4x4xf32, #tpu.memory_space<vmem>>, vector<1x4x4xf32>
    %101 = vector.shape_cast %100 : vector<1x4x4xf32> to vector<4x4xf32>
    %cst_89 = arith.constant dense<0.000000e+00> : vector<384x4xf32>
    %102 = tpu.matmul %99, %101, %cst_89 {dimension_numbers = #tpu.dot_dimension_numbers<[1], [0], [0], [1], [0, 0, 1, 1], [], []>} : vector<384x4xf32>, vector<4x4xf32>, vector<384x4xf32> -> vector<384x4xf32>
    %103 = arith.addf %97, %102 : vector<384x4xf32>
    %c0_90 = arith.constant 0 : index
    %c48_91 = arith.constant 48 : index
    %c0_92 = arith.constant 0 : index
    %104 = vector.load %arg7[%c0_90, %c48_91, %c0_92] : memref<3x432x4xf32, #tpu.memory_space<vmem>>, vector<1x384x4xf32>
    %105 = vector.shape_cast %104 : vector<1x384x4xf32> to vector<384x4xf32>
    %c6 = arith.constant 6 : index
    %c0_93 = arith.constant 0 : index
    %c0_94 = arith.constant 0 : index
    %106 = vector.load %arg4[%c6, %c0_93, %c0_94] : memref<9x4x4xf32, #tpu.memory_space<vmem>>, vector<1x4x4xf32>
    %107 = vector.shape_cast %106 : vector<1x4x4xf32> to vector<4x4xf32>
    %cst_95 = arith.constant dense<0.000000e+00> : vector<384x4xf32>
    %108 = tpu.matmul %105, %107, %cst_95 {dimension_numbers = #tpu.dot_dimension_numbers<[1], [0], [0], [1], [0, 0, 1, 1], [], []>} : vector<384x4xf32>, vector<4x4xf32>, vector<384x4xf32> -> vector<384x4xf32>
    %109 = arith.addf %103, %108 : vector<384x4xf32>
    %c1_96 = arith.constant 1 : index
    %c48_97 = arith.constant 48 : index
    %c0_98 = arith.constant 0 : index
    %110 = vector.load %arg7[%c1_96, %c48_97, %c0_98] : memref<3x432x4xf32, #tpu.memory_space<vmem>>, vector<1x384x4xf32>
    %111 = vector.shape_cast %110 : vector<1x384x4xf32> to vector<384x4xf32>
    %c7 = arith.constant 7 : index
    %c0_99 = arith.constant 0 : index
    %c0_100 = arith.constant 0 : index
    %112 = vector.load %arg4[%c7, %c0_99, %c0_100] : memref<9x4x4xf32, #tpu.memory_space<vmem>>, vector<1x4x4xf32>
    %113 = vector.shape_cast %112 : vector<1x4x4xf32> to vector<4x4xf32>
    %cst_101 = arith.constant dense<0.000000e+00> : vector<384x4xf32>
    %114 = tpu.matmul %111, %113, %cst_101 {dimension_numbers = #tpu.dot_dimension_numbers<[1], [0], [0], [1], [0, 0, 1, 1], [], []>} : vector<384x4xf32>, vector<4x4xf32>, vector<384x4xf32> -> vector<384x4xf32>
    %115 = arith.addf %109, %114 : vector<384x4xf32>
    %c2_102 = arith.constant 2 : index
    %c48_103 = arith.constant 48 : index
    %c0_104 = arith.constant 0 : index
    %116 = vector.load %arg7[%c2_102, %c48_103, %c0_104] : memref<3x432x4xf32, #tpu.memory_space<vmem>>, vector<1x384x4xf32>
    %117 = vector.shape_cast %116 : vector<1x384x4xf32> to vector<384x4xf32>
    %c8 = arith.constant 8 : index
    %c0_105 = arith.constant 0 : index
    %c0_106 = arith.constant 0 : index
    %118 = vector.load %arg4[%c8, %c0_105, %c0_106] : memref<9x4x4xf32, #tpu.memory_space<vmem>>, vector<1x4x4xf32>
    %119 = vector.shape_cast %118 : vector<1x4x4xf32> to vector<4x4xf32>
    %cst_107 = arith.constant dense<0.000000e+00> : vector<384x4xf32>
    %120 = tpu.matmul %117, %119, %cst_107 {dimension_numbers = #tpu.dot_dimension_numbers<[1], [0], [0], [1], [0, 0, 1, 1], [], []>} : vector<384x4xf32>, vector<4x4xf32>, vector<384x4xf32> -> vector<384x4xf32>
    %121 = arith.addf %115, %120 : vector<384x4xf32>
    %c0_108 = arith.constant 0 : index
    %c0_109 = arith.constant 0 : index
    %122 = vector.load %arg5[%c0_108, %c0_109] : memref<1x4xf32, #tpu.memory_space<vmem>>, vector<1x4xf32>
    %123 = vector.broadcast %122 : vector<1x4xf32> to vector<384x4xf32>
    %124 = arith.addf %121, %123 : vector<384x4xf32>
    %cst_110 = arith.constant 0.000000e+00 : f32
    %125 = vector.broadcast %cst_110 : f32 to vector<384x4xf32>
    %126 = arith.maximumf %124, %125 : vector<384x4xf32>
    %127 = vector.extract_strided_slice %126 {offsets = [0, 0], sizes = [16, 4], strides = [1, 1]} : vector<384x4xf32> to vector<16x4xf32>
    %c0_111 = arith.constant 0 : index
    %c0_112 = arith.constant 0 : index
    %c0_113 = arith.constant 0 : index
    %128 = vector.load %arg6[%c0_111, %c0_112, %c0_113] : memref<1x256x4xf32, #tpu.memory_space<vmem>>, vector<1x16x4xf32>
    %129 = vector.shape_cast %128 : vector<1x16x4xf32> to vector<16x4xf32>
    %130 = vector.shape_cast %127 : vector<16x4xf32> to vector<1x16x4xf32>
    tpu.vector_store %arg6[%c0_111, %c0_112, %c0_113], %130 {strides = array<i32>} : memref<1x256x4xf32, #tpu.memory_space<vmem>>, vector<1x16x4xf32>,
    %131 = vector.extract_strided_slice %126 {offsets = [24, 0], sizes = [16, 4], strides = [1, 1]} : vector<384x4xf32> to vector<16x4xf32>
    %c0_114 = arith.constant 0 : index
    %c16 = arith.constant 16 : index
    %c0_115 = arith.constant 0 : index
    %132 = vector.load %arg6[%c0_114, %c16, %c0_115] : memref<1x256x4xf32, #tpu.memory_space<vmem>>, vector<1x16x4xf32>
    %133 = vector.shape_cast %132 : vector<1x16x4xf32> to vector<16x4xf32>
    %134 = vector.shape_cast %131 : vector<16x4xf32> to vector<1x16x4xf32>
    tpu.vector_store %arg6[%c0_114, %c16, %c0_115], %134 {strides = array<i32>} : memref<1x256x4xf32, #tpu.memory_space<vmem>>, vector<1x16x4xf32>,
    %135 = vector.extract_strided_slice %126 {offsets = [48, 0], sizes = [16, 4], strides = [1, 1]} : vector<384x4xf32> to vector<16x4xf32>
    %c0_116 = arith.constant 0 : index
    %c32 = arith.constant 32 : index
    %c0_117 = arith.constant 0 : index
    %136 = vector.load %arg6[%c0_116, %c32, %c0_117] : memref<1x256x4xf32, #tpu.memory_space<vmem>>, vector<1x16x4xf32>
    %137 = vector.shape_cast %136 : vector<1x16x4xf32> to vector<16x4xf32>
    %138 = vector.shape_cast %135 : vector<16x4xf32> to vector<1x16x4xf32>
    tpu.vector_store %arg6[%c0_116, %c32, %c0_117], %138 {strides = array<i32>} : memref<1x256x4xf32, #tpu.memory_space<vmem>>, vector<1x16x4xf32>,
    %139 = vector.extract_strided_slice %126 {offsets = [72, 0], sizes = [16, 4], strides = [1, 1]} : vector<384x4xf32> to vector<16x4xf32>
    %c0_118 = arith.constant 0 : index
    %c48_119 = arith.constant 48 : index
    %c0_120 = arith.constant 0 : index
    %140 = vector.load %arg6[%c0_118, %c48_119, %c0_120] : memref<1x256x4xf32, #tpu.memory_space<vmem>>, vector<1x16x4xf32>
    %141 = vector.shape_cast %140 : vector<1x16x4xf32> to vector<16x4xf32>
    %142 = vector.shape_cast %139 : vector<16x4xf32> to vector<1x16x4xf32>
    tpu.vector_store %arg6[%c0_118, %c48_119, %c0_120], %142 {strides = array<i32>} : memref<1x256x4xf32, #tpu.memory_space<vmem>>, vector<1x16x4xf32>,
    %143 = vector.extract_strided_slice %126 {offsets = [96, 0], sizes = [16, 4], strides = [1, 1]} : vector<384x4xf32> to vector<16x4xf32>
    %c0_121 = arith.constant 0 : index
    %c64 = arith.constant 64 : index
    %c0_122 = arith.constant 0 : index
    %144 = vector.load %arg6[%c0_121, %c64, %c0_122] : memref<1x256x4xf32, #tpu.memory_space<vmem>>, vector<1x16x4xf32>
    %145 = vector.shape_cast %144 : vector<1x16x4xf32> to vector<16x4xf32>
    %146 = vector.shape_cast %143 : vector<16x4xf32> to vector<1x16x4xf32>
    tpu.vector_store %arg6[%c0_121, %c64, %c0_122], %146 {strides = array<i32>} : memref<1x256x4xf32, #tpu.memory_space<vmem>>, vector<1x16x4xf32>,
    %147 = vector.extract_strided_slice %126 {offsets = [120, 0], sizes = [16, 4], strides = [1, 1]} : vector<384x4xf32> to vector<16x4xf32>
    %c0_123 = arith.constant 0 : index
    %c80 = arith.constant 80 : index
    %c0_124 = arith.constant 0 : index
    %148 = vector.load %arg6[%c0_123, %c80, %c0_124] : memref<1x256x4xf32, #tpu.memory_space<vmem>>, vector<1x16x4xf32>
    %149 = vector.shape_cast %148 : vector<1x16x4xf32> to vector<16x4xf32>
    %150 = vector.shape_cast %147 : vector<16x4xf32> to vector<1x16x4xf32>
    tpu.vector_store %arg6[%c0_123, %c80, %c0_124], %150 {strides = array<i32>} : memref<1x256x4xf32, #tpu.memory_space<vmem>>, vector<1x16x4xf32>,
    %151 = vector.extract_strided_slice %126 {offsets = [144, 0], sizes = [16, 4], strides = [1, 1]} : vector<384x4xf32> to vector<16x4xf32>
    %c0_125 = arith.constant 0 : index
    %c96 = arith.constant 96 : index
    %c0_126 = arith.constant 0 : index
    %152 = vector.load %arg6[%c0_125, %c96, %c0_126] : memref<1x256x4xf32, #tpu.memory_space<vmem>>, vector<1x16x4xf32>
    %153 = vector.shape_cast %152 : vector<1x16x4xf32> to vector<16x4xf32>
    %154 = vector.shape_cast %151 : vector<16x4xf32> to vector<1x16x4xf32>
    tpu.vector_store %arg6[%c0_125, %c96, %c0_126], %154 {strides = array<i32>} : memref<1x256x4xf32, #tpu.memory_space<vmem>>, vector<1x16x4xf32>,
    %155 = vector.extract_strided_slice %126 {offsets = [168, 0], sizes = [16, 4], strides = [1, 1]} : vector<384x4xf32> to vector<16x4xf32>
    %c0_127 = arith.constant 0 : index
    %c112 = arith.constant 112 : index
    %c0_128 = arith.constant 0 : index
    %156 = vector.load %arg6[%c0_127, %c112, %c0_128] : memref<1x256x4xf32, #tpu.memory_space<vmem>>, vector<1x16x4xf32>
    %157 = vector.shape_cast %156 : vector<1x16x4xf32> to vector<16x4xf32>
    %158 = vector.shape_cast %155 : vector<16x4xf32> to vector<1x16x4xf32>
    tpu.vector_store %arg6[%c0_127, %c112, %c0_128], %158 {strides = array<i32>} : memref<1x256x4xf32, #tpu.memory_space<vmem>>, vector<1x16x4xf32>,
    %159 = vector.extract_strided_slice %126 {offsets = [192, 0], sizes = [16, 4], strides = [1, 1]} : vector<384x4xf32> to vector<16x4xf32>
    %c0_129 = arith.constant 0 : index
    %c128 = arith.constant 128 : index
    %c0_130 = arith.constant 0 : index
    %160 = vector.load %arg6[%c0_129, %c128, %c0_130] : memref<1x256x4xf32, #tpu.memory_space<vmem>>, vector<1x16x4xf32>
    %161 = vector.shape_cast %160 : vector<1x16x4xf32> to vector<16x4xf32>
    %162 = vector.shape_cast %159 : vector<16x4xf32> to vector<1x16x4xf32>
    tpu.vector_store %arg6[%c0_129, %c128, %c0_130], %162 {strides = array<i32>} : memref<1x256x4xf32, #tpu.memory_space<vmem>>, vector<1x16x4xf32>,
    %163 = vector.extract_strided_slice %126 {offsets = [216, 0], sizes = [16, 4], strides = [1, 1]} : vector<384x4xf32> to vector<16x4xf32>
    %c0_131 = arith.constant 0 : index
    %c144 = arith.constant 144 : index
    %c0_132 = arith.constant 0 : index
    %164 = vector.load %arg6[%c0_131, %c144, %c0_132] : memref<1x256x4xf32, #tpu.memory_space<vmem>>, vector<1x16x4xf32>
    %165 = vector.shape_cast %164 : vector<1x16x4xf32> to vector<16x4xf32>
    %166 = vector.shape_cast %163 : vector<16x4xf32> to vector<1x16x4xf32>
    tpu.vector_store %arg6[%c0_131, %c144, %c0_132], %166 {strides = array<i32>} : memref<1x256x4xf32, #tpu.memory_space<vmem>>, vector<1x16x4xf32>,
    %167 = vector.extract_strided_slice %126 {offsets = [240, 0], sizes = [16, 4], strides = [1, 1]} : vector<384x4xf32> to vector<16x4xf32>
    %c0_133 = arith.constant 0 : index
    %c160 = arith.constant 160 : index
    %c0_134 = arith.constant 0 : index
    %168 = vector.load %arg6[%c0_133, %c160, %c0_134] : memref<1x256x4xf32, #tpu.memory_space<vmem>>, vector<1x16x4xf32>
    %169 = vector.shape_cast %168 : vector<1x16x4xf32> to vector<16x4xf32>
    %170 = vector.shape_cast %167 : vector<16x4xf32> to vector<1x16x4xf32>
    tpu.vector_store %arg6[%c0_133, %c160, %c0_134], %170 {strides = array<i32>} : memref<1x256x4xf32, #tpu.memory_space<vmem>>, vector<1x16x4xf32>,
    %171 = vector.extract_strided_slice %126 {offsets = [264, 0], sizes = [16, 4], strides = [1, 1]} : vector<384x4xf32> to vector<16x4xf32>
    %c0_135 = arith.constant 0 : index
    %c176 = arith.constant 176 : index
    %c0_136 = arith.constant 0 : index
    %172 = vector.load %arg6[%c0_135, %c176, %c0_136] : memref<1x256x4xf32, #tpu.memory_space<vmem>>, vector<1x16x4xf32>
    %173 = vector.shape_cast %172 : vector<1x16x4xf32> to vector<16x4xf32>
    %174 = vector.shape_cast %171 : vector<16x4xf32> to vector<1x16x4xf32>
    tpu.vector_store %arg6[%c0_135, %c176, %c0_136], %174 {strides = array<i32>} : memref<1x256x4xf32, #tpu.memory_space<vmem>>, vector<1x16x4xf32>,
    %175 = vector.extract_strided_slice %126 {offsets = [288, 0], sizes = [16, 4], strides = [1, 1]} : vector<384x4xf32> to vector<16x4xf32>
    %c0_137 = arith.constant 0 : index
    %c192 = arith.constant 192 : index
    %c0_138 = arith.constant 0 : index
    %176 = vector.load %arg6[%c0_137, %c192, %c0_138] : memref<1x256x4xf32, #tpu.memory_space<vmem>>, vector<1x16x4xf32>
    %177 = vector.shape_cast %176 : vector<1x16x4xf32> to vector<16x4xf32>
    %178 = vector.shape_cast %175 : vector<16x4xf32> to vector<1x16x4xf32>
    tpu.vector_store %arg6[%c0_137, %c192, %c0_138], %178 {strides = array<i32>} : memref<1x256x4xf32, #tpu.memory_space<vmem>>, vector<1x16x4xf32>,
    %179 = vector.extract_strided_slice %126 {offsets = [312, 0], sizes = [16, 4], strides = [1, 1]} : vector<384x4xf32> to vector<16x4xf32>
    %c0_139 = arith.constant 0 : index
    %c208 = arith.constant 208 : index
    %c0_140 = arith.constant 0 : index
    %180 = vector.load %arg6[%c0_139, %c208, %c0_140] : memref<1x256x4xf32, #tpu.memory_space<vmem>>, vector<1x16x4xf32>
    %181 = vector.shape_cast %180 : vector<1x16x4xf32> to vector<16x4xf32>
    %182 = vector.shape_cast %179 : vector<16x4xf32> to vector<1x16x4xf32>
    tpu.vector_store %arg6[%c0_139, %c208, %c0_140], %182 {strides = array<i32>} : memref<1x256x4xf32, #tpu.memory_space<vmem>>, vector<1x16x4xf32>,
    %183 = vector.extract_strided_slice %126 {offsets = [336, 0], sizes = [16, 4], strides = [1, 1]} : vector<384x4xf32> to vector<16x4xf32>
    %c0_141 = arith.constant 0 : index
    %c224 = arith.constant 224 : index
    %c0_142 = arith.constant 0 : index
    %184 = vector.load %arg6[%c0_141, %c224, %c0_142] : memref<1x256x4xf32, #tpu.memory_space<vmem>>, vector<1x16x4xf32>
    %185 = vector.shape_cast %184 : vector<1x16x4xf32> to vector<16x4xf32>
    %186 = vector.shape_cast %183 : vector<16x4xf32> to vector<1x16x4xf32>
    tpu.vector_store %arg6[%c0_141, %c224, %c0_142], %186 {strides = array<i32>} : memref<1x256x4xf32, #tpu.memory_space<vmem>>, vector<1x16x4xf32>,
    %187 = vector.extract_strided_slice %126 {offsets = [360, 0], sizes = [16, 4], strides = [1, 1]} : vector<384x4xf32> to vector<16x4xf32>
    %c0_143 = arith.constant 0 : index
    %c240 = arith.constant 240 : index
    %c0_144 = arith.constant 0 : index
    %188 = vector.load %arg6[%c0_143, %c240, %c0_144] : memref<1x256x4xf32, #tpu.memory_space<vmem>>, vector<1x16x4xf32>
    %189 = vector.shape_cast %188 : vector<1x16x4xf32> to vector<16x4xf32>
    %190 = vector.shape_cast %187 : vector<16x4xf32> to vector<1x16x4xf32>
    tpu.vector_store %arg6[%c0_143, %c240, %c0_144], %190 {strides = array<i32>} : memref<1x256x4xf32, #tpu.memory_space<vmem>>, vector<1x16x4xf32>,
    return
  }
  func.func @transform_0(%arg0: i32) -> (i32, i32, i32) {
    %c0_i32 = arith.constant 0 : i32
    %c0_i32_0 = arith.constant 0 : i32
    %c0_i32_1 = arith.constant 0 : i32
    return %arg0, %c0_i32, %c0_i32_0 : i32, i32, i32
  }
  func.func @transform_1(%arg0: i32) -> (i32, i32, i32) {
    %c0_i32 = arith.constant 0 : i32
    %c0_i32_0 = arith.constant 0 : i32
    %c0_i32_1 = arith.constant 0 : i32
    %c0_i32_2 = arith.constant 0 : i32
    return %c0_i32, %c0_i32_0, %c0_i32_1 : i32, i32, i32
  }
  func.func @transform_2(%arg0: i32) -> (i32, i32) {
    %c0_i32 = arith.constant 0 : i32
    %c0_i32_0 = arith.constant 0 : i32
    %c0_i32_1 = arith.constant 0 : i32
    return %c0_i32, %c0_i32_0 : i32, i32
  }
  func.func @transform_3(%arg0: i32) -> (i32, i32, i32) {
    %c0_i32 = arith.constant 0 : i32
    %c0_i32_0 = arith.constant 0 : i32
    %c0_i32_1 = arith.constant 0 : i32
    %c0_i32_2 = arith.constant 0 : i32
    return %c0_i32, %c0_i32_0, %c0_i32_1 : i32, i32, i32
  }
  func.func @transform_4(%arg0: i32) -> (i32, i32) {
    %c0_i32 = arith.constant 0 : i32
    %c0_i32_0 = arith.constant 0 : i32
    %c0_i32_1 = arith.constant 0 : i32
    return %c0_i32, %c0_i32_0 : i32, i32
  }
  func.func @transform_5(%arg0: i32) -> (i32, i32, i32) {
    %c0_i32 = arith.constant 0 : i32
    %c0_i32_0 = arith.constant 0 : i32
    %c0_i32_1 = arith.constant 0 : i32
    return %arg0, %c0_i32, %c0_i32_0 : i32, i32, i32
  }
}

</mosaic_0001>

<llo_original>
// kernel: tpu_custom_call.1
$region0: #{tpu_custom_call.1}
  #allocation0 [shape = 'u32[]', space=smem, size = 0x4, offset = 0x4, fixed_abs, tag = 'smem constant byte address 0x4 - core index']
  #allocation1 [shape = 'u32[144,128]{1,0:T(1,128)}', space=vmem, size = 0x12000, scoped, tag = 'internal scratch']
  #allocation2 [shape = 'f32[3,432,4]{2,1,0:T(8,128)}', space=vmem, size = 0xa2000, scoped, tag = 'scratch operand']
  %s0 = inlined_call_operand.vmem [shape: f32[2,432,24], index: 0, kind: input, shape index: {}]
  %s1 = inlined_call_operand.vmem [shape: f32[3,24,4], index: 1, kind: input, shape index: {}]
  %s2 = inlined_call_operand.vmem [shape: f32[1,4], index: 2, kind: input, shape index: {}]
  %s3 = inlined_call_operand.vmem [shape: f32[9,4,4], index: 3, kind: input, shape index: {}]
  %s4 = inlined_call_operand.vmem [shape: f32[1,4], index: 4, kind: input, shape index: {}]
  %s5 = inlined_call_operand.vmem [shape: f32[2,256,4], index: 5, kind: output, shape index: {}]
  %s6 = sld [smem:[#allocation0]]
  $region53: #{tpu_custom_call.1} parent=0
    _
  %s8 = ssub.s32 1, %s6
  %s9 = scalar_select 0, %s8, %s6
  loop: start=0, step=1, limit=4
  $region2: #{tpu_custom_call.1} parent=0 // loop_pre_header
    _
  $region3: #{tpu_custom_call.1} parent=0 // loop_header
    %s11 = sphi 0, %s15
    %p12 = scmp.ge.s32.totalorder %s11, 4
    %s21 = sphi 0, %s23
    %s24 = sphi 0, %s21
    %s25 = sphi 0, %s24
    %s41 = sphi 0, %s25
    %s45 = sphi 0, %s45
    %s47 = sphi 0, %s45
    %s48 = sphi 0, %s47
    %s62 = sphi 0, %s48
    %s66 = sphi 0, %s66
    %s68 = sphi 0, %s66
    %s69 = sphi 0, %s68
    %s83 = sphi 0, %s69
    %s87 = sphi 0, %s87
    %s89 = sphi 0, %s87
    %s90 = sphi 0, %s89
    %s104 = sphi 0, %s90
    %s108 = sphi 0, %s108
    %s110 = sphi 0, %s108
    %s111 = sphi 0, %s110
    %s125 = sphi 0, %s111
    %s131 = sphi 0, %s133
    %s134 = sphi 0, %s131
    %s135 = sphi 0, %s134
    %s151 = sphi 0, %s135
  $region4: #{tpu_custom_call.1} parent=0 // loop_header_branch
    %14 = sbr.rel (%p12) target = $region8
  $region5: #{tpu_custom_call.1} parent=0 // loop_body
    %s16 = ssub.s32 %s11, 1
    %s17 = ssub.s32 %s11, 2
    %s18 = sadd.s32 %s11, 1
    %s19 = ssub.s32 %s11, %s18
    %p20 = scmp.eq.s32.totalorder %s19, 0
    %s22 = sadd.s32 %s21, 1
    %s23 = scalar_select %p20, %s21, %s22
    %p26 = pneg %p20
    %p27 = scmp.eq.s32.totalorder %s11, 1
    %p28 = por %p26, %p27
    %p29 = scmp.ne.s32.totalorder %s21, %s24
    %p30 = scmp.eq.s32.totalorder %s11, 0
    %p31 = por %p29, %p30
    %p32 = scmp.ne.s32.totalorder %s21, %s24
    %p33 = scmp.eq.s32.totalorder %s16, 1
    %p34 = por %p32, %p33
    %p35 = scmp.ne.s32.totalorder %s24, %s25
    %p36 = scmp.eq.s32.totalorder %s16, 0
    %p37 = por %p35, %p36
    %p38 = scmp.ne.s32.totalorder %s24, %s25
    %p39 = scmp.eq.s32.totalorder %s17, 1
    %p40 = por %p38, %p39
    %p42 = scmp.ne.s32.totalorder %s25, %s41
    %p43 = scmp.eq.s32.totalorder %s17, 0
    %p44 = por %p42, %p43
    %s46 = sadd.s32 %s45, 1
    %p49 = scmp.eq.s32.totalorder %s11, 1
    %p50 = scmp.ne.s32.totalorder %s45, %s47
    %p51 = scmp.eq.s32.totalorder %s11, 0
    %p52 = por %p50, %p51
    %p53 = scmp.ne.s32.totalorder %s45, %s47
    %p54 = scmp.eq.s32.totalorder %s16, 1
    %p55 = por %p53, %p54
    %p56 = scmp.ne.s32.totalorder %s47, %s48
    %p57 = scmp.eq.s32.totalorder %s16, 0
    %p58 = por %p56, %p57
    %p59 = scmp.ne.s32.totalorder %s47, %s48
    %p60 = scmp.eq.s32.totalorder %s17, 1
    %p61 = por %p59, %p60
    %p63 = scmp.ne.s32.totalorder %s48, %s62
    %p64 = scmp.eq.s32.totalorder %s17, 0
    %p65 = por %p63, %p64
    %s67 = sadd.s32 %s66, 1
    %p70 = scmp.eq.s32.totalorder %s11, 1
    %p71 = scmp.ne.s32.totalorder %s66, %s68
    %p72 = scmp.eq.s32.totalorder %s11, 0
    %p73 = por %p71, %p72
    %p74 = scmp.ne.s32.totalorder %s66, %s68
    %p75 = scmp.eq.s32.totalorder %s16, 1
    %p76 = por %p74, %p75
    %p77 = scmp.ne.s32.totalorder %s68, %s69
    %p78 = scmp.eq.s32.totalorder %s16, 0
    %p79 = por %p77, %p78
    %p80 = scmp.ne.s32.totalorder %s68, %s69
    %p81 = scmp.eq.s32.totalorder %s17, 1
    %p82 = por %p80, %p81
    %p84 = scmp.ne.s32.totalorder %s69, %s83
    %p85 = scmp.eq.s32.totalorder %s17, 0
    %p86 = por %p84, %p85
    %s88 = sadd.s32 %s87, 1
    %p91 = scmp.eq.s32.totalorder %s11, 1
    %p92 = scmp.ne.s32.totalorder %s87, %s89
    %p93 = scmp.eq.s32.totalorder %s11, 0
    %p94 = por %p92, %p93
    %p95 = scmp.ne.s32.totalorder %s87, %s89
    %p96 = scmp.eq.s32.totalorder %s16, 1
    %p97 = por %p95, %p96
    %p98 = scmp.ne.s32.totalorder %s89, %s90
    %p99 = scmp.eq.s32.totalorder %s16, 0
    %p100 = por %p98, %p99
    %p101 = scmp.ne.s32.totalorder %s89, %s90
    %p102 = scmp.eq.s32.totalorder %s17, 1
    %p103 = por %p101, %p102
    %p105 = scmp.ne.s32.totalorder %s90, %s104
    %p106 = scmp.eq.s32.totalorder %s17, 0
    %p107 = por %p105, %p106
    %s109 = sadd.s32 %s108, 1
    %p112 = scmp.eq.s32.totalorder %s11, 1
    %p113 = scmp.ne.s32.totalorder %s108, %s110
    %p114 = scmp.eq.s32.totalorder %s11, 0
    %p115 = por %p113, %p114
    %p116 = scmp.ne.s32.totalorder %s108, %s110
    %p117 = scmp.eq.s32.totalorder %s16, 1
    %p118 = por %p116, %p117
    %p119 = scmp.ne.s32.totalorder %s110, %s111
    %p120 = scmp.eq.s32.totalorder %s16, 0
    %p121 = por %p119, %p120
    %p122 = scmp.ne.s32.totalorder %s110, %s111
    %p123 = scmp.eq.s32.totalorder %s17, 1
    %p124 = por %p122, %p123
    %p126 = scmp.ne.s32.totalorder %s111, %s125
    %p127 = scmp.eq.s32.totalorder %s17, 0
    %p128 = por %p126, %p127
    %s129 = ssub.s32 %s11, %s18
    %p130 = scmp.eq.s32.totalorder %s129, 0
    %s132 = sadd.s32 %s131, 1
    %s133 = scalar_select %p130, %s131, %s132
    %p136 = pneg %p130
    %p137 = scmp.eq.s32.totalorder %s11, 1
    %p138 = por %p136, %p137
    %p139 = scmp.ne.s32.totalorder %s131, %s134
    %p140 = scmp.eq.s32.totalorder %s11, 0
    %p141 = por %p139, %p140
    %p142 = scmp.ne.s32.totalorder %s131, %s134
    %p143 = scmp.eq.s32.totalorder %s16, 1
    %p144 = por %p142, %p143
    %p145 = scmp.ne.s32.totalorder %s134, %s135
    %p146 = scmp.eq.s32.totalorder %s16, 0
    %p147 = por %p145, %p146
    %p148 = scmp.ne.s32.totalorder %s134, %s135
    %p149 = scmp.eq.s32.totalorder %s17, 1
    %p150 = por %p148, %p149
    %p152 = scmp.ne.s32.totalorder %s135, %s151
    %p153 = scmp.eq.s32.totalorder %s17, 0
    %p154 = por %p152, %p153
    %p155 = scmp.le.s32.totalorder 1, %s11
    %p156 = scmp.lt.s32.totalorder %s11, 3
    %p157 = pnand %p155, %p156
    %p158 = pneg %p157
    // Predicated region
    $region9: #{tpu_custom_call.1} parent=5 // pred_check
      _
    $region10: #{tpu_custom_call.1} parent=5 // pred_check_branch
      %160 = sbr.rel (%p157) target = $region12
    $region11: #{tpu_custom_call.1} parent=5 // pred_region
      %s161 = ssub.s32 %s11, 1
      // Predicated region
      $region13: #{tpu_custom_call.1} parent=11 // pred_check
        %p162 = pneg %p58
      $region14: #{tpu_custom_call.1} parent=11 // pred_check_branch
        %164 = sbr.rel (%p162) target = $region16
      $region15: #{tpu_custom_call.1} parent=11 // pred_region
        _
      $region16: #{tpu_custom_call.1} parent=11 // pred_fallthru
        _
      // Predicated region
      $region17: #{tpu_custom_call.1} parent=11 // pred_check
        %p165 = pneg %p79
      $region18: #{tpu_custom_call.1} parent=11 // pred_check_branch
        %167 = sbr.rel (%p165) target = $region20
      $region19: #{tpu_custom_call.1} parent=11 // pred_region
        _
      $region20: #{tpu_custom_call.1} parent=11 // pred_fallthru
        _
      // Predicated region
      $region21: #{tpu_custom_call.1} parent=11 // pred_check
        %p168 = pneg %p100
      $region22: #{tpu_custom_call.1} parent=11 // pred_check_branch
        %170 = sbr.rel (%p168) target = $region24
      $region23: #{tpu_custom_call.1} parent=11 // pred_region
        _
      $region24: #{tpu_custom_call.1} parent=11 // pred_fallthru
        _
      // Predicated region
      $region25: #{tpu_custom_call.1} parent=11 // pred_check
        %p171 = pneg %p121
      $region26: #{tpu_custom_call.1} parent=11 // pred_check_branch
        %173 = sbr.rel (%p171) target = $region28
      $region27: #{tpu_custom_call.1} parent=11 // pred_region
        _
      $region28: #{tpu_custom_call.1} parent=11 // pred_fallthru
        _
    $region12: #{tpu_custom_call.1} parent=5 // pred_fallthru
      _
    %p174 = scmp.lt.s32.totalorder %s11, 2
    // Predicated region
    $region29: #{tpu_custom_call.1} parent=5 // pred_check
      %p175 = pneg %p174
    $region30: #{tpu_custom_call.1} parent=5 // pred_check_branch
      %177 = sbr.rel (%p175) target = $region32
    $region31: #{tpu_custom_call.1} parent=5 // pred_region
      // Predicated region
      $region33: #{tpu_custom_call.1} parent=31 // pred_check
        %p178 = pneg %p31
      $region34: #{tpu_custom_call.1} parent=31 // pred_check_branch
        %180 = sbr.rel (%p178) target = $region36
      $region35: #{tpu_custom_call.1} parent=31 // pred_region
        %p181 = scmp.lt.s32.totalorder %s11, 1
        %s182 = scalar_select %p181, %s11, 1
        %s183 = smul.addr %s182, 54
        %s184 = smul.addr %s183, 8
        %s185 = scalar_lea.vmem %s0, %s184
      $region36: #{tpu_custom_call.1} parent=31 // pred_fallthru
        _
    $region32: #{tpu_custom_call.1} parent=5 // pred_fallthru
      _
    %p186 = scmp.le.s32.totalorder 1, %s11
    %p187 = scmp.lt.s32.totalorder %s11, 3
    %p188 = pnand %p186, %p187
    %p189 = pneg %p188
    // Predicated region
    $region37: #{tpu_custom_call.1} parent=5 // pred_check
      _
    $region38: #{tpu_custom_call.1} parent=5 // pred_check_branch
      %191 = sbr.rel (%p188) target = $region40
    $region39: #{tpu_custom_call.1} parent=5 // pred_region
      %s192 = ssub.s32 %s11, 1
      %p193 = scmp.lt.s32.totalorder %s16, 1
      %s194 = scalar_select %p193, %s16, 1
      %s195 = smul.addr %s194, 54
      %s196 = smul.addr %s195, 8
      %s197 = scalar_lea.vmem %s0, %s196
      %p198 = pneg %p37
      %p199 = pneg %p34
      %p200 = pneg %p58
      %p201 = pneg %p55
      %p202 = pneg %p79
      %p203 = pneg %p76
      %p204 = pneg %p100
      %p205 = pneg %p97
      %p206 = pneg %p121
      %p207 = pneg %p118
      %p208 = pneg %p147
      %p209 = pneg %p144
      %p210 = scmp.lt.s32.totalorder %s16, 1
      %s211 = scalar_select %p210, %s16, 1
      %s212 = smul.addr %s211, 32
      %s213 = smul.addr %s212, 8
      %s214 = scalar_lea.vmem %s5, %s213
      %p215 = scmp.lt.s32.totalorder %s16, 1
      %s216 = scalar_select %p215, %s16, 1
      %s217 = smul.addr %s216, 54
      %s218 = smul.addr %s217, 8
      %s219 = scalar_lea.vmem %s0, %s218
      %p220 = scmp.lt.s32.totalorder %s16, 1
      %s221 = scalar_select %p220, %s16, 1
      %s222 = smul.addr %s221, 32
      %s223 = smul.addr %s222, 8
      %s224 = scalar_lea.vmem %s5, %s223
      %v225 = vld [vmem:[%s219] sm:$0xff]
      %v226 = vld [vmem:[%s219 + $0x8] sm:$0xff]
      %v227 = vld [vmem:[%s219 + $0x10] sm:$0xff]
      %v228 = vld [vmem:[%s219 + $0x18] sm:$0xff]
      %v229 = vld [vmem:[%s219 + $0x20] sm:$0xff]
      %v230 = vld [vmem:[%s219 + $0x28] sm:$0xff]
      %v231 = vld [vmem:[%s219 + $0x30] sm:$0xff]
      %v232 = vld [vmem:[%s219 + $0x38] sm:$0xff]
      %v233 = vld [vmem:[%s219 + $0x40] sm:$0xff]
      %v234 = vld [vmem:[%s219 + $0x48] sm:$0xff]
      %v235 = vld [vmem:[%s219 + $0x50] sm:$0xff]
      %v236 = vld [vmem:[%s219 + $0x58] sm:$0xff]
      %v237 = vld [vmem:[%s219 + $0x60] sm:$0xff]
      %v238 = vld [vmem:[%s219 + $0x68] sm:$0xff]
      %v239 = vld [vmem:[%s219 + $0x70] sm:$0xff]
      %v240 = vld [vmem:[%s219 + $0x78] sm:$0xff]
      %v241 = vld [vmem:[%s219 + $0x80] sm:$0xff]
      %v242 = vld [vmem:[%s219 + $0x88] sm:$0xff]
      %v243 = vld [vmem:[%s219 + $0x90] sm:$0xff]
      %v244 = vld [vmem:[%s219 + $0x98] sm:$0xff]
      %v245 = vld [vmem:[%s219 + $0xa0] sm:$0xff]
      %v246 = vld [vmem:[%s219 + $0xa8] sm:$0xff]
      %v247 = vld [vmem:[%s219 + $0xb0] sm:$0xff]
      %v248 = vld [vmem:[%s219 + $0xb8] sm:$0xff]
      %v249 = vld [vmem:[%s219 + $0xc0] sm:$0xff]
      %v250 = vld [vmem:[%s219 + $0xc8] sm:$0xff]
      %v251 = vld [vmem:[%s219 + $0xd0] sm:$0xff]
      %v252 = vld [vmem:[%s219 + $0xd8] sm:$0xff]
      %v253 = vld [vmem:[%s219 + $0xe0] sm:$0xff]
      %v254 = vld [vmem:[%s219 + $0xe8] sm:$0xff]
      %v255 = vld [vmem:[%s219 + $0xf0] sm:$0xff]
      %v256 = vld [vmem:[%s219 + $0xf8] sm:$0xff]
      %v257 = vld [vmem:[%s219 + $0x100] sm:$0xff]
      %v258 = vld [vmem:[%s219 + $0x108] sm:$0xff]
      %v259 = vld [vmem:[%s219 + $0x110] sm:$0xff]
      %v260 = vld [vmem:[%s219 + $0x118] sm:$0xff]
      %v261 = vld [vmem:[%s219 + $0x120] sm:$0xff]
      %v262 = vld [vmem:[%s219 + $0x128] sm:$0xff]
      %v263 = vld [vmem:[%s219 + $0x130] sm:$0xff]
      %v264 = vld [vmem:[%s219 + $0x138] sm:$0xff]
      %v265 = vld [vmem:[%s219 + $0x140] sm:$0xff]
      %v266 = vld [vmem:[%s219 + $0x148] sm:$0xff]
      %v267 = vld [vmem:[%s219 + $0x150] sm:$0xff]
      %v268 = vld [vmem:[%s219 + $0x158] sm:$0xff]
      %v269 = vld [vmem:[%s219 + $0x160] sm:$0xff]
      %v270 = vld [vmem:[%s219 + $0x168] sm:$0xff]
      %v271 = vld [vmem:[%s219 + $0x170] sm:$0xff]
      %v272 = vld [vmem:[%s219 + $0x178] sm:$0xff]
      %v273 = vld [vmem:[%s1] sm:$0xff]
      %v274 = vld [vmem:[%s1 + $0x8] sm:$0xff]
      %v275 = vld [vmem:[%s1 + $0x10] sm:$0xff]
      %v276 = vld [vmem:[%s219 + $0x180] sm:$0xff]
      %v277 = vld [vmem:[%s219 + $0x188] sm:$0xff]
      %v278 = vld [vmem:[%s219 + $0x190] sm:$0xff]
      %s279 = scalar_lea.vmem %s1, 24
      %v280 = vld [vmem:[%s279] sm:$0xff]
      %v281 = vld [vmem:[%s279 + $0x8] sm:$0xff]
      %v282 = vld [vmem:[%s279 + $0x10] sm:$0xff]
      %vm283 = vcmask 195584
      %v285 = vsel %vm283, %v228, 0
      %v288 = vsel %vm283, %v229, 0
      %v291 = vsel %vm283, %v230, 0
      %v294 = vsel %vm283, %v231, 0
      %v297 = vsel %vm283, %v232, 0
      %v300 = vsel %vm283, %v233, 0
      %v303 = vsel %vm283, %v234, 0
      %v306 = vsel %vm283, %v235, 0
      %v309 = vsel %vm283, %v236, 0
      %v312 = vsel %vm283, %v237, 0
      %v315 = vsel %vm283, %v238, 0
      %v318 = vsel %vm283, %v239, 0
      %v321 = vsel %vm283, %v240, 0
      %v324 = vsel %vm283, %v241, 0
      %v327 = vsel %vm283, %v242, 0
      %v330 = vsel %vm283, %v243, 0
      %v333 = vsel %vm283, %v244, 0
      %v336 = vsel %vm283, %v245, 0
      %v339 = vsel %vm283, %v246, 0
      %v342 = vsel %vm283, %v247, 0
      %v345 = vsel %vm283, %v248, 0
      %v348 = vsel %vm283, %v249, 0
      %v351 = vsel %vm283, %v250, 0
      %v354 = vsel %vm283, %v251, 0
      %v357 = vsel %vm283, %v252, 0
      %v360 = vsel %vm283, %v253, 0
      %v363 = vsel %vm283, %v254, 0
      %v366 = vsel %vm283, %v255, 0
      %v369 = vsel %vm283, %v256, 0
      %v372 = vsel %vm283, %v257, 0
      %v375 = vsel %vm283, %v258, 0
      %v378 = vsel %vm283, %v259, 0
      %v381 = vsel %vm283, %v260, 0
      %v384 = vsel %vm283, %v261, 0
      %v387 = vsel %vm283, %v262, 0
      %v390 = vsel %vm283, %v263, 0
      %v393 = vsel %vm283, %v264, 0
      %v396 = vsel %vm283, %v265, 0
      %v399 = vsel %vm283, %v266, 0
      %v402 = vsel %vm283, %v267, 0
      %v405 = vsel %vm283, %v268, 0
      %v408 = vsel %vm283, %v269, 0
      %v411 = vsel %vm283, %v270, 0
      %v414 = vsel %vm283, %v271, 0
      %v417 = vsel %vm283, %v272, 0
      %v420 = vsel %vm283, %v276, 0
      %v423 = vsel %vm283, %v277, 0
      %v426 = vsel %vm283, %v278, 0
      %428 = vmatprep.subr.mxu0 0.0
      %429 = vmatpush1.msra.mxu0 0.0
      %430 = vmatprep.subr.mxu0 0.0
      %431 = vmatpush1.msra.mxu0 0.0
      %432 = vmatprep.subr.mxu0 0.0
      %433 = vmatpush1.msra.mxu0 0.0
      %434 = vmatprep.subr.mxu0 0.0
      %435 = vmatpush1.msra.mxu0 0.0
      %436 = vmatprep.subr.mxu0 0.0
      %437 = vmatpush1.msra.mxu0 0.0
      %438 = vmatprep.subr.mxu0 0.0
      %439 = vmatpush1.msra.mxu0 0.0
      %440 = vmatprep.subr.mxu0 0.0
      %441 = vmatpush1.msra.mxu0 0.0
      %442 = vmatprep.subr.mxu0 0.0
      %443 = vmatpush1.msra.mxu0 0.0
      %444 = vmatprep.subr.mxu0 0.0
      %445 = vmatpush1.msra.mxu0 0.0
      %446 = vmatprep.subr.mxu0 0.0
      %447 = vmatpush1.msra.mxu0 0.0
      %448 = vmatprep.subr.mxu0 0.0
      %449 = vmatpush1.msra.mxu0 0.0
      %450 = vmatprep.subr.mxu0 0.0
      %451 = vmatpush1.msra.mxu0 0.0
      %452 = vmatprep.subr.mxu0 0.0
      %453 = vmatpush1.msra.mxu0 0.0
      %454 = vmatprep.subr.mxu0 0.0
      %455 = vmatpush1.msra.mxu0 %v282
      %456 = vmatprep.subr.mxu0 0.0
      %457 = vmatpush1.msra.mxu0 %v281
      %458 = vmatprep.subr.mxu0 0.0
      %459 = vmatpush1.msra.mxu0 %v280
      %460 = vmatprep.subr.mxu0 0.0
      %461 = vmatpush2.msra.mxu0 0.0
      %462 = vmatprep.subr.mxu0 0.0
      %463 = vmatpush2.msra.mxu0 0.0
      %464 = vmatprep.subr.mxu0 0.0
      %465 = vmatpush2.msra.mxu0 0.0
      %466 = vmatprep.subr.mxu0 0.0
      %467 = vmatpush2.msra.mxu0 0.0
      %468 = vmatprep.subr.mxu0 0.0
      %469 = vmatpush2.msra.mxu0 0.0
      %470 = vmatprep.subr.mxu0 0.0
      %471 = vmatpush2.msra.mxu0 0.0
      %472 = vmatprep.subr.mxu0 0.0
      %473 = vmatpush2.msra.mxu0 0.0
      %474 = vmatprep.subr.mxu0 0.0
      %475 = vmatpush2.msra.mxu0 0.0
      %476 = vmatprep.subr.mxu0 0.0
      %477 = vmatpush2.msra.mxu0 0.0
      %478 = vmatprep.subr.mxu0 0.0
      %479 = vmatpush2.msra.mxu0 0.0
      %480 = vmatprep.subr.mxu0 0.0
      %481 = vmatpush2.msra.mxu0 0.0
      %482 = vmatprep.subr.mxu0 0.0
      %483 = vmatpush2.msra.mxu0 0.0
      %484 = vmatprep.subr.mxu0 0.0
      %485 = vmatpush2.msra.mxu0 0.0
      %486 = vmatprep.subr.mxu0 0.0
      %487 = vmatpush2.msra.mxu0 0.0
      %488 = vmatprep.subr.mxu0 0.0
      %489 = vmatpush2.msra.mxu0 0.0
      %490 = vmatprep.subr.mxu0 0.0
      %491 = vmatpush2.msra.mxu0 0.0
      %492 = vmatprep.mubr.f32.mxu0 0.0
      %493 = vmatmul.mubr.f32.gmra.mxu0 %v285
      %v494 = vpop.f32.mrf.mxu0
      %v495 = vadd.f32 0.0, %v494
      %v496 = vpop.f32.mrf.mxu0
      %497 = vmatprep.mubr.f32.mxu0 0.0
      %498 = vmatmul.mubr.f32.gmra.mxu0 %v288
      %v499 = vpop.f32.mrf.mxu0
      %v500 = vadd.f32 0.0, %v499
      %v501 = vpop.f32.mrf.mxu0
      %502 = vmatprep.mubr.f32.mxu0 0.0
      %503 = vmatmul.mubr.f32.gmra.mxu0 %v291
      %v504 = vpop.f32.mrf.mxu0
      %v505 = vadd.f32 0.0, %v504
      %v506 = vpop.f32.mrf.mxu0
      %507 = vmatprep.mubr.f32.mxu0 0.0
      %508 = vmatmul.mubr.f32.gmra.mxu0 %v294
      %v509 = vpop.f32.mrf.mxu0
      %v510 = vadd.f32 0.0, %v509
      %v511 = vpop.f32.mrf.mxu0
      %512 = vmatprep.mubr.f32.mxu0 0.0
      %513 = vmatmul.mubr.f32.gmra.mxu0 %v297
      %v514 = vpop.f32.mrf.mxu0
      %v515 = vadd.f32 0.0, %v514
      %v516 = vpop.f32.mrf.mxu0
      %517 = vmatprep.mubr.f32.mxu0 0.0
      %518 = vmatmul.mubr.f32.gmra.mxu0 %v300
      %v519 = vpop.f32.mrf.mxu0
      %v520 = vadd.f32 0.0, %v519
      %v521 = vpop.f32.mrf.mxu0
      %522 = vmatprep.mubr.f32.mxu0 0.0
      %523 = vmatmul.mubr.f32.gmra.mxu0 %v303
      %v524 = vpop.f32.mrf.mxu0
      %v525 = vadd.f32 0.0, %v524
      %v526 = vpop.f32.mrf.mxu0
      %527 = vmatprep.mubr.f32.mxu0 0.0
      %528 = vmatmul.mubr.f32.gmra.mxu0 %v306
      %v529 = vpop.f32.mrf.mxu0
      %v530 = vadd.f32 0.0, %v529
      %v531 = vpop.f32.mrf.mxu0
      %532 = vmatprep.mubr.f32.mxu0 0.0
      %533 = vmatmul.mubr.f32.gmra.mxu0 %v309
      %v534 = vpop.f32.mrf.mxu0
      %v535 = vadd.f32 0.0, %v534
      %v536 = vpop.f32.mrf.mxu0
      %537 = vmatprep.mubr.f32.mxu0 0.0
      %538 = vmatmul.mubr.f32.gmra.mxu0 %v312
      %v539 = vpop.f32.mrf.mxu0
      %v540 = vadd.f32 0.0, %v539
      %v541 = vpop.f32.mrf.mxu0
      %542 = vmatprep.mubr.f32.mxu0 0.0
      %543 = vmatmul.mubr.f32.gmra.mxu0 %v315
      %v544 = vpop.f32.mrf.mxu0
      %v545 = vadd.f32 0.0, %v544
      %v546 = vpop.f32.mrf.mxu0
      %547 = vmatprep.mubr.f32.mxu0 0.0
      %548 = vmatmul.mubr.f32.gmra.mxu0 %v318
      %v549 = vpop.f32.mrf.mxu0
      %v550 = vadd.f32 0.0, %v549
      %v551 = vpop.f32.mrf.mxu0
      %552 = vmatprep.mubr.f32.mxu0 0.0
      %553 = vmatmul.mubr.f32.gmra.mxu0 %v321
      %v554 = vpop.f32.mrf.mxu0
      %v555 = vadd.f32 0.0, %v554
      %v556 = vpop.f32.mrf.mxu0
      %557 = vmatprep.mubr.f32.mxu0 0.0
      %558 = vmatmul.mubr.f32.gmra.mxu0 %v324
      %v559 = vpop.f32.mrf.mxu0
      %v560 = vadd.f32 0.0, %v559
      %v561 = vpop.f32.mrf.mxu0
      %562 = vmatprep.mubr.f32.mxu0 0.0
      %563 = vmatmul.mubr.f32.gmra.mxu0 %v327
      %v564 = vpop.f32.mrf.mxu0
      %v565 = vadd.f32 0.0, %v564
      %v566 = vpop.f32.mrf.mxu0
      %567 = vmatprep.mubr.f32.mxu0 0.0
      %568 = vmatmul.mubr.f32.gmra.mxu0 %v330
      %v569 = vpop.f32.mrf.mxu0
      %v570 = vadd.f32 0.0, %v569
      %v571 = vpop.f32.mrf.mxu0
      %572 = vmatprep.mubr.f32.mxu0 0.0
      %573 = vmatmul.mubr.f32.gmra.mxu0 %v333
      %v574 = vpop.f32.mrf.mxu0
      %v575 = vadd.f32 0.0, %v574
      %v576 = vpop.f32.mrf.mxu0
      %577 = vmatprep.mubr.f32.mxu0 0.0
      %578 = vmatmul.mubr.f32.gmra.mxu0 %v336
      %v579 = vpop.f32.mrf.mxu0
      %v580 = vadd.f32 0.0, %v579
      %v581 = vpop.f32.mrf.mxu0
      %582 = vmatprep.mubr.f32.mxu0 0.0
      %583 = vmatmul.mubr.f32.gmra.mxu0 %v339
      %v584 = vpop.f32.mrf.mxu0
      %v585 = vadd.f32 0.0, %v584
      %v586 = vpop.f32.mrf.mxu0
      %587 = vmatprep.mubr.f32.mxu0 0.0
      %588 = vmatmul.mubr.f32.gmra.mxu0 %v342
      %v589 = vpop.f32.mrf.mxu0
      %v590 = vadd.f32 0.0, %v589
      %v591 = vpop.f32.mrf.mxu0
      %592 = vmatprep.mubr.f32.mxu0 0.0
      %593 = vmatmul.mubr.f32.gmra.mxu0 %v345
      %v594 = vpop.f32.mrf.mxu0
      %v595 = vadd.f32 0.0, %v594
      %v596 = vpop.f32.mrf.mxu0
      %597 = vmatprep.mubr.f32.mxu0 0.0
      %598 = vmatmul.mubr.f32.gmra.mxu0 %v348
      %v599 = vpop.f32.mrf.mxu0
      %v600 = vadd.f32 0.0, %v599
      %v601 = vpop.f32.mrf.mxu0
      %602 = vmatprep.mubr.f32.mxu0 0.0
      %603 = vmatmul.mubr.f32.gmra.mxu0 %v351
      %v604 = vpop.f32.mrf.mxu0
      %v605 = vadd.f32 0.0, %v604
      %v606 = vpop.f32.mrf.mxu0
      %607 = vmatprep.mubr.f32.mxu0 0.0
      %608 = vmatmul.mubr.f32.gmra.mxu0 %v354
      %v609 = vpop.f32.mrf.mxu0
      %v610 = vadd.f32 0.0, %v609
      %v611 = vpop.f32.mrf.mxu0
      %612 = vmatprep.mubr.f32.mxu0 0.0
      %613 = vmatmul.mubr.f32.gmra.mxu0 %v357
      %v614 = vpop.f32.mrf.mxu0
      %v615 = vadd.f32 0.0, %v614
      %v616 = vpop.f32.mrf.mxu0
      %617 = vmatprep.mubr.f32.mxu0 0.0
      %618 = vmatmul.mubr.f32.gmra.mxu0 %v360
      %v619 = vpop.f32.mrf.mxu0
      %v620 = vadd.f32 0.0, %v619
      %v621 = vpop.f32.mrf.mxu0
      %622 = vmatprep.mubr.f32.mxu0 0.0
      %623 = vmatmul.mubr.f32.gmra.mxu0 %v363
      %v624 = vpop.f32.mrf.mxu0
      %v625 = vadd.f32 0.0, %v624
      %v626 = vpop.f32.mrf.mxu0
      %627 = vmatprep.mubr.f32.mxu0 0.0
      %628 = vmatmul.mubr.f32.gmra.mxu0 %v366
      %v629 = vpop.f32.mrf.mxu0
      %v630 = vadd.f32 0.0, %v629
      %v631 = vpop.f32.mrf.mxu0
      %632 = vmatprep.mubr.f32.mxu0 0.0
      %633 = vmatmul.mubr.f32.gmra.mxu0 %v369
      %v634 = vpop.f32.mrf.mxu0
      %v635 = vadd.f32 0.0, %v634
      %v636 = vpop.f32.mrf.mxu0
      %637 = vmatprep.mubr.f32.mxu0 0.0
      %638 = vmatmul.mubr.f32.gmra.mxu0 %v372
      %v639 = vpop.f32.mrf.mxu0
      %v640 = vadd.f32 0.0, %v639
      %v641 = vpop.f32.mrf.mxu0
      %642 = vmatprep.mubr.f32.mxu0 0.0
      %643 = vmatmul.mubr.f32.gmra.mxu0 %v375
      %v644 = vpop.f32.mrf.mxu0
      %v645 = vadd.f32 0.0, %v644
      %v646 = vpop.f32.mrf.mxu0
      %647 = vmatprep.mubr.f32.mxu0 0.0
      %648 = vmatmul.mubr.f32.gmra.mxu0 %v378
      %v649 = vpop.f32.mrf.mxu0
      %v650 = vadd.f32 0.0, %v649
      %v651 = vpop.f32.mrf.mxu0
      %652 = vmatprep.mubr.f32.mxu0 0.0
      %653 = vmatmul.mubr.f32.gmra.mxu0 %v381
      %v654 = vpop.f32.mrf.mxu0
      %v655 = vadd.f32 0.0, %v654
      %v656 = vpop.f32.mrf.mxu0
      %657 = vmatprep.mubr.f32.mxu0 0.0
      %658 = vmatmul.mubr.f32.gmra.mxu0 %v384
      %v659 = vpop.f32.mrf.mxu0
      %v660 = vadd.f32 0.0, %v659
      %v661 = vpop.f32.mrf.mxu0
      %662 = vmatprep.mubr.f32.mxu0 0.0
      %663 = vmatmul.mubr.f32.gmra.mxu0 %v387
      %v664 = vpop.f32.mrf.mxu0
      %v665 = vadd.f32 0.0, %v664
      %v666 = vpop.f32.mrf.mxu0
      %667 = vmatprep.mubr.f32.mxu0 0.0
      %668 = vmatmul.mubr.f32.gmra.mxu0 %v390
      %v669 = vpop.f32.mrf.mxu0
      %v670 = vadd.f32 0.0, %v669
      %v671 = vpop.f32.mrf.mxu0
      %672 = vmatprep.mubr.f32.mxu0 0.0
      %673 = vmatmul.mubr.f32.gmra.mxu0 %v393
      %v674 = vpop.f32.mrf.mxu0
      %v675 = vadd.f32 0.0, %v674
      %v676 = vpop.f32.mrf.mxu0
      %677 = vmatprep.mubr.f32.mxu0 0.0
      %678 = vmatmul.mubr.f32.gmra.mxu0 %v396
      %v679 = vpop.f32.mrf.mxu0
      %v680 = vadd.f32 0.0, %v679
      %v681 = vpop.f32.mrf.mxu0
      %682 = vmatprep.mubr.f32.mxu0 0.0
      %683 = vmatmul.mubr.f32.gmra.mxu0 %v399
      %v684 = vpop.f32.mrf.mxu0
      %v685 = vadd.f32 0.0, %v684
      %v686 = vpop.f32.mrf.mxu0
      %687 = vmatprep.mubr.f32.mxu0 0.0
      %688 = vmatmul.mubr.f32.gmra.mxu0 %v402
      %v689 = vpop.f32.mrf.mxu0
      %v690 = vadd.f32 0.0, %v689
      %v691 = vpop.f32.mrf.mxu0
      %692 = vmatprep.mubr.f32.mxu0 0.0
      %693 = vmatmul.mubr.f32.gmra.mxu0 %v405
      %v694 = vpop.f32.mrf.mxu0
      %v695 = vadd.f32 0.0, %v694
      %v696 = vpop.f32.mrf.mxu0
      %697 = vmatprep.mubr.f32.mxu0 0.0
      %698 = vmatmul.mubr.f32.gmra.mxu0 %v408
      %v699 = vpop.f32.mrf.mxu0
      %v700 = vadd.f32 0.0, %v699
      %v701 = vpop.f32.mrf.mxu0
      %702 = vmatprep.mubr.f32.mxu0 0.0
      %703 = vmatmul.mubr.f32.gmra.mxu0 %v411
      %v704 = vpop.f32.mrf.mxu0
      %v705 = vadd.f32 0.0, %v704
      %v706 = vpop.f32.mrf.mxu0
      %707 = vmatprep.mubr.f32.mxu0 0.0
      %708 = vmatmul.mubr.f32.gmra.mxu0 %v414
      %v709 = vpop.f32.mrf.mxu0
      %v710 = vadd.f32 0.0, %v709
      %v711 = vpop.f32.mrf.mxu0
      %712 = vmatprep.mubr.f32.mxu0 0.0
      %713 = vmatmul.mubr.f32.gmra.mxu0 %v417
      %v714 = vpop.f32.mrf.mxu0
      %v715 = vadd.f32 0.0, %v714
      %v716 = vpop.f32.mrf.mxu0
      %717 = vmatprep.mubr.f32.mxu0 0.0
      %718 = vmatmul.mubr.f32.gmra.mxu0 %v420
      %v719 = vpop.f32.mrf.mxu0
      %v720 = vadd.f32 0.0, %v719
      %v721 = vpop.f32.mrf.mxu0
      %722 = vmatprep.mubr.f32.mxu0 0.0
      %723 = vmatmul.mubr.f32.gmra.mxu0 %v423
      %v724 = vpop.f32.mrf.mxu0
      %v725 = vadd.f32 0.0, %v724
      %v726 = vpop.f32.mrf.mxu0
      %727 = vmatprep.mubr.f32.mxu0 0.0
      %728 = vmatmul.mubr.f32.gmra.mxu0 %v426
      %v729 = vpop.f32.mrf.mxu0
      %v730 = vadd.f32 0.0, %v729
      %v731 = vpop.f32.mrf.mxu0
      %732 = vdwg.mxu0
      %v734 = vsel %vm283, %v225, 0
      %v737 = vsel %vm283, %v226, 0
      %v740 = vsel %vm283, %v227, 0
      %742 = vmatprep.subr.mxu0 0.0
      %743 = vmatpush1.msra.mxu0 0.0
      %744 = vmatprep.subr.mxu0 0.0
      %745 = vmatpush1.msra.mxu0 0.0
      %746 = vmatprep.subr.mxu0 0.0
      %747 = vmatpush1.msra.mxu0 0.0
      %748 = vmatprep.subr.mxu0 0.0
      %749 = vmatpush1.msra.mxu0 0.0
      %750 = vmatprep.subr.mxu0 0.0
      %751 = vmatpush1.msra.mxu0 0.0
      %752 = vmatprep.subr.mxu0 0.0
      %753 = vmatpush1.msra.mxu0 0.0
      %754 = vmatprep.subr.mxu0 0.0
      %755 = vmatpush1.msra.mxu0 0.0
      %756 = vmatprep.subr.mxu0 0.0
      %757 = vmatpush1.msra.mxu0 0.0
      %758 = vmatprep.subr.mxu0 0.0
      %759 = vmatpush1.msra.mxu0 0.0
      %760 = vmatprep.subr.mxu0 0.0
      %761 = vmatpush1.msra.mxu0 0.0
      %762 = vmatprep.subr.mxu0 0.0
      %763 = vmatpush1.msra.mxu0 0.0
      %764 = vmatprep.subr.mxu0 0.0
      %765 = vmatpush1.msra.mxu0 0.0
      %766 = vmatprep.subr.mxu0 0.0
      %767 = vmatpush1.msra.mxu0 0.0
      %768 = vmatprep.subr.mxu0 0.0
      %769 = vmatpush1.msra.mxu0 %v275
      %770 = vmatprep.subr.mxu0 0.0
      %771 = vmatpush1.msra.mxu0 %v274
      %772 = vmatprep.subr.mxu0 0.0
      %773 = vmatpush1.msra.mxu0 %v273
      %774 = vmatprep.subr.mxu0 0.0
      %775 = vmatpush2.msra.mxu0 0.0
      %776 = vmatprep.subr.mxu0 0.0
      %777 = vmatpush2.msra.mxu0 0.0
      %778 = vmatprep.subr.mxu0 0.0
      %779 = vmatpush2.msra.mxu0 0.0
      %780 = vmatprep.subr.mxu0 0.0
      %781 = vmatpush2.msra.mxu0 0.0
      %782 = vmatprep.subr.mxu0 0.0
      %783 = vmatpush2.msra.mxu0 0.0
      %784 = vmatprep.subr.mxu0 0.0
      %785 = vmatpush2.msra.mxu0 0.0
      %786 = vmatprep.subr.mxu0 0.0
      %787 = vmatpush2.msra.mxu0 0.0
      %788 = vmatprep.subr.mxu0 0.0
      %789 = vmatpush2.msra.mxu0 0.0
      %790 = vmatprep.subr.mxu0 0.0
      %791 = vmatpush2.msra.mxu0 0.0
      %792 = vmatprep.subr.mxu0 0.0
      %793 = vmatpush2.msra.mxu0 0.0
      %794 = vmatprep.subr.mxu0 0.0
      %795 = vmatpush2.msra.mxu0 0.0
      %796 = vmatprep.subr.mxu0 0.0
      %797 = vmatpush2.msra.mxu0 0.0
      %798 = vmatprep.subr.mxu0 0.0
      %799 = vmatpush2.msra.mxu0 0.0
      %800 = vmatprep.subr.mxu0 0.0
      %801 = vmatpush2.msra.mxu0 0.0
      %802 = vmatprep.subr.mxu0 0.0
      %803 = vmatpush2.msra.mxu0 0.0
      %804 = vmatprep.subr.mxu0 0.0
      %805 = vmatpush2.msra.mxu0 0.0
      %806 = vmatprep.mubr.f32.mxu0 0.0
      %807 = vmatmul.mubr.f32.gmra.mxu0 %v734
      %v808 = vpop.f32.mrf.mxu0
      %v809 = vadd.f32 %v495, %v808
      %v810 = vpop.f32.mrf.mxu0
      %811 = vmatprep.mubr.f32.mxu0 0.0
      %812 = vmatmul.mubr.f32.gmra.mxu0 %v737
      %v813 = vpop.f32.mrf.mxu0
      %v814 = vadd.f32 %v500, %v813
      %v815 = vpop.f32.mrf.mxu0
      %816 = vmatprep.mubr.f32.mxu0 0.0
      %817 = vmatmul.mubr.f32.gmra.mxu0 %v740
      %v818 = vpop.f32.mrf.mxu0
      %v819 = vadd.f32 %v505, %v818
      %v820 = vpop.f32.mrf.mxu0
      %821 = vmatprep.mubr.f32.mxu0 0.0
      %822 = vmatmul.mubr.f32.gmra.mxu0 %v285
      %v823 = vpop.f32.mrf.mxu0
      %v824 = vadd.f32 %v510, %v823
      %v825 = vpop.f32.mrf.mxu0
      %826 = vmatprep.mubr.f32.mxu0 0.0
      %827 = vmatmul.mubr.f32.gmra.mxu0 %v288
      %v828 = vpop.f32.mrf.mxu0
      %v829 = vadd.f32 %v515, %v828
      %v830 = vpop.f32.mrf.mxu0
      %831 = vmatprep.mubr.f32.mxu0 0.0
      %832 = vmatmul.mubr.f32.gmra.mxu0 %v291
      %v833 = vpop.f32.mrf.mxu0
      %v834 = vadd.f32 %v520, %v833
      %v835 = vpop.f32.mrf.mxu0
      %836 = vmatprep.mubr.f32.mxu0 0.0
      %837 = vmatmul.mubr.f32.gmra.mxu0 %v294
      %v838 = vpop.f32.mrf.mxu0
      %v839 = vadd.f32 %v525, %v838
      %v840 = vpop.f32.mrf.mxu0
      %841 = vmatprep.mubr.f32.mxu0 0.0
      %842 = vmatmul.mubr.f32.gmra.mxu0 %v297
      %v843 = vpop.f32.mrf.mxu0
      %v844 = vadd.f32 %v530, %v843
      %v845 = vpop.f32.mrf.mxu0
      %846 = vmatprep.mubr.f32.mxu0 0.0
      %847 = vmatmul.mubr.f32.gmra.mxu0 %v300
      %v848 = vpop.f32.mrf.mxu0
      %v849 = vadd.f32 %v535, %v848
      %v850 = vpop.f32.mrf.mxu0
      %851 = vmatprep.mubr.f32.mxu0 0.0
      %852 = vmatmul.mubr.f32.gmra.mxu0 %v303
      %v853 = vpop.f32.mrf.mxu0
      %v854 = vadd.f32 %v540, %v853
      %v855 = vpop.f32.mrf.mxu0
      %856 = vmatprep.mubr.f32.mxu0 0.0
      %857 = vmatmul.mubr.f32.gmra.mxu0 %v306
      %v858 = vpop.f32.mrf.mxu0
      %v859 = vadd.f32 %v545, %v858
      %v860 = vpop.f32.mrf.mxu0
      %861 = vmatprep.mubr.f32.mxu0 0.0
      %862 = vmatmul.mubr.f32.gmra.mxu0 %v309
      %v863 = vpop.f32.mrf.mxu0
      %v864 = vadd.f32 %v550, %v863
      %v865 = vpop.f32.mrf.mxu0
      %866 = vmatprep.mubr.f32.mxu0 0.0
      %867 = vmatmul.mubr.f32.gmra.mxu0 %v312
      %v868 = vpop.f32.mrf.mxu0
      %v869 = vadd.f32 %v555, %v868
      %v870 = vpop.f32.mrf.mxu0
      %871 = vmatprep.mubr.f32.mxu0 0.0
      %872 = vmatmul.mubr.f32.gmra.mxu0 %v315
      %v873 = vpop.f32.mrf.mxu0
      %v874 = vadd.f32 %v560, %v873
      %v875 = vpop.f32.mrf.mxu0
      %876 = vmatprep.mubr.f32.mxu0 0.0
      %877 = vmatmul.mubr.f32.gmra.mxu0 %v318
      %v878 = vpop.f32.mrf.mxu0
      %v879 = vadd.f32 %v565, %v878
      %v880 = vpop.f32.mrf.mxu0
      %881 = vmatprep.mubr.f32.mxu0 0.0
      %882 = vmatmul.mubr.f32.gmra.mxu0 %v321
      %v883 = vpop.f32.mrf.mxu0
      %v884 = vadd.f32 %v570, %v883
      %v885 = vpop.f32.mrf.mxu0
      %886 = vmatprep.mubr.f32.mxu0 0.0
      %887 = vmatmul.mubr.f32.gmra.mxu0 %v324
      %v888 = vpop.f32.mrf.mxu0
      %v889 = vadd.f32 %v575, %v888
      %v890 = vpop.f32.mrf.mxu0
      %891 = vmatprep.mubr.f32.mxu0 0.0
      %892 = vmatmul.mubr.f32.gmra.mxu0 %v327
      %v893 = vpop.f32.mrf.mxu0
      %v894 = vadd.f32 %v580, %v893
      %v895 = vpop.f32.mrf.mxu0
      %896 = vmatprep.mubr.f32.mxu0 0.0
      %897 = vmatmul.mubr.f32.gmra.mxu0 %v330
      %v898 = vpop.f32.mrf.mxu0
      %v899 = vadd.f32 %v585, %v898
      %v900 = vpop.f32.mrf.mxu0
      %901 = vmatprep.mubr.f32.mxu0 0.0
      %902 = vmatmul.mubr.f32.gmra.mxu0 %v333
      %v903 = vpop.f32.mrf.mxu0
      %v904 = vadd.f32 %v590, %v903
      %v905 = vpop.f32.mrf.mxu0
      %906 = vmatprep.mubr.f32.mxu0 0.0
      %907 = vmatmul.mubr.f32.gmra.mxu0 %v336
      %v908 = vpop.f32.mrf.mxu0
      %v909 = vadd.f32 %v595, %v908
      %v910 = vpop.f32.mrf.mxu0
      %911 = vmatprep.mubr.f32.mxu0 0.0
      %912 = vmatmul.mubr.f32.gmra.mxu0 %v339
      %v913 = vpop.f32.mrf.mxu0
      %v914 = vadd.f32 %v600, %v913
      %v915 = vpop.f32.mrf.mxu0
      %916 = vmatprep.mubr.f32.mxu0 0.0
      %917 = vmatmul.mubr.f32.gmra.mxu0 %v342
      %v918 = vpop.f32.mrf.mxu0
      %v919 = vadd.f32 %v605, %v918
      %v920 = vpop.f32.mrf.mxu0
      %921 = vmatprep.mubr.f32.mxu0 0.0
      %922 = vmatmul.mubr.f32.gmra.mxu0 %v345
      %v923 = vpop.f32.mrf.mxu0
      %v924 = vadd.f32 %v610, %v923
      %v925 = vpop.f32.mrf.mxu0
      %926 = vmatprep.mubr.f32.mxu0 0.0
      %927 = vmatmul.mubr.f32.gmra.mxu0 %v348
      %v928 = vpop.f32.mrf.mxu0
      %v929 = vadd.f32 %v615, %v928
      %v930 = vpop.f32.mrf.mxu0
      %931 = vmatprep.mubr.f32.mxu0 0.0
      %932 = vmatmul.mubr.f32.gmra.mxu0 %v351
      %v933 = vpop.f32.mrf.mxu0
      %v934 = vadd.f32 %v620, %v933
      %v935 = vpop.f32.mrf.mxu0
      %936 = vmatprep.mubr.f32.mxu0 0.0
      %937 = vmatmul.mubr.f32.gmra.mxu0 %v354
      %v938 = vpop.f32.mrf.mxu0
      %v939 = vadd.f32 %v625, %v938
      %v940 = vpop.f32.mrf.mxu0
      %941 = vmatprep.mubr.f32.mxu0 0.0
      %942 = vmatmul.mubr.f32.gmra.mxu0 %v357
      %v943 = vpop.f32.mrf.mxu0
      %v944 = vadd.f32 %v630, %v943
      %v945 = vpop.f32.mrf.mxu0
      %946 = vmatprep.mubr.f32.mxu0 0.0
      %947 = vmatmul.mubr.f32.gmra.mxu0 %v360
      %v948 = vpop.f32.mrf.mxu0
      %v949 = vadd.f32 %v635, %v948
      %v950 = vpop.f32.mrf.mxu0
      %951 = vmatprep.mubr.f32.mxu0 0.0
      %952 = vmatmul.mubr.f32.gmra.mxu0 %v363
      %v953 = vpop.f32.mrf.mxu0
      %v954 = vadd.f32 %v640, %v953
      %v955 = vpop.f32.mrf.mxu0
      %956 = vmatprep.mubr.f32.mxu0 0.0
      %957 = vmatmul.mubr.f32.gmra.mxu0 %v366
      %v958 = vpop.f32.mrf.mxu0
      %v959 = vadd.f32 %v645, %v958
      %v960 = vpop.f32.mrf.mxu0
      %961 = vmatprep.mubr.f32.mxu0 0.0
      %962 = vmatmul.mubr.f32.gmra.mxu0 %v369
      %v963 = vpop.f32.mrf.mxu0
      %v964 = vadd.f32 %v650, %v963
      %v965 = vpop.f32.mrf.mxu0
      %966 = vmatprep.mubr.f32.mxu0 0.0
      %967 = vmatmul.mubr.f32.gmra.mxu0 %v372
      %v968 = vpop.f32.mrf.mxu0
      %v969 = vadd.f32 %v655, %v968
      %v970 = vpop.f32.mrf.mxu0
      %971 = vmatprep.mubr.f32.mxu0 0.0
      %972 = vmatmul.mubr.f32.gmra.mxu0 %v375
      %v973 = vpop.f32.mrf.mxu0
      %v974 = vadd.f32 %v660, %v973
      %v975 = vpop.f32.mrf.mxu0
      %976 = vmatprep.mubr.f32.mxu0 0.0
      %977 = vmatmul.mubr.f32.gmra.mxu0 %v378
      %v978 = vpop.f32.mrf.mxu0
      %v979 = vadd.f32 %v665, %v978
      %v980 = vpop.f32.mrf.mxu0
      %981 = vmatprep.mubr.f32.mxu0 0.0
      %982 = vmatmul.mubr.f32.gmra.mxu0 %v381
      %v983 = vpop.f32.mrf.mxu0
      %v984 = vadd.f32 %v670, %v983
      %v985 = vpop.f32.mrf.mxu0
      %986 = vmatprep.mubr.f32.mxu0 0.0
      %987 = vmatmul.mubr.f32.gmra.mxu0 %v384
      %v988 = vpop.f32.mrf.mxu0
      %v989 = vadd.f32 %v675, %v988
      %v990 = vpop.f32.mrf.mxu0
      %991 = vmatprep.mubr.f32.mxu0 0.0
      %992 = vmatmul.mubr.f32.gmra.mxu0 %v387
      %v993 = vpop.f32.mrf.mxu0
      %v994 = vadd.f32 %v680, %v993
      %v995 = vpop.f32.mrf.mxu0
      %996 = vmatprep.mubr.f32.mxu0 0.0
      %997 = vmatmul.mubr.f32.gmra.mxu0 %v390
      %v998 = vpop.f32.mrf.mxu0
      %v999 = vadd.f32 %v685, %v998
      %v1000 = vpop.f32.mrf.mxu0
      %1001 = vmatprep.mubr.f32.mxu0 0.0
      %1002 = vmatmul.mubr.f32.gmra.mxu0 %v393
      %v1003 = vpop.f32.mrf.mxu0
      %v1004 = vadd.f32 %v690, %v1003
      %v1005 = vpop.f32.mrf.mxu0
      %1006 = vmatprep.mubr.f32.mxu0 0.0
      %1007 = vmatmul.mubr.f32.gmra.mxu0 %v396
      %v1008 = vpop.f32.mrf.mxu0
      %v1009 = vadd.f32 %v695, %v1008
      %v1010 = vpop.f32.mrf.mxu0
      %1011 = vmatprep.mubr.f32.mxu0 0.0
      %1012 = vmatmul.mubr.f32.gmra.mxu0 %v399
      %v1013 = vpop.f32.mrf.mxu0
      %v1014 = vadd.f32 %v700, %v1013
      %v1015 = vpop.f32.mrf.mxu0
      %1016 = vmatprep.mubr.f32.mxu0 0.0
      %1017 = vmatmul.mubr.f32.gmra.mxu0 %v402
      %v1018 = vpop.f32.mrf.mxu0
      %v1019 = vadd.f32 %v705, %v1018
      %v1020 = vpop.f32.mrf.mxu0
      %1021 = vmatprep.mubr.f32.mxu0 0.0
      %1022 = vmatmul.mubr.f32.gmra.mxu0 %v405
      %v1023 = vpop.f32.mrf.mxu0
      %v1024 = vadd.f32 %v710, %v1023
      %v1025 = vpop.f32.mrf.mxu0
      %1026 = vmatprep.mubr.f32.mxu0 0.0
      %1027 = vmatmul.mubr.f32.gmra.mxu0 %v408
      %v1028 = vpop.f32.mrf.mxu0
      %v1029 = vadd.f32 %v715, %v1028
      %v1030 = vpop.f32.mrf.mxu0
      %1031 = vmatprep.mubr.f32.mxu0 0.0
      %1032 = vmatmul.mubr.f32.gmra.mxu0 %v411
      %v1033 = vpop.f32.mrf.mxu0
      %v1034 = vadd.f32 %v720, %v1033
      %v1035 = vpop.f32.mrf.mxu0
      %1036 = vmatprep.mubr.f32.mxu0 0.0
      %1037 = vmatmul.mubr.f32.gmra.mxu0 %v414
      %v1038 = vpop.f32.mrf.mxu0
      %v1039 = vadd.f32 %v725, %v1038
      %v1040 = vpop.f32.mrf.mxu0
      %1041 = vmatprep.mubr.f32.mxu0 0.0
      %1042 = vmatmul.mubr.f32.gmra.mxu0 %v417
      %v1043 = vpop.f32.mrf.mxu0
      %v1044 = vadd.f32 %v730, %v1043
      %v1045 = vpop.f32.mrf.mxu0
      %1046 = vdwg.mxu0
      %v1047 = vld [vmem:[%s219 + $0x30] sm:$0xff]
      %v1048 = vld [vmem:[%s219 + $0x38] sm:$0xff]
      %v1049 = vld [vmem:[%s219 + $0x40] sm:$0xff]
      %v1050 = vld [vmem:[%s219 + $0x48] sm:$0xff]
      %v1051 = vld [vmem:[%s219 + $0x50] sm:$0xff]
      %v1052 = vld [vmem:[%s219 + $0x58] sm:$0xff]
      %v1053 = vld [vmem:[%s219 + $0x60] sm:$0xff]
      %v1054 = vld [vmem:[%s219 + $0x68] sm:$0xff]
      %v1055 = vld [vmem:[%s219 + $0x70] sm:$0xff]
      %v1056 = vld [vmem:[%s219 + $0x78] sm:$0xff]
      %v1057 = vld [vmem:[%s219 + $0x80] sm:$0xff]
      %v1058 = vld [vmem:[%s219 + $0x88] sm:$0xff]
      %v1059 = vld [vmem:[%s219 + $0x90] sm:$0xff]
      %v1060 = vld [vmem:[%s219 + $0x98] sm:$0xff]
      %v1061 = vld [vmem:[%s219 + $0xa0] sm:$0xff]
      %v1062 = vld [vmem:[%s219 + $0xa8] sm:$0xff]
      %v1063 = vld [vmem:[%s219 + $0xb0] sm:$0xff]
      %v1064 = vld [vmem:[%s219 + $0xb8] sm:$0xff]
      %v1065 = vld [vmem:[%s219 + $0xc0] sm:$0xff]
      %v1066 = vld [vmem:[%s219 + $0xc8] sm:$0xff]
      %v1067 = vld [vmem:[%s219 + $0xd0] sm:$0xff]
      %v1068 = vld [vmem:[%s219 + $0xd8] sm:$0xff]
      %v1069 = vld [vmem:[%s219 + $0xe0] sm:$0xff]
      %v1070 = vld [vmem:[%s219 + $0xe8] sm:$0xff]
      %v1071 = vld [vmem:[%s219 + $0xf0] sm:$0xff]
      %v1072 = vld [vmem:[%s219 + $0xf8] sm:$0xff]
      %v1073 = vld [vmem:[%s219 + $0x100] sm:$0xff]
      %v1074 = vld [vmem:[%s219 + $0x108] sm:$0xff]
      %v1075 = vld [vmem:[%s219 + $0x110] sm:$0xff]
      %v1076 = vld [vmem:[%s219 + $0x118] sm:$0xff]
      %v1077 = vld [vmem:[%s219 + $0x120] sm:$0xff]
      %v1078 = vld [vmem:[%s219 + $0x128] sm:$0xff]
      %v1079 = vld [vmem:[%s219 + $0x130] sm:$0xff]
      %v1080 = vld [vmem:[%s219 + $0x138] sm:$0xff]
      %v1081 = vld [vmem:[%s219 + $0x140] sm:$0xff]
      %v1082 = vld [vmem:[%s219 + $0x148] sm:$0xff]
      %v1083 = vld [vmem:[%s219 + $0x150] sm:$0xff]
      %v1084 = vld [vmem:[%s219 + $0x158] sm:$0xff]
      %v1085 = vld [vmem:[%s219 + $0x160] sm:$0xff]
      %v1086 = vld [vmem:[%s219 + $0x168] sm:$0xff]
      %v1087 = vld [vmem:[%s219 + $0x170] sm:$0xff]
      %v1088 = vld [vmem:[%s219 + $0x178] sm:$0xff]
      %v1089 = vld [vmem:[%s219 + $0x180] sm:$0xff]
      %v1090 = vld [vmem:[%s219 + $0x188] sm:$0xff]
      %v1091 = vld [vmem:[%s219 + $0x190] sm:$0xff]
      %v1092 = vld [vmem:[%s219 + $0x198] sm:$0xff]
      %v1093 = vld [vmem:[%s219 + $0x1a0] sm:$0xff]
      %v1094 = vld [vmem:[%s219 + $0x1a8] sm:$0xff]
      %s1095 = scalar_lea.vmem %s1, 48
      %v1096 = vld [vmem:[%s1095] sm:$0xff]
      %v1097 = vld [vmem:[%s1095 + $0x8] sm:$0xff]
      %v1098 = vld [vmem:[%s1095 + $0x10] sm:$0xff]
      %v1100 = vsel %vm283, %v1047, 0
      %v1103 = vsel %vm283, %v1048, 0
      %v1106 = vsel %vm283, %v1049, 0
      %v1109 = vsel %vm283, %v1050, 0
      %v1112 = vsel %vm283, %v1051, 0
      %v1115 = vsel %vm283, %v1052, 0
      %v1118 = vsel %vm283, %v1053, 0
      %v1121 = vsel %vm283, %v1054, 0
      %v1124 = vsel %vm283, %v1055, 0
      %v1127 = vsel %vm283, %v1056, 0
      %v1130 = vsel %vm283, %v1057, 0
      %v1133 = vsel %vm283, %v1058, 0
      %v1136 = vsel %vm283, %v1059, 0
      %v1139 = vsel %vm283, %v1060, 0
      %v1142 = vsel %vm283, %v1061, 0
      %v1145 = vsel %vm283, %v1062, 0
      %v1148 = vsel %vm283, %v1063, 0
      %v1151 = vsel %vm283, %v1064, 0
      %v1154 = vsel %vm283, %v1065, 0
      %v1157 = vsel %vm283, %v1066, 0
      %v1160 = vsel %vm283, %v1067, 0
      %v1163 = vsel %vm283, %v1068, 0
      %v1166 = vsel %vm283, %v1069, 0
      %v1169 = vsel %vm283, %v1070, 0
      %v1172 = vsel %vm283, %v1071, 0
      %v1175 = vsel %vm283, %v1072, 0
      %v1178 = vsel %vm283, %v1073, 0
      %v1181 = vsel %vm283, %v1074, 0
      %v1184 = vsel %vm283, %v1075, 0
      %v1187 = vsel %vm283, %v1076, 0
      %v1190 = vsel %vm283, %v1077, 0
      %v1193 = vsel %vm283, %v1078, 0
      %v1196 = vsel %vm283, %v1079, 0
      %v1199 = vsel %vm283, %v1080, 0
      %v1202 = vsel %vm283, %v1081, 0
      %v1205 = vsel %vm283, %v1082, 0
      %v1208 = vsel %vm283, %v1083, 0
      %v1211 = vsel %vm283, %v1084, 0
      %v1214 = vsel %vm283, %v1085, 0
      %v1217 = vsel %vm283, %v1086, 0
      %v1220 = vsel %vm283, %v1087, 0
      %v1223 = vsel %vm283, %v1088, 0
      %v1226 = vsel %vm283, %v1089, 0
      %v1229 = vsel %vm283, %v1090, 0
      %v1232 = vsel %vm283, %v1091, 0
      %v1235 = vsel %vm283, %v1092, 0
      %v1238 = vsel %vm283, %v1093, 0
      %v1241 = vsel %vm283, %v1094, 0
      %1243 = vmatprep.subr.mxu0 0.0
      %1244 = vmatpush1.msra.mxu0 0.0
      %1245 = vmatprep.subr.mxu0 0.0
      %1246 = vmatpush1.msra.mxu0 0.0
      %1247 = vmatprep.subr.mxu0 0.0
      %1248 = vmatpush1.msra.mxu0 0.0
      %1249 = vmatprep.subr.mxu0 0.0
      %1250 = vmatpush1.msra.mxu0 0.0
      %1251 = vmatprep.subr.mxu0 0.0
      %1252 = vmatpush1.msra.mxu0 0.0
      %1253 = vmatprep.subr.mxu0 0.0
      %1254 = vmatpush1.msra.mxu0 0.0
      %1255 = vmatprep.subr.mxu0 0.0
      %1256 = vmatpush1.msra.mxu0 0.0
      %1257 = vmatprep.subr.mxu0 0.0
      %1258 = vmatpush1.msra.mxu0 0.0
      %1259 = vmatprep.subr.mxu0 0.0
      %1260 = vmatpush1.msra.mxu0 0.0
      %1261 = vmatprep.subr.mxu0 0.0
      %1262 = vmatpush1.msra.mxu0 0.0
      %1263 = vmatprep.subr.mxu0 0.0
      %1264 = vmatpush1.msra.mxu0 0.0
      %1265 = vmatprep.subr.mxu0 0.0
      %1266 = vmatpush1.msra.mxu0 0.0
      %1267 = vmatprep.subr.mxu0 0.0
      %1268 = vmatpush1.msra.mxu0 0.0
      %1269 = vmatprep.subr.mxu0 0.0
      %1270 = vmatpush1.msra.mxu0 %v1098
      %1271 = vmatprep.subr.mxu0 0.0
      %1272 = vmatpush1.msra.mxu0 %v1097
      %1273 = vmatprep.subr.mxu0 0.0
      %1274 = vmatpush1.msra.mxu0 %v1096
      %1275 = vmatprep.subr.mxu0 0.0
      %1276 = vmatpush2.msra.mxu0 0.0
      %1277 = vmatprep.subr.mxu0 0.0
      %1278 = vmatpush2.msra.mxu0 0.0
      %1279 = vmatprep.subr.mxu0 0.0
      %1280 = vmatpush2.msra.mxu0 0.0
      %1281 = vmatprep.subr.mxu0 0.0
      %1282 = vmatpush2.msra.mxu0 0.0
      %1283 = vmatprep.subr.mxu0 0.0
      %1284 = vmatpush2.msra.mxu0 0.0
      %1285 = vmatprep.subr.mxu0 0.0
      %1286 = vmatpush2.msra.mxu0 0.0
      %1287 = vmatprep.subr.mxu0 0.0
      %1288 = vmatpush2.msra.mxu0 0.0
      %1289 = vmatprep.subr.mxu0 0.0
      %1290 = vmatpush2.msra.mxu0 0.0
      %1291 = vmatprep.subr.mxu0 0.0
      %1292 = vmatpush2.msra.mxu0 0.0
      %1293 = vmatprep.subr.mxu0 0.0
      %1294 = vmatpush2.msra.mxu0 0.0
      %1295 = vmatprep.subr.mxu0 0.0
      %1296 = vmatpush2.msra.mxu0 0.0
      %1297 = vmatprep.subr.mxu0 0.0
      %1298 = vmatpush2.msra.mxu0 0.0
      %1299 = vmatprep.subr.mxu0 0.0
      %1300 = vmatpush2.msra.mxu0 0.0
      %1301 = vmatprep.subr.mxu0 0.0
      %1302 = vmatpush2.msra.mxu0 0.0
      %1303 = vmatprep.subr.mxu0 0.0
      %1304 = vmatpush2.msra.mxu0 0.0
      %1305 = vmatprep.subr.mxu0 0.0
      %1306 = vmatpush2.msra.mxu0 0.0
      %1307 = vmatprep.mubr.f32.mxu0 0.0
      %1308 = vmatmul.mubr.f32.gmra.mxu0 %v1100
      %v1309 = vpop.f32.mrf.mxu0
      %v1310 = vadd.f32 0.0, %v1309
      %v1311 = vpop.f32.mrf.mxu0
      %1312 = vmatprep.mubr.f32.mxu0 0.0
      %1313 = vmatmul.mubr.f32.gmra.mxu0 %v1103
      %v1314 = vpop.f32.mrf.mxu0
      %v1315 = vadd.f32 0.0, %v1314
      %v1316 = vpop.f32.mrf.mxu0
      %1317 = vmatprep.mubr.f32.mxu0 0.0
      %1318 = vmatmul.mubr.f32.gmra.mxu0 %v1106
      %v1319 = vpop.f32.mrf.mxu0
      %v1320 = vadd.f32 0.0, %v1319
      %v1321 = vpop.f32.mrf.mxu0
      %1322 = vmatprep.mubr.f32.mxu0 0.0
      %1323 = vmatmul.mubr.f32.gmra.mxu0 %v1109
      %v1324 = vpop.f32.mrf.mxu0
      %v1325 = vadd.f32 0.0, %v1324
      %v1326 = vpop.f32.mrf.mxu0
      %1327 = vmatprep.mubr.f32.mxu0 0.0
      %1328 = vmatmul.mubr.f32.gmra.mxu0 %v1112
      %v1329 = vpop.f32.mrf.mxu0
      %v1330 = vadd.f32 0.0, %v1329
      %v1331 = vpop.f32.mrf.mxu0
      %1332 = vmatprep.mubr.f32.mxu0 0.0
      %1333 = vmatmul.mubr.f32.gmra.mxu0 %v1115
      %v1334 = vpop.f32.mrf.mxu0
      %v1335 = vadd.f32 0.0, %v1334
      %v1336 = vpop.f32.mrf.mxu0
      %1337 = vmatprep.mubr.f32.mxu0 0.0
      %1338 = vmatmul.mubr.f32.gmra.mxu0 %v1118
      %v1339 = vpop.f32.mrf.mxu0
      %v1340 = vadd.f32 0.0, %v1339
      %v1341 = vpop.f32.mrf.mxu0
      %1342 = vmatprep.mubr.f32.mxu0 0.0
      %1343 = vmatmul.mubr.f32.gmra.mxu0 %v1121
      %v1344 = vpop.f32.mrf.mxu0
      %v1345 = vadd.f32 0.0, %v1344
      %v1346 = vpop.f32.mrf.mxu0
      %1347 = vmatprep.mubr.f32.mxu0 0.0
      %1348 = vmatmul.mubr.f32.gmra.mxu0 %v1124
      %v1349 = vpop.f32.mrf.mxu0
      %v1350 = vadd.f32 0.0, %v1349
      %v1351 = vpop.f32.mrf.mxu0
      %1352 = vmatprep.mubr.f32.mxu0 0.0
      %1353 = vmatmul.mubr.f32.gmra.mxu0 %v1127
      %v1354 = vpop.f32.mrf.mxu0
      %v1355 = vadd.f32 0.0, %v1354
      %v1356 = vpop.f32.mrf.mxu0
      %1357 = vmatprep.mubr.f32.mxu0 0.0
      %1358 = vmatmul.mubr.f32.gmra.mxu0 %v1130
      %v1359 = vpop.f32.mrf.mxu0
      %v1360 = vadd.f32 0.0, %v1359
      %v1361 = vpop.f32.mrf.mxu0
      %1362 = vmatprep.mubr.f32.mxu0 0.0
      %1363 = vmatmul.mubr.f32.gmra.mxu0 %v1133
      %v1364 = vpop.f32.mrf.mxu0
      %v1365 = vadd.f32 0.0, %v1364
      %v1366 = vpop.f32.mrf.mxu0
      %1367 = vmatprep.mubr.f32.mxu0 0.0
      %1368 = vmatmul.mubr.f32.gmra.mxu0 %v1136
      %v1369 = vpop.f32.mrf.mxu0
      %v1370 = vadd.f32 0.0, %v1369
      %v1371 = vpop.f32.mrf.mxu0
      %1372 = vmatprep.mubr.f32.mxu0 0.0
      %1373 = vmatmul.mubr.f32.gmra.mxu0 %v1139
      %v1374 = vpop.f32.mrf.mxu0
      %v1375 = vadd.f32 0.0, %v1374
      %v1376 = vpop.f32.mrf.mxu0
      %1377 = vmatprep.mubr.f32.mxu0 0.0
      %1378 = vmatmul.mubr.f32.gmra.mxu0 %v1142
      %v1379 = vpop.f32.mrf.mxu0
      %v1380 = vadd.f32 0.0, %v1379
      %v1381 = vpop.f32.mrf.mxu0
      %1382 = vmatprep.mubr.f32.mxu0 0.0
      %1383 = vmatmul.mubr.f32.gmra.mxu0 %v1145
      %v1384 = vpop.f32.mrf.mxu0
      %v1385 = vadd.f32 0.0, %v1384
      %v1386 = vpop.f32.mrf.mxu0
      %1387 = vmatprep.mubr.f32.mxu0 0.0
      %1388 = vmatmul.mubr.f32.gmra.mxu0 %v1148
      %v1389 = vpop.f32.mrf.mxu0
      %v1390 = vadd.f32 0.0, %v1389
      %v1391 = vpop.f32.mrf.mxu0
      %1392 = vmatprep.mubr.f32.mxu0 0.0
      %1393 = vmatmul.mubr.f32.gmra.mxu0 %v1151
      %v1394 = vpop.f32.mrf.mxu0
      %v1395 = vadd.f32 0.0, %v1394
      %v1396 = vpop.f32.mrf.mxu0
      %1397 = vmatprep.mubr.f32.mxu0 0.0
      %1398 = vmatmul.mubr.f32.gmra.mxu0 %v1154
      %v1399 = vpop.f32.mrf.mxu0
      %v1400 = vadd.f32 0.0, %v1399
      %v1401 = vpop.f32.mrf.mxu0
      %1402 = vmatprep.mubr.f32.mxu0 0.0
      %1403 = vmatmul.mubr.f32.gmra.mxu0 %v1157
      %v1404 = vpop.f32.mrf.mxu0
      %v1405 = vadd.f32 0.0, %v1404
      %v1406 = vpop.f32.mrf.mxu0
      %1407 = vmatprep.mubr.f32.mxu0 0.0
      %1408 = vmatmul.mubr.f32.gmra.mxu0 %v1160
      %v1409 = vpop.f32.mrf.mxu0
      %v1410 = vadd.f32 0.0, %v1409
      %v1411 = vpop.f32.mrf.mxu0
      %1412 = vmatprep.mubr.f32.mxu0 0.0
      %1413 = vmatmul.mubr.f32.gmra.mxu0 %v1163
      %v1414 = vpop.f32.mrf.mxu0
      %v1415 = vadd.f32 0.0, %v1414
      %v1416 = vpop.f32.mrf.mxu0
      %1417 = vmatprep.mubr.f32.mxu0 0.0
      %1418 = vmatmul.mubr.f32.gmra.mxu0 %v1166
      %v1419 = vpop.f32.mrf.mxu0
      %v1420 = vadd.f32 0.0, %v1419
      %v1421 = vpop.f32.mrf.mxu0
      %1422 = vmatprep.mubr.f32.mxu0 0.0
      %1423 = vmatmul.mubr.f32.gmra.mxu0 %v1169
      %v1424 = vpop.f32.mrf.mxu0
      %v1425 = vadd.f32 0.0, %v1424
      %v1426 = vpop.f32.mrf.mxu0
      %1427 = vmatprep.mubr.f32.mxu0 0.0
      %1428 = vmatmul.mubr.f32.gmra.mxu0 %v1172
      %v1429 = vpop.f32.mrf.mxu0
      %v1430 = vadd.f32 0.0, %v1429
      %v1431 = vpop.f32.mrf.mxu0
      %1432 = vmatprep.mubr.f32.mxu0 0.0
      %1433 = vmatmul.mubr.f32.gmra.mxu0 %v1175
      %v1434 = vpop.f32.mrf.mxu0
      %v1435 = vadd.f32 0.0, %v1434
      %v1436 = vpop.f32.mrf.mxu0
      %1437 = vmatprep.mubr.f32.mxu0 0.0
      %1438 = vmatmul.mubr.f32.gmra.mxu0 %v1178
      %v1439 = vpop.f32.mrf.mxu0
      %v1440 = vadd.f32 0.0, %v1439
      %v1441 = vpop.f32.mrf.mxu0
      %1442 = vmatprep.mubr.f32.mxu0 0.0
      %1443 = vmatmul.mubr.f32.gmra.mxu0 %v1181
      %v1444 = vpop.f32.mrf.mxu0
      %v1445 = vadd.f32 0.0, %v1444
      %v1446 = vpop.f32.mrf.mxu0
      %1447 = vmatprep.mubr.f32.mxu0 0.0
      %1448 = vmatmul.mubr.f32.gmra.mxu0 %v1184
      %v1449 = vpop.f32.mrf.mxu0
      %v1450 = vadd.f32 0.0, %v1449
      %v1451 = vpop.f32.mrf.mxu0
      %1452 = vmatprep.mubr.f32.mxu0 0.0
      %1453 = vmatmul.mubr.f32.gmra.mxu0 %v1187
      %v1454 = vpop.f32.mrf.mxu0
      %v1455 = vadd.f32 0.0, %v1454
      %v1456 = vpop.f32.mrf.mxu0
      %1457 = vmatprep.mubr.f32.mxu0 0.0
      %1458 = vmatmul.mubr.f32.gmra.mxu0 %v1190
      %v1459 = vpop.f32.mrf.mxu0
      %v1460 = vadd.f32 0.0, %v1459
      %v1461 = vpop.f32.mrf.mxu0
      %1462 = vmatprep.mubr.f32.mxu0 0.0
      %1463 = vmatmul.mubr.f32.gmra.mxu0 %v1193
      %v1464 = vpop.f32.mrf.mxu0
      %v1465 = vadd.f32 0.0, %v1464
      %v1466 = vpop.f32.mrf.mxu0
      %1467 = vmatprep.mubr.f32.mxu0 0.0
      %1468 = vmatmul.mubr.f32.gmra.mxu0 %v1196
      %v1469 = vpop.f32.mrf.mxu0
      %v1470 = vadd.f32 0.0, %v1469
      %v1471 = vpop.f32.mrf.mxu0
      %1472 = vmatprep.mubr.f32.mxu0 0.0
      %1473 = vmatmul.mubr.f32.gmra.mxu0 %v1199
      %v1474 = vpop.f32.mrf.mxu0
      %v1475 = vadd.f32 0.0, %v1474
      %v1476 = vpop.f32.mrf.mxu0
      %1477 = vmatprep.mubr.f32.mxu0 0.0
      %1478 = vmatmul.mubr.f32.gmra.mxu0 %v1202
      %v1479 = vpop.f32.mrf.mxu0
      %v1480 = vadd.f32 0.0, %v1479
      %v1481 = vpop.f32.mrf.mxu0
      %1482 = vmatprep.mubr.f32.mxu0 0.0
      %1483 = vmatmul.mubr.f32.gmra.mxu0 %v1205
      %v1484 = vpop.f32.mrf.mxu0
      %v1485 = vadd.f32 0.0, %v1484
      %v1486 = vpop.f32.mrf.mxu0
      %1487 = vmatprep.mubr.f32.mxu0 0.0
      %1488 = vmatmul.mubr.f32.gmra.mxu0 %v1208
      %v1489 = vpop.f32.mrf.mxu0
      %v1490 = vadd.f32 0.0, %v1489
      %v1491 = vpop.f32.mrf.mxu0
      %1492 = vmatprep.mubr.f32.mxu0 0.0
      %1493 = vmatmul.mubr.f32.gmra.mxu0 %v1211
      %v1494 = vpop.f32.mrf.mxu0
      %v1495 = vadd.f32 0.0, %v1494
      %v1496 = vpop.f32.mrf.mxu0
      %1497 = vmatprep.mubr.f32.mxu0 0.0
      %1498 = vmatmul.mubr.f32.gmra.mxu0 %v1214
      %v1499 = vpop.f32.mrf.mxu0
      %v1500 = vadd.f32 0.0, %v1499
      %v1501 = vpop.f32.mrf.mxu0
      %1502 = vmatprep.mubr.f32.mxu0 0.0
      %1503 = vmatmul.mubr.f32.gmra.mxu0 %v1217
      %v1504 = vpop.f32.mrf.mxu0
      %v1505 = vadd.f32 0.0, %v1504
      %v1506 = vpop.f32.mrf.mxu0
      %1507 = vmatprep.mubr.f32.mxu0 0.0
      %1508 = vmatmul.mubr.f32.gmra.mxu0 %v1220
      %v1509 = vpop.f32.mrf.mxu0
      %v1510 = vadd.f32 0.0, %v1509
      %v1511 = vpop.f32.mrf.mxu0
      %1512 = vmatprep.mubr.f32.mxu0 0.0
      %1513 = vmatmul.mubr.f32.gmra.mxu0 %v1223
      %v1514 = vpop.f32.mrf.mxu0
      %v1515 = vadd.f32 0.0, %v1514
      %v1516 = vpop.f32.mrf.mxu0
      %1517 = vmatprep.mubr.f32.mxu0 0.0
      %1518 = vmatmul.mubr.f32.gmra.mxu0 %v1226
      %v1519 = vpop.f32.mrf.mxu0
      %v1520 = vadd.f32 0.0, %v1519
      %v1521 = vpop.f32.mrf.mxu0
      %1522 = vmatprep.mubr.f32.mxu0 0.0
      %1523 = vmatmul.mubr.f32.gmra.mxu0 %v1229
      %v1524 = vpop.f32.mrf.mxu0
      %v1525 = vadd.f32 0.0, %v1524
      %v1526 = vpop.f32.mrf.mxu0
      %1527 = vmatprep.mubr.f32.mxu0 0.0
      %1528 = vmatmul.mubr.f32.gmra.mxu0 %v1232
      %v1529 = vpop.f32.mrf.mxu0
      %v1530 = vadd.f32 0.0, %v1529
      %v1531 = vpop.f32.mrf.mxu0
      %1532 = vmatprep.mubr.f32.mxu0 0.0
      %1533 = vmatmul.mubr.f32.gmra.mxu0 %v1235
      %v1534 = vpop.f32.mrf.mxu0
      %v1535 = vadd.f32 0.0, %v1534
      %v1536 = vpop.f32.mrf.mxu0
      %1537 = vmatprep.mubr.f32.mxu0 0.0
      %1538 = vmatmul.mubr.f32.gmra.mxu0 %v1238
      %v1539 = vpop.f32.mrf.mxu0
      %v1540 = vadd.f32 0.0, %v1539
      %v1541 = vpop.f32.mrf.mxu0
      %1542 = vmatprep.mubr.f32.mxu0 0.0
      %1543 = vmatmul.mubr.f32.gmra.mxu0 %v1241
      %v1544 = vpop.f32.mrf.mxu0
      %v1545 = vadd.f32 0.0, %v1544
      %v1546 = vpop.f32.mrf.mxu0
      %1547 = vdwg.mxu0
      %v1548 = vadd.f32 %v809, %v1310
      %v1549 = vadd.f32 %v814, %v1315
      %v1550 = vadd.f32 %v819, %v1320
      %v1551 = vadd.f32 %v824, %v1325
      %v1552 = vadd.f32 %v829, %v1330
      %v1553 = vadd.f32 %v834, %v1335
      %v1554 = vadd.f32 %v839, %v1340
      %v1555 = vadd.f32 %v844, %v1345
      %v1556 = vadd.f32 %v849, %v1350
      %v1557 = vadd.f32 %v854, %v1355
      %v1558 = vadd.f32 %v859, %v1360
      %v1559 = vadd.f32 %v864, %v1365
      %v1560 = vadd.f32 %v869, %v1370
      %v1561 = vadd.f32 %v874, %v1375
      %v1562 = vadd.f32 %v879, %v1380
      %v1563 = vadd.f32 %v884, %v1385
      %v1564 = vadd.f32 %v889, %v1390
      %v1565 = vadd.f32 %v894, %v1395
      %v1566 = vadd.f32 %v899, %v1400
      %v1567 = vadd.f32 %v904, %v1405
      %v1568 = vadd.f32 %v909, %v1410
      %v1569 = vadd.f32 %v914, %v1415
      %v1570 = vadd.f32 %v919, %v1420
      %v1571 = vadd.f32 %v924, %v1425
      %v1572 = vadd.f32 %v929, %v1430
      %v1573 = vadd.f32 %v934, %v1435
      %v1574 = vadd.f32 %v939, %v1440
      %v1575 = vadd.f32 %v944, %v1445
      %v1576 = vadd.f32 %v949, %v1450
      %v1577 = vadd.f32 %v954, %v1455
      %v1578 = vadd.f32 %v959, %v1460
      %v1579 = vadd.f32 %v964, %v1465
      %v1580 = vadd.f32 %v969, %v1470
      %v1581 = vadd.f32 %v974, %v1475
      %v1582 = vadd.f32 %v979, %v1480
      %v1583 = vadd.f32 %v984, %v1485
      %v1584 = vadd.f32 %v989, %v1490
      %v1585 = vadd.f32 %v994, %v1495
      %v1586 = vadd.f32 %v999, %v1500
      %v1587 = vadd.f32 %v1004, %v1505
      %v1588 = vadd.f32 %v1009, %v1510
      %v1589 = vadd.f32 %v1014, %v1515
      %v1590 = vadd.f32 %v1019, %v1520
      %v1591 = vadd.f32 %v1024, %v1525
      %v1592 = vadd.f32 %v1029, %v1530
      %v1593 = vadd.f32 %v1034, %v1535
      %v1594 = vadd.f32 %v1039, %v1540
      %v1595 = vadd.f32 %v1044, %v1545
      %v1596 = vld [vmem:[%s2] sm:$0x1]
      %v1598 = vlaneseq
      %v1599 = vshrl.u32 %v1598, 7
      %v1600 = vsub.s32 0, %v1599
      %v1601 = vrot.slane %v1596, %v1600
      %v1603 = vadd.f32 %v1548, %v1601
      %v1604 = vadd.f32 %v1549, %v1601
      %v1605 = vadd.f32 %v1550, %v1601
      %v1606 = vadd.f32 %v1551, %v1601
      %v1607 = vadd.f32 %v1552, %v1601
      %v1608 = vadd.f32 %v1553, %v1601
      %v1609 = vadd.f32 %v1554, %v1601
      %v1610 = vadd.f32 %v1555, %v1601
      %v1611 = vadd.f32 %v1556, %v1601
      %v1612 = vadd.f32 %v1557, %v1601
      %v1613 = vadd.f32 %v1558, %v1601
      %v1614 = vadd.f32 %v1559, %v1601
      %v1615 = vadd.f32 %v1560, %v1601
      %v1616 = vadd.f32 %v1561, %v1601
      %v1617 = vadd.f32 %v1562, %v1601
      %v1618 = vadd.f32 %v1563, %v1601
      %v1619 = vadd.f32 %v1564, %v1601
      %v1620 = vadd.f32 %v1565, %v1601
      %v1621 = vadd.f32 %v1566, %v1601
      %v1622 = vadd.f32 %v1567, %v1601
      %v1623 = vadd.f32 %v1568, %v1601
      %v1624 = vadd.f32 %v1569, %v1601
      %v1625 = vadd.f32 %v1570, %v1601
      %v1626 = vadd.f32 %v1571, %v1601
      %v1627 = vadd.f32 %v1572, %v1601
      %v1628 = vadd.f32 %v1573, %v1601
      %v1629 = vadd.f32 %v1574, %v1601
      %v1630 = vadd.f32 %v1575, %v1601
      %v1631 = vadd.f32 %v1576, %v1601
      %v1632 = vadd.f32 %v1577, %v1601
      %v1633 = vadd.f32 %v1578, %v1601
      %v1634 = vadd.f32 %v1579, %v1601
      %v1635 = vadd.f32 %v1580, %v1601
      %v1636 = vadd.f32 %v1581, %v1601
      %v1637 = vadd.f32 %v1582, %v1601
      %v1638 = vadd.f32 %v1583, %v1601
      %v1639 = vadd.f32 %v1584, %v1601
      %v1640 = vadd.f32 %v1585, %v1601
      %v1641 = vadd.f32 %v1586, %v1601
      %v1642 = vadd.f32 %v1587, %v1601
      %v1643 = vadd.f32 %v1588, %v1601
      %v1644 = vadd.f32 %v1589, %v1601
      %v1645 = vadd.f32 %v1590, %v1601
      %v1646 = vadd.f32 %v1591, %v1601
      %v1647 = vadd.f32 %v1592, %v1601
      %v1648 = vadd.f32 %v1593, %v1601
      %v1649 = vadd.f32 %v1594, %v1601
      %v1650 = vadd.f32 %v1595, %v1601
      %v1651 = vmax.f32 %v1603, 0.0
      %v1652 = vmax.f32 %v1604, 0.0
      %v1653 = vmax.f32 %v1605, 0.0
      %v1654 = vmax.f32 %v1606, 0.0
      %v1655 = vmax.f32 %v1607, 0.0
      %v1656 = vmax.f32 %v1608, 0.0
      %v1657 = vmax.f32 %v1609, 0.0
      %v1658 = vmax.f32 %v1610, 0.0
      %v1659 = vmax.f32 %v1611, 0.0
      %v1660 = vmax.f32 %v1612, 0.0
      %v1661 = vmax.f32 %v1613, 0.0
      %v1662 = vmax.f32 %v1614, 0.0
      %v1663 = vmax.f32 %v1615, 0.0
      %v1664 = vmax.f32 %v1616, 0.0
      %v1665 = vmax.f32 %v1617, 0.0
      %v1666 = vmax.f32 %v1618, 0.0
      %v1667 = vmax.f32 %v1619, 0.0
      %v1668 = vmax.f32 %v1620, 0.0
      %v1669 = vmax.f32 %v1621, 0.0
      %v1670 = vmax.f32 %v1622, 0.0
      %v1671 = vmax.f32 %v1623, 0.0
      %v1672 = vmax.f32 %v1624, 0.0
      %v1673 = vmax.f32 %v1625, 0.0
      %v1674 = vmax.f32 %v1626, 0.0
      %v1675 = vmax.f32 %v1627, 0.0
      %v1676 = vmax.f32 %v1628, 0.0
      %v1677 = vmax.f32 %v1629, 0.0
      %v1678 = vmax.f32 %v1630, 0.0
      %v1679 = vmax.f32 %v1631, 0.0
      %v1680 = vmax.f32 %v1632, 0.0
      %v1681 = vmax.f32 %v1633, 0.0
      %v1682 = vmax.f32 %v1634, 0.0
      %v1683 = vmax.f32 %v1635, 0.0
      %v1684 = vmax.f32 %v1636, 0.0
      %v1685 = vmax.f32 %v1637, 0.0
      %v1686 = vmax.f32 %v1638, 0.0
      %v1687 = vmax.f32 %v1639, 0.0
      %v1688 = vmax.f32 %v1640, 0.0
      %v1689 = vmax.f32 %v1641, 0.0
      %v1690 = vmax.f32 %v1642, 0.0
      %v1691 = vmax.f32 %v1643, 0.0
      %v1692 = vmax.f32 %v1644, 0.0
      %v1693 = vmax.f32 %v1645, 0.0
      %v1694 = vmax.f32 %v1646, 0.0
      %v1695 = vmax.f32 %v1647, 0.0
      %v1696 = vmax.f32 %v1648, 0.0
      %v1697 = vmax.f32 %v1649, 0.0
      %v1698 = vmax.f32 %v1650, 0.0
      %v1699 = vlaneseq
      %v1700 = vshrl.u32 %v1699, 7
      %v1701 = vadd.s32 %v1700, 8
      %v1702 = vadd.s32 %v1700, 16
      %v1703 = vadd.s32 %v1700, 24
      %v1704 = vadd.s32 %v1700, 32
      %v1705 = vadd.s32 %v1700, 40
      %v1706 = vadd.s32 %v1700, 48
      %v1707 = vadd.s32 %v1700, 56
      %v1708 = vadd.s32 %v1700, 64
      %v1709 = vadd.s32 %v1700, 72
      %v1710 = vadd.s32 %v1700, 80
      %v1711 = vadd.s32 %v1700, 88
      %v1712 = vadd.s32 %v1700, 96
      %v1713 = vadd.s32 %v1700, 104
      %v1714 = vadd.s32 %v1700, 112
      %v1715 = vadd.s32 %v1700, 120
      %v1716 = vadd.s32 %v1700, 128
      %v1717 = vadd.s32 %v1700, 136
      %v1718 = vadd.s32 %v1700, 144
      %v1719 = vadd.s32 %v1700, 152
      %v1720 = vadd.s32 %v1700, 160
      %v1721 = vadd.s32 %v1700, 168
      %v1722 = vadd.s32 %v1700, 176
      %v1723 = vadd.s32 %v1700, 184
      %v1724 = vadd.s32 %v1700, 192
      %v1725 = vadd.s32 %v1700, 200
      %v1726 = vadd.s32 %v1700, 208
      %v1727 = vadd.s32 %v1700, 216
      %v1728 = vadd.s32 %v1700, 224
      %v1729 = vadd.s32 %v1700, 232
      %v1730 = vadd.s32 %v1700, 240
      %v1731 = vadd.s32 %v1700, 248
      %v1732 = vadd.s32 %v1700, 256
      %v1733 = vadd.s32 %v1700, 264
      %v1734 = vadd.s32 %v1700, 272
      %v1735 = vadd.s32 %v1700, 280
      %v1736 = vadd.s32 %v1700, 288
      %v1737 = vadd.s32 %v1700, 296
      %v1738 = vadd.s32 %v1700, 304
      %v1739 = vadd.s32 %v1700, 312
      %v1740 = vadd.s32 %v1700, 320
      %v1741 = vadd.s32 %v1700, 328
      %v1742 = vadd.s32 %v1700, 336
      %v1743 = vadd.s32 %v1700, 344
      %v1744 = vadd.s32 %v1700, 352
      %v1745 = vadd.s32 %v1700, 360
      %v1746 = vadd.s32 %v1700, 368
      %v1747 = vadd.s32 %v1700, 376
      %v1748 = vcvt.s32.f32 %v1700
      %v1749 = vcvt.s32.f32 %v1701
      %v1750 = vcvt.s32.f32 %v1702
      %v1751 = vcvt.s32.f32 %v1703
      %v1752 = vcvt.s32.f32 %v1704
      %v1753 = vcvt.s32.f32 %v1705
      %v1754 = vcvt.s32.f32 %v1706
      %v1755 = vcvt.s32.f32 %v1707
      %v1756 = vcvt.s32.f32 %v1708
      %v1757 = vcvt.s32.f32 %v1709
      %v1758 = vcvt.s32.f32 %v1710
      %v1759 = vcvt.s32.f32 %v1711
      %v1760 = vcvt.s32.f32 %v1712
      %v1761 = vcvt.s32.f32 %v1713
      %v1762 = vcvt.s32.f32 %v1714
      %v1763 = vcvt.s32.f32 %v1715
      %v1764 = vcvt.s32.f32 %v1716
      %v1765 = vcvt.s32.f32 %v1717
      %v1766 = vcvt.s32.f32 %v1718
      %v1767 = vcvt.s32.f32 %v1719
      %v1768 = vcvt.s32.f32 %v1720
      %v1769 = vcvt.s32.f32 %v1721
      %v1770 = vcvt.s32.f32 %v1722
      %v1771 = vcvt.s32.f32 %v1723
      %v1772 = vcvt.s32.f32 %v1724
      %v1773 = vcvt.s32.f32 %v1725
      %v1774 = vcvt.s32.f32 %v1726
      %v1775 = vcvt.s32.f32 %v1727
      %v1776 = vcvt.s32.f32 %v1728
      %v1777 = vcvt.s32.f32 %v1729
      %v1778 = vcvt.s32.f32 %v1730
      %v1779 = vcvt.s32.f32 %v1731
      %v1780 = vcvt.s32.f32 %v1732
      %v1781 = vcvt.s32.f32 %v1733
      %v1782 = vcvt.s32.f32 %v1734
      %v1783 = vcvt.s32.f32 %v1735
      %v1784 = vcvt.s32.f32 %v1736
      %v1785 = vcvt.s32.f32 %v1737
      %v1786 = vcvt.s32.f32 %v1738
      %v1787 = vcvt.s32.f32 %v1739
      %v1788 = vcvt.s32.f32 %v1740
      %v1789 = vcvt.s32.f32 %v1741
      %v1790 = vcvt.s32.f32 %v1742
      %v1791 = vcvt.s32.f32 %v1743
      %v1792 = vcvt.s32.f32 %v1744
      %v1793 = vcvt.s32.f32 %v1745
      %v1794 = vcvt.s32.f32 %v1746
      %v1795 = vcvt.s32.f32 %v1747
      %v1796 = vadd.f32 %v1748, 0.5
      %v1797 = vadd.f32 %v1749, 0.5
      %v1798 = vadd.f32 %v1750, 0.5
      %v1799 = vadd.f32 %v1751, 0.5
      %v1800 = vadd.f32 %v1752, 0.5
      %v1801 = vadd.f32 %v1753, 0.5
      %v1802 = vadd.f32 %v1754, 0.5
      %v1803 = vadd.f32 %v1755, 0.5
      %v1804 = vadd.f32 %v1756, 0.5
      %v1805 = vadd.f32 %v1757, 0.5
      %v1806 = vadd.f32 %v1758, 0.5
      %v1807 = vadd.f32 %v1759, 0.5
      %v1808 = vadd.f32 %v1760, 0.5
      %v1809 = vadd.f32 %v1761, 0.5
      %v1810 = vadd.f32 %v1762, 0.5
      %v1811 = vadd.f32 %v1763, 0.5
      %v1812 = vadd.f32 %v1764, 0.5
      %v1813 = vadd.f32 %v1765, 0.5
      %v1814 = vadd.f32 %v1766, 0.5
      %v1815 = vadd.f32 %v1767, 0.5
      %v1816 = vadd.f32 %v1768, 0.5
      %v1817 = vadd.f32 %v1769, 0.5
      %v1818 = vadd.f32 %v1770, 0.5
      %v1819 = vadd.f32 %v1771, 0.5
      %v1820 = vadd.f32 %v1772, 0.5
      %v1821 = vadd.f32 %v1773, 0.5
      %v1822 = vadd.f32 %v1774, 0.5
      %v1823 = vadd.f32 %v1775, 0.5
      %v1824 = vadd.f32 %v1776, 0.5
      %v1825 = vadd.f32 %v1777, 0.5
      %v1826 = vadd.f32 %v1778, 0.5
      %v1827 = vadd.f32 %v1779, 0.5
      %v1828 = vadd.f32 %v1780, 0.5
      %v1829 = vadd.f32 %v1781, 0.5
      %v1830 = vadd.f32 %v1782, 0.5
      %v1831 = vadd.f32 %v1783, 0.5
      %v1832 = vadd.f32 %v1784, 0.5
      %v1833 = vadd.f32 %v1785, 0.5
      %v1834 = vadd.f32 %v1786, 0.5
      %v1835 = vadd.f32 %v1787, 0.5
      %v1836 = vadd.f32 %v1788, 0.5
      %v1837 = vadd.f32 %v1789, 0.5
      %v1838 = vadd.f32 %v1790, 0.5
      %v1839 = vadd.f32 %v1791, 0.5
      %v1840 = vadd.f32 %v1792, 0.5
      %v1841 = vadd.f32 %v1793, 0.5
      %v1842 = vadd.f32 %v1794, 0.5
      %v1843 = vadd.f32 %v1795, 0.5
      %v1844 = vmul.f32 %v1796, 0.041666668
      %v1845 = vmul.f32 %v1797, 0.041666668
      %v1846 = vmul.f32 %v1798, 0.041666668
      %v1847 = vmul.f32 %v1799, 0.041666668
      %v1848 = vmul.f32 %v1800, 0.041666668
      %v1849 = vmul.f32 %v1801, 0.041666668
      %v1850 = vmul.f32 %v1802, 0.041666668
      %v1851 = vmul.f32 %v1803, 0.041666668
      %v1852 = vmul.f32 %v1804, 0.041666668
      %v1853 = vmul.f32 %v1805, 0.041666668
      %v1854 = vmul.f32 %v1806, 0.041666668
      %v1855 = vmul.f32 %v1807, 0.041666668
      %v1856 = vmul.f32 %v1808, 0.041666668
      %v1857 = vmul.f32 %v1809, 0.041666668
      %v1858 = vmul.f32 %v1810, 0.041666668
      %v1859 = vmul.f32 %v1811, 0.041666668
      %v1860 = vmul.f32 %v1812, 0.041666668
      %v1861 = vmul.f32 %v1813, 0.041666668
      %v1862 = vmul.f32 %v1814, 0.041666668
      %v1863 = vmul.f32 %v1815, 0.041666668
      %v1864 = vmul.f32 %v1816, 0.041666668
      %v1865 = vmul.f32 %v1817, 0.041666668
      %v1866 = vmul.f32 %v1818, 0.041666668
      %v1867 = vmul.f32 %v1819, 0.041666668
      %v1868 = vmul.f32 %v1820, 0.041666668
      %v1869 = vmul.f32 %v1821, 0.041666668
      %v1870 = vmul.f32 %v1822, 0.041666668
      %v1871 = vmul.f32 %v1823, 0.041666668
      %v1872 = vmul.f32 %v1824, 0.041666668
      %v1873 = vmul.f32 %v1825, 0.041666668
      %v1874 = vmul.f32 %v1826, 0.041666668
      %v1875 = vmul.f32 %v1827, 0.041666668
      %v1876 = vmul.f32 %v1828, 0.041666668
      %v1877 = vmul.f32 %v1829, 0.041666668
      %v1878 = vmul.f32 %v1830, 0.041666668
      %v1879 = vmul.f32 %v1831, 0.041666668
      %v1880 = vmul.f32 %v1832, 0.041666668
      %v1881 = vmul.f32 %v1833, 0.041666668
      %v1882 = vmul.f32 %v1834, 0.041666668
      %v1883 = vmul.f32 %v1835, 0.041666668
      %v1884 = vmul.f32 %v1836, 0.041666668
      %v1885 = vmul.f32 %v1837, 0.041666668
      %v1886 = vmul.f32 %v1838, 0.041666668
      %v1887 = vmul.f32 %v1839, 0.041666668
      %v1888 = vmul.f32 %v1840, 0.041666668
      %v1889 = vmul.f32 %v1841, 0.041666668
      %v1890 = vmul.f32 %v1842, 0.041666668
      %v1891 = vmul.f32 %v1843, 0.041666668
      %v1892 = vfloor.f32 %v1844
      %v1893 = vfloor.f32 %v1845
      %v1894 = vfloor.f32 %v1846
      %v1895 = vfloor.f32 %v1847
      %v1896 = vfloor.f32 %v1848
      %v1897 = vfloor.f32 %v1849
      %v1898 = vfloor.f32 %v1850
      %v1899 = vfloor.f32 %v1851
      %v1900 = vfloor.f32 %v1852
      %v1901 = vfloor.f32 %v1853
      %v1902 = vfloor.f32 %v1854
      %v1903 = vfloor.f32 %v1855
      %v1904 = vfloor.f32 %v1856
      %v1905 = vfloor.f32 %v1857
      %v1906 = vfloor.f32 %v1858
      %v1907 = vfloor.f32 %v1859
      %v1908 = vfloor.f32 %v1860
      %v1909 = vfloor.f32 %v1861
      %v1910 = vfloor.f32 %v1862
      %v1911 = vfloor.f32 %v1863
      %v1912 = vfloor.f32 %v1864
      %v1913 = vfloor.f32 %v1865
      %v1914 = vfloor.f32 %v1866
      %v1915 = vfloor.f32 %v1867
      %v1916 = vfloor.f32 %v1868
      %v1917 = vfloor.f32 %v1869
      %v1918 = vfloor.f32 %v1870
      %v1919 = vfloor.f32 %v1871
      %v1920 = vfloor.f32 %v1872
      %v1921 = vfloor.f32 %v1873
      %v1922 = vfloor.f32 %v1874
      %v1923 = vfloor.f32 %v1875
      %v1924 = vfloor.f32 %v1876
      %v1925 = vfloor.f32 %v1877
      %v1926 = vfloor.f32 %v1878
      %v1927 = vfloor.f32 %v1879
      %v1928 = vfloor.f32 %v1880
      %v1929 = vfloor.f32 %v1881
      %v1930 = vfloor.f32 %v1882
      %v1931 = vfloor.f32 %v1883
      %v1932 = vfloor.f32 %v1884
      %v1933 = vfloor.f32 %v1885
      %v1934 = vfloor.f32 %v1886
      %v1935 = vfloor.f32 %v1887
      %v1936 = vfloor.f32 %v1888
      %v1937 = vfloor.f32 %v1889
      %v1938 = vfloor.f32 %v1890
      %v1939 = vfloor.f32 %v1891
      %v1940 = vmul.f32 %v1892, 24.0
      %v1941 = vmul.f32 %v1893, 24.0
      %v1942 = vmul.f32 %v1894, 24.0
      %v1943 = vmul.f32 %v1895, 24.0
      %v1944 = vmul.f32 %v1896, 24.0
      %v1945 = vmul.f32 %v1897, 24.0
      %v1946 = vmul.f32 %v1898, 24.0
      %v1947 = vmul.f32 %v1899, 24.0
      %v1948 = vmul.f32 %v1900, 24.0
      %v1949 = vmul.f32 %v1901, 24.0
      %v1950 = vmul.f32 %v1902, 24.0
      %v1951 = vmul.f32 %v1903, 24.0
      %v1952 = vmul.f32 %v1904, 24.0
      %v1953 = vmul.f32 %v1905, 24.0
      %v1954 = vmul.f32 %v1906, 24.0
      %v1955 = vmul.f32 %v1907, 24.0
      %v1956 = vmul.f32 %v1908, 24.0
      %v1957 = vmul.f32 %v1909, 24.0
      %v1958 = vmul.f32 %v1910, 24.0
      %v1959 = vmul.f32 %v1911, 24.0
      %v1960 = vmul.f32 %v1912, 24.0
      %v1961 = vmul.f32 %v1913, 24.0
      %v1962 = vmul.f32 %v1914, 24.0
      %v1963 = vmul.f32 %v1915, 24.0
      %v1964 = vmul.f32 %v1916, 24.0
      %v1965 = vmul.f32 %v1917, 24.0
      %v1966 = vmul.f32 %v1918, 24.0
      %v1967 = vmul.f32 %v1919, 24.0
      %v1968 = vmul.f32 %v1920, 24.0
      %v1969 = vmul.f32 %v1921, 24.0
      %v1970 = vmul.f32 %v1922, 24.0
      %v1971 = vmul.f32 %v1923, 24.0
      %v1972 = vmul.f32 %v1924, 24.0
      %v1973 = vmul.f32 %v1925, 24.0
      %v1974 = vmul.f32 %v1926, 24.0
      %v1975 = vmul.f32 %v1927, 24.0
      %v1976 = vmul.f32 %v1928, 24.0
      %v1977 = vmul.f32 %v1929, 24.0
      %v1978 = vmul.f32 %v1930, 24.0
      %v1979 = vmul.f32 %v1931, 24.0
      %v1980 = vmul.f32 %v1932, 24.0
      %v1981 = vmul.f32 %v1933, 24.0
      %v1982 = vmul.f32 %v1934, 24.0
      %v1983 = vmul.f32 %v1935, 24.0
      %v1984 = vmul.f32 %v1936, 24.0
      %v1985 = vmul.f32 %v1937, 24.0
      %v1986 = vmul.f32 %v1938, 24.0
      %v1987 = vmul.f32 %v1939, 24.0
      %v1988 = vsub.f32 %v1748, %v1940
      %v1989 = vsub.f32 %v1749, %v1941
      %v1990 = vsub.f32 %v1750, %v1942
      %v1991 = vsub.f32 %v1751, %v1943
      %v1992 = vsub.f32 %v1752, %v1944
      %v1993 = vsub.f32 %v1753, %v1945
      %v1994 = vsub.f32 %v1754, %v1946
      %v1995 = vsub.f32 %v1755, %v1947
      %v1996 = vsub.f32 %v1756, %v1948
      %v1997 = vsub.f32 %v1757, %v1949
      %v1998 = vsub.f32 %v1758, %v1950
      %v1999 = vsub.f32 %v1759, %v1951
      %v2000 = vsub.f32 %v1760, %v1952
      %v2001 = vsub.f32 %v1761, %v1953
      %v2002 = vsub.f32 %v1762, %v1954
      %v2003 = vsub.f32 %v1763, %v1955
      %v2004 = vsub.f32 %v1764, %v1956
      %v2005 = vsub.f32 %v1765, %v1957
      %v2006 = vsub.f32 %v1766, %v1958
      %v2007 = vsub.f32 %v1767, %v1959
      %v2008 = vsub.f32 %v1768, %v1960
      %v2009 = vsub.f32 %v1769, %v1961
      %v2010 = vsub.f32 %v1770, %v1962
      %v2011 = vsub.f32 %v1771, %v1963
      %v2012 = vsub.f32 %v1772, %v1964
      %v2013 = vsub.f32 %v1773, %v1965
      %v2014 = vsub.f32 %v1774, %v1966
      %v2015 = vsub.f32 %v1775, %v1967
      %v2016 = vsub.f32 %v1776, %v1968
      %v2017 = vsub.f32 %v1777, %v1969
      %v2018 = vsub.f32 %v1778, %v1970
      %v2019 = vsub.f32 %v1779, %v1971
      %v2020 = vsub.f32 %v1780, %v1972
      %v2021 = vsub.f32 %v1781, %v1973
      %v2022 = vsub.f32 %v1782, %v1974
      %v2023 = vsub.f32 %v1783, %v1975
      %v2024 = vsub.f32 %v1784, %v1976
      %v2025 = vsub.f32 %v1785, %v1977
      %v2026 = vsub.f32 %v1786, %v1978
      %v2027 = vsub.f32 %v1787, %v1979
      %v2028 = vsub.f32 %v1788, %v1980
      %v2029 = vsub.f32 %v1789, %v1981
      %v2030 = vsub.f32 %v1790, %v1982
      %v2031 = vsub.f32 %v1791, %v1983
      %v2032 = vsub.f32 %v1792, %v1984
      %v2033 = vsub.f32 %v1793, %v1985
      %v2034 = vsub.f32 %v1794, %v1986
      %v2035 = vsub.f32 %v1795, %v1987
      %vm2036 = vcmp.lt.f32.partialorder %v1988, 15.5
      %vm2037 = vcmp.lt.f32.partialorder %v1989, 15.5
      %vm2038 = vcmp.lt.f32.partialorder %v1990, 15.5
      %vm2039 = vcmp.lt.f32.partialorder %v1991, 15.5
      %vm2040 = vcmp.lt.f32.partialorder %v1992, 15.5
      %vm2041 = vcmp.lt.f32.partialorder %v1993, 15.5
      %vm2042 = vcmp.lt.f32.partialorder %v1994, 15.5
      %vm2043 = vcmp.lt.f32.partialorder %v1995, 15.5
      %vm2044 = vcmp.lt.f32.partialorder %v1996, 15.5
      %vm2045 = vcmp.lt.f32.partialorder %v1997, 15.5
      %vm2046 = vcmp.lt.f32.partialorder %v1998, 15.5
      %vm2047 = vcmp.lt.f32.partialorder %v1999, 15.5
      %vm2048 = vcmp.lt.f32.partialorder %v2000, 15.5
      %vm2049 = vcmp.lt.f32.partialorder %v2001, 15.5
      %vm2050 = vcmp.lt.f32.partialorder %v2002, 15.5
      %vm2051 = vcmp.lt.f32.partialorder %v2003, 15.5
      %vm2052 = vcmp.lt.f32.partialorder %v2004, 15.5
      %vm2053 = vcmp.lt.f32.partialorder %v2005, 15.5
      %vm2054 = vcmp.lt.f32.partialorder %v2006, 15.5
      %vm2055 = vcmp.lt.f32.partialorder %v2007, 15.5
      %vm2056 = vcmp.lt.f32.partialorder %v2008, 15.5
      %vm2057 = vcmp.lt.f32.partialorder %v2009, 15.5
      %vm2058 = vcmp.lt.f32.partialorder %v2010, 15.5
      %vm2059 = vcmp.lt.f32.partialorder %v2011, 15.5
      %vm2060 = vcmp.lt.f32.partialorder %v2012, 15.5
      %vm2061 = vcmp.lt.f32.partialorder %v2013, 15.5
      %vm2062 = vcmp.lt.f32.partialorder %v2014, 15.5
      %vm2063 = vcmp.lt.f32.partialorder %v2015, 15.5
      %vm2064 = vcmp.lt.f32.partialorder %v2016, 15.5
      %vm2065 = vcmp.lt.f32.partialorder %v2017, 15.5
      %vm2066 = vcmp.lt.f32.partialorder %v2018, 15.5
      %vm2067 = vcmp.lt.f32.partialorder %v2019, 15.5
      %vm2068 = vcmp.lt.f32.partialorder %v2020, 15.5
      %vm2069 = vcmp.lt.f32.partialorder %v2021, 15.5
      %vm2070 = vcmp.lt.f32.partialorder %v2022, 15.5
      %vm2071 = vcmp.lt.f32.partialorder %v2023, 15.5
      %vm2072 = vcmp.lt.f32.partialorder %v2024, 15.5
      %vm2073 = vcmp.lt.f32.partialorder %v2025, 15.5
      %vm2074 = vcmp.lt.f32.partialorder %v2026, 15.5
      %vm2075 = vcmp.lt.f32.partialorder %v2027, 15.5
      %vm2076 = vcmp.lt.f32.partialorder %v2028, 15.5
      %vm2077 = vcmp.lt.f32.partialorder %v2029, 15.5
      %vm2078 = vcmp.lt.f32.partialorder %v2030, 15.5
      %vm2079 = vcmp.lt.f32.partialorder %v2031, 15.5
      %vm2080 = vcmp.lt.f32.partialorder %v2032, 15.5
      %vm2081 = vcmp.lt.f32.partialorder %v2033, 15.5
      %vm2082 = vcmp.lt.f32.partialorder %v2034, 15.5
      %vm2083 = vcmp.lt.f32.partialorder %v2035, 15.5
      %v2084 = vsel %vm2036, %v1651, 0.0
      %v2085 = vsel %vm2037, %v1652, 0.0
      %v2086 = vsel %vm2038, %v1653, 0.0
      %v2087 = vsel %vm2039, %v1654, 0.0
      %v2088 = vsel %vm2040, %v1655, 0.0
      %v2089 = vsel %vm2041, %v1656, 0.0
      %v2090 = vsel %vm2042, %v1657, 0.0
      %v2091 = vsel %vm2043, %v1658, 0.0
      %v2092 = vsel %vm2044, %v1659, 0.0
      %v2093 = vsel %vm2045, %v1660, 0.0
      %v2094 = vsel %vm2046, %v1661, 0.0
      %v2095 = vsel %vm2047, %v1662, 0.0
      %v2096 = vsel %vm2048, %v1663, 0.0
      %v2097 = vsel %vm2049, %v1664, 0.0
      %v2098 = vsel %vm2050, %v1665, 0.0
      %v2099 = vsel %vm2051, %v1666, 0.0
      %v2100 = vsel %vm2052, %v1667, 0.0
      %v2101 = vsel %vm2053, %v1668, 0.0
      %v2102 = vsel %vm2054, %v1669, 0.0
      %v2103 = vsel %vm2055, %v1670, 0.0
      %v2104 = vsel %vm2056, %v1671, 0.0
      %v2105 = vsel %vm2057, %v1672, 0.0
      %v2106 = vsel %vm2058, %v1673, 0.0
      %v2107 = vsel %vm2059, %v1674, 0.0
      %v2108 = vsel %vm2060, %v1675, 0.0
      %v2109 = vsel %vm2061, %v1676, 0.0
      %v2110 = vsel %vm2062, %v1677, 0.0
      %v2111 = vsel %vm2063, %v1678, 0.0
      %v2112 = vsel %vm2064, %v1679, 0.0
      %v2113 = vsel %vm2065, %v1680, 0.0
      %v2114 = vsel %vm2066, %v1681, 0.0
      %v2115 = vsel %vm2067, %v1682, 0.0
      %v2116 = vsel %vm2068, %v1683, 0.0
      %v2117 = vsel %vm2069, %v1684, 0.0
      %v2118 = vsel %vm2070, %v1685, 0.0
      %v2119 = vsel %vm2071, %v1686, 0.0
      %v2120 = vsel %vm2072, %v1687, 0.0
      %v2121 = vsel %vm2073, %v1688, 0.0
      %v2122 = vsel %vm2074, %v1689, 0.0
      %v2123 = vsel %vm2075, %v1690, 0.0
      %v2124 = vsel %vm2076, %v1691, 0.0
      %v2125 = vsel %vm2077, %v1692, 0.0
      %v2126 = vsel %vm2078, %v1693, 0.0
      %v2127 = vsel %vm2079, %v1694, 0.0
      %v2128 = vsel %vm2080, %v1695, 0.0
      %v2129 = vsel %vm2081, %v1696, 0.0
      %v2130 = vsel %vm2082, %v1697, 0.0
      %v2131 = vsel %vm2083, %v1698, 0.0
      %vm2132 = vcmask 31744
      %2133 = vst.msk [vmem:[#allocation2] sm:$0xff] %vm2132, 0.0
      %2134 = vst.msk [vmem:[#allocation2 + $0x8] sm:$0xff] %vm2132, 0.0
      %2135 = vst.msk [vmem:[#allocation2 + $0x10] sm:$0xff] %vm2132, 0.0
      %vm2136 = vcmask 24576
      %2137 = vst.msk [vmem:[#allocation2 + $0x18] sm:$0x1] %vm2136, 0.0
      %2138 = vst.msk [vmem:[#allocation2 + $0x19] sm:$0xff] %vm2132, %v2084
      %2139 = vst.msk [vmem:[#allocation2 + $0x21] sm:$0xff] %vm2132, %v2085
      %2140 = vst.msk [vmem:[#allocation2 + $0x29] sm:$0xff] %vm2132, %v2086
      %2141 = vst.msk [vmem:[#allocation2 + $0x31] sm:$0xff] %vm2132, %v2087
      %2142 = vst.msk [vmem:[#allocation2 + $0x39] sm:$0xff] %vm2132, %v2088
      %2143 = vst.msk [vmem:[#allocation2 + $0x41] sm:$0xff] %vm2132, %v2089
      %2144 = vst.msk [vmem:[#allocation2 + $0x49] sm:$0xff] %vm2132, %v2090
      %2145 = vst.msk [vmem:[#allocation2 + $0x51] sm:$0xff] %vm2132, %v2091
      %2146 = vst.msk [vmem:[#allocation2 + $0x59] sm:$0xff] %vm2132, %v2092
      %2147 = vst.msk [vmem:[#allocation2 + $0x61] sm:$0xff] %vm2132, %v2093
      %2148 = vst.msk [vmem:[#allocation2 + $0x69] sm:$0xff] %vm2132, %v2094
      %2149 = vst.msk [vmem:[#allocation2 + $0x71] sm:$0xff] %vm2132, %v2095
      %2150 = vst.msk [vmem:[#allocation2 + $0x79] sm:$0xff] %vm2132, %v2096
      %2151 = vst.msk [vmem:[#allocation2 + $0x81] sm:$0xff] %vm2132, %v2097
      %2152 = vst.msk [vmem:[#allocation2 + $0x89] sm:$0xff] %vm2132, %v2098
      %2153 = vst.msk [vmem:[#allocation2 + $0x91] sm:$0xff] %vm2132, %v2099
      %2154 = vst.msk [vmem:[#allocation2 + $0x99] sm:$0xff] %vm2132, %v2100
      %2155 = vst.msk [vmem:[#allocation2 + $0xa1] sm:$0xff] %vm2132, %v2101
      %2156 = vst.msk [vmem:[#allocation2 + $0xa9] sm:$0xff] %vm2132, %v2102
      %2157 = vst.msk [vmem:[#allocation2 + $0xb1] sm:$0xff] %vm2132, %v2103
      %2158 = vst.msk [vmem:[#allocation2 + $0xb9] sm:$0xff] %vm2132, %v2104
      %2159 = vst.msk [vmem:[#allocation2 + $0xc1] sm:$0xff] %vm2132, %v2105
      %2160 = vst.msk [vmem:[#allocation2 + $0xc9] sm:$0xff] %vm2132, %v2106
      %2161 = vst.msk [vmem:[#allocation2 + $0xd1] sm:$0xff] %vm2132, %v2107
      %2162 = vst.msk [vmem:[#allocation2 + $0xd9] sm:$0xff] %vm2132, %v2108
      %2163 = vst.msk [vmem:[#allocation2 + $0xe1] sm:$0xff] %vm2132, %v2109
      %2164 = vst.msk [vmem:[#allocation2 + $0xe9] sm:$0xff] %vm2132, %v2110
      %2165 = vst.msk [vmem:[#allocation2 + $0xf1] sm:$0xff] %vm2132, %v2111
      %2166 = vst.msk [vmem:[#allocation2 + $0xf9] sm:$0xff] %vm2132, %v2112
      %2167 = vst.msk [vmem:[#allocation2 + $0x101] sm:$0xff] %vm2132, %v2113
      %2168 = vst.msk [vmem:[#allocation2 + $0x109] sm:$0xff] %vm2132, %v2114
      %2169 = vst.msk [vmem:[#allocation2 + $0x111] sm:$0xff] %vm2132, %v2115
      %2170 = vst.msk [vmem:[#allocation2 + $0x119] sm:$0xff] %vm2132, %v2116
      %2171 = vst.msk [vmem:[#allocation2 + $0x121] sm:$0xff] %vm2132, %v2117
      %2172 = vst.msk [vmem:[#allocation2 + $0x129] sm:$0xff] %vm2132, %v2118
      %2173 = vst.msk [vmem:[#allocation2 + $0x131] sm:$0xff] %vm2132, %v2119
      %2174 = vst.msk [vmem:[#allocation2 + $0x139] sm:$0xff] %vm2132, %v2120
      %2175 = vst.msk [vmem:[#allocation2 + $0x141] sm:$0xff] %vm2132, %v2121
      %2176 = vst.msk [vmem:[#allocation2 + $0x149] sm:$0xff] %vm2132, %v2122
      %2177 = vst.msk [vmem:[#allocation2 + $0x151] sm:$0xff] %vm2132, %v2123
      %2178 = vst.msk [vmem:[#allocation2 + $0x159] sm:$0xff] %vm2132, %v2124
      %2179 = vst.msk [vmem:[#allocation2 + $0x161] sm:$0xff] %vm2132, %v2125
      %2180 = vst.msk [vmem:[#allocation2 + $0x169] sm:$0xff] %vm2132, %v2126
      %2181 = vst.msk [vmem:[#allocation2 + $0x171] sm:$0xff] %vm2132, %v2127
      %2182 = vst.msk [vmem:[#allocation2 + $0x179] sm:$0xff] %vm2132, %v2128
      %2183 = vst.msk [vmem:[#allocation2 + $0x181] sm:$0xff] %vm2132, %v2129
      %2184 = vst.msk [vmem:[#allocation2 + $0x189] sm:$0xff] %vm2132, %v2130
      %2185 = vst.msk [vmem:[#allocation2 + $0x191] sm:$0xff] %vm2132, %v2131
      %2186 = vst.msk [vmem:[#allocation2 + $0x199] sm:$0xff] %vm2132, 0.0
      %2187 = vst.msk [vmem:[#allocation2 + $0x1a1] sm:$0xff] %vm2132, 0.0
      %vm2188 = vcmask 30720
      %2189 = vst.msk [vmem:[#allocation2 + $0x1a9] sm:$0x7f] %vm2188, 0.0
      %s2190 = scalar_lea.vmem [#allocation2], 432
      %2191 = vst.msk [vmem:[%s2190] sm:$0xff] %vm2132, 0.0
      %2192 = vst.msk [vmem:[%s2190 + $0x8] sm:$0xff] %vm2132, 0.0
      %2193 = vst.msk [vmem:[%s2190 + $0x10] sm:$0xff] %vm2132, 0.0
      %2194 = vst.msk [vmem:[%s2190 + $0x18] sm:$0xff] %vm2132, %v2084
      %2195 = vst.msk [vmem:[%s2190 + $0x20] sm:$0xff] %vm2132, %v2085
      %2196 = vst.msk [vmem:[%s2190 + $0x28] sm:$0xff] %vm2132, %v2086
      %2197 = vst.msk [vmem:[%s2190 + $0x30] sm:$0xff] %vm2132, %v2087
      %2198 = vst.msk [vmem:[%s2190 + $0x38] sm:$0xff] %vm2132, %v2088
      %2199 = vst.msk [vmem:[%s2190 + $0x40] sm:$0xff] %vm2132, %v2089
      %2200 = vst.msk [vmem:[%s2190 + $0x48] sm:$0xff] %vm2132, %v2090
      %2201 = vst.msk [vmem:[%s2190 + $0x50] sm:$0xff] %vm2132, %v2091
      %2202 = vst.msk [vmem:[%s2190 + $0x58] sm:$0xff] %vm2132, %v2092
      %2203 = vst.msk [vmem:[%s2190 + $0x60] sm:$0xff] %vm2132, %v2093
      %2204 = vst.msk [vmem:[%s2190 + $0x68] sm:$0xff] %vm2132, %v2094
      %2205 = vst.msk [vmem:[%s2190 + $0x70] sm:$0xff] %vm2132, %v2095
      %2206 = vst.msk [vmem:[%s2190 + $0x78] sm:$0xff] %vm2132, %v2096
      %2207 = vst.msk [vmem:[%s2190 + $0x80] sm:$0xff] %vm2132, %v2097
      %2208 = vst.msk [vmem:[%s2190 + $0x88] sm:$0xff] %vm2132, %v2098
      %2209 = vst.msk [vmem:[%s2190 + $0x90] sm:$0xff] %vm2132, %v2099
      %2210 = vst.msk [vmem:[%s2190 + $0x98] sm:$0xff] %vm2132, %v2100
      %2211 = vst.msk [vmem:[%s2190 + $0xa0] sm:$0xff] %vm2132, %v2101
      %2212 = vst.msk [vmem:[%s2190 + $0xa8] sm:$0xff] %vm2132, %v2102
      %2213 = vst.msk [vmem:[%s2190 + $0xb0] sm:$0xff] %vm2132, %v2103
      %2214 = vst.msk [vmem:[%s2190 + $0xb8] sm:$0xff] %vm2132, %v2104
      %2215 = vst.msk [vmem:[%s2190 + $0xc0] sm:$0xff] %vm2132, %v2105
      %2216 = vst.msk [vmem:[%s2190 + $0xc8] sm:$0xff] %vm2132, %v2106
      %2217 = vst.msk [vmem:[%s2190 + $0xd0] sm:$0xff] %vm2132, %v2107
      %2218 = vst.msk [vmem:[%s2190 + $0xd8] sm:$0xff] %vm2132, %v2108
      %2219 = vst.msk [vmem:[%s2190 + $0xe0] sm:$0xff] %vm2132, %v2109
      %2220 = vst.msk [vmem:[%s2190 + $0xe8] sm:$0xff] %vm2132, %v2110
      %2221 = vst.msk [vmem:[%s2190 + $0xf0] sm:$0xff] %vm2132, %v2111
      %2222 = vst.msk [vmem:[%s2190 + $0xf8] sm:$0xff] %vm2132, %v2112
      %2223 = vst.msk [vmem:[%s2190 + $0x100] sm:$0xff] %vm2132, %v2113
      %2224 = vst.msk [vmem:[%s2190 + $0x108] sm:$0xff] %vm2132, %v2114
      %2225 = vst.msk [vmem:[%s2190 + $0x110] sm:$0xff] %vm2132, %v2115
      %2226 = vst.msk [vmem:[%s2190 + $0x118] sm:$0xff] %vm2132, %v2116
      %2227 = vst.msk [vmem:[%s2190 + $0x120] sm:$0xff] %vm2132, %v2117
      %2228 = vst.msk [vmem:[%s2190 + $0x128] sm:$0xff] %vm2132, %v2118
      %2229 = vst.msk [vmem:[%s2190 + $0x130] sm:$0xff] %vm2132, %v2119
      %2230 = vst.msk [vmem:[%s2190 + $0x138] sm:$0xff] %vm2132, %v2120
      %2231 = vst.msk [vmem:[%s2190 + $0x140] sm:$0xff] %vm2132, %v2121
      %2232 = vst.msk [vmem:[%s2190 + $0x148] sm:$0xff] %vm2132, %v2122
      %2233 = vst.msk [vmem:[%s2190 + $0x150] sm:$0xff] %vm2132, %v2123
      %2234 = vst.msk [vmem:[%s2190 + $0x158] sm:$0xff] %vm2132, %v2124
      %2235 = vst.msk [vmem:[%s2190 + $0x160] sm:$0xff] %vm2132, %v2125
      %2236 = vst.msk [vmem:[%s2190 + $0x168] sm:$0xff] %vm2132, %v2126
      %2237 = vst.msk [vmem:[%s2190 + $0x170] sm:$0xff] %vm2132, %v2127
      %2238 = vst.msk [vmem:[%s2190 + $0x178] sm:$0xff] %vm2132, %v2128
      %2239 = vst.msk [vmem:[%s2190 + $0x180] sm:$0xff] %vm2132, %v2129
      %2240 = vst.msk [vmem:[%s2190 + $0x188] sm:$0xff] %vm2132, %v2130
      %2241 = vst.msk [vmem:[%s2190 + $0x190] sm:$0xff] %vm2132, %v2131
      %2242 = vst.msk [vmem:[%s2190 + $0x198] sm:$0xff] %vm2132, 0.0
      %2243 = vst.msk [vmem:[%s2190 + $0x1a0] sm:$0xff] %vm2132, 0.0
      %2244 = vst.msk [vmem:[%s2190 + $0x1a8] sm:$0xff] %vm2132, 0.0
      %s2245 = scalar_lea.vmem [#allocation2], 864
      %2246 = vst.msk [vmem:[%s2245] sm:$0xff] %vm2132, 0.0
      %2247 = vst.msk [vmem:[%s2245 + $0x8] sm:$0xff] %vm2132, 0.0
      %2248 = vst.msk [vmem:[%s2245 + $0x10] sm:$0x7f] %vm2188, 0.0
      %2249 = vst.msk [vmem:[%s2245 + $0x17] sm:$0xff] %vm2132, %v2084
      %2250 = vst.msk [vmem:[%s2245 + $0x1f] sm:$0xff] %vm2132, %v2085
      %2251 = vst.msk [vmem:[%s2245 + $0x27] sm:$0xff] %vm2132, %v2086
      %2252 = vst.msk [vmem:[%s2245 + $0x2f] sm:$0xff] %vm2132, %v2087
      %2253 = vst.msk [vmem:[%s2245 + $0x37] sm:$0xff] %vm2132, %v2088
      %2254 = vst.msk [vmem:[%s2245 + $0x3f] sm:$0xff] %vm2132, %v2089
      %2255 = vst.msk [vmem:[%s2245 + $0x47] sm:$0xff] %vm2132, %v2090
      %2256 = vst.msk [vmem:[%s2245 + $0x4f] sm:$0xff] %vm2132, %v2091
      %2257 = vst.msk [vmem:[%s2245 + $0x57] sm:$0xff] %vm2132, %v2092
      %2258 = vst.msk [vmem:[%s2245 + $0x5f] sm:$0xff] %vm2132, %v2093
      %2259 = vst.msk [vmem:[%s2245 + $0x67] sm:$0xff] %vm2132, %v2094
      %2260 = vst.msk [vmem:[%s2245 + $0x6f] sm:$0xff] %vm2132, %v2095
      %2261 = vst.msk [vmem:[%s2245 + $0x77] sm:$0xff] %vm2132, %v2096
      %2262 = vst.msk [vmem:[%s2245 + $0x7f] sm:$0xff] %vm2132, %v2097
      %2263 = vst.msk [vmem:[%s2245 + $0x87] sm:$0xff] %vm2132, %v2098
      %2264 = vst.msk [vmem:[%s2245 + $0x8f] sm:$0xff] %vm2132, %v2099
      %2265 = vst.msk [vmem:[%s2245 + $0x97] sm:$0xff] %vm2132, %v2100
      %2266 = vst.msk [vmem:[%s2245 + $0x9f] sm:$0xff] %vm2132, %v2101
      %2267 = vst.msk [vmem:[%s2245 + $0xa7] sm:$0xff] %vm2132, %v2102
      %2268 = vst.msk [vmem:[%s2245 + $0xaf] sm:$0xff] %vm2132, %v2103
      %2269 = vst.msk [vmem:[%s2245 + $0xb7] sm:$0xff] %vm2132, %v2104
      %2270 = vst.msk [vmem:[%s2245 + $0xbf] sm:$0xff] %vm2132, %v2105
      %2271 = vst.msk [vmem:[%s2245 + $0xc7] sm:$0xff] %vm2132, %v2106
      %2272 = vst.msk [vmem:[%s2245 + $0xcf] sm:$0xff] %vm2132, %v2107
      %2273 = vst.msk [vmem:[%s2245 + $0xd7] sm:$0xff] %vm2132, %v2108
      %2274 = vst.msk [vmem:[%s2245 + $0xdf] sm:$0xff] %vm2132, %v2109
      %2275 = vst.msk [vmem:[%s2245 + $0xe7] sm:$0xff] %vm2132, %v2110
      %2276 = vst.msk [vmem:[%s2245 + $0xef] sm:$0xff] %vm2132, %v2111
      %2277 = vst.msk [vmem:[%s2245 + $0xf7] sm:$0xff] %vm2132, %v2112
      %2278 = vst.msk [vmem:[%s2245 + $0xff] sm:$0xff] %vm2132, %v2113
      %2279 = vst.msk [vmem:[%s2245 + $0x107] sm:$0xff] %vm2132, %v2114
      %2280 = vst.msk [vmem:[%s2245 + $0x10f] sm:$0xff] %vm2132, %v2115
      %2281 = vst.msk [vmem:[%s2245 + $0x117] sm:$0xff] %vm2132, %v2116
      %2282 = vst.msk [vmem:[%s2245 + $0x11f] sm:$0xff] %vm2132, %v2117
      %2283 = vst.msk [vmem:[%s2245 + $0x127] sm:$0xff] %vm2132, %v2118
      %2284 = vst.msk [vmem:[%s2245 + $0x12f] sm:$0xff] %vm2132, %v2119
      %2285 = vst.msk [vmem:[%s2245 + $0x137] sm:$0xff] %vm2132, %v2120
      %2286 = vst.msk [vmem:[%s2245 + $0x13f] sm:$0xff] %vm2132, %v2121
      %2287 = vst.msk [vmem:[%s2245 + $0x147] sm:$0xff] %vm2132, %v2122
      %2288 = vst.msk [vmem:[%s2245 + $0x14f] sm:$0xff] %vm2132, %v2123
      %2289 = vst.msk [vmem:[%s2245 + $0x157] sm:$0xff] %vm2132, %v2124
      %2290 = vst.msk [vmem:[%s2245 + $0x15f] sm:$0xff] %vm2132, %v2125
      %2291 = vst.msk [vmem:[%s2245 + $0x167] sm:$0xff] %vm2132, %v2126
      %2292 = vst.msk [vmem:[%s2245 + $0x16f] sm:$0xff] %vm2132, %v2127
      %2293 = vst.msk [vmem:[%s2245 + $0x177] sm:$0xff] %vm2132, %v2128
      %2294 = vst.msk [vmem:[%s2245 + $0x17f] sm:$0xff] %vm2132, %v2129
      %2295 = vst.msk [vmem:[%s2245 + $0x187] sm:$0xff] %vm2132, %v2130
      %2296 = vst.msk [vmem:[%s2245 + $0x18f] sm:$0xff] %vm2132, %v2131
      %2297 = vst.msk [vmem:[%s2245 + $0x197] sm:$0xff] %vm2132, 0.0
      %2298 = vst.msk [vmem:[%s2245 + $0x19f] sm:$0xff] %vm2132, 0.0
      %2299 = vst.msk [vmem:[%s2245 + $0x1a7] sm:$0xff] %vm2132, 0.0
      %2300 = vst.msk [vmem:[%s2245 + $0x1af] sm:$0x1] %vm2136, 0.0
      %v2301 = vld [vmem:[#allocation2] sm:$0xff]
      %v2302 = vld [vmem:[#allocation2 + $0x8] sm:$0xff]
      %v2303 = vld [vmem:[#allocation2 + $0x10] sm:$0xff]
      %v2304 = vld [vmem:[#allocation2 + $0x18] sm:$0xff]
      %v2305 = vld [vmem:[#allocation2 + $0x20] sm:$0xff]
      %v2306 = vld [vmem:[#allocation2 + $0x28] sm:$0xff]
      %v2307 = vld [vmem:[#allocation2 + $0x30] sm:$0xff]
      %v2308 = vld [vmem:[#allocation2 + $0x38] sm:$0xff]
      %v2309 = vld [vmem:[#allocation2 + $0x40] sm:$0xff]
      %v2310 = vld [vmem:[#allocation2 + $0x48] sm:$0xff]
      %v2311 = vld [vmem:[#allocation2 + $0x50] sm:$0xff]
      %v2312 = vld [vmem:[#allocation2 + $0x58] sm:$0xff]
      %v2313 = vld [vmem:[#allocation2 + $0x60] sm:$0xff]
      %v2314 = vld [vmem:[#allocation2 + $0x68] sm:$0xff]
      %v2315 = vld [vmem:[#allocation2 + $0x70] sm:$0xff]
      %v2316 = vld [vmem:[#allocation2 + $0x78] sm:$0xff]
      %v2317 = vld [vmem:[#allocation2 + $0x80] sm:$0xff]
      %v2318 = vld [vmem:[#allocation2 + $0x88] sm:$0xff]
      %v2319 = vld [vmem:[#allocation2 + $0x90] sm:$0xff]
      %v2320 = vld [vmem:[#allocation2 + $0x98] sm:$0xff]
      %v2321 = vld [vmem:[#allocation2 + $0xa0] sm:$0xff]
      %v2322 = vld [vmem:[#allocation2 + $0xa8] sm:$0xff]
      %v2323 = vld [vmem:[#allocation2 + $0xb0] sm:$0xff]
      %v2324 = vld [vmem:[#allocation2 + $0xb8] sm:$0xff]
      %v2325 = vld [vmem:[#allocation2 + $0xc0] sm:$0xff]
      %v2326 = vld [vmem:[#allocation2 + $0xc8] sm:$0xff]
      %v2327 = vld [vmem:[#allocation2 + $0xd0] sm:$0xff]
      %v2328 = vld [vmem:[#allocation2 + $0xd8] sm:$0xff]
      %v2329 = vld [vmem:[#allocation2 + $0xe0] sm:$0xff]
      %v2330 = vld [vmem:[#allocation2 + $0xe8] sm:$0xff]
      %v2331 = vld [vmem:[#allocation2 + $0xf0] sm:$0xff]
      %v2332 = vld [vmem:[#allocation2 + $0xf8] sm:$0xff]
      %v2333 = vld [vmem:[#allocation2 + $0x100] sm:$0xff]
      %v2334 = vld [vmem:[#allocation2 + $0x108] sm:$0xff]
      %v2335 = vld [vmem:[#allocation2 + $0x110] sm:$0xff]
      %v2336 = vld [vmem:[#allocation2 + $0x118] sm:$0xff]
      %v2337 = vld [vmem:[#allocation2 + $0x120] sm:$0xff]
      %v2338 = vld [vmem:[#allocation2 + $0x128] sm:$0xff]
      %v2339 = vld [vmem:[#allocation2 + $0x130] sm:$0xff]
      %v2340 = vld [vmem:[#allocation2 + $0x138] sm:$0xff]
      %v2341 = vld [vmem:[#allocation2 + $0x140] sm:$0xff]
      %v2342 = vld [vmem:[#allocation2 + $0x148] sm:$0xff]
      %v2343 = vld [vmem:[#allocation2 + $0x150] sm:$0xff]
      %v2344 = vld [vmem:[#allocation2 + $0x158] sm:$0xff]
      %v2345 = vld [vmem:[#allocation2 + $0x160] sm:$0xff]
      %v2346 = vld [vmem:[#allocation2 + $0x168] sm:$0xff]
      %v2347 = vld [vmem:[#allocation2 + $0x170] sm:$0xff]
      %v2348 = vld [vmem:[#allocation2 + $0x178] sm:$0xff]
      %v2349 = vld [vmem:[%s3] sm:$0xf]
      %v2350 = vld [vmem:[%s2190] sm:$0xff]
      %v2351 = vld [vmem:[%s2190 + $0x8] sm:$0xff]
      %v2352 = vld [vmem:[%s2190 + $0x10] sm:$0xff]
      %v2353 = vld [vmem:[%s2190 + $0x18] sm:$0xff]
      %v2354 = vld [vmem:[%s2190 + $0x20] sm:$0xff]
      %v2355 = vld [vmem:[%s2190 + $0x28] sm:$0xff]
      %v2356 = vld [vmem:[%s2190 + $0x30] sm:$0xff]
      %v2357 = vld [vmem:[%s2190 + $0x38] sm:$0xff]
      %v2358 = vld [vmem:[%s2190 + $0x40] sm:$0xff]
      %v2359 = vld [vmem:[%s2190 + $0x48] sm:$0xff]
      %v2360 = vld [vmem:[%s2190 + $0x50] sm:$0xff]
      %v2361 = vld [vmem:[%s2190 + $0x58] sm:$0xff]
      %v2362 = vld [vmem:[%s2190 + $0x60] sm:$0xff]
      %v2363 = vld [vmem:[%s2190 + $0x68] sm:$0xff]
      %v2364 = vld [vmem:[%s2190 + $0x70] sm:$0xff]
      %v2365 = vld [vmem:[%s2190 + $0x78] sm:$0xff]
      %v2366 = vld [vmem:[%s2190 + $0x80] sm:$0xff]
      %v2367 = vld [vmem:[%s2190 + $0x88] sm:$0xff]
      %v2368 = vld [vmem:[%s2190 + $0x90] sm:$0xff]
      %v2369 = vld [vmem:[%s2190 + $0x98] sm:$0xff]
      %v2370 = vld [vmem:[%s2190 + $0xa0] sm:$0xff]
      %v2371 = vld [vmem:[%s2190 + $0xa8] sm:$0xff]
      %v2372 = vld [vmem:[%s2190 + $0xb0] sm:$0xff]
      %v2373 = vld [vmem:[%s2190 + $0xb8] sm:$0xff]
      %v2374 = vld [vmem:[%s2190 + $0xc0] sm:$0xff]
      %v2375 = vld [vmem:[%s2190 + $0xc8] sm:$0xff]
      %v2376 = vld [vmem:[%s2190 + $0xd0] sm:$0xff]
      %v2377 = vld [vmem:[%s2190 + $0xd8] sm:$0xff]
      %v2378 = vld [vmem:[%s2190 + $0xe0] sm:$0xff]
      %v2379 = vld [vmem:[%s2190 + $0xe8] sm:$0xff]
      %v2380 = vld [vmem:[%s2190 + $0xf0] sm:$0xff]
      %v2381 = vld [vmem:[%s2190 + $0xf8] sm:$0xff]
      %v2382 = vld [vmem:[%s2190 + $0x100] sm:$0xff]
      %v2383 = vld [vmem:[%s2190 + $0x108] sm:$0xff]
      %v2384 = vld [vmem:[%s2190 + $0x110] sm:$0xff]
      %v2385 = vld [vmem:[%s2190 + $0x118] sm:$0xff]
      %v2386 = vld [vmem:[%s2190 + $0x120] sm:$0xff]
      %v2387 = vld [vmem:[%s2190 + $0x128] sm:$0xff]
      %v2388 = vld [vmem:[%s2190 + $0x130] sm:$0xff]
      %v2389 = vld [vmem:[%s2190 + $0x138] sm:$0xff]
      %v2390 = vld [vmem:[%s2190 + $0x140] sm:$0xff]
      %v2391 = vld [vmem:[%s2190 + $0x148] sm:$0xff]
      %v2392 = vld [vmem:[%s2190 + $0x150] sm:$0xff]
      %v2393 = vld [vmem:[%s2190 + $0x158] sm:$0xff]
      %v2394 = vld [vmem:[%s2190 + $0x160] sm:$0xff]
      %v2395 = vld [vmem:[%s2190 + $0x168] sm:$0xff]
      %v2396 = vld [vmem:[%s2190 + $0x170] sm:$0xff]
      %v2397 = vld [vmem:[%s2190 + $0x178] sm:$0xff]
      %s2398 = scalar_lea.vmem %s3, 4
      %v2399 = vld [vmem:[%s2398] sm:$0xf]
      %v2401 = vsel %vm2132, %v2350, 0
      %v2404 = vsel %vm2132, %v2351, 0
      %v2407 = vsel %vm2132, %v2352, 0
      %v2410 = vsel %vm2132, %v2353, 0
      %v2413 = vsel %vm2132, %v2354, 0
      %v2416 = vsel %vm2132, %v2355, 0
      %v2419 = vsel %vm2132, %v2356, 0
      %v2422 = vsel %vm2132, %v2357, 0
      %v2425 = vsel %vm2132, %v2358, 0
      %v2428 = vsel %vm2132, %v2359, 0
      %v2431 = vsel %vm2132, %v2360, 0
      %v2434 = vsel %vm2132, %v2361, 0
      %v2437 = vsel %vm2132, %v2362, 0
      %v2440 = vsel %vm2132, %v2363, 0
      %v2443 = vsel %vm2132, %v2364, 0
      %v2446 = vsel %vm2132, %v2365, 0
      %v2449 = vsel %vm2132, %v2366, 0
      %v2452 = vsel %vm2132, %v2367, 0
      %v2455 = vsel %vm2132, %v2368, 0
      %v2458 = vsel %vm2132, %v2369, 0
      %v2461 = vsel %vm2132, %v2370, 0
      %v2464 = vsel %vm2132, %v2371, 0
      %v2467 = vsel %vm2132, %v2372, 0
      %v2470 = vsel %vm2132, %v2373, 0
      %v2473 = vsel %vm2132, %v2374, 0
      %v2476 = vsel %vm2132, %v2375, 0
      %v2479 = vsel %vm2132, %v2376, 0
      %v2482 = vsel %vm2132, %v2377, 0
      %v2485 = vsel %vm2132, %v2378, 0
      %v2488 = vsel %vm2132, %v2379, 0
      %v2491 = vsel %vm2132, %v2380, 0
      %v2494 = vsel %vm2132, %v2381, 0
      %v2497 = vsel %vm2132, %v2382, 0
      %v2500 = vsel %vm2132, %v2383, 0
      %v2503 = vsel %vm2132, %v2384, 0
      %v2506 = vsel %vm2132, %v2385, 0
      %v2509 = vsel %vm2132, %v2386, 0
      %v2512 = vsel %vm2132, %v2387, 0
      %v2515 = vsel %vm2132, %v2388, 0
      %v2518 = vsel %vm2132, %v2389, 0
      %v2521 = vsel %vm2132, %v2390, 0
      %v2524 = vsel %vm2132, %v2391, 0
      %v2527 = vsel %vm2132, %v2392, 0
      %v2530 = vsel %vm2132, %v2393, 0
      %v2533 = vsel %vm2132, %v2394, 0
      %v2536 = vsel %vm2132, %v2395, 0
      %v2539 = vsel %vm2132, %v2396, 0
      %v2542 = vsel %vm2132, %v2397, 0
      %vm2544 = vcmask 1043456
      %v2546 = vsel %vm2544, %v2399, 0
      %2548 = vmatprep.subr.mxu0 0.0
      %2549 = vmatpush1.msra.mxu0 0.0
      %2550 = vmatprep.subr.mxu0 0.0
      %2551 = vmatpush1.msra.mxu0 0.0
      %2552 = vmatprep.subr.mxu0 0.0
      %2553 = vmatpush1.msra.mxu0 0.0
      %2554 = vmatprep.subr.mxu0 0.0
      %2555 = vmatpush1.msra.mxu0 0.0
      %2556 = vmatprep.subr.mxu0 0.0
      %2557 = vmatpush1.msra.mxu0 0.0
      %2558 = vmatprep.subr.mxu0 0.0
      %2559 = vmatpush1.msra.mxu0 0.0
      %2560 = vmatprep.subr.mxu0 0.0
      %2561 = vmatpush1.msra.mxu0 0.0
      %2562 = vmatprep.subr.mxu0 0.0
      %2563 = vmatpush1.msra.mxu0 0.0
      %2564 = vmatprep.subr.mxu0 0.0
      %2565 = vmatpush1.msra.mxu0 0.0
      %2566 = vmatprep.subr.mxu0 0.0
      %2567 = vmatpush1.msra.mxu0 0.0
      %2568 = vmatprep.subr.mxu0 0.0
      %2569 = vmatpush1.msra.mxu0 0.0
      %2570 = vmatprep.subr.mxu0 0.0
      %2571 = vmatpush1.msra.mxu0 0.0
      %2572 = vmatprep.subr.mxu0 0.0
      %2573 = vmatpush1.msra.mxu0 0.0
      %2574 = vmatprep.subr.mxu0 0.0
      %2575 = vmatpush1.msra.mxu0 0.0
      %2576 = vmatprep.subr.mxu0 0.0
      %2577 = vmatpush1.msra.mxu0 0.0
      %2578 = vmatprep.subr.mxu0 0.0
      %2579 = vmatpush1.msra.mxu0 %v2546
      %2580 = vmatprep.subr.mxu0 0.0
      %2581 = vmatpush2.msra.mxu0 0.0
      %2582 = vmatprep.subr.mxu0 0.0
      %2583 = vmatpush2.msra.mxu0 0.0
      %2584 = vmatprep.subr.mxu0 0.0
      %2585 = vmatpush2.msra.mxu0 0.0
      %2586 = vmatprep.subr.mxu0 0.0
      %2587 = vmatpush2.msra.mxu0 0.0
      %2588 = vmatprep.subr.mxu0 0.0
      %2589 = vmatpush2.msra.mxu0 0.0
      %2590 = vmatprep.subr.mxu0 0.0
      %2591 = vmatpush2.msra.mxu0 0.0
      %2592 = vmatprep.subr.mxu0 0.0
      %2593 = vmatpush2.msra.mxu0 0.0
      %2594 = vmatprep.subr.mxu0 0.0
      %2595 = vmatpush2.msra.mxu0 0.0
      %2596 = vmatprep.subr.mxu0 0.0
      %2597 = vmatpush2.msra.mxu0 0.0
      %2598 = vmatprep.subr.mxu0 0.0
      %2599 = vmatpush2.msra.mxu0 0.0
      %2600 = vmatprep.subr.mxu0 0.0
      %2601 = vmatpush2.msra.mxu0 0.0
      %2602 = vmatprep.subr.mxu0 0.0
      %2603 = vmatpush2.msra.mxu0 0.0
      %2604 = vmatprep.subr.mxu0 0.0
      %2605 = vmatpush2.msra.mxu0 0.0
      %2606 = vmatprep.subr.mxu0 0.0
      %2607 = vmatpush2.msra.mxu0 0.0
      %2608 = vmatprep.subr.mxu0 0.0
      %2609 = vmatpush2.msra.mxu0 0.0
      %2610 = vmatprep.subr.mxu0 0.0
      %2611 = vmatpush2.msra.mxu0 0.0
      %2612 = vmatprep.mubr.f32.mxu0 0.0
      %2613 = vmatmul.mubr.f32.gmra.mxu0 %v2401
      %v2614 = vpop.f32.mrf.mxu0
      %v2615 = vadd.f32 0.0, %v2614
      %v2616 = vpop.f32.mrf.mxu0
      %2617 = vmatprep.mubr.f32.mxu0 0.0
      %2618 = vmatmul.mubr.f32.gmra.mxu0 %v2404
      %v2619 = vpop.f32.mrf.mxu0
      %v2620 = vadd.f32 0.0, %v2619
      %v2621 = vpop.f32.mrf.mxu0
      %2622 = vmatprep.mubr.f32.mxu0 0.0
      %2623 = vmatmul.mubr.f32.gmra.mxu0 %v2407
      %v2624 = vpop.f32.mrf.mxu0
      %v2625 = vpop.f32.mrf.mxu0
      %2626 = vmatprep.mubr.f32.mxu0 0.0
      %2627 = vmatmul.mubr.f32.gmra.mxu0 %v2410
      %v2628 = vpop.f32.mrf.mxu0
      %v2629 = vadd.f32 0.0, %v2628
      %v2630 = vpop.f32.mrf.mxu0
      %2631 = vmatprep.mubr.f32.mxu0 0.0
      %2632 = vmatmul.mubr.f32.gmra.mxu0 %v2413
      %v2633 = vpop.f32.mrf.mxu0
      %v2634 = vadd.f32 0.0, %v2633
      %v2635 = vpop.f32.mrf.mxu0
      %2636 = vmatprep.mubr.f32.mxu0 0.0
      %2637 = vmatmul.mubr.f32.gmra.mxu0 %v2416
      %v2638 = vpop.f32.mrf.mxu0
      %v2639 = vpop.f32.mrf.mxu0
      %2640 = vmatprep.mubr.f32.mxu0 0.0
      %2641 = vmatmul.mubr.f32.gmra.mxu0 %v2419
      %v2642 = vpop.f32.mrf.mxu0
      %v2643 = vadd.f32 0.0, %v2642
      %v2644 = vpop.f32.mrf.mxu0
      %2645 = vmatprep.mubr.f32.mxu0 0.0
      %2646 = vmatmul.mubr.f32.gmra.mxu0 %v2422
      %v2647 = vpop.f32.mrf.mxu0
      %v2648 = vadd.f32 0.0, %v2647
      %v2649 = vpop.f32.mrf.mxu0
      %2650 = vmatprep.mubr.f32.mxu0 0.0
      %2651 = vmatmul.mubr.f32.gmra.mxu0 %v2425
      %v2652 = vpop.f32.mrf.mxu0
      %v2653 = vpop.f32.mrf.mxu0
      %2654 = vmatprep.mubr.f32.mxu0 0.0
      %2655 = vmatmul.mubr.f32.gmra.mxu0 %v2428
      %v2656 = vpop.f32.mrf.mxu0
      %v2657 = vadd.f32 0.0, %v2656
      %v2658 = vpop.f32.mrf.mxu0
      %2659 = vmatprep.mubr.f32.mxu0 0.0
      %2660 = vmatmul.mubr.f32.gmra.mxu0 %v2431
      %v2661 = vpop.f32.mrf.mxu0
      %v2662 = vadd.f32 0.0, %v2661
      %v2663 = vpop.f32.mrf.mxu0
      %2664 = vmatprep.mubr.f32.mxu0 0.0
      %2665 = vmatmul.mubr.f32.gmra.mxu0 %v2434
      %v2666 = vpop.f32.mrf.mxu0
      %v2667 = vpop.f32.mrf.mxu0
      %2668 = vmatprep.mubr.f32.mxu0 0.0
      %2669 = vmatmul.mubr.f32.gmra.mxu0 %v2437
      %v2670 = vpop.f32.mrf.mxu0
      %v2671 = vadd.f32 0.0, %v2670
      %v2672 = vpop.f32.mrf.mxu0
      %2673 = vmatprep.mubr.f32.mxu0 0.0
      %2674 = vmatmul.mubr.f32.gmra.mxu0 %v2440
      %v2675 = vpop.f32.mrf.mxu0
      %v2676 = vadd.f32 0.0, %v2675
      %v2677 = vpop.f32.mrf.mxu0
      %2678 = vmatprep.mubr.f32.mxu0 0.0
      %2679 = vmatmul.mubr.f32.gmra.mxu0 %v2443
      %v2680 = vpop.f32.mrf.mxu0
      %v2681 = vpop.f32.mrf.mxu0
      %2682 = vmatprep.mubr.f32.mxu0 0.0
      %2683 = vmatmul.mubr.f32.gmra.mxu0 %v2446
      %v2684 = vpop.f32.mrf.mxu0
      %v2685 = vadd.f32 0.0, %v2684
      %v2686 = vpop.f32.mrf.mxu0
      %2687 = vmatprep.mubr.f32.mxu0 0.0
      %2688 = vmatmul.mubr.f32.gmra.mxu0 %v2449
      %v2689 = vpop.f32.mrf.mxu0
      %v2690 = vadd.f32 0.0, %v2689
      %v2691 = vpop.f32.mrf.mxu0
      %2692 = vmatprep.mubr.f32.mxu0 0.0
      %2693 = vmatmul.mubr.f32.gmra.mxu0 %v2452
      %v2694 = vpop.f32.mrf.mxu0
      %v2695 = vpop.f32.mrf.mxu0
      %2696 = vmatprep.mubr.f32.mxu0 0.0
      %2697 = vmatmul.mubr.f32.gmra.mxu0 %v2455
      %v2698 = vpop.f32.mrf.mxu0
      %v2699 = vadd.f32 0.0, %v2698
      %v2700 = vpop.f32.mrf.mxu0
      %2701 = vmatprep.mubr.f32.mxu0 0.0
      %2702 = vmatmul.mubr.f32.gmra.mxu0 %v2458
      %v2703 = vpop.f32.mrf.mxu0
      %v2704 = vadd.f32 0.0, %v2703
      %v2705 = vpop.f32.mrf.mxu0
      %2706 = vmatprep.mubr.f32.mxu0 0.0
      %2707 = vmatmul.mubr.f32.gmra.mxu0 %v2461
      %v2708 = vpop.f32.mrf.mxu0
      %v2709 = vpop.f32.mrf.mxu0
      %2710 = vmatprep.mubr.f32.mxu0 0.0
      %2711 = vmatmul.mubr.f32.gmra.mxu0 %v2464
      %v2712 = vpop.f32.mrf.mxu0
      %v2713 = vadd.f32 0.0, %v2712
      %v2714 = vpop.f32.mrf.mxu0
      %2715 = vmatprep.mubr.f32.mxu0 0.0
      %2716 = vmatmul.mubr.f32.gmra.mxu0 %v2467
      %v2717 = vpop.f32.mrf.mxu0
      %v2718 = vadd.f32 0.0, %v2717
      %v2719 = vpop.f32.mrf.mxu0
      %2720 = vmatprep.mubr.f32.mxu0 0.0
      %2721 = vmatmul.mubr.f32.gmra.mxu0 %v2470
      %v2722 = vpop.f32.mrf.mxu0
      %v2723 = vpop.f32.mrf.mxu0
      %2724 = vmatprep.mubr.f32.mxu0 0.0
      %2725 = vmatmul.mubr.f32.gmra.mxu0 %v2473
      %v2726 = vpop.f32.mrf.mxu0
      %v2727 = vadd.f32 0.0, %v2726
      %v2728 = vpop.f32.mrf.mxu0
      %2729 = vmatprep.mubr.f32.mxu0 0.0
      %2730 = vmatmul.mubr.f32.gmra.mxu0 %v2476
      %v2731 = vpop.f32.mrf.mxu0
      %v2732 = vadd.f32 0.0, %v2731
      %v2733 = vpop.f32.mrf.mxu0
      %2734 = vmatprep.mubr.f32.mxu0 0.0
      %2735 = vmatmul.mubr.f32.gmra.mxu0 %v2479
      %v2736 = vpop.f32.mrf.mxu0
      %v2737 = vpop.f32.mrf.mxu0
      %2738 = vmatprep.mubr.f32.mxu0 0.0
      %2739 = vmatmul.mubr.f32.gmra.mxu0 %v2482
      %v2740 = vpop.f32.mrf.mxu0
      %v2741 = vadd.f32 0.0, %v2740
      %v2742 = vpop.f32.mrf.mxu0
      %2743 = vmatprep.mubr.f32.mxu0 0.0
      %2744 = vmatmul.mubr.f32.gmra.mxu0 %v2485
      %v2745 = vpop.f32.mrf.mxu0
      %v2746 = vadd.f32 0.0, %v2745
      %v2747 = vpop.f32.mrf.mxu0
      %2748 = vmatprep.mubr.f32.mxu0 0.0
      %2749 = vmatmul.mubr.f32.gmra.mxu0 %v2488
      %v2750 = vpop.f32.mrf.mxu0
      %v2751 = vpop.f32.mrf.mxu0
      %2752 = vmatprep.mubr.f32.mxu0 0.0
      %2753 = vmatmul.mubr.f32.gmra.mxu0 %v2491
      %v2754 = vpop.f32.mrf.mxu0
      %v2755 = vadd.f32 0.0, %v2754
      %v2756 = vpop.f32.mrf.mxu0
      %2757 = vmatprep.mubr.f32.mxu0 0.0
      %2758 = vmatmul.mubr.f32.gmra.mxu0 %v2494
      %v2759 = vpop.f32.mrf.mxu0
      %v2760 = vadd.f32 0.0, %v2759
      %v2761 = vpop.f32.mrf.mxu0
      %2762 = vmatprep.mubr.f32.mxu0 0.0
      %2763 = vmatmul.mubr.f32.gmra.mxu0 %v2497
      %v2764 = vpop.f32.mrf.mxu0
      %v2765 = vpop.f32.mrf.mxu0
      %2766 = vmatprep.mubr.f32.mxu0 0.0
      %2767 = vmatmul.mubr.f32.gmra.mxu0 %v2500
      %v2768 = vpop.f32.mrf.mxu0
      %v2769 = vadd.f32 0.0, %v2768
      %v2770 = vpop.f32.mrf.mxu0
      %2771 = vmatprep.mubr.f32.mxu0 0.0
      %2772 = vmatmul.mubr.f32.gmra.mxu0 %v2503
      %v2773 = vpop.f32.mrf.mxu0
      %v2774 = vadd.f32 0.0, %v2773
      %v2775 = vpop.f32.mrf.mxu0
      %2776 = vmatprep.mubr.f32.mxu0 0.0
      %2777 = vmatmul.mubr.f32.gmra.mxu0 %v2506
      %v2778 = vpop.f32.mrf.mxu0
      %v2779 = vpop.f32.mrf.mxu0
      %2780 = vmatprep.mubr.f32.mxu0 0.0
      %2781 = vmatmul.mubr.f32.gmra.mxu0 %v2509
      %v2782 = vpop.f32.mrf.mxu0
      %v2783 = vadd.f32 0.0, %v2782
      %v2784 = vpop.f32.mrf.mxu0
      %2785 = vmatprep.mubr.f32.mxu0 0.0
      %2786 = vmatmul.mubr.f32.gmra.mxu0 %v2512
      %v2787 = vpop.f32.mrf.mxu0
      %v2788 = vadd.f32 0.0, %v2787
      %v2789 = vpop.f32.mrf.mxu0
      %2790 = vmatprep.mubr.f32.mxu0 0.0
      %2791 = vmatmul.mubr.f32.gmra.mxu0 %v2515
      %v2792 = vpop.f32.mrf.mxu0
      %v2793 = vpop.f32.mrf.mxu0
      %2794 = vmatprep.mubr.f32.mxu0 0.0
      %2795 = vmatmul.mubr.f32.gmra.mxu0 %v2518
      %v2796 = vpop.f32.mrf.mxu0
      %v2797 = vadd.f32 0.0, %v2796
      %v2798 = vpop.f32.mrf.mxu0
      %2799 = vmatprep.mubr.f32.mxu0 0.0
      %2800 = vmatmul.mubr.f32.gmra.mxu0 %v2521
      %v2801 = vpop.f32.mrf.mxu0
      %v2802 = vadd.f32 0.0, %v2801
      %v2803 = vpop.f32.mrf.mxu0
      %2804 = vmatprep.mubr.f32.mxu0 0.0
      %2805 = vmatmul.mubr.f32.gmra.mxu0 %v2524
      %v2806 = vpop.f32.mrf.mxu0
      %v2807 = vpop.f32.mrf.mxu0
      %2808 = vmatprep.mubr.f32.mxu0 0.0
      %2809 = vmatmul.mubr.f32.gmra.mxu0 %v2527
      %v2810 = vpop.f32.mrf.mxu0
      %v2811 = vadd.f32 0.0, %v2810
      %v2812 = vpop.f32.mrf.mxu0
      %2813 = vmatprep.mubr.f32.mxu0 0.0
      %2814 = vmatmul.mubr.f32.gmra.mxu0 %v2530
      %v2815 = vpop.f32.mrf.mxu0
      %v2816 = vadd.f32 0.0, %v2815
      %v2817 = vpop.f32.mrf.mxu0
      %2818 = vmatprep.mubr.f32.mxu0 0.0
      %2819 = vmatmul.mubr.f32.gmra.mxu0 %v2533
      %v2820 = vpop.f32.mrf.mxu0
      %v2821 = vpop.f32.mrf.mxu0
      %2822 = vmatprep.mubr.f32.mxu0 0.0
      %2823 = vmatmul.mubr.f32.gmra.mxu0 %v2536
      %v2824 = vpop.f32.mrf.mxu0
      %v2825 = vadd.f32 0.0, %v2824
      %v2826 = vpop.f32.mrf.mxu0
      %2827 = vmatprep.mubr.f32.mxu0 0.0
      %2828 = vmatmul.mubr.f32.gmra.mxu0 %v2539
      %v2829 = vpop.f32.mrf.mxu0
      %v2830 = vadd.f32 0.0, %v2829
      %v2831 = vpop.f32.mrf.mxu0
      %2832 = vmatprep.mubr.f32.mxu0 0.0
      %2833 = vmatmul.mubr.f32.gmra.mxu0 %v2542
      %v2834 = vpop.f32.mrf.mxu0
      %v2835 = vpop.f32.mrf.mxu0
      %2836 = vdwg.mxu0
      %v2838 = vsel %vm2132, %v2301, 0
      %v2841 = vsel %vm2132, %v2302, 0
      %v2844 = vsel %vm2132, %v2303, 0
      %v2847 = vsel %vm2132, %v2304, 0
      %v2850 = vsel %vm2132, %v2305, 0
      %v2853 = vsel %vm2132, %v2306, 0
      %v2856 = vsel %vm2132, %v2307, 0
      %v2859 = vsel %vm2132, %v2308, 0
      %v2862 = vsel %vm2132, %v2309, 0
      %v2865 = vsel %vm2132, %v2310, 0
      %v2868 = vsel %vm2132, %v2311, 0
      %v2871 = vsel %vm2132, %v2312, 0
      %v2874 = vsel %vm2132, %v2313, 0
      %v2877 = vsel %vm2132, %v2314, 0
      %v2880 = vsel %vm2132, %v2315, 0
      %v2883 = vsel %vm2132, %v2316, 0
      %v2886 = vsel %vm2132, %v2317, 0
      %v2889 = vsel %vm2132, %v2318, 0
      %v2892 = vsel %vm2132, %v2319, 0
      %v2895 = vsel %vm2132, %v2320, 0
      %v2898 = vsel %vm2132, %v2321, 0
      %v2901 = vsel %vm2132, %v2322, 0
      %v2904 = vsel %vm2132, %v2323, 0
      %v2907 = vsel %vm2132, %v2324, 0
      %v2910 = vsel %vm2132, %v2325, 0
      %v2913 = vsel %vm2132, %v2326, 0
      %v2916 = vsel %vm2132, %v2327, 0
      %v2919 = vsel %vm2132, %v2328, 0
      %v2922 = vsel %vm2132, %v2329, 0
      %v2925 = vsel %vm2132, %v2330, 0
      %v2928 = vsel %vm2132, %v2331, 0
      %v2931 = vsel %vm2132, %v2332, 0
      %v2934 = vsel %vm2132, %v2333, 0
      %v2937 = vsel %vm2132, %v2334, 0
      %v2940 = vsel %vm2132, %v2335, 0
      %v2943 = vsel %vm2132, %v2336, 0
      %v2946 = vsel %vm2132, %v2337, 0
      %v2949 = vsel %vm2132, %v2338, 0
      %v2952 = vsel %vm2132, %v2339, 0
      %v2955 = vsel %vm2132, %v2340, 0
      %v2958 = vsel %vm2132, %v2341, 0
      %v2961 = vsel %vm2132, %v2342, 0
      %v2964 = vsel %vm2132, %v2343, 0
      %v2967 = vsel %vm2132, %v2344, 0
      %v2970 = vsel %vm2132, %v2345, 0
      %v2973 = vsel %vm2132, %v2346, 0
      %v2976 = vsel %vm2132, %v2347, 0
      %v2979 = vsel %vm2132, %v2348, 0
      %v2982 = vsel %vm2544, %v2349, 0
      %2984 = vmatprep.subr.mxu0 0.0
      %2985 = vmatpush1.msra.mxu0 0.0
      %2986 = vmatprep.subr.mxu0 0.0
      %2987 = vmatpush1.msra.mxu0 0.0
      %2988 = vmatprep.subr.mxu0 0.0
      %2989 = vmatpush1.msra.mxu0 0.0
      %2990 = vmatprep.subr.mxu0 0.0
      %2991 = vmatpush1.msra.mxu0 0.0
      %2992 = vmatprep.subr.mxu0 0.0
      %2993 = vmatpush1.msra.mxu0 0.0
      %2994 = vmatprep.subr.mxu0 0.0
      %2995 = vmatpush1.msra.mxu0 0.0
      %2996 = vmatprep.subr.mxu0 0.0
      %2997 = vmatpush1.msra.mxu0 0.0
      %2998 = vmatprep.subr.mxu0 0.0
      %2999 = vmatpush1.msra.mxu0 0.0
      %3000 = vmatprep.subr.mxu0 0.0
      %3001 = vmatpush1.msra.mxu0 0.0
      %3002 = vmatprep.subr.mxu0 0.0
      %3003 = vmatpush1.msra.mxu0 0.0
      %3004 = vmatprep.subr.mxu0 0.0
      %3005 = vmatpush1.msra.mxu0 0.0
      %3006 = vmatprep.subr.mxu0 0.0
      %3007 = vmatpush1.msra.mxu0 0.0
      %3008 = vmatprep.subr.mxu0 0.0
      %3009 = vmatpush1.msra.mxu0 0.0
      %3010 = vmatprep.subr.mxu0 0.0
      %3011 = vmatpush1.msra.mxu0 0.0
      %3012 = vmatprep.subr.mxu0 0.0
      %3013 = vmatpush1.msra.mxu0 0.0
      %3014 = vmatprep.subr.mxu0 0.0
      %3015 = vmatpush1.msra.mxu0 %v2982
      %3016 = vmatprep.subr.mxu0 0.0
      %3017 = vmatpush2.msra.mxu0 0.0
      %3018 = vmatprep.subr.mxu0 0.0
      %3019 = vmatpush2.msra.mxu0 0.0
      %3020 = vmatprep.subr.mxu0 0.0
      %3021 = vmatpush2.msra.mxu0 0.0
      %3022 = vmatprep.subr.mxu0 0.0
      %3023 = vmatpush2.msra.mxu0 0.0
      %3024 = vmatprep.subr.mxu0 0.0
      %3025 = vmatpush2.msra.mxu0 0.0
      %3026 = vmatprep.subr.mxu0 0.0
      %3027 = vmatpush2.msra.mxu0 0.0
      %3028 = vmatprep.subr.mxu0 0.0
      %3029 = vmatpush2.msra.mxu0 0.0
      %3030 = vmatprep.subr.mxu0 0.0
      %3031 = vmatpush2.msra.mxu0 0.0
      %3032 = vmatprep.subr.mxu0 0.0
      %3033 = vmatpush2.msra.mxu0 0.0
      %3034 = vmatprep.subr.mxu0 0.0
      %3035 = vmatpush2.msra.mxu0 0.0
      %3036 = vmatprep.subr.mxu0 0.0
      %3037 = vmatpush2.msra.mxu0 0.0
      %3038 = vmatprep.subr.mxu0 0.0
      %3039 = vmatpush2.msra.mxu0 0.0
      %3040 = vmatprep.subr.mxu0 0.0
      %3041 = vmatpush2.msra.mxu0 0.0
      %3042 = vmatprep.subr.mxu0 0.0
      %3043 = vmatpush2.msra.mxu0 0.0
      %3044 = vmatprep.subr.mxu0 0.0
      %3045 = vmatpush2.msra.mxu0 0.0
      %3046 = vmatprep.subr.mxu0 0.0
      %3047 = vmatpush2.msra.mxu0 0.0
      %3048 = vmatprep.mubr.f32.mxu0 0.0
      %3049 = vmatmul.mubr.f32.gmra.mxu0 %v2838
      %v3050 = vpop.f32.mrf.mxu0
      %v3051 = vadd.f32 %v2615, %v3050
      %v3052 = vpop.f32.mrf.mxu0
      %3053 = vmatprep.mubr.f32.mxu0 0.0
      %3054 = vmatmul.mubr.f32.gmra.mxu0 %v2841
      %v3055 = vpop.f32.mrf.mxu0
      %v3056 = vadd.f32 %v2620, %v3055
      %v3057 = vpop.f32.mrf.mxu0
      %3058 = vmatprep.mubr.f32.mxu0 0.0
      %3059 = vmatmul.mubr.f32.gmra.mxu0 %v2844
      %v3060 = vpop.f32.mrf.mxu0
      %v3061 = vpop.f32.mrf.mxu0
      %3062 = vmatprep.mubr.f32.mxu0 0.0
      %3063 = vmatmul.mubr.f32.gmra.mxu0 %v2847
      %v3064 = vpop.f32.mrf.mxu0
      %v3065 = vadd.f32 %v2629, %v3064
      %v3066 = vpop.f32.mrf.mxu0
      %3067 = vmatprep.mubr.f32.mxu0 0.0
      %3068 = vmatmul.mubr.f32.gmra.mxu0 %v2850
      %v3069 = vpop.f32.mrf.mxu0
      %v3070 = vadd.f32 %v2634, %v3069
      %v3071 = vpop.f32.mrf.mxu0
      %3072 = vmatprep.mubr.f32.mxu0 0.0
      %3073 = vmatmul.mubr.f32.gmra.mxu0 %v2853
      %v3074 = vpop.f32.mrf.mxu0
      %v3075 = vpop.f32.mrf.mxu0
      %3076 = vmatprep.mubr.f32.mxu0 0.0
      %3077 = vmatmul.mubr.f32.gmra.mxu0 %v2856
      %v3078 = vpop.f32.mrf.mxu0
      %v3079 = vadd.f32 %v2643, %v3078
      %v3080 = vpop.f32.mrf.mxu0
      %3081 = vmatprep.mubr.f32.mxu0 0.0
      %3082 = vmatmul.mubr.f32.gmra.mxu0 %v2859
      %v3083 = vpop.f32.mrf.mxu0
      %v3084 = vadd.f32 %v2648, %v3083
      %v3085 = vpop.f32.mrf.mxu0
      %3086 = vmatprep.mubr.f32.mxu0 0.0
      %3087 = vmatmul.mubr.f32.gmra.mxu0 %v2862
      %v3088 = vpop.f32.mrf.mxu0
      %v3089 = vpop.f32.mrf.mxu0
      %3090 = vmatprep.mubr.f32.mxu0 0.0
      %3091 = vmatmul.mubr.f32.gmra.mxu0 %v2865
      %v3092 = vpop.f32.mrf.mxu0
      %v3093 = vadd.f32 %v2657, %v3092
      %v3094 = vpop.f32.mrf.mxu0
      %3095 = vmatprep.mubr.f32.mxu0 0.0
      %3096 = vmatmul.mubr.f32.gmra.mxu0 %v2868
      %v3097 = vpop.f32.mrf.mxu0
      %v3098 = vadd.f32 %v2662, %v3097
      %v3099 = vpop.f32.mrf.mxu0
      %3100 = vmatprep.mubr.f32.mxu0 0.0
      %3101 = vmatmul.mubr.f32.gmra.mxu0 %v2871
      %v3102 = vpop.f32.mrf.mxu0
      %v3103 = vpop.f32.mrf.mxu0
      %3104 = vmatprep.mubr.f32.mxu0 0.0
      %3105 = vmatmul.mubr.f32.gmra.mxu0 %v2874
      %v3106 = vpop.f32.mrf.mxu0
      %v3107 = vadd.f32 %v2671, %v3106
      %v3108 = vpop.f32.mrf.mxu0
      %3109 = vmatprep.mubr.f32.mxu0 0.0
      %3110 = vmatmul.mubr.f32.gmra.mxu0 %v2877
      %v3111 = vpop.f32.mrf.mxu0
      %v3112 = vadd.f32 %v2676, %v3111
      %v3113 = vpop.f32.mrf.mxu0
      %3114 = vmatprep.mubr.f32.mxu0 0.0
      %3115 = vmatmul.mubr.f32.gmra.mxu0 %v2880
      %v3116 = vpop.f32.mrf.mxu0
      %v3117 = vpop.f32.mrf.mxu0
      %3118 = vmatprep.mubr.f32.mxu0 0.0
      %3119 = vmatmul.mubr.f32.gmra.mxu0 %v2883
      %v3120 = vpop.f32.mrf.mxu0
      %v3121 = vadd.f32 %v2685, %v3120
      %v3122 = vpop.f32.mrf.mxu0
      %3123 = vmatprep.mubr.f32.mxu0 0.0
      %3124 = vmatmul.mubr.f32.gmra.mxu0 %v2886
      %v3125 = vpop.f32.mrf.mxu0
      %v3126 = vadd.f32 %v2690, %v3125
      %v3127 = vpop.f32.mrf.mxu0
      %3128 = vmatprep.mubr.f32.mxu0 0.0
      %3129 = vmatmul.mubr.f32.gmra.mxu0 %v2889
      %v3130 = vpop.f32.mrf.mxu0
      %v3131 = vpop.f32.mrf.mxu0
      %3132 = vmatprep.mubr.f32.mxu0 0.0
      %3133 = vmatmul.mubr.f32.gmra.mxu0 %v2892
      %v3134 = vpop.f32.mrf.mxu0
      %v3135 = vadd.f32 %v2699, %v3134
      %v3136 = vpop.f32.mrf.mxu0
      %3137 = vmatprep.mubr.f32.mxu0 0.0
      %3138 = vmatmul.mubr.f32.gmra.mxu0 %v2895
      %v3139 = vpop.f32.mrf.mxu0
      %v3140 = vadd.f32 %v2704, %v3139
      %v3141 = vpop.f32.mrf.mxu0
      %3142 = vmatprep.mubr.f32.mxu0 0.0
      %3143 = vmatmul.mubr.f32.gmra.mxu0 %v2898
      %v3144 = vpop.f32.mrf.mxu0
      %v3145 = vpop.f32.mrf.mxu0
      %3146 = vmatprep.mubr.f32.mxu0 0.0
      %3147 = vmatmul.mubr.f32.gmra.mxu0 %v2901
      %v3148 = vpop.f32.mrf.mxu0
      %v3149 = vadd.f32 %v2713, %v3148
      %v3150 = vpop.f32.mrf.mxu0
      %3151 = vmatprep.mubr.f32.mxu0 0.0
      %3152 = vmatmul.mubr.f32.gmra.mxu0 %v2904
      %v3153 = vpop.f32.mrf.mxu0
      %v3154 = vadd.f32 %v2718, %v3153
      %v3155 = vpop.f32.mrf.mxu0
      %3156 = vmatprep.mubr.f32.mxu0 0.0
      %3157 = vmatmul.mubr.f32.gmra.mxu0 %v2907
      %v3158 = vpop.f32.mrf.mxu0
      %v3159 = vpop.f32.mrf.mxu0
      %3160 = vmatprep.mubr.f32.mxu0 0.0
      %3161 = vmatmul.mubr.f32.gmra.mxu0 %v2910
      %v3162 = vpop.f32.mrf.mxu0
      %v3163 = vadd.f32 %v2727, %v3162
      %v3164 = vpop.f32.mrf.mxu0
      %3165 = vmatprep.mubr.f32.mxu0 0.0
      %3166 = vmatmul.mubr.f32.gmra.mxu0 %v2913
      %v3167 = vpop.f32.mrf.mxu0
      %v3168 = vadd.f32 %v2732, %v3167
      %v3169 = vpop.f32.mrf.mxu0
      %3170 = vmatprep.mubr.f32.mxu0 0.0
      %3171 = vmatmul.mubr.f32.gmra.mxu0 %v2916
      %v3172 = vpop.f32.mrf.mxu0
      %v3173 = vpop.f32.mrf.mxu0
      %3174 = vmatprep.mubr.f32.mxu0 0.0
      %3175 = vmatmul.mubr.f32.gmra.mxu0 %v2919
      %v3176 = vpop.f32.mrf.mxu0
      %v3177 = vadd.f32 %v2741, %v3176
      %v3178 = vpop.f32.mrf.mxu0
      %3179 = vmatprep.mubr.f32.mxu0 0.0
      %3180 = vmatmul.mubr.f32.gmra.mxu0 %v2922
      %v3181 = vpop.f32.mrf.mxu0
      %v3182 = vadd.f32 %v2746, %v3181
      %v3183 = vpop.f32.mrf.mxu0
      %3184 = vmatprep.mubr.f32.mxu0 0.0
      %3185 = vmatmul.mubr.f32.gmra.mxu0 %v2925
      %v3186 = vpop.f32.mrf.mxu0
      %v3187 = vpop.f32.mrf.mxu0
      %3188 = vmatprep.mubr.f32.mxu0 0.0
      %3189 = vmatmul.mubr.f32.gmra.mxu0 %v2928
      %v3190 = vpop.f32.mrf.mxu0
      %v3191 = vadd.f32 %v2755, %v3190
      %v3192 = vpop.f32.mrf.mxu0
      %3193 = vmatprep.mubr.f32.mxu0 0.0
      %3194 = vmatmul.mubr.f32.gmra.mxu0 %v2931
      %v3195 = vpop.f32.mrf.mxu0
      %v3196 = vadd.f32 %v2760, %v3195
      %v3197 = vpop.f32.mrf.mxu0
      %3198 = vmatprep.mubr.f32.mxu0 0.0
      %3199 = vmatmul.mubr.f32.gmra.mxu0 %v2934
      %v3200 = vpop.f32.mrf.mxu0
      %v3201 = vpop.f32.mrf.mxu0
      %3202 = vmatprep.mubr.f32.mxu0 0.0
      %3203 = vmatmul.mubr.f32.gmra.mxu0 %v2937
      %v3204 = vpop.f32.mrf.mxu0
      %v3205 = vadd.f32 %v2769, %v3204
      %v3206 = vpop.f32.mrf.mxu0
      %3207 = vmatprep.mubr.f32.mxu0 0.0
      %3208 = vmatmul.mubr.f32.gmra.mxu0 %v2940
      %v3209 = vpop.f32.mrf.mxu0
      %v3210 = vadd.f32 %v2774, %v3209
      %v3211 = vpop.f32.mrf.mxu0
      %3212 = vmatprep.mubr.f32.mxu0 0.0
      %3213 = vmatmul.mubr.f32.gmra.mxu0 %v2943
      %v3214 = vpop.f32.mrf.mxu0
      %v3215 = vpop.f32.mrf.mxu0
      %3216 = vmatprep.mubr.f32.mxu0 0.0
      %3217 = vmatmul.mubr.f32.gmra.mxu0 %v2946
      %v3218 = vpop.f32.mrf.mxu0
      %v3219 = vadd.f32 %v2783, %v3218
      %v3220 = vpop.f32.mrf.mxu0
      %3221 = vmatprep.mubr.f32.mxu0 0.0
      %3222 = vmatmul.mubr.f32.gmra.mxu0 %v2949
      %v3223 = vpop.f32.mrf.mxu0
      %v3224 = vadd.f32 %v2788, %v3223
      %v3225 = vpop.f32.mrf.mxu0
      %3226 = vmatprep.mubr.f32.mxu0 0.0
      %3227 = vmatmul.mubr.f32.gmra.mxu0 %v2952
      %v3228 = vpop.f32.mrf.mxu0
      %v3229 = vpop.f32.mrf.mxu0
      %3230 = vmatprep.mubr.f32.mxu0 0.0
      %3231 = vmatmul.mubr.f32.gmra.mxu0 %v2955
      %v3232 = vpop.f32.mrf.mxu0
      %v3233 = vadd.f32 %v2797, %v3232
      %v3234 = vpop.f32.mrf.mxu0
      %3235 = vmatprep.mubr.f32.mxu0 0.0
      %3236 = vmatmul.mubr.f32.gmra.mxu0 %v2958
      %v3237 = vpop.f32.mrf.mxu0
      %v3238 = vadd.f32 %v2802, %v3237
      %v3239 = vpop.f32.mrf.mxu0
      %3240 = vmatprep.mubr.f32.mxu0 0.0
      %3241 = vmatmul.mubr.f32.gmra.mxu0 %v2961
      %v3242 = vpop.f32.mrf.mxu0
      %v3243 = vpop.f32.mrf.mxu0
      %3244 = vmatprep.mubr.f32.mxu0 0.0
      %3245 = vmatmul.mubr.f32.gmra.mxu0 %v2964
      %v3246 = vpop.f32.mrf.mxu0
      %v3247 = vadd.f32 %v2811, %v3246
      %v3248 = vpop.f32.mrf.mxu0
      %3249 = vmatprep.mubr.f32.mxu0 0.0
      %3250 = vmatmul.mubr.f32.gmra.mxu0 %v2967
      %v3251 = vpop.f32.mrf.mxu0
      %v3252 = vadd.f32 %v2816, %v3251
      %v3253 = vpop.f32.mrf.mxu0
      %3254 = vmatprep.mubr.f32.mxu0 0.0
      %3255 = vmatmul.mubr.f32.gmra.mxu0 %v2970
      %v3256 = vpop.f32.mrf.mxu0
      %v3257 = vpop.f32.mrf.mxu0
      %3258 = vmatprep.mubr.f32.mxu0 0.0
      %3259 = vmatmul.mubr.f32.gmra.mxu0 %v2973
      %v3260 = vpop.f32.mrf.mxu0
      %v3261 = vadd.f32 %v2825, %v3260
      %v3262 = vpop.f32.mrf.mxu0
      %3263 = vmatprep.mubr.f32.mxu0 0.0
      %3264 = vmatmul.mubr.f32.gmra.mxu0 %v2976
      %v3265 = vpop.f32.mrf.mxu0
      %v3266 = vadd.f32 %v2830, %v3265
      %v3267 = vpop.f32.mrf.mxu0
      %3268 = vmatprep.mubr.f32.mxu0 0.0
      %3269 = vmatmul.mubr.f32.gmra.mxu0 %v2979
      %v3270 = vpop.f32.mrf.mxu0
      %v3271 = vpop.f32.mrf.mxu0
      %3272 = vdwg.mxu0
      %v3273 = vld [vmem:[%s2245] sm:$0xff]
      %v3274 = vld [vmem:[%s2245 + $0x8] sm:$0xff]
      %v3275 = vld [vmem:[%s2245 + $0x10] sm:$0xff]
      %v3276 = vld [vmem:[%s2245 + $0x18] sm:$0xff]
      %v3277 = vld [vmem:[%s2245 + $0x20] sm:$0xff]
      %v3278 = vld [vmem:[%s2245 + $0x28] sm:$0xff]
      %v3279 = vld [vmem:[%s2245 + $0x30] sm:$0xff]
      %v3280 = vld [vmem:[%s2245 + $0x38] sm:$0xff]
      %v3281 = vld [vmem:[%s2245 + $0x40] sm:$0xff]
      %v3282 = vld [vmem:[%s2245 + $0x48] sm:$0xff]
      %v3283 = vld [vmem:[%s2245 + $0x50] sm:$0xff]
      %v3284 = vld [vmem:[%s2245 + $0x58] sm:$0xff]
      %v3285 = vld [vmem:[%s2245 + $0x60] sm:$0xff]
      %v3286 = vld [vmem:[%s2245 + $0x68] sm:$0xff]
      %v3287 = vld [vmem:[%s2245 + $0x70] sm:$0xff]
      %v3288 = vld [vmem:[%s2245 + $0x78] sm:$0xff]
      %v3289 = vld [vmem:[%s2245 + $0x80] sm:$0xff]
      %v3290 = vld [vmem:[%s2245 + $0x88] sm:$0xff]
      %v3291 = vld [vmem:[%s2245 + $0x90] sm:$0xff]
      %v3292 = vld [vmem:[%s2245 + $0x98] sm:$0xff]
      %v3293 = vld [vmem:[%s2245 + $0xa0] sm:$0xff]
      %v3294 = vld [vmem:[%s2245 + $0xa8] sm:$0xff]
      %v3295 = vld [vmem:[%s2245 + $0xb0] sm:$0xff]
      %v3296 = vld [vmem:[%s2245 + $0xb8] sm:$0xff]
      %v3297 = vld [vmem:[%s2245 + $0xc0] sm:$0xff]
      %v3298 = vld [vmem:[%s2245 + $0xc8] sm:$0xff]
      %v3299 = vld [vmem:[%s2245 + $0xd0] sm:$0xff]
      %v3300 = vld [vmem:[%s2245 + $0xd8] sm:$0xff]
      %v3301 = vld [vmem:[%s2245 + $0xe0] sm:$0xff]
      %v3302 = vld [vmem:[%s2245 + $0xe8] sm:$0xff]
      %v3303 = vld [vmem:[%s2245 + $0xf0] sm:$0xff]
      %v3304 = vld [vmem:[%s2245 + $0xf8] sm:$0xff]
      %v3305 = vld [vmem:[%s2245 + $0x100] sm:$0xff]
      %v3306 = vld [vmem:[%s2245 + $0x108] sm:$0xff]
      %v3307 = vld [vmem:[%s2245 + $0x110] sm:$0xff]
      %v3308 = vld [vmem:[%s2245 + $0x118] sm:$0xff]
      %v3309 = vld [vmem:[%s2245 + $0x120] sm:$0xff]
      %v3310 = vld [vmem:[%s2245 + $0x128] sm:$0xff]
      %v3311 = vld [vmem:[%s2245 + $0x130] sm:$0xff]
      %v3312 = vld [vmem:[%s2245 + $0x138] sm:$0xff]
      %v3313 = vld [vmem:[%s2245 + $0x140] sm:$0xff]
      %v3314 = vld [vmem:[%s2245 + $0x148] sm:$0xff]
      %v3315 = vld [vmem:[%s2245 + $0x150] sm:$0xff]
      %v3316 = vld [vmem:[%s2245 + $0x158] sm:$0xff]
      %v3317 = vld [vmem:[%s2245 + $0x160] sm:$0xff]
      %v3318 = vld [vmem:[%s2245 + $0x168] sm:$0xff]
      %v3319 = vld [vmem:[%s2245 + $0x170] sm:$0xff]
      %v3320 = vld [vmem:[%s2245 + $0x178] sm:$0xff]
      %s3321 = scalar_lea.vmem %s3, 8
      %v3322 = vld [vmem:[%s3321] sm:$0xf]
      %v3324 = vsel %vm2132, %v3273, 0
      %v3327 = vsel %vm2132, %v3274, 0
      %v3330 = vsel %vm2132, %v3275, 0
      %v3333 = vsel %vm2132, %v3276, 0
      %v3336 = vsel %vm2132, %v3277, 0
      %v3339 = vsel %vm2132, %v3278, 0
      %v3342 = vsel %vm2132, %v3279, 0
      %v3345 = vsel %vm2132, %v3280, 0
      %v3348 = vsel %vm2132, %v3281, 0
      %v3351 = vsel %vm2132, %v3282, 0
      %v3354 = vsel %vm2132, %v3283, 0
      %v3357 = vsel %vm2132, %v3284, 0
      %v3360 = vsel %vm2132, %v3285, 0
      %v3363 = vsel %vm2132, %v3286, 0
      %v3366 = vsel %vm2132, %v3287, 0
      %v3369 = vsel %vm2132, %v3288, 0
      %v3372 = vsel %vm2132, %v3289, 0
      %v3375 = vsel %vm2132, %v3290, 0
      %v3378 = vsel %vm2132, %v3291, 0
      %v3381 = vsel %vm2132, %v3292, 0
      %v3384 = vsel %vm2132, %v3293, 0
      %v3387 = vsel %vm2132, %v3294, 0
      %v3390 = vsel %vm2132, %v3295, 0
      %v3393 = vsel %vm2132, %v3296, 0
      %v3396 = vsel %vm2132, %v3297, 0
      %v3399 = vsel %vm2132, %v3298, 0
      %v3402 = vsel %vm2132, %v3299, 0
      %v3405 = vsel %vm2132, %v3300, 0
      %v3408 = vsel %vm2132, %v3301, 0
      %v3411 = vsel %vm2132, %v3302, 0
      %v3414 = vsel %vm2132, %v3303, 0
      %v3417 = vsel %vm2132, %v3304, 0
      %v3420 = vsel %vm2132, %v3305, 0
      %v3423 = vsel %vm2132, %v3306, 0
      %v3426 = vsel %vm2132, %v3307, 0
      %v3429 = vsel %vm2132, %v3308, 0
      %v3432 = vsel %vm2132, %v3309, 0
      %v3435 = vsel %vm2132, %v3310, 0
      %v3438 = vsel %vm2132, %v3311, 0
      %v3441 = vsel %vm2132, %v3312, 0
      %v3444 = vsel %vm2132, %v3313, 0
      %v3447 = vsel %vm2132, %v3314, 0
      %v3450 = vsel %vm2132, %v3315, 0
      %v3453 = vsel %vm2132, %v3316, 0
      %v3456 = vsel %vm2132, %v3317, 0
      %v3459 = vsel %vm2132, %v3318, 0
      %v3462 = vsel %vm2132, %v3319, 0
      %v3465 = vsel %vm2132, %v3320, 0
      %v3468 = vsel %vm2544, %v3322, 0
      %3470 = vmatprep.subr.mxu0 0.0
      %3471 = vmatpush1.msra.mxu0 0.0
      %3472 = vmatprep.subr.mxu0 0.0
      %3473 = vmatpush1.msra.mxu0 0.0
      %3474 = vmatprep.subr.mxu0 0.0
      %3475 = vmatpush1.msra.mxu0 0.0
      %3476 = vmatprep.subr.mxu0 0.0
      %3477 = vmatpush1.msra.mxu0 0.0
      %3478 = vmatprep.subr.mxu0 0.0
      %3479 = vmatpush1.msra.mxu0 0.0
      %3480 = vmatprep.subr.mxu0 0.0
      %3481 = vmatpush1.msra.mxu0 0.0
      %3482 = vmatprep.subr.mxu0 0.0
      %3483 = vmatpush1.msra.mxu0 0.0
      %3484 = vmatprep.subr.mxu0 0.0
      %3485 = vmatpush1.msra.mxu0 0.0
      %3486 = vmatprep.subr.mxu0 0.0
      %3487 = vmatpush1.msra.mxu0 0.0
      %3488 = vmatprep.subr.mxu0 0.0
      %3489 = vmatpush1.msra.mxu0 0.0
      %3490 = vmatprep.subr.mxu0 0.0
      %3491 = vmatpush1.msra.mxu0 0.0
      %3492 = vmatprep.subr.mxu0 0.0
      %3493 = vmatpush1.msra.mxu0 0.0
      %3494 = vmatprep.subr.mxu0 0.0
      %3495 = vmatpush1.msra.mxu0 0.0
      %3496 = vmatprep.subr.mxu0 0.0
      %3497 = vmatpush1.msra.mxu0 0.0
      %3498 = vmatprep.subr.mxu0 0.0
      %3499 = vmatpush1.msra.mxu0 0.0
      %3500 = vmatprep.subr.mxu0 0.0
      %3501 = vmatpush1.msra.mxu0 %v3468
      %3502 = vmatprep.subr.mxu0 0.0
      %3503 = vmatpush2.msra.mxu0 0.0
      %3504 = vmatprep.subr.mxu0 0.0
      %3505 = vmatpush2.msra.mxu0 0.0
      %3506 = vmatprep.subr.mxu0 0.0
      %3507 = vmatpush2.msra.mxu0 0.0
      %3508 = vmatprep.subr.mxu0 0.0
      %3509 = vmatpush2.msra.mxu0 0.0
      %3510 = vmatprep.subr.mxu0 0.0
      %3511 = vmatpush2.msra.mxu0 0.0
      %3512 = vmatprep.subr.mxu0 0.0
      %3513 = vmatpush2.msra.mxu0 0.0
      %3514 = vmatprep.subr.mxu0 0.0
      %3515 = vmatpush2.msra.mxu0 0.0
      %3516 = vmatprep.subr.mxu0 0.0
      %3517 = vmatpush2.msra.mxu0 0.0
      %3518 = vmatprep.subr.mxu0 0.0
      %3519 = vmatpush2.msra.mxu0 0.0
      %3520 = vmatprep.subr.mxu0 0.0
      %3521 = vmatpush2.msra.mxu0 0.0
      %3522 = vmatprep.subr.mxu0 0.0
      %3523 = vmatpush2.msra.mxu0 0.0
      %3524 = vmatprep.subr.mxu0 0.0
      %3525 = vmatpush2.msra.mxu0 0.0
      %3526 = vmatprep.subr.mxu0 0.0
      %3527 = vmatpush2.msra.mxu0 0.0
      %3528 = vmatprep.subr.mxu0 0.0
      %3529 = vmatpush2.msra.mxu0 0.0
      %3530 = vmatprep.subr.mxu0 0.0
      %3531 = vmatpush2.msra.mxu0 0.0
      %3532 = vmatprep.subr.mxu0 0.0
      %3533 = vmatpush2.msra.mxu0 0.0
      %3534 = vmatprep.mubr.f32.mxu0 0.0
      %3535 = vmatmul.mubr.f32.gmra.mxu0 %v3324
      %v3536 = vpop.f32.mrf.mxu0
      %v3537 = vadd.f32 0.0, %v3536
      %v3538 = vpop.f32.mrf.mxu0
      %3539 = vmatprep.mubr.f32.mxu0 0.0
      %3540 = vmatmul.mubr.f32.gmra.mxu0 %v3327
      %v3541 = vpop.f32.mrf.mxu0
      %v3542 = vadd.f32 0.0, %v3541
      %v3543 = vpop.f32.mrf.mxu0
      %3544 = vmatprep.mubr.f32.mxu0 0.0
      %3545 = vmatmul.mubr.f32.gmra.mxu0 %v3330
      %v3546 = vpop.f32.mrf.mxu0
      %v3547 = vpop.f32.mrf.mxu0
      %3548 = vmatprep.mubr.f32.mxu0 0.0
      %3549 = vmatmul.mubr.f32.gmra.mxu0 %v3333
      %v3550 = vpop.f32.mrf.mxu0
      %v3551 = vadd.f32 0.0, %v3550
      %v3552 = vpop.f32.mrf.mxu0
      %3553 = vmatprep.mubr.f32.mxu0 0.0
      %3554 = vmatmul.mubr.f32.gmra.mxu0 %v3336
      %v3555 = vpop.f32.mrf.mxu0
      %v3556 = vadd.f32 0.0, %v3555
      %v3557 = vpop.f32.mrf.mxu0
      %3558 = vmatprep.mubr.f32.mxu0 0.0
      %3559 = vmatmul.mubr.f32.gmra.mxu0 %v3339
      %v3560 = vpop.f32.mrf.mxu0
      %v3561 = vpop.f32.mrf.mxu0
      %3562 = vmatprep.mubr.f32.mxu0 0.0
      %3563 = vmatmul.mubr.f32.gmra.mxu0 %v3342
      %v3564 = vpop.f32.mrf.mxu0
      %v3565 = vadd.f32 0.0, %v3564
      %v3566 = vpop.f32.mrf.mxu0
      %3567 = vmatprep.mubr.f32.mxu0 0.0
      %3568 = vmatmul.mubr.f32.gmra.mxu0 %v3345
      %v3569 = vpop.f32.mrf.mxu0
      %v3570 = vadd.f32 0.0, %v3569
      %v3571 = vpop.f32.mrf.mxu0
      %3572 = vmatprep.mubr.f32.mxu0 0.0
      %3573 = vmatmul.mubr.f32.gmra.mxu0 %v3348
      %v3574 = vpop.f32.mrf.mxu0
      %v3575 = vpop.f32.mrf.mxu0
      %3576 = vmatprep.mubr.f32.mxu0 0.0
      %3577 = vmatmul.mubr.f32.gmra.mxu0 %v3351
      %v3578 = vpop.f32.mrf.mxu0
      %v3579 = vadd.f32 0.0, %v3578
      %v3580 = vpop.f32.mrf.mxu0
      %3581 = vmatprep.mubr.f32.mxu0 0.0
      %3582 = vmatmul.mubr.f32.gmra.mxu0 %v3354
      %v3583 = vpop.f32.mrf.mxu0
      %v3584 = vadd.f32 0.0, %v3583
      %v3585 = vpop.f32.mrf.mxu0
      %3586 = vmatprep.mubr.f32.mxu0 0.0
      %3587 = vmatmul.mubr.f32.gmra.mxu0 %v3357
      %v3588 = vpop.f32.mrf.mxu0
      %v3589 = vpop.f32.mrf.mxu0
      %3590 = vmatprep.mubr.f32.mxu0 0.0
      %3591 = vmatmul.mubr.f32.gmra.mxu0 %v3360
      %v3592 = vpop.f32.mrf.mxu0
      %v3593 = vadd.f32 0.0, %v3592
      %v3594 = vpop.f32.mrf.mxu0
      %3595 = vmatprep.mubr.f32.mxu0 0.0
      %3596 = vmatmul.mubr.f32.gmra.mxu0 %v3363
      %v3597 = vpop.f32.mrf.mxu0
      %v3598 = vadd.f32 0.0, %v3597
      %v3599 = vpop.f32.mrf.mxu0
      %3600 = vmatprep.mubr.f32.mxu0 0.0
      %3601 = vmatmul.mubr.f32.gmra.mxu0 %v3366
      %v3602 = vpop.f32.mrf.mxu0
      %v3603 = vpop.f32.mrf.mxu0
      %3604 = vmatprep.mubr.f32.mxu0 0.0
      %3605 = vmatmul.mubr.f32.gmra.mxu0 %v3369
      %v3606 = vpop.f32.mrf.mxu0
      %v3607 = vadd.f32 0.0, %v3606
      %v3608 = vpop.f32.mrf.mxu0
      %3609 = vmatprep.mubr.f32.mxu0 0.0
      %3610 = vmatmul.mubr.f32.gmra.mxu0 %v3372
      %v3611 = vpop.f32.mrf.mxu0
      %v3612 = vadd.f32 0.0, %v3611
      %v3613 = vpop.f32.mrf.mxu0
      %3614 = vmatprep.mubr.f32.mxu0 0.0
      %3615 = vmatmul.mubr.f32.gmra.mxu0 %v3375
      %v3616 = vpop.f32.mrf.mxu0
      %v3617 = vpop.f32.mrf.mxu0
      %3618 = vmatprep.mubr.f32.mxu0 0.0
      %3619 = vmatmul.mubr.f32.gmra.mxu0 %v3378
      %v3620 = vpop.f32.mrf.mxu0
      %v3621 = vadd.f32 0.0, %v3620
      %v3622 = vpop.f32.mrf.mxu0
      %3623 = vmatprep.mubr.f32.mxu0 0.0
      %3624 = vmatmul.mubr.f32.gmra.mxu0 %v3381
      %v3625 = vpop.f32.mrf.mxu0
      %v3626 = vadd.f32 0.0, %v3625
      %v3627 = vpop.f32.mrf.mxu0
      %3628 = vmatprep.mubr.f32.mxu0 0.0
      %3629 = vmatmul.mubr.f32.gmra.mxu0 %v3384
      %v3630 = vpop.f32.mrf.mxu0
      %v3631 = vpop.f32.mrf.mxu0
      %3632 = vmatprep.mubr.f32.mxu0 0.0
      %3633 = vmatmul.mubr.f32.gmra.mxu0 %v3387
      %v3634 = vpop.f32.mrf.mxu0
      %v3635 = vadd.f32 0.0, %v3634
      %v3636 = vpop.f32.mrf.mxu0
      %3637 = vmatprep.mubr.f32.mxu0 0.0
      %3638 = vmatmul.mubr.f32.gmra.mxu0 %v3390
      %v3639 = vpop.f32.mrf.mxu0
      %v3640 = vadd.f32 0.0, %v3639
      %v3641 = vpop.f32.mrf.mxu0
      %3642 = vmatprep.mubr.f32.mxu0 0.0
      %3643 = vmatmul.mubr.f32.gmra.mxu0 %v3393
      %v3644 = vpop.f32.mrf.mxu0
      %v3645 = vpop.f32.mrf.mxu0
      %3646 = vmatprep.mubr.f32.mxu0 0.0
      %3647 = vmatmul.mubr.f32.gmra.mxu0 %v3396
      %v3648 = vpop.f32.mrf.mxu0
      %v3649 = vadd.f32 0.0, %v3648
      %v3650 = vpop.f32.mrf.mxu0
      %3651 = vmatprep.mubr.f32.mxu0 0.0
      %3652 = vmatmul.mubr.f32.gmra.mxu0 %v3399
      %v3653 = vpop.f32.mrf.mxu0
      %v3654 = vadd.f32 0.0, %v3653
      %v3655 = vpop.f32.mrf.mxu0
      %3656 = vmatprep.mubr.f32.mxu0 0.0
      %3657 = vmatmul.mubr.f32.gmra.mxu0 %v3402
      %v3658 = vpop.f32.mrf.mxu0
      %v3659 = vpop.f32.mrf.mxu0
      %3660 = vmatprep.mubr.f32.mxu0 0.0
      %3661 = vmatmul.mubr.f32.gmra.mxu0 %v3405
      %v3662 = vpop.f32.mrf.mxu0
      %v3663 = vadd.f32 0.0, %v3662
      %v3664 = vpop.f32.mrf.mxu0
      %3665 = vmatprep.mubr.f32.mxu0 0.0
      %3666 = vmatmul.mubr.f32.gmra.mxu0 %v3408
      %v3667 = vpop.f32.mrf.mxu0
      %v3668 = vadd.f32 0.0, %v3667
      %v3669 = vpop.f32.mrf.mxu0
      %3670 = vmatprep.mubr.f32.mxu0 0.0
      %3671 = vmatmul.mubr.f32.gmra.mxu0 %v3411
      %v3672 = vpop.f32.mrf.mxu0
      %v3673 = vpop.f32.mrf.mxu0
      %3674 = vmatprep.mubr.f32.mxu0 0.0
      %3675 = vmatmul.mubr.f32.gmra.mxu0 %v3414
      %v3676 = vpop.f32.mrf.mxu0
      %v3677 = vadd.f32 0.0, %v3676
      %v3678 = vpop.f32.mrf.mxu0
      %3679 = vmatprep.mubr.f32.mxu0 0.0
      %3680 = vmatmul.mubr.f32.gmra.mxu0 %v3417
      %v3681 = vpop.f32.mrf.mxu0
      %v3682 = vadd.f32 0.0, %v3681
      %v3683 = vpop.f32.mrf.mxu0
      %3684 = vmatprep.mubr.f32.mxu0 0.0
      %3685 = vmatmul.mubr.f32.gmra.mxu0 %v3420
      %v3686 = vpop.f32.mrf.mxu0
      %v3687 = vpop.f32.mrf.mxu0
      %3688 = vmatprep.mubr.f32.mxu0 0.0
      %3689 = vmatmul.mubr.f32.gmra.mxu0 %v3423
      %v3690 = vpop.f32.mrf.mxu0
      %v3691 = vadd.f32 0.0, %v3690
      %v3692 = vpop.f32.mrf.mxu0
      %3693 = vmatprep.mubr.f32.mxu0 0.0
      %3694 = vmatmul.mubr.f32.gmra.mxu0 %v3426
      %v3695 = vpop.f32.mrf.mxu0
      %v3696 = vadd.f32 0.0, %v3695
      %v3697 = vpop.f32.mrf.mxu0
      %3698 = vmatprep.mubr.f32.mxu0 0.0
      %3699 = vmatmul.mubr.f32.gmra.mxu0 %v3429
      %v3700 = vpop.f32.mrf.mxu0
      %v3701 = vpop.f32.mrf.mxu0
      %3702 = vmatprep.mubr.f32.mxu0 0.0
      %3703 = vmatmul.mubr.f32.gmra.mxu0 %v3432
      %v3704 = vpop.f32.mrf.mxu0
      %v3705 = vadd.f32 0.0, %v3704
      %v3706 = vpop.f32.mrf.mxu0
      %3707 = vmatprep.mubr.f32.mxu0 0.0
      %3708 = vmatmul.mubr.f32.gmra.mxu0 %v3435
      %v3709 = vpop.f32.mrf.mxu0
      %v3710 = vadd.f32 0.0, %v3709
      %v3711 = vpop.f32.mrf.mxu0
      %3712 = vmatprep.mubr.f32.mxu0 0.0
      %3713 = vmatmul.mubr.f32.gmra.mxu0 %v3438
      %v3714 = vpop.f32.mrf.mxu0
      %v3715 = vpop.f32.mrf.mxu0
      %3716 = vmatprep.mubr.f32.mxu0 0.0
      %3717 = vmatmul.mubr.f32.gmra.mxu0 %v3441
      %v3718 = vpop.f32.mrf.mxu0
      %v3719 = vadd.f32 0.0, %v3718
      %v3720 = vpop.f32.mrf.mxu0
      %3721 = vmatprep.mubr.f32.mxu0 0.0
      %3722 = vmatmul.mubr.f32.gmra.mxu0 %v3444
      %v3723 = vpop.f32.mrf.mxu0
      %v3724 = vadd.f32 0.0, %v3723
      %v3725 = vpop.f32.mrf.mxu0
      %3726 = vmatprep.mubr.f32.mxu0 0.0
      %3727 = vmatmul.mubr.f32.gmra.mxu0 %v3447
      %v3728 = vpop.f32.mrf.mxu0
      %v3729 = vpop.f32.mrf.mxu0
      %3730 = vmatprep.mubr.f32.mxu0 0.0
      %3731 = vmatmul.mubr.f32.gmra.mxu0 %v3450
      %v3732 = vpop.f32.mrf.mxu0
      %v3733 = vadd.f32 0.0, %v3732
      %v3734 = vpop.f32.mrf.mxu0
      %3735 = vmatprep.mubr.f32.mxu0 0.0
      %3736 = vmatmul.mubr.f32.gmra.mxu0 %v3453
      %v3737 = vpop.f32.mrf.mxu0
      %v3738 = vadd.f32 0.0, %v3737
      %v3739 = vpop.f32.mrf.mxu0
      %3740 = vmatprep.mubr.f32.mxu0 0.0
      %3741 = vmatmul.mubr.f32.gmra.mxu0 %v3456
      %v3742 = vpop.f32.mrf.mxu0
      %v3743 = vpop.f32.mrf.mxu0
      %3744 = vmatprep.mubr.f32.mxu0 0.0
      %3745 = vmatmul.mubr.f32.gmra.mxu0 %v3459
      %v3746 = vpop.f32.mrf.mxu0
      %v3747 = vadd.f32 0.0, %v3746
      %v3748 = vpop.f32.mrf.mxu0
      %3749 = vmatprep.mubr.f32.mxu0 0.0
      %3750 = vmatmul.mubr.f32.gmra.mxu0 %v3462
      %v3751 = vpop.f32.mrf.mxu0
      %v3752 = vadd.f32 0.0, %v3751
      %v3753 = vpop.f32.mrf.mxu0
      %3754 = vmatprep.mubr.f32.mxu0 0.0
      %3755 = vmatmul.mubr.f32.gmra.mxu0 %v3465
      %v3756 = vpop.f32.mrf.mxu0
      %v3757 = vpop.f32.mrf.mxu0
      %3758 = vdwg.mxu0
      %v3759 = vadd.f32 %v3051, %v3537
      %v3760 = vadd.f32 %v3056, %v3542
      %v3761 = vadd.f32 %v3065, %v3551
      %v3762 = vadd.f32 %v3070, %v3556
      %v3763 = vadd.f32 %v3079, %v3565
      %v3764 = vadd.f32 %v3084, %v3570
      %v3765 = vadd.f32 %v3093, %v3579
      %v3766 = vadd.f32 %v3098, %v3584
      %v3767 = vadd.f32 %v3107, %v3593
      %v3768 = vadd.f32 %v3112, %v3598
      %v3769 = vadd.f32 %v3121, %v3607
      %v3770 = vadd.f32 %v3126, %v3612
      %v3771 = vadd.f32 %v3135, %v3621
      %v3772 = vadd.f32 %v3140, %v3626
      %v3773 = vadd.f32 %v3149, %v3635
      %v3774 = vadd.f32 %v3154, %v3640
      %v3775 = vadd.f32 %v3163, %v3649
      %v3776 = vadd.f32 %v3168, %v3654
      %v3777 = vadd.f32 %v3177, %v3663
      %v3778 = vadd.f32 %v3182, %v3668
      %v3779 = vadd.f32 %v3191, %v3677
      %v3780 = vadd.f32 %v3196, %v3682
      %v3781 = vadd.f32 %v3205, %v3691
      %v3782 = vadd.f32 %v3210, %v3696
      %v3783 = vadd.f32 %v3219, %v3705
      %v3784 = vadd.f32 %v3224, %v3710
      %v3785 = vadd.f32 %v3233, %v3719
      %v3786 = vadd.f32 %v3238, %v3724
      %v3787 = vadd.f32 %v3247, %v3733
      %v3788 = vadd.f32 %v3252, %v3738
      %v3789 = vadd.f32 %v3261, %v3747
      %v3790 = vadd.f32 %v3266, %v3752
      %v3791 = vld [vmem:[#allocation2 + $0x18] sm:$0xff]
      %v3792 = vld [vmem:[#allocation2 + $0x20] sm:$0xff]
      %v3793 = vld [vmem:[#allocation2 + $0x28] sm:$0xff]
      %v3794 = vld [vmem:[#allocation2 + $0x30] sm:$0xff]
      %v3795 = vld [vmem:[#allocation2 + $0x38] sm:$0xff]
      %v3796 = vld [vmem:[#allocation2 + $0x40] sm:$0xff]
      %v3797 = vld [vmem:[#allocation2 + $0x48] sm:$0xff]
      %v3798 = vld [vmem:[#allocation2 + $0x50] sm:$0xff]
      %v3799 = vld [vmem:[#allocation2 + $0x58] sm:$0xff]
      %v3800 = vld [vmem:[#allocation2 + $0x60] sm:$0xff]
      %v3801 = vld [vmem:[#allocation2 + $0x68] sm:$0xff]
      %v3802 = vld [vmem:[#allocation2 + $0x70] sm:$0xff]
      %v3803 = vld [vmem:[#allocation2 + $0x78] sm:$0xff]
      %v3804 = vld [vmem:[#allocation2 + $0x80] sm:$0xff]
      %v3805 = vld [vmem:[#allocation2 + $0x88] sm:$0xff]
      %v3806 = vld [vmem:[#allocation2 + $0x90] sm:$0xff]
      %v3807 = vld [vmem:[#allocation2 + $0x98] sm:$0xff]
      %v3808 = vld [vmem:[#allocation2 + $0xa0] sm:$0xff]
      %v3809 = vld [vmem:[#allocation2 + $0xa8] sm:$0xff]
      %v3810 = vld [vmem:[#allocation2 + $0xb0] sm:$0xff]
      %v3811 = vld [vmem:[#allocation2 + $0xb8] sm:$0xff]
      %v3812 = vld [vmem:[#allocation2 + $0xc0] sm:$0xff]
      %v3813 = vld [vmem:[#allocation2 + $0xc8] sm:$0xff]
      %v3814 = vld [vmem:[#allocation2 + $0xd0] sm:$0xff]
      %v3815 = vld [vmem:[#allocation2 + $0xd8] sm:$0xff]
      %v3816 = vld [vmem:[#allocation2 + $0xe0] sm:$0xff]
      %v3817 = vld [vmem:[#allocation2 + $0xe8] sm:$0xff]
      %v3818 = vld [vmem:[#allocation2 + $0xf0] sm:$0xff]
      %v3819 = vld [vmem:[#allocation2 + $0xf8] sm:$0xff]
      %v3820 = vld [vmem:[#allocation2 + $0x100] sm:$0xff]
      %v3821 = vld [vmem:[#allocation2 + $0x108] sm:$0xff]
      %v3822 = vld [vmem:[#allocation2 + $0x110] sm:$0xff]
      %v3823 = vld [vmem:[#allocation2 + $0x118] sm:$0xff]
      %v3824 = vld [vmem:[#allocation2 + $0x120] sm:$0xff]
      %v3825 = vld [vmem:[#allocation2 + $0x128] sm:$0xff]
      %v3826 = vld [vmem:[#allocation2 + $0x130] sm:$0xff]
      %v3827 = vld [vmem:[#allocation2 + $0x138] sm:$0xff]
      %v3828 = vld [vmem:[#allocation2 + $0x140] sm:$0xff]
      %v3829 = vld [vmem:[#allocation2 + $0x148] sm:$0xff]
      %v3830 = vld [vmem:[#allocation2 + $0x150] sm:$0xff]
      %v3831 = vld [vmem:[#allocation2 + $0x158] sm:$0xff]
      %v3832 = vld [vmem:[#allocation2 + $0x160] sm:$0xff]
      %v3833 = vld [vmem:[#allocation2 + $0x168] sm:$0xff]
      %v3834 = vld [vmem:[#allocation2 + $0x170] sm:$0xff]
      %v3835 = vld [vmem:[#allocation2 + $0x178] sm:$0xff]
      %v3836 = vld [vmem:[#allocation2 + $0x180] sm:$0xff]
      %v3837 = vld [vmem:[#allocation2 + $0x188] sm:$0xff]
      %v3838 = vld [vmem:[#allocation2 + $0x190] sm:$0xff]
      %s3839 = scalar_lea.vmem %s3, 12
      %v3840 = vld [vmem:[%s3839] sm:$0xf]
      %v3842 = vsel %vm2132, %v3791, 0
      %v3845 = vsel %vm2132, %v3792, 0
      %v3848 = vsel %vm2132, %v3793, 0
      %v3851 = vsel %vm2132, %v3794, 0
      %v3854 = vsel %vm2132, %v3795, 0
      %v3857 = vsel %vm2132, %v3796, 0
      %v3860 = vsel %vm2132, %v3797, 0
      %v3863 = vsel %vm2132, %v3798, 0
      %v3866 = vsel %vm2132, %v3799, 0
      %v3869 = vsel %vm2132, %v3800, 0
      %v3872 = vsel %vm2132, %v3801, 0
      %v3875 = vsel %vm2132, %v3802, 0
      %v3878 = vsel %vm2132, %v3803, 0
      %v3881 = vsel %vm2132, %v3804, 0
      %v3884 = vsel %vm2132, %v3805, 0
      %v3887 = vsel %vm2132, %v3806, 0
      %v3890 = vsel %vm2132, %v3807, 0
      %v3893 = vsel %vm2132, %v3808, 0
      %v3896 = vsel %vm2132, %v3809, 0
      %v3899 = vsel %vm2132, %v3810, 0
      %v3902 = vsel %vm2132, %v3811, 0
      %v3905 = vsel %vm2132, %v3812, 0
      %v3908 = vsel %vm2132, %v3813, 0
      %v3911 = vsel %vm2132, %v3814, 0
      %v3914 = vsel %vm2132, %v3815, 0
      %v3917 = vsel %vm2132, %v3816, 0
      %v3920 = vsel %vm2132, %v3817, 0
      %v3923 = vsel %vm2132, %v3818, 0
      %v3926 = vsel %vm2132, %v3819, 0
      %v3929 = vsel %vm2132, %v3820, 0
      %v3932 = vsel %vm2132, %v3821, 0
      %v3935 = vsel %vm2132, %v3822, 0
      %v3938 = vsel %vm2132, %v3823, 0
      %v3941 = vsel %vm2132, %v3824, 0
      %v3944 = vsel %vm2132, %v3825, 0
      %v3947 = vsel %vm2132, %v3826, 0
      %v3950 = vsel %vm2132, %v3827, 0
      %v3953 = vsel %vm2132, %v3828, 0
      %v3956 = vsel %vm2132, %v3829, 0
      %v3959 = vsel %vm2132, %v3830, 0
      %v3962 = vsel %vm2132, %v3831, 0
      %v3965 = vsel %vm2132, %v3832, 0
      %v3968 = vsel %vm2132, %v3833, 0
      %v3971 = vsel %vm2132, %v3834, 0
      %v3974 = vsel %vm2132, %v3835, 0
      %v3977 = vsel %vm2132, %v3836, 0
      %v3980 = vsel %vm2132, %v3837, 0
      %v3983 = vsel %vm2132, %v3838, 0
      %v3986 = vsel %vm2544, %v3840, 0
      %3988 = vmatprep.subr.mxu0 0.0
      %3989 = vmatpush1.msra.mxu0 0.0
      %3990 = vmatprep.subr.mxu0 0.0
      %3991 = vmatpush1.msra.mxu0 0.0
      %3992 = vmatprep.subr.mxu0 0.0
      %3993 = vmatpush1.msra.mxu0 0.0
      %3994 = vmatprep.subr.mxu0 0.0
      %3995 = vmatpush1.msra.mxu0 0.0
      %3996 = vmatprep.subr.mxu0 0.0
      %3997 = vmatpush1.msra.mxu0 0.0
      %3998 = vmatprep.subr.mxu0 0.0
      %3999 = vmatpush1.msra.mxu0 0.0
      %4000 = vmatprep.subr.mxu0 0.0
      %4001 = vmatpush1.msra.mxu0 0.0
      %4002 = vmatprep.subr.mxu0 0.0
      %4003 = vmatpush1.msra.mxu0 0.0
      %4004 = vmatprep.subr.mxu0 0.0
      %4005 = vmatpush1.msra.mxu0 0.0
      %4006 = vmatprep.subr.mxu0 0.0
      %4007 = vmatpush1.msra.mxu0 0.0
      %4008 = vmatprep.subr.mxu0 0.0
      %4009 = vmatpush1.msra.mxu0 0.0
      %4010 = vmatprep.subr.mxu0 0.0
      %4011 = vmatpush1.msra.mxu0 0.0
      %4012 = vmatprep.subr.mxu0 0.0
      %4013 = vmatpush1.msra.mxu0 0.0
      %4014 = vmatprep.subr.mxu0 0.0
      %4015 = vmatpush1.msra.mxu0 0.0
      %4016 = vmatprep.subr.mxu0 0.0
      %4017 = vmatpush1.msra.mxu0 0.0
      %4018 = vmatprep.subr.mxu0 0.0
      %4019 = vmatpush1.msra.mxu0 %v3986
      %4020 = vmatprep.subr.mxu0 0.0
      %4021 = vmatpush2.msra.mxu0 0.0
      %4022 = vmatprep.subr.mxu0 0.0
      %4023 = vmatpush2.msra.mxu0 0.0
      %4024 = vmatprep.subr.mxu0 0.0
      %4025 = vmatpush2.msra.mxu0 0.0
      %4026 = vmatprep.subr.mxu0 0.0
      %4027 = vmatpush2.msra.mxu0 0.0
      %4028 = vmatprep.subr.mxu0 0.0
      %4029 = vmatpush2.msra.mxu0 0.0
      %4030 = vmatprep.subr.mxu0 0.0
      %4031 = vmatpush2.msra.mxu0 0.0
      %4032 = vmatprep.subr.mxu0 0.0
      %4033 = vmatpush2.msra.mxu0 0.0
      %4034 = vmatprep.subr.mxu0 0.0
      %4035 = vmatpush2.msra.mxu0 0.0
      %4036 = vmatprep.subr.mxu0 0.0
      %4037 = vmatpush2.msra.mxu0 0.0
      %4038 = vmatprep.subr.mxu0 0.0
      %4039 = vmatpush2.msra.mxu0 0.0
      %4040 = vmatprep.subr.mxu0 0.0
      %4041 = vmatpush2.msra.mxu0 0.0
      %4042 = vmatprep.subr.mxu0 0.0
      %4043 = vmatpush2.msra.mxu0 0.0
      %4044 = vmatprep.subr.mxu0 0.0
      %4045 = vmatpush2.msra.mxu0 0.0
      %4046 = vmatprep.subr.mxu0 0.0
      %4047 = vmatpush2.msra.mxu0 0.0
      %4048 = vmatprep.subr.mxu0 0.0
      %4049 = vmatpush2.msra.mxu0 0.0
      %4050 = vmatprep.subr.mxu0 0.0
      %4051 = vmatpush2.msra.mxu0 0.0
      %4052 = vmatprep.mubr.f32.mxu0 0.0
      %4053 = vmatmul.mubr.f32.gmra.mxu0 %v3842
      %v4054 = vpop.f32.mrf.mxu0
      %v4055 = vadd.f32 0.0, %v4054
      %v4056 = vpop.f32.mrf.mxu0
      %4057 = vmatprep.mubr.f32.mxu0 0.0
      %4058 = vmatmul.mubr.f32.gmra.mxu0 %v3845
      %v4059 = vpop.f32.mrf.mxu0
      %v4060 = vadd.f32 0.0, %v4059
      %v4061 = vpop.f32.mrf.mxu0
      %4062 = vmatprep.mubr.f32.mxu0 0.0
      %4063 = vmatmul.mubr.f32.gmra.mxu0 %v3848
      %v4064 = vpop.f32.mrf.mxu0
      %v4065 = vpop.f32.mrf.mxu0
      %4066 = vmatprep.mubr.f32.mxu0 0.0
      %4067 = vmatmul.mubr.f32.gmra.mxu0 %v3851
      %v4068 = vpop.f32.mrf.mxu0
      %v4069 = vadd.f32 0.0, %v4068
      %v4070 = vpop.f32.mrf.mxu0
      %4071 = vmatprep.mubr.f32.mxu0 0.0
      %4072 = vmatmul.mubr.f32.gmra.mxu0 %v3854
      %v4073 = vpop.f32.mrf.mxu0
      %v4074 = vadd.f32 0.0, %v4073
      %v4075 = vpop.f32.mrf.mxu0
      %4076 = vmatprep.mubr.f32.mxu0 0.0
      %4077 = vmatmul.mubr.f32.gmra.mxu0 %v3857
      %v4078 = vpop.f32.mrf.mxu0
      %v4079 = vpop.f32.mrf.mxu0
      %4080 = vmatprep.mubr.f32.mxu0 0.0
      %4081 = vmatmul.mubr.f32.gmra.mxu0 %v3860
      %v4082 = vpop.f32.mrf.mxu0
      %v4083 = vadd.f32 0.0, %v4082
      %v4084 = vpop.f32.mrf.mxu0
      %4085 = vmatprep.mubr.f32.mxu0 0.0
      %4086 = vmatmul.mubr.f32.gmra.mxu0 %v3863
      %v4087 = vpop.f32.mrf.mxu0
      %v4088 = vadd.f32 0.0, %v4087
      %v4089 = vpop.f32.mrf.mxu0
      %4090 = vmatprep.mubr.f32.mxu0 0.0
      %4091 = vmatmul.mubr.f32.gmra.mxu0 %v3866
      %v4092 = vpop.f32.mrf.mxu0
      %v4093 = vpop.f32.mrf.mxu0
      %4094 = vmatprep.mubr.f32.mxu0 0.0
      %4095 = vmatmul.mubr.f32.gmra.mxu0 %v3869
      %v4096 = vpop.f32.mrf.mxu0
      %v4097 = vadd.f32 0.0, %v4096
      %v4098 = vpop.f32.mrf.mxu0
      %4099 = vmatprep.mubr.f32.mxu0 0.0
      %4100 = vmatmul.mubr.f32.gmra.mxu0 %v3872
      %v4101 = vpop.f32.mrf.mxu0
      %v4102 = vadd.f32 0.0, %v4101
      %v4103 = vpop.f32.mrf.mxu0
      %4104 = vmatprep.mubr.f32.mxu0 0.0
      %4105 = vmatmul.mubr.f32.gmra.mxu0 %v3875
      %v4106 = vpop.f32.mrf.mxu0
      %v4107 = vpop.f32.mrf.mxu0
      %4108 = vmatprep.mubr.f32.mxu0 0.0
      %4109 = vmatmul.mubr.f32.gmra.mxu0 %v3878
      %v4110 = vpop.f32.mrf.mxu0
      %v4111 = vadd.f32 0.0, %v4110
      %v4112 = vpop.f32.mrf.mxu0
      %4113 = vmatprep.mubr.f32.mxu0 0.0
      %4114 = vmatmul.mubr.f32.gmra.mxu0 %v3881
      %v4115 = vpop.f32.mrf.mxu0
      %v4116 = vadd.f32 0.0, %v4115
      %v4117 = vpop.f32.mrf.mxu0
      %4118 = vmatprep.mubr.f32.mxu0 0.0
      %4119 = vmatmul.mubr.f32.gmra.mxu0 %v3884
      %v4120 = vpop.f32.mrf.mxu0
      %v4121 = vpop.f32.mrf.mxu0
      %4122 = vmatprep.mubr.f32.mxu0 0.0
      %4123 = vmatmul.mubr.f32.gmra.mxu0 %v3887
      %v4124 = vpop.f32.mrf.mxu0
      %v4125 = vadd.f32 0.0, %v4124
      %v4126 = vpop.f32.mrf.mxu0
      %4127 = vmatprep.mubr.f32.mxu0 0.0
      %4128 = vmatmul.mubr.f32.gmra.mxu0 %v3890
      %v4129 = vpop.f32.mrf.mxu0
      %v4130 = vadd.f32 0.0, %v4129
      %v4131 = vpop.f32.mrf.mxu0
      %4132 = vmatprep.mubr.f32.mxu0 0.0
      %4133 = vmatmul.mubr.f32.gmra.mxu0 %v3893
      %v4134 = vpop.f32.mrf.mxu0
      %v4135 = vpop.f32.mrf.mxu0
      %4136 = vmatprep.mubr.f32.mxu0 0.0
      %4137 = vmatmul.mubr.f32.gmra.mxu0 %v3896
      %v4138 = vpop.f32.mrf.mxu0
      %v4139 = vadd.f32 0.0, %v4138
      %v4140 = vpop.f32.mrf.mxu0
      %4141 = vmatprep.mubr.f32.mxu0 0.0
      %4142 = vmatmul.mubr.f32.gmra.mxu0 %v3899
      %v4143 = vpop.f32.mrf.mxu0
      %v4144 = vadd.f32 0.0, %v4143
      %v4145 = vpop.f32.mrf.mxu0
      %4146 = vmatprep.mubr.f32.mxu0 0.0
      %4147 = vmatmul.mubr.f32.gmra.mxu0 %v3902
      %v4148 = vpop.f32.mrf.mxu0
      %v4149 = vpop.f32.mrf.mxu0
      %4150 = vmatprep.mubr.f32.mxu0 0.0
      %4151 = vmatmul.mubr.f32.gmra.mxu0 %v3905
      %v4152 = vpop.f32.mrf.mxu0
      %v4153 = vadd.f32 0.0, %v4152
      %v4154 = vpop.f32.mrf.mxu0
      %4155 = vmatprep.mubr.f32.mxu0 0.0
      %4156 = vmatmul.mubr.f32.gmra.mxu0 %v3908
      %v4157 = vpop.f32.mrf.mxu0
      %v4158 = vadd.f32 0.0, %v4157
      %v4159 = vpop.f32.mrf.mxu0
      %4160 = vmatprep.mubr.f32.mxu0 0.0
      %4161 = vmatmul.mubr.f32.gmra.mxu0 %v3911
      %v4162 = vpop.f32.mrf.mxu0
      %v4163 = vpop.f32.mrf.mxu0
      %4164 = vmatprep.mubr.f32.mxu0 0.0
      %4165 = vmatmul.mubr.f32.gmra.mxu0 %v3914
      %v4166 = vpop.f32.mrf.mxu0
      %v4167 = vadd.f32 0.0, %v4166
      %v4168 = vpop.f32.mrf.mxu0
      %4169 = vmatprep.mubr.f32.mxu0 0.0
      %4170 = vmatmul.mubr.f32.gmra.mxu0 %v3917
      %v4171 = vpop.f32.mrf.mxu0
      %v4172 = vadd.f32 0.0, %v4171
      %v4173 = vpop.f32.mrf.mxu0
      %4174 = vmatprep.mubr.f32.mxu0 0.0
      %4175 = vmatmul.mubr.f32.gmra.mxu0 %v3920
      %v4176 = vpop.f32.mrf.mxu0
      %v4177 = vpop.f32.mrf.mxu0
      %4178 = vmatprep.mubr.f32.mxu0 0.0
      %4179 = vmatmul.mubr.f32.gmra.mxu0 %v3923
      %v4180 = vpop.f32.mrf.mxu0
      %v4181 = vadd.f32 0.0, %v4180
      %v4182 = vpop.f32.mrf.mxu0
      %4183 = vmatprep.mubr.f32.mxu0 0.0
      %4184 = vmatmul.mubr.f32.gmra.mxu0 %v3926
      %v4185 = vpop.f32.mrf.mxu0
      %v4186 = vadd.f32 0.0, %v4185
      %v4187 = vpop.f32.mrf.mxu0
      %4188 = vmatprep.mubr.f32.mxu0 0.0
      %4189 = vmatmul.mubr.f32.gmra.mxu0 %v3929
      %v4190 = vpop.f32.mrf.mxu0
      %v4191 = vpop.f32.mrf.mxu0
      %4192 = vmatprep.mubr.f32.mxu0 0.0
      %4193 = vmatmul.mubr.f32.gmra.mxu0 %v3932
      %v4194 = vpop.f32.mrf.mxu0
      %v4195 = vadd.f32 0.0, %v4194
      %v4196 = vpop.f32.mrf.mxu0
      %4197 = vmatprep.mubr.f32.mxu0 0.0
      %4198 = vmatmul.mubr.f32.gmra.mxu0 %v3935
      %v4199 = vpop.f32.mrf.mxu0
      %v4200 = vadd.f32 0.0, %v4199
      %v4201 = vpop.f32.mrf.mxu0
      %4202 = vmatprep.mubr.f32.mxu0 0.0
      %4203 = vmatmul.mubr.f32.gmra.mxu0 %v3938
      %v4204 = vpop.f32.mrf.mxu0
      %v4205 = vpop.f32.mrf.mxu0
      %4206 = vmatprep.mubr.f32.mxu0 0.0
      %4207 = vmatmul.mubr.f32.gmra.mxu0 %v3941
      %v4208 = vpop.f32.mrf.mxu0
      %v4209 = vadd.f32 0.0, %v4208
      %v4210 = vpop.f32.mrf.mxu0
      %4211 = vmatprep.mubr.f32.mxu0 0.0
      %4212 = vmatmul.mubr.f32.gmra.mxu0 %v3944
      %v4213 = vpop.f32.mrf.mxu0
      %v4214 = vadd.f32 0.0, %v4213
      %v4215 = vpop.f32.mrf.mxu0
      %4216 = vmatprep.mubr.f32.mxu0 0.0
      %4217 = vmatmul.mubr.f32.gmra.mxu0 %v3947
      %v4218 = vpop.f32.mrf.mxu0
      %v4219 = vpop.f32.mrf.mxu0
      %4220 = vmatprep.mubr.f32.mxu0 0.0
      %4221 = vmatmul.mubr.f32.gmra.mxu0 %v3950
      %v4222 = vpop.f32.mrf.mxu0
      %v4223 = vadd.f32 0.0, %v4222
      %v4224 = vpop.f32.mrf.mxu0
      %4225 = vmatprep.mubr.f32.mxu0 0.0
      %4226 = vmatmul.mubr.f32.gmra.mxu0 %v3953
      %v4227 = vpop.f32.mrf.mxu0
      %v4228 = vadd.f32 0.0, %v4227
      %v4229 = vpop.f32.mrf.mxu0
      %4230 = vmatprep.mubr.f32.mxu0 0.0
      %4231 = vmatmul.mubr.f32.gmra.mxu0 %v3956
      %v4232 = vpop.f32.mrf.mxu0
      %v4233 = vpop.f32.mrf.mxu0
      %4234 = vmatprep.mubr.f32.mxu0 0.0
      %4235 = vmatmul.mubr.f32.gmra.mxu0 %v3959
      %v4236 = vpop.f32.mrf.mxu0
      %v4237 = vadd.f32 0.0, %v4236
      %v4238 = vpop.f32.mrf.mxu0
      %4239 = vmatprep.mubr.f32.mxu0 0.0
      %4240 = vmatmul.mubr.f32.gmra.mxu0 %v3962
      %v4241 = vpop.f32.mrf.mxu0
      %v4242 = vadd.f32 0.0, %v4241
      %v4243 = vpop.f32.mrf.mxu0
      %4244 = vmatprep.mubr.f32.mxu0 0.0
      %4245 = vmatmul.mubr.f32.gmra.mxu0 %v3965
      %v4246 = vpop.f32.mrf.mxu0
      %v4247 = vpop.f32.mrf.mxu0
      %4248 = vmatprep.mubr.f32.mxu0 0.0
      %4249 = vmatmul.mubr.f32.gmra.mxu0 %v3968
      %v4250 = vpop.f32.mrf.mxu0
      %v4251 = vadd.f32 0.0, %v4250
      %v4252 = vpop.f32.mrf.mxu0
      %4253 = vmatprep.mubr.f32.mxu0 0.0
      %4254 = vmatmul.mubr.f32.gmra.mxu0 %v3971
      %v4255 = vpop.f32.mrf.mxu0
      %v4256 = vadd.f32 0.0, %v4255
      %v4257 = vpop.f32.mrf.mxu0
      %4258 = vmatprep.mubr.f32.mxu0 0.0
      %4259 = vmatmul.mubr.f32.gmra.mxu0 %v3974
      %v4260 = vpop.f32.mrf.mxu0
      %v4261 = vpop.f32.mrf.mxu0
      %4262 = vmatprep.mubr.f32.mxu0 0.0
      %4263 = vmatmul.mubr.f32.gmra.mxu0 %v3977
      %v4264 = vpop.f32.mrf.mxu0
      %v4265 = vadd.f32 0.0, %v4264
      %v4266 = vpop.f32.mrf.mxu0
      %4267 = vmatprep.mubr.f32.mxu0 0.0
      %4268 = vmatmul.mubr.f32.gmra.mxu0 %v3980
      %v4269 = vpop.f32.mrf.mxu0
      %v4270 = vadd.f32 0.0, %v4269
      %v4271 = vpop.f32.mrf.mxu0
      %4272 = vmatprep.mubr.f32.mxu0 0.0
      %4273 = vmatmul.mubr.f32.gmra.mxu0 %v3983
      %v4274 = vpop.f32.mrf.mxu0
      %v4275 = vpop.f32.mrf.mxu0
      %4276 = vdwg.mxu0
      %v4277 = vadd.f32 %v3759, %v4055
      %v4278 = vadd.f32 %v3760, %v4060
      %v4279 = vadd.f32 %v3761, %v4069
      %v4280 = vadd.f32 %v3762, %v4074
      %v4281 = vadd.f32 %v3763, %v4083
      %v4282 = vadd.f32 %v3764, %v4088
      %v4283 = vadd.f32 %v3765, %v4097
      %v4284 = vadd.f32 %v3766, %v4102
      %v4285 = vadd.f32 %v3767, %v4111
      %v4286 = vadd.f32 %v3768, %v4116
      %v4287 = vadd.f32 %v3769, %v4125
      %v4288 = vadd.f32 %v3770, %v4130
      %v4289 = vadd.f32 %v3771, %v4139
      %v4290 = vadd.f32 %v3772, %v4144
      %v4291 = vadd.f32 %v3773, %v4153
      %v4292 = vadd.f32 %v3774, %v4158
      %v4293 = vadd.f32 %v3775, %v4167
      %v4294 = vadd.f32 %v3776, %v4172
      %v4295 = vadd.f32 %v3777, %v4181
      %v4296 = vadd.f32 %v3778, %v4186
      %v4297 = vadd.f32 %v3779, %v4195
      %v4298 = vadd.f32 %v3780, %v4200
      %v4299 = vadd.f32 %v3781, %v4209
      %v4300 = vadd.f32 %v3782, %v4214
      %v4301 = vadd.f32 %v3783, %v4223
      %v4302 = vadd.f32 %v3784, %v4228
      %v4303 = vadd.f32 %v3785, %v4237
      %v4304 = vadd.f32 %v3786, %v4242
      %v4305 = vadd.f32 %v3787, %v4251
      %v4306 = vadd.f32 %v3788, %v4256
      %v4307 = vadd.f32 %v3789, %v4265
      %v4308 = vadd.f32 %v3790, %v4270
      %v4309 = vld [vmem:[%s2190 + $0x18] sm:$0xff]
      %v4310 = vld [vmem:[%s2190 + $0x20] sm:$0xff]
      %v4311 = vld [vmem:[%s2190 + $0x28] sm:$0xff]
      %v4312 = vld [vmem:[%s2190 + $0x30] sm:$0xff]
      %v4313 = vld [vmem:[%s2190 + $0x38] sm:$0xff]
      %v4314 = vld [vmem:[%s2190 + $0x40] sm:$0xff]
      %v4315 = vld [vmem:[%s2190 + $0x48] sm:$0xff]
      %v4316 = vld [vmem:[%s2190 + $0x50] sm:$0xff]
      %v4317 = vld [vmem:[%s2190 + $0x58] sm:$0xff]
      %v4318 = vld [vmem:[%s2190 + $0x60] sm:$0xff]
      %v4319 = vld [vmem:[%s2190 + $0x68] sm:$0xff]
      %v4320 = vld [vmem:[%s2190 + $0x70] sm:$0xff]
      %v4321 = vld [vmem:[%s2190 + $0x78] sm:$0xff]
      %v4322 = vld [vmem:[%s2190 + $0x80] sm:$0xff]
      %v4323 = vld [vmem:[%s2190 + $0x88] sm:$0xff]
      %v4324 = vld [vmem:[%s2190 + $0x90] sm:$0xff]
      %v4325 = vld [vmem:[%s2190 + $0x98] sm:$0xff]
      %v4326 = vld [vmem:[%s2190 + $0xa0] sm:$0xff]
      %v4327 = vld [vmem:[%s2190 + $0xa8] sm:$0xff]
      %v4328 = vld [vmem:[%s2190 + $0xb0] sm:$0xff]
      %v4329 = vld [vmem:[%s2190 + $0xb8] sm:$0xff]
      %v4330 = vld [vmem:[%s2190 + $0xc0] sm:$0xff]
      %v4331 = vld [vmem:[%s2190 + $0xc8] sm:$0xff]
      %v4332 = vld [vmem:[%s2190 + $0xd0] sm:$0xff]
      %v4333 = vld [vmem:[%s2190 + $0xd8] sm:$0xff]
      %v4334 = vld [vmem:[%s2190 + $0xe0] sm:$0xff]
      %v4335 = vld [vmem:[%s2190 + $0xe8] sm:$0xff]
      %v4336 = vld [vmem:[%s2190 + $0xf0] sm:$0xff]
      %v4337 = vld [vmem:[%s2190 + $0xf8] sm:$0xff]
      %v4338 = vld [vmem:[%s2190 + $0x100] sm:$0xff]
      %v4339 = vld [vmem:[%s2190 + $0x108] sm:$0xff]
      %v4340 = vld [vmem:[%s2190 + $0x110] sm:$0xff]
      %v4341 = vld [vmem:[%s2190 + $0x118] sm:$0xff]
      %v4342 = vld [vmem:[%s2190 + $0x120] sm:$0xff]
      %v4343 = vld [vmem:[%s2190 + $0x128] sm:$0xff]
      %v4344 = vld [vmem:[%s2190 + $0x130] sm:$0xff]
      %v4345 = vld [vmem:[%s2190 + $0x138] sm:$0xff]
      %v4346 = vld [vmem:[%s2190 + $0x140] sm:$0xff]
      %v4347 = vld [vmem:[%s2190 + $0x148] sm:$0xff]
      %v4348 = vld [vmem:[%s2190 + $0x150] sm:$0xff]
      %v4349 = vld [vmem:[%s2190 + $0x158] sm:$0xff]
      %v4350 = vld [vmem:[%s2190 + $0x160] sm:$0xff]
      %v4351 = vld [vmem:[%s2190 + $0x168] sm:$0xff]
      %v4352 = vld [vmem:[%s2190 + $0x170] sm:$0xff]
      %v4353 = vld [vmem:[%s2190 + $0x178] sm:$0xff]
      %v4354 = vld [vmem:[%s2190 + $0x180] sm:$0xff]
      %v4355 = vld [vmem:[%s2190 + $0x188] sm:$0xff]
      %v4356 = vld [vmem:[%s2190 + $0x190] sm:$0xff]
      %s4357 = scalar_lea.vmem %s3, 16
      %v4358 = vld [vmem:[%s4357] sm:$0xf]
      %v4360 = vsel %vm2132, %v4309, 0
      %v4363 = vsel %vm2132, %v4310, 0
      %v4366 = vsel %vm2132, %v4311, 0
      %v4369 = vsel %vm2132, %v4312, 0
      %v4372 = vsel %vm2132, %v4313, 0
      %v4375 = vsel %vm2132, %v4314, 0
      %v4378 = vsel %vm2132, %v4315, 0
      %v4381 = vsel %vm2132, %v4316, 0
      %v4384 = vsel %vm2132, %v4317, 0
      %v4387 = vsel %vm2132, %v4318, 0
      %v4390 = vsel %vm2132, %v4319, 0
      %v4393 = vsel %vm2132, %v4320, 0
      %v4396 = vsel %vm2132, %v4321, 0
      %v4399 = vsel %vm2132, %v4322, 0
      %v4402 = vsel %vm2132, %v4323, 0
      %v4405 = vsel %vm2132, %v4324, 0
      %v4408 = vsel %vm2132, %v4325, 0
      %v4411 = vsel %vm2132, %v4326, 0
      %v4414 = vsel %vm2132, %v4327, 0
      %v4417 = vsel %vm2132, %v4328, 0
      %v4420 = vsel %vm2132, %v4329, 0
      %v4423 = vsel %vm2132, %v4330, 0
      %v4426 = vsel %vm2132, %v4331, 0
      %v4429 = vsel %vm2132, %v4332, 0
      %v4432 = vsel %vm2132, %v4333, 0
      %v4435 = vsel %vm2132, %v4334, 0
      %v4438 = vsel %vm2132, %v4335, 0
      %v4441 = vsel %vm2132, %v4336, 0
      %v4444 = vsel %vm2132, %v4337, 0
      %v4447 = vsel %vm2132, %v4338, 0
      %v4450 = vsel %vm2132, %v4339, 0
      %v4453 = vsel %vm2132, %v4340, 0
      %v4456 = vsel %vm2132, %v4341, 0
      %v4459 = vsel %vm2132, %v4342, 0
      %v4462 = vsel %vm2132, %v4343, 0
      %v4465 = vsel %vm2132, %v4344, 0
      %v4468 = vsel %vm2132, %v4345, 0
      %v4471 = vsel %vm2132, %v4346, 0
      %v4474 = vsel %vm2132, %v4347, 0
      %v4477 = vsel %vm2132, %v4348, 0
      %v4480 = vsel %vm2132, %v4349, 0
      %v4483 = vsel %vm2132, %v4350, 0
      %v4486 = vsel %vm2132, %v4351, 0
      %v4489 = vsel %vm2132, %v4352, 0
      %v4492 = vsel %vm2132, %v4353, 0
      %v4495 = vsel %vm2132, %v4354, 0
      %v4498 = vsel %vm2132, %v4355, 0
      %v4501 = vsel %vm2132, %v4356, 0
      %v4504 = vsel %vm2544, %v4358, 0
      %4506 = vmatprep.subr.mxu0 0.0
      %4507 = vmatpush1.msra.mxu0 0.0
      %4508 = vmatprep.subr.mxu0 0.0
      %4509 = vmatpush1.msra.mxu0 0.0
      %4510 = vmatprep.subr.mxu0 0.0
      %4511 = vmatpush1.msra.mxu0 0.0
      %4512 = vmatprep.subr.mxu0 0.0
      %4513 = vmatpush1.msra.mxu0 0.0
      %4514 = vmatprep.subr.mxu0 0.0
      %4515 = vmatpush1.msra.mxu0 0.0
      %4516 = vmatprep.subr.mxu0 0.0
      %4517 = vmatpush1.msra.mxu0 0.0
      %4518 = vmatprep.subr.mxu0 0.0
      %4519 = vmatpush1.msra.mxu0 0.0
      %4520 = vmatprep.subr.mxu0 0.0
      %4521 = vmatpush1.msra.mxu0 0.0
      %4522 = vmatprep.subr.mxu0 0.0
      %4523 = vmatpush1.msra.mxu0 0.0
      %4524 = vmatprep.subr.mxu0 0.0
      %4525 = vmatpush1.msra.mxu0 0.0
      %4526 = vmatprep.subr.mxu0 0.0
      %4527 = vmatpush1.msra.mxu0 0.0
      %4528 = vmatprep.subr.mxu0 0.0
      %4529 = vmatpush1.msra.mxu0 0.0
      %4530 = vmatprep.subr.mxu0 0.0
      %4531 = vmatpush1.msra.mxu0 0.0
      %4532 = vmatprep.subr.mxu0 0.0
      %4533 = vmatpush1.msra.mxu0 0.0
      %4534 = vmatprep.subr.mxu0 0.0
      %4535 = vmatpush1.msra.mxu0 0.0
      %4536 = vmatprep.subr.mxu0 0.0
      %4537 = vmatpush1.msra.mxu0 %v4504
      %4538 = vmatprep.subr.mxu0 0.0
      %4539 = vmatpush2.msra.mxu0 0.0
      %4540 = vmatprep.subr.mxu0 0.0
      %4541 = vmatpush2.msra.mxu0 0.0
      %4542 = vmatprep.subr.mxu0 0.0
      %4543 = vmatpush2.msra.mxu0 0.0
      %4544 = vmatprep.subr.mxu0 0.0
      %4545 = vmatpush2.msra.mxu0 0.0
      %4546 = vmatprep.subr.mxu0 0.0
      %4547 = vmatpush2.msra.mxu0 0.0
      %4548 = vmatprep.subr.mxu0 0.0
      %4549 = vmatpush2.msra.mxu0 0.0
      %4550 = vmatprep.subr.mxu0 0.0
      %4551 = vmatpush2.msra.mxu0 0.0
      %4552 = vmatprep.subr.mxu0 0.0
      %4553 = vmatpush2.msra.mxu0 0.0
      %4554 = vmatprep.subr.mxu0 0.0
      %4555 = vmatpush2.msra.mxu0 0.0
      %4556 = vmatprep.subr.mxu0 0.0
      %4557 = vmatpush2.msra.mxu0 0.0
      %4558 = vmatprep.subr.mxu0 0.0
      %4559 = vmatpush2.msra.mxu0 0.0
      %4560 = vmatprep.subr.mxu0 0.0
      %4561 = vmatpush2.msra.mxu0 0.0
      %4562 = vmatprep.subr.mxu0 0.0
      %4563 = vmatpush2.msra.mxu0 0.0
      %4564 = vmatprep.subr.mxu0 0.0
      %4565 = vmatpush2.msra.mxu0 0.0
      %4566 = vmatprep.subr.mxu0 0.0
      %4567 = vmatpush2.msra.mxu0 0.0
      %4568 = vmatprep.subr.mxu0 0.0
      %4569 = vmatpush2.msra.mxu0 0.0
      %4570 = vmatprep.mubr.f32.mxu0 0.0
      %4571 = vmatmul.mubr.f32.gmra.mxu0 %v4360
      %v4572 = vpop.f32.mrf.mxu0
      %v4573 = vadd.f32 0.0, %v4572
      %v4574 = vpop.f32.mrf.mxu0
      %4575 = vmatprep.mubr.f32.mxu0 0.0
      %4576 = vmatmul.mubr.f32.gmra.mxu0 %v4363
      %v4577 = vpop.f32.mrf.mxu0
      %v4578 = vadd.f32 0.0, %v4577
      %v4579 = vpop.f32.mrf.mxu0
      %4580 = vmatprep.mubr.f32.mxu0 0.0
      %4581 = vmatmul.mubr.f32.gmra.mxu0 %v4366
      %v4582 = vpop.f32.mrf.mxu0
      %v4583 = vpop.f32.mrf.mxu0
      %4584 = vmatprep.mubr.f32.mxu0 0.0
      %4585 = vmatmul.mubr.f32.gmra.mxu0 %v4369
      %v4586 = vpop.f32.mrf.mxu0
      %v4587 = vadd.f32 0.0, %v4586
      %v4588 = vpop.f32.mrf.mxu0
      %4589 = vmatprep.mubr.f32.mxu0 0.0
      %4590 = vmatmul.mubr.f32.gmra.mxu0 %v4372
      %v4591 = vpop.f32.mrf.mxu0
      %v4592 = vadd.f32 0.0, %v4591
      %v4593 = vpop.f32.mrf.mxu0
      %4594 = vmatprep.mubr.f32.mxu0 0.0
      %4595 = vmatmul.mubr.f32.gmra.mxu0 %v4375
      %v4596 = vpop.f32.mrf.mxu0
      %v4597 = vpop.f32.mrf.mxu0
      %4598 = vmatprep.mubr.f32.mxu0 0.0
      %4599 = vmatmul.mubr.f32.gmra.mxu0 %v4378
      %v4600 = vpop.f32.mrf.mxu0
      %v4601 = vadd.f32 0.0, %v4600
      %v4602 = vpop.f32.mrf.mxu0
      %4603 = vmatprep.mubr.f32.mxu0 0.0
      %4604 = vmatmul.mubr.f32.gmra.mxu0 %v4381
      %v4605 = vpop.f32.mrf.mxu0
      %v4606 = vadd.f32 0.0, %v4605
      %v4607 = vpop.f32.mrf.mxu0
      %4608 = vmatprep.mubr.f32.mxu0 0.0
      %4609 = vmatmul.mubr.f32.gmra.mxu0 %v4384
      %v4610 = vpop.f32.mrf.mxu0
      %v4611 = vpop.f32.mrf.mxu0
      %4612 = vmatprep.mubr.f32.mxu0 0.0
      %4613 = vmatmul.mubr.f32.gmra.mxu0 %v4387
      %v4614 = vpop.f32.mrf.mxu0
      %v4615 = vadd.f32 0.0, %v4614
      %v4616 = vpop.f32.mrf.mxu0
      %4617 = vmatprep.mubr.f32.mxu0 0.0
      %4618 = vmatmul.mubr.f32.gmra.mxu0 %v4390
      %v4619 = vpop.f32.mrf.mxu0
      %v4620 = vadd.f32 0.0, %v4619
      %v4621 = vpop.f32.mrf.mxu0
      %4622 = vmatprep.mubr.f32.mxu0 0.0
      %4623 = vmatmul.mubr.f32.gmra.mxu0 %v4393
      %v4624 = vpop.f32.mrf.mxu0
      %v4625 = vpop.f32.mrf.mxu0
      %4626 = vmatprep.mubr.f32.mxu0 0.0
      %4627 = vmatmul.mubr.f32.gmra.mxu0 %v4396
      %v4628 = vpop.f32.mrf.mxu0
      %v4629 = vadd.f32 0.0, %v4628
      %v4630 = vpop.f32.mrf.mxu0
      %4631 = vmatprep.mubr.f32.mxu0 0.0
      %4632 = vmatmul.mubr.f32.gmra.mxu0 %v4399
      %v4633 = vpop.f32.mrf.mxu0
      %v4634 = vadd.f32 0.0, %v4633
      %v4635 = vpop.f32.mrf.mxu0
      %4636 = vmatprep.mubr.f32.mxu0 0.0
      %4637 = vmatmul.mubr.f32.gmra.mxu0 %v4402
      %v4638 = vpop.f32.mrf.mxu0
      %v4639 = vpop.f32.mrf.mxu0
      %4640 = vmatprep.mubr.f32.mxu0 0.0
      %4641 = vmatmul.mubr.f32.gmra.mxu0 %v4405
      %v4642 = vpop.f32.mrf.mxu0
      %v4643 = vadd.f32 0.0, %v4642
      %v4644 = vpop.f32.mrf.mxu0
      %4645 = vmatprep.mubr.f32.mxu0 0.0
      %4646 = vmatmul.mubr.f32.gmra.mxu0 %v4408
      %v4647 = vpop.f32.mrf.mxu0
      %v4648 = vadd.f32 0.0, %v4647
      %v4649 = vpop.f32.mrf.mxu0
      %4650 = vmatprep.mubr.f32.mxu0 0.0
      %4651 = vmatmul.mubr.f32.gmra.mxu0 %v4411
      %v4652 = vpop.f32.mrf.mxu0
      %v4653 = vpop.f32.mrf.mxu0
      %4654 = vmatprep.mubr.f32.mxu0 0.0
      %4655 = vmatmul.mubr.f32.gmra.mxu0 %v4414
      %v4656 = vpop.f32.mrf.mxu0
      %v4657 = vadd.f32 0.0, %v4656
      %v4658 = vpop.f32.mrf.mxu0
      %4659 = vmatprep.mubr.f32.mxu0 0.0
      %4660 = vmatmul.mubr.f32.gmra.mxu0 %v4417
      %v4661 = vpop.f32.mrf.mxu0
      %v4662 = vadd.f32 0.0, %v4661
      %v4663 = vpop.f32.mrf.mxu0
      %4664 = vmatprep.mubr.f32.mxu0 0.0
      %4665 = vmatmul.mubr.f32.gmra.mxu0 %v4420
      %v4666 = vpop.f32.mrf.mxu0
      %v4667 = vpop.f32.mrf.mxu0
      %4668 = vmatprep.mubr.f32.mxu0 0.0
      %4669 = vmatmul.mubr.f32.gmra.mxu0 %v4423
      %v4670 = vpop.f32.mrf.mxu0
      %v4671 = vadd.f32 0.0, %v4670
      %v4672 = vpop.f32.mrf.mxu0
      %4673 = vmatprep.mubr.f32.mxu0 0.0
      %4674 = vmatmul.mubr.f32.gmra.mxu0 %v4426
      %v4675 = vpop.f32.mrf.mxu0
      %v4676 = vadd.f32 0.0, %v4675
      %v4677 = vpop.f32.mrf.mxu0
      %4678 = vmatprep.mubr.f32.mxu0 0.0
      %4679 = vmatmul.mubr.f32.gmra.mxu0 %v4429
      %v4680 = vpop.f32.mrf.mxu0
      %v4681 = vpop.f32.mrf.mxu0
      %4682 = vmatprep.mubr.f32.mxu0 0.0
      %4683 = vmatmul.mubr.f32.gmra.mxu0 %v4432
      %v4684 = vpop.f32.mrf.mxu0
      %v4685 = vadd.f32 0.0, %v4684
      %v4686 = vpop.f32.mrf.mxu0
      %4687 = vmatprep.mubr.f32.mxu0 0.0
      %4688 = vmatmul.mubr.f32.gmra.mxu0 %v4435
      %v4689 = vpop.f32.mrf.mxu0
      %v4690 = vadd.f32 0.0, %v4689
      %v4691 = vpop.f32.mrf.mxu0
      %4692 = vmatprep.mubr.f32.mxu0 0.0
      %4693 = vmatmul.mubr.f32.gmra.mxu0 %v4438
      %v4694 = vpop.f32.mrf.mxu0
      %v4695 = vpop.f32.mrf.mxu0
      %4696 = vmatprep.mubr.f32.mxu0 0.0
      %4697 = vmatmul.mubr.f32.gmra.mxu0 %v4441
      %v4698 = vpop.f32.mrf.mxu0
      %v4699 = vadd.f32 0.0, %v4698
      %v4700 = vpop.f32.mrf.mxu0
      %4701 = vmatprep.mubr.f32.mxu0 0.0
      %4702 = vmatmul.mubr.f32.gmra.mxu0 %v4444
      %v4703 = vpop.f32.mrf.mxu0
      %v4704 = vadd.f32 0.0, %v4703
      %v4705 = vpop.f32.mrf.mxu0
      %4706 = vmatprep.mubr.f32.mxu0 0.0
      %4707 = vmatmul.mubr.f32.gmra.mxu0 %v4447
      %v4708 = vpop.f32.mrf.mxu0
      %v4709 = vpop.f32.mrf.mxu0
      %4710 = vmatprep.mubr.f32.mxu0 0.0
      %4711 = vmatmul.mubr.f32.gmra.mxu0 %v4450
      %v4712 = vpop.f32.mrf.mxu0
      %v4713 = vadd.f32 0.0, %v4712
      %v4714 = vpop.f32.mrf.mxu0
      %4715 = vmatprep.mubr.f32.mxu0 0.0
      %4716 = vmatmul.mubr.f32.gmra.mxu0 %v4453
      %v4717 = vpop.f32.mrf.mxu0
      %v4718 = vadd.f32 0.0, %v4717
      %v4719 = vpop.f32.mrf.mxu0
      %4720 = vmatprep.mubr.f32.mxu0 0.0
      %4721 = vmatmul.mubr.f32.gmra.mxu0 %v4456
      %v4722 = vpop.f32.mrf.mxu0
      %v4723 = vpop.f32.mrf.mxu0
      %4724 = vmatprep.mubr.f32.mxu0 0.0
      %4725 = vmatmul.mubr.f32.gmra.mxu0 %v4459
      %v4726 = vpop.f32.mrf.mxu0
      %v4727 = vadd.f32 0.0, %v4726
      %v4728 = vpop.f32.mrf.mxu0
      %4729 = vmatprep.mubr.f32.mxu0 0.0
      %4730 = vmatmul.mubr.f32.gmra.mxu0 %v4462
      %v4731 = vpop.f32.mrf.mxu0
      %v4732 = vadd.f32 0.0, %v4731
      %v4733 = vpop.f32.mrf.mxu0
      %4734 = vmatprep.mubr.f32.mxu0 0.0
      %4735 = vmatmul.mubr.f32.gmra.mxu0 %v4465
      %v4736 = vpop.f32.mrf.mxu0
      %v4737 = vpop.f32.mrf.mxu0
      %4738 = vmatprep.mubr.f32.mxu0 0.0
      %4739 = vmatmul.mubr.f32.gmra.mxu0 %v4468
      %v4740 = vpop.f32.mrf.mxu0
      %v4741 = vadd.f32 0.0, %v4740
      %v4742 = vpop.f32.mrf.mxu0
      %4743 = vmatprep.mubr.f32.mxu0 0.0
      %4744 = vmatmul.mubr.f32.gmra.mxu0 %v4471
      %v4745 = vpop.f32.mrf.mxu0
      %v4746 = vadd.f32 0.0, %v4745
      %v4747 = vpop.f32.mrf.mxu0
      %4748 = vmatprep.mubr.f32.mxu0 0.0
      %4749 = vmatmul.mubr.f32.gmra.mxu0 %v4474
      %v4750 = vpop.f32.mrf.mxu0
      %v4751 = vpop.f32.mrf.mxu0
      %4752 = vmatprep.mubr.f32.mxu0 0.0
      %4753 = vmatmul.mubr.f32.gmra.mxu0 %v4477
      %v4754 = vpop.f32.mrf.mxu0
      %v4755 = vadd.f32 0.0, %v4754
      %v4756 = vpop.f32.mrf.mxu0
      %4757 = vmatprep.mubr.f32.mxu0 0.0
      %4758 = vmatmul.mubr.f32.gmra.mxu0 %v4480
      %v4759 = vpop.f32.mrf.mxu0
      %v4760 = vadd.f32 0.0, %v4759
      %v4761 = vpop.f32.mrf.mxu0
      %4762 = vmatprep.mubr.f32.mxu0 0.0
      %4763 = vmatmul.mubr.f32.gmra.mxu0 %v4483
      %v4764 = vpop.f32.mrf.mxu0
      %v4765 = vpop.f32.mrf.mxu0
      %4766 = vmatprep.mubr.f32.mxu0 0.0
      %4767 = vmatmul.mubr.f32.gmra.mxu0 %v4486
      %v4768 = vpop.f32.mrf.mxu0
      %v4769 = vadd.f32 0.0, %v4768
      %v4770 = vpop.f32.mrf.mxu0
      %4771 = vmatprep.mubr.f32.mxu0 0.0
      %4772 = vmatmul.mubr.f32.gmra.mxu0 %v4489
      %v4773 = vpop.f32.mrf.mxu0
      %v4774 = vadd.f32 0.0, %v4773
      %v4775 = vpop.f32.mrf.mxu0
      %4776 = vmatprep.mubr.f32.mxu0 0.0
      %4777 = vmatmul.mubr.f32.gmra.mxu0 %v4492
      %v4778 = vpop.f32.mrf.mxu0
      %v4779 = vpop.f32.mrf.mxu0
      %4780 = vmatprep.mubr.f32.mxu0 0.0
      %4781 = vmatmul.mubr.f32.gmra.mxu0 %v4495
      %v4782 = vpop.f32.mrf.mxu0
      %v4783 = vadd.f32 0.0, %v4782
      %v4784 = vpop.f32.mrf.mxu0
      %4785 = vmatprep.mubr.f32.mxu0 0.0
      %4786 = vmatmul.mubr.f32.gmra.mxu0 %v4498
      %v4787 = vpop.f32.mrf.mxu0
      %v4788 = vadd.f32 0.0, %v4787
      %v4789 = vpop.f32.mrf.mxu0
      %4790 = vmatprep.mubr.f32.mxu0 0.0
      %4791 = vmatmul.mubr.f32.gmra.mxu0 %v4501
      %v4792 = vpop.f32.mrf.mxu0
      %v4793 = vpop.f32.mrf.mxu0
      %4794 = vdwg.mxu0
      %v4795 = vadd.f32 %v4277, %v4573
      %v4796 = vadd.f32 %v4278, %v4578
      %v4797 = vadd.f32 %v4279, %v4587
      %v4798 = vadd.f32 %v4280, %v4592
      %v4799 = vadd.f32 %v4281, %v4601
      %v4800 = vadd.f32 %v4282, %v4606
      %v4801 = vadd.f32 %v4283, %v4615
      %v4802 = vadd.f32 %v4284, %v4620
      %v4803 = vadd.f32 %v4285, %v4629
      %v4804 = vadd.f32 %v4286, %v4634
      %v4805 = vadd.f32 %v4287, %v4643
      %v4806 = vadd.f32 %v4288, %v4648
      %v4807 = vadd.f32 %v4289, %v4657
      %v4808 = vadd.f32 %v4290, %v4662
      %v4809 = vadd.f32 %v4291, %v4671
      %v4810 = vadd.f32 %v4292, %v4676
      %v4811 = vadd.f32 %v4293, %v4685
      %v4812 = vadd.f32 %v4294, %v4690
      %v4813 = vadd.f32 %v4295, %v4699
      %v4814 = vadd.f32 %v4296, %v4704
      %v4815 = vadd.f32 %v4297, %v4713
      %v4816 = vadd.f32 %v4298, %v4718
      %v4817 = vadd.f32 %v4299, %v4727
      %v4818 = vadd.f32 %v4300, %v4732
      %v4819 = vadd.f32 %v4301, %v4741
      %v4820 = vadd.f32 %v4302, %v4746
      %v4821 = vadd.f32 %v4303, %v4755
      %v4822 = vadd.f32 %v4304, %v4760
      %v4823 = vadd.f32 %v4305, %v4769
      %v4824 = vadd.f32 %v4306, %v4774
      %v4825 = vadd.f32 %v4307, %v4783
      %v4826 = vadd.f32 %v4308, %v4788
      %v4827 = vld [vmem:[%s2245 + $0x18] sm:$0xff]
      %v4828 = vld [vmem:[%s2245 + $0x20] sm:$0xff]
      %v4829 = vld [vmem:[%s2245 + $0x28] sm:$0xff]
      %v4830 = vld [vmem:[%s2245 + $0x30] sm:$0xff]
      %v4831 = vld [vmem:[%s2245 + $0x38] sm:$0xff]
      %v4832 = vld [vmem:[%s2245 + $0x40] sm:$0xff]
      %v4833 = vld [vmem:[%s2245 + $0x48] sm:$0xff]
      %v4834 = vld [vmem:[%s2245 + $0x50] sm:$0xff]
      %v4835 = vld [vmem:[%s2245 + $0x58] sm:$0xff]
      %v4836 = vld [vmem:[%s2245 + $0x60] sm:$0xff]
      %v4837 = vld [vmem:[%s2245 + $0x68] sm:$0xff]
      %v4838 = vld [vmem:[%s2245 + $0x70] sm:$0xff]
      %v4839 = vld [vmem:[%s2245 + $0x78] sm:$0xff]
      %v4840 = vld [vmem:[%s2245 + $0x80] sm:$0xff]
      %v4841 = vld [vmem:[%s2245 + $0x88] sm:$0xff]
      %v4842 = vld [vmem:[%s2245 + $0x90] sm:$0xff]
      %v4843 = vld [vmem:[%s2245 + $0x98] sm:$0xff]
      %v4844 = vld [vmem:[%s2245 + $0xa0] sm:$0xff]
      %v4845 = vld [vmem:[%s2245 + $0xa8] sm:$0xff]
      %v4846 = vld [vmem:[%s2245 + $0xb0] sm:$0xff]
      %v4847 = vld [vmem:[%s2245 + $0xb8] sm:$0xff]
      %v4848 = vld [vmem:[%s2245 + $0xc0] sm:$0xff]
      %v4849 = vld [vmem:[%s2245 + $0xc8] sm:$0xff]
      %v4850 = vld [vmem:[%s2245 + $0xd0] sm:$0xff]
      %v4851 = vld [vmem:[%s2245 + $0xd8] sm:$0xff]
      %v4852 = vld [vmem:[%s2245 + $0xe0] sm:$0xff]
      %v4853 = vld [vmem:[%s2245 + $0xe8] sm:$0xff]
      %v4854 = vld [vmem:[%s2245 + $0xf0] sm:$0xff]
      %v4855 = vld [vmem:[%s2245 + $0xf8] sm:$0xff]
      %v4856 = vld [vmem:[%s2245 + $0x100] sm:$0xff]
      %v4857 = vld [vmem:[%s2245 + $0x108] sm:$0xff]
      %v4858 = vld [vmem:[%s2245 + $0x110] sm:$0xff]
      %v4859 = vld [vmem:[%s2245 + $0x118] sm:$0xff]
      %v4860 = vld [vmem:[%s2245 + $0x120] sm:$0xff]
      %v4861 = vld [vmem:[%s2245 + $0x128] sm:$0xff]
      %v4862 = vld [vmem:[%s2245 + $0x130] sm:$0xff]
      %v4863 = vld [vmem:[%s2245 + $0x138] sm:$0xff]
      %v4864 = vld [vmem:[%s2245 + $0x140] sm:$0xff]
      %v4865 = vld [vmem:[%s2245 + $0x148] sm:$0xff]
      %v4866 = vld [vmem:[%s2245 + $0x150] sm:$0xff]
      %v4867 = vld [vmem:[%s2245 + $0x158] sm:$0xff]
      %v4868 = vld [vmem:[%s2245 + $0x160] sm:$0xff]
      %v4869 = vld [vmem:[%s2245 + $0x168] sm:$0xff]
      %v4870 = vld [vmem:[%s2245 + $0x170] sm:$0xff]
      %v4871 = vld [vmem:[%s2245 + $0x178] sm:$0xff]
      %v4872 = vld [vmem:[%s2245 + $0x180] sm:$0xff]
      %v4873 = vld [vmem:[%s2245 + $0x188] sm:$0xff]
      %v4874 = vld [vmem:[%s2245 + $0x190] sm:$0xff]
      %s4875 = scalar_lea.vmem %s3, 20
      %v4876 = vld [vmem:[%s4875] sm:$0xf]
      %v4878 = vsel %vm2132, %v4827, 0
      %v4881 = vsel %vm2132, %v4828, 0
      %v4884 = vsel %vm2132, %v4829, 0
      %v4887 = vsel %vm2132, %v4830, 0
      %v4890 = vsel %vm2132, %v4831, 0
      %v4893 = vsel %vm2132, %v4832, 0
      %v4896 = vsel %vm2132, %v4833, 0
      %v4899 = vsel %vm2132, %v4834, 0
      %v4902 = vsel %vm2132, %v4835, 0
      %v4905 = vsel %vm2132, %v4836, 0
      %v4908 = vsel %vm2132, %v4837, 0
      %v4911 = vsel %vm2132, %v4838, 0
      %v4914 = vsel %vm2132, %v4839, 0
      %v4917 = vsel %vm2132, %v4840, 0
      %v4920 = vsel %vm2132, %v4841, 0
      %v4923 = vsel %vm2132, %v4842, 0
      %v4926 = vsel %vm2132, %v4843, 0
      %v4929 = vsel %vm2132, %v4844, 0
      %v4932 = vsel %vm2132, %v4845, 0
      %v4935 = vsel %vm2132, %v4846, 0
      %v4938 = vsel %vm2132, %v4847, 0
      %v4941 = vsel %vm2132, %v4848, 0
      %v4944 = vsel %vm2132, %v4849, 0
      %v4947 = vsel %vm2132, %v4850, 0
      %v4950 = vsel %vm2132, %v4851, 0
      %v4953 = vsel %vm2132, %v4852, 0
      %v4956 = vsel %vm2132, %v4853, 0
      %v4959 = vsel %vm2132, %v4854, 0
      %v4962 = vsel %vm2132, %v4855, 0
      %v4965 = vsel %vm2132, %v4856, 0
      %v4968 = vsel %vm2132, %v4857, 0
      %v4971 = vsel %vm2132, %v4858, 0
      %v4974 = vsel %vm2132, %v4859, 0
      %v4977 = vsel %vm2132, %v4860, 0
      %v4980 = vsel %vm2132, %v4861, 0
      %v4983 = vsel %vm2132, %v4862, 0
      %v4986 = vsel %vm2132, %v4863, 0
      %v4989 = vsel %vm2132, %v4864, 0
      %v4992 = vsel %vm2132, %v4865, 0
      %v4995 = vsel %vm2132, %v4866, 0
      %v4998 = vsel %vm2132, %v4867, 0
      %v5001 = vsel %vm2132, %v4868, 0
      %v5004 = vsel %vm2132, %v4869, 0
      %v5007 = vsel %vm2132, %v4870, 0
      %v5010 = vsel %vm2132, %v4871, 0
      %v5013 = vsel %vm2132, %v4872, 0
      %v5016 = vsel %vm2132, %v4873, 0
      %v5019 = vsel %vm2132, %v4874, 0
      %v5022 = vsel %vm2544, %v4876, 0
      %5024 = vmatprep.subr.mxu0 0.0
      %5025 = vmatpush1.msra.mxu0 0.0
      %5026 = vmatprep.subr.mxu0 0.0
      %5027 = vmatpush1.msra.mxu0 0.0
      %5028 = vmatprep.subr.mxu0 0.0
      %5029 = vmatpush1.msra.mxu0 0.0
      %5030 = vmatprep.subr.mxu0 0.0
      %5031 = vmatpush1.msra.mxu0 0.0
      %5032 = vmatprep.subr.mxu0 0.0
      %5033 = vmatpush1.msra.mxu0 0.0
      %5034 = vmatprep.subr.mxu0 0.0
      %5035 = vmatpush1.msra.mxu0 0.0
      %5036 = vmatprep.subr.mxu0 0.0
      %5037 = vmatpush1.msra.mxu0 0.0
      %5038 = vmatprep.subr.mxu0 0.0
      %5039 = vmatpush1.msra.mxu0 0.0
      %5040 = vmatprep.subr.mxu0 0.0
      %5041 = vmatpush1.msra.mxu0 0.0
      %5042 = vmatprep.subr.mxu0 0.0
      %5043 = vmatpush1.msra.mxu0 0.0
      %5044 = vmatprep.subr.mxu0 0.0
      %5045 = vmatpush1.msra.mxu0 0.0
      %5046 = vmatprep.subr.mxu0 0.0
      %5047 = vmatpush1.msra.mxu0 0.0
      %5048 = vmatprep.subr.mxu0 0.0
      %5049 = vmatpush1.msra.mxu0 0.0
      %5050 = vmatprep.subr.mxu0 0.0
      %5051 = vmatpush1.msra.mxu0 0.0
      %5052 = vmatprep.subr.mxu0 0.0
      %5053 = vmatpush1.msra.mxu0 0.0
      %5054 = vmatprep.subr.mxu0 0.0
      %5055 = vmatpush1.msra.mxu0 %v5022
      %5056 = vmatprep.subr.mxu0 0.0
      %5057 = vmatpush2.msra.mxu0 0.0
      %5058 = vmatprep.subr.mxu0 0.0
      %5059 = vmatpush2.msra.mxu0 0.0
      %5060 = vmatprep.subr.mxu0 0.0
      %5061 = vmatpush2.msra.mxu0 0.0
      %5062 = vmatprep.subr.mxu0 0.0
      %5063 = vmatpush2.msra.mxu0 0.0
      %5064 = vmatprep.subr.mxu0 0.0
      %5065 = vmatpush2.msra.mxu0 0.0
      %5066 = vmatprep.subr.mxu0 0.0
      %5067 = vmatpush2.msra.mxu0 0.0
      %5068 = vmatprep.subr.mxu0 0.0
      %5069 = vmatpush2.msra.mxu0 0.0
      %5070 = vmatprep.subr.mxu0 0.0
      %5071 = vmatpush2.msra.mxu0 0.0
      %5072 = vmatprep.subr.mxu0 0.0
      %5073 = vmatpush2.msra.mxu0 0.0
      %5074 = vmatprep.subr.mxu0 0.0
      %5075 = vmatpush2.msra.mxu0 0.0
      %5076 = vmatprep.subr.mxu0 0.0
      %5077 = vmatpush2.msra.mxu0 0.0
      %5078 = vmatprep.subr.mxu0 0.0
      %5079 = vmatpush2.msra.mxu0 0.0
      %5080 = vmatprep.subr.mxu0 0.0
      %5081 = vmatpush2.msra.mxu0 0.0
      %5082 = vmatprep.subr.mxu0 0.0
      %5083 = vmatpush2.msra.mxu0 0.0
      %5084 = vmatprep.subr.mxu0 0.0
      %5085 = vmatpush2.msra.mxu0 0.0
      %5086 = vmatprep.subr.mxu0 0.0
      %5087 = vmatpush2.msra.mxu0 0.0
      %5088 = vmatprep.mubr.f32.mxu0 0.0
      %5089 = vmatmul.mubr.f32.gmra.mxu0 %v4878
      %v5090 = vpop.f32.mrf.mxu0
      %v5091 = vadd.f32 0.0, %v5090
      %v5092 = vpop.f32.mrf.mxu0
      %5093 = vmatprep.mubr.f32.mxu0 0.0
      %5094 = vmatmul.mubr.f32.gmra.mxu0 %v4881
      %v5095 = vpop.f32.mrf.mxu0
      %v5096 = vadd.f32 0.0, %v5095
      %v5097 = vpop.f32.mrf.mxu0
      %5098 = vmatprep.mubr.f32.mxu0 0.0
      %5099 = vmatmul.mubr.f32.gmra.mxu0 %v4884
      %v5100 = vpop.f32.mrf.mxu0
      %v5101 = vpop.f32.mrf.mxu0
      %5102 = vmatprep.mubr.f32.mxu0 0.0
      %5103 = vmatmul.mubr.f32.gmra.mxu0 %v4887
      %v5104 = vpop.f32.mrf.mxu0
      %v5105 = vadd.f32 0.0, %v5104
      %v5106 = vpop.f32.mrf.mxu0
      %5107 = vmatprep.mubr.f32.mxu0 0.0
      %5108 = vmatmul.mubr.f32.gmra.mxu0 %v4890
      %v5109 = vpop.f32.mrf.mxu0
      %v5110 = vadd.f32 0.0, %v5109
      %v5111 = vpop.f32.mrf.mxu0
      %5112 = vmatprep.mubr.f32.mxu0 0.0
      %5113 = vmatmul.mubr.f32.gmra.mxu0 %v4893
      %v5114 = vpop.f32.mrf.mxu0
      %v5115 = vpop.f32.mrf.mxu0
      %5116 = vmatprep.mubr.f32.mxu0 0.0
      %5117 = vmatmul.mubr.f32.gmra.mxu0 %v4896
      %v5118 = vpop.f32.mrf.mxu0
      %v5119 = vadd.f32 0.0, %v5118
      %v5120 = vpop.f32.mrf.mxu0
      %5121 = vmatprep.mubr.f32.mxu0 0.0
      %5122 = vmatmul.mubr.f32.gmra.mxu0 %v4899
      %v5123 = vpop.f32.mrf.mxu0
      %v5124 = vadd.f32 0.0, %v5123
      %v5125 = vpop.f32.mrf.mxu0
      %5126 = vmatprep.mubr.f32.mxu0 0.0
      %5127 = vmatmul.mubr.f32.gmra.mxu0 %v4902
      %v5128 = vpop.f32.mrf.mxu0
      %v5129 = vpop.f32.mrf.mxu0
      %5130 = vmatprep.mubr.f32.mxu0 0.0
      %5131 = vmatmul.mubr.f32.gmra.mxu0 %v4905
      %v5132 = vpop.f32.mrf.mxu0
      %v5133 = vadd.f32 0.0, %v5132
      %v5134 = vpop.f32.mrf.mxu0
      %5135 = vmatprep.mubr.f32.mxu0 0.0
      %5136 = vmatmul.mubr.f32.gmra.mxu0 %v4908
      %v5137 = vpop.f32.mrf.mxu0
      %v5138 = vadd.f32 0.0, %v5137
      %v5139 = vpop.f32.mrf.mxu0
      %5140 = vmatprep.mubr.f32.mxu0 0.0
      %5141 = vmatmul.mubr.f32.gmra.mxu0 %v4911
      %v5142 = vpop.f32.mrf.mxu0
      %v5143 = vpop.f32.mrf.mxu0
      %5144 = vmatprep.mubr.f32.mxu0 0.0
      %5145 = vmatmul.mubr.f32.gmra.mxu0 %v4914
      %v5146 = vpop.f32.mrf.mxu0
      %v5147 = vadd.f32 0.0, %v5146
      %v5148 = vpop.f32.mrf.mxu0
      %5149 = vmatprep.mubr.f32.mxu0 0.0
      %5150 = vmatmul.mubr.f32.gmra.mxu0 %v4917
      %v5151 = vpop.f32.mrf.mxu0
      %v5152 = vadd.f32 0.0, %v5151
      %v5153 = vpop.f32.mrf.mxu0
      %5154 = vmatprep.mubr.f32.mxu0 0.0
      %5155 = vmatmul.mubr.f32.gmra.mxu0 %v4920
      %v5156 = vpop.f32.mrf.mxu0
      %v5157 = vpop.f32.mrf.mxu0
      %5158 = vmatprep.mubr.f32.mxu0 0.0
      %5159 = vmatmul.mubr.f32.gmra.mxu0 %v4923
      %v5160 = vpop.f32.mrf.mxu0
      %v5161 = vadd.f32 0.0, %v5160
      %v5162 = vpop.f32.mrf.mxu0
      %5163 = vmatprep.mubr.f32.mxu0 0.0
      %5164 = vmatmul.mubr.f32.gmra.mxu0 %v4926
      %v5165 = vpop.f32.mrf.mxu0
      %v5166 = vadd.f32 0.0, %v5165
      %v5167 = vpop.f32.mrf.mxu0
      %5168 = vmatprep.mubr.f32.mxu0 0.0
      %5169 = vmatmul.mubr.f32.gmra.mxu0 %v4929
      %v5170 = vpop.f32.mrf.mxu0
      %v5171 = vpop.f32.mrf.mxu0
      %5172 = vmatprep.mubr.f32.mxu0 0.0
      %5173 = vmatmul.mubr.f32.gmra.mxu0 %v4932
      %v5174 = vpop.f32.mrf.mxu0
      %v5175 = vadd.f32 0.0, %v5174
      %v5176 = vpop.f32.mrf.mxu0
      %5177 = vmatprep.mubr.f32.mxu0 0.0
      %5178 = vmatmul.mubr.f32.gmra.mxu0 %v4935
      %v5179 = vpop.f32.mrf.mxu0
      %v5180 = vadd.f32 0.0, %v5179
      %v5181 = vpop.f32.mrf.mxu0
      %5182 = vmatprep.mubr.f32.mxu0 0.0
      %5183 = vmatmul.mubr.f32.gmra.mxu0 %v4938
      %v5184 = vpop.f32.mrf.mxu0
      %v5185 = vpop.f32.mrf.mxu0
      %5186 = vmatprep.mubr.f32.mxu0 0.0
      %5187 = vmatmul.mubr.f32.gmra.mxu0 %v4941
      %v5188 = vpop.f32.mrf.mxu0
      %v5189 = vadd.f32 0.0, %v5188
      %v5190 = vpop.f32.mrf.mxu0
      %5191 = vmatprep.mubr.f32.mxu0 0.0
      %5192 = vmatmul.mubr.f32.gmra.mxu0 %v4944
      %v5193 = vpop.f32.mrf.mxu0
      %v5194 = vadd.f32 0.0, %v5193
      %v5195 = vpop.f32.mrf.mxu0
      %5196 = vmatprep.mubr.f32.mxu0 0.0
      %5197 = vmatmul.mubr.f32.gmra.mxu0 %v4947
      %v5198 = vpop.f32.mrf.mxu0
      %v5199 = vpop.f32.mrf.mxu0
      %5200 = vmatprep.mubr.f32.mxu0 0.0
      %5201 = vmatmul.mubr.f32.gmra.mxu0 %v4950
      %v5202 = vpop.f32.mrf.mxu0
      %v5203 = vadd.f32 0.0, %v5202
      %v5204 = vpop.f32.mrf.mxu0
      %5205 = vmatprep.mubr.f32.mxu0 0.0
      %5206 = vmatmul.mubr.f32.gmra.mxu0 %v4953
      %v5207 = vpop.f32.mrf.mxu0
      %v5208 = vadd.f32 0.0, %v5207
      %v5209 = vpop.f32.mrf.mxu0
      %5210 = vmatprep.mubr.f32.mxu0 0.0
      %5211 = vmatmul.mubr.f32.gmra.mxu0 %v4956
      %v5212 = vpop.f32.mrf.mxu0
      %v5213 = vpop.f32.mrf.mxu0
      %5214 = vmatprep.mubr.f32.mxu0 0.0
      %5215 = vmatmul.mubr.f32.gmra.mxu0 %v4959
      %v5216 = vpop.f32.mrf.mxu0
      %v5217 = vadd.f32 0.0, %v5216
      %v5218 = vpop.f32.mrf.mxu0
      %5219 = vmatprep.mubr.f32.mxu0 0.0
      %5220 = vmatmul.mubr.f32.gmra.mxu0 %v4962
      %v5221 = vpop.f32.mrf.mxu0
      %v5222 = vadd.f32 0.0, %v5221
      %v5223 = vpop.f32.mrf.mxu0
      %5224 = vmatprep.mubr.f32.mxu0 0.0
      %5225 = vmatmul.mubr.f32.gmra.mxu0 %v4965
      %v5226 = vpop.f32.mrf.mxu0
      %v5227 = vpop.f32.mrf.mxu0
      %5228 = vmatprep.mubr.f32.mxu0 0.0
      %5229 = vmatmul.mubr.f32.gmra.mxu0 %v4968
      %v5230 = vpop.f32.mrf.mxu0
      %v5231 = vadd.f32 0.0, %v5230
      %v5232 = vpop.f32.mrf.mxu0
      %5233 = vmatprep.mubr.f32.mxu0 0.0
      %5234 = vmatmul.mubr.f32.gmra.mxu0 %v4971
      %v5235 = vpop.f32.mrf.mxu0
      %v5236 = vadd.f32 0.0, %v5235
      %v5237 = vpop.f32.mrf.mxu0
      %5238 = vmatprep.mubr.f32.mxu0 0.0
      %5239 = vmatmul.mubr.f32.gmra.mxu0 %v4974
      %v5240 = vpop.f32.mrf.mxu0
      %v5241 = vpop.f32.mrf.mxu0
      %5242 = vmatprep.mubr.f32.mxu0 0.0
      %5243 = vmatmul.mubr.f32.gmra.mxu0 %v4977
      %v5244 = vpop.f32.mrf.mxu0
      %v5245 = vadd.f32 0.0, %v5244
      %v5246 = vpop.f32.mrf.mxu0
      %5247 = vmatprep.mubr.f32.mxu0 0.0
      %5248 = vmatmul.mubr.f32.gmra.mxu0 %v4980
      %v5249 = vpop.f32.mrf.mxu0
      %v5250 = vadd.f32 0.0, %v5249
      %v5251 = vpop.f32.mrf.mxu0
      %5252 = vmatprep.mubr.f32.mxu0 0.0
      %5253 = vmatmul.mubr.f32.gmra.mxu0 %v4983
      %v5254 = vpop.f32.mrf.mxu0
      %v5255 = vpop.f32.mrf.mxu0
      %5256 = vmatprep.mubr.f32.mxu0 0.0
      %5257 = vmatmul.mubr.f32.gmra.mxu0 %v4986
      %v5258 = vpop.f32.mrf.mxu0
      %v5259 = vadd.f32 0.0, %v5258
      %v5260 = vpop.f32.mrf.mxu0
      %5261 = vmatprep.mubr.f32.mxu0 0.0
      %5262 = vmatmul.mubr.f32.gmra.mxu0 %v4989
      %v5263 = vpop.f32.mrf.mxu0
      %v5264 = vadd.f32 0.0, %v5263
      %v5265 = vpop.f32.mrf.mxu0
      %5266 = vmatprep.mubr.f32.mxu0 0.0
      %5267 = vmatmul.mubr.f32.gmra.mxu0 %v4992
      %v5268 = vpop.f32.mrf.mxu0
      %v5269 = vpop.f32.mrf.mxu0
      %5270 = vmatprep.mubr.f32.mxu0 0.0
      %5271 = vmatmul.mubr.f32.gmra.mxu0 %v4995
      %v5272 = vpop.f32.mrf.mxu0
      %v5273 = vadd.f32 0.0, %v5272
      %v5274 = vpop.f32.mrf.mxu0
      %5275 = vmatprep.mubr.f32.mxu0 0.0
      %5276 = vmatmul.mubr.f32.gmra.mxu0 %v4998
      %v5277 = vpop.f32.mrf.mxu0
      %v5278 = vadd.f32 0.0, %v5277
      %v5279 = vpop.f32.mrf.mxu0
      %5280 = vmatprep.mubr.f32.mxu0 0.0
      %5281 = vmatmul.mubr.f32.gmra.mxu0 %v5001
      %v5282 = vpop.f32.mrf.mxu0
      %v5283 = vpop.f32.mrf.mxu0
      %5284 = vmatprep.mubr.f32.mxu0 0.0
      %5285 = vmatmul.mubr.f32.gmra.mxu0 %v5004
      %v5286 = vpop.f32.mrf.mxu0
      %v5287 = vadd.f32 0.0, %v5286
      %v5288 = vpop.f32.mrf.mxu0
      %5289 = vmatprep.mubr.f32.mxu0 0.0
      %5290 = vmatmul.mubr.f32.gmra.mxu0 %v5007
      %v5291 = vpop.f32.mrf.mxu0
      %v5292 = vadd.f32 0.0, %v5291
      %v5293 = vpop.f32.mrf.mxu0
      %5294 = vmatprep.mubr.f32.mxu0 0.0
      %5295 = vmatmul.mubr.f32.gmra.mxu0 %v5010
      %v5296 = vpop.f32.mrf.mxu0
      %v5297 = vpop.f32.mrf.mxu0
      %5298 = vmatprep.mubr.f32.mxu0 0.0
      %5299 = vmatmul.mubr.f32.gmra.mxu0 %v5013
      %v5300 = vpop.f32.mrf.mxu0
      %v5301 = vadd.f32 0.0, %v5300
      %v5302 = vpop.f32.mrf.mxu0
      %5303 = vmatprep.mubr.f32.mxu0 0.0
      %5304 = vmatmul.mubr.f32.gmra.mxu0 %v5016
      %v5305 = vpop.f32.mrf.mxu0
      %v5306 = vadd.f32 0.0, %v5305
      %v5307 = vpop.f32.mrf.mxu0
      %5308 = vmatprep.mubr.f32.mxu0 0.0
      %5309 = vmatmul.mubr.f32.gmra.mxu0 %v5019
      %v5310 = vpop.f32.mrf.mxu0
      %v5311 = vpop.f32.mrf.mxu0
      %5312 = vdwg.mxu0
      %v5313 = vadd.f32 %v4795, %v5091
      %v5314 = vadd.f32 %v4796, %v5096
      %v5315 = vadd.f32 %v4797, %v5105
      %v5316 = vadd.f32 %v4798, %v5110
      %v5317 = vadd.f32 %v4799, %v5119
      %v5318 = vadd.f32 %v4800, %v5124
      %v5319 = vadd.f32 %v4801, %v5133
      %v5320 = vadd.f32 %v4802, %v5138
      %v5321 = vadd.f32 %v4803, %v5147
      %v5322 = vadd.f32 %v4804, %v5152
      %v5323 = vadd.f32 %v4805, %v5161
      %v5324 = vadd.f32 %v4806, %v5166
      %v5325 = vadd.f32 %v4807, %v5175
      %v5326 = vadd.f32 %v4808, %v5180
      %v5327 = vadd.f32 %v4809, %v5189
      %v5328 = vadd.f32 %v4810, %v5194
      %v5329 = vadd.f32 %v4811, %v5203
      %v5330 = vadd.f32 %v4812, %v5208
      %v5331 = vadd.f32 %v4813, %v5217
      %v5332 = vadd.f32 %v4814, %v5222
      %v5333 = vadd.f32 %v4815, %v5231
      %v5334 = vadd.f32 %v4816, %v5236
      %v5335 = vadd.f32 %v4817, %v5245
      %v5336 = vadd.f32 %v4818, %v5250
      %v5337 = vadd.f32 %v4819, %v5259
      %v5338 = vadd.f32 %v4820, %v5264
      %v5339 = vadd.f32 %v4821, %v5273
      %v5340 = vadd.f32 %v4822, %v5278
      %v5341 = vadd.f32 %v4823, %v5287
      %v5342 = vadd.f32 %v4824, %v5292
      %v5343 = vadd.f32 %v4825, %v5301
      %v5344 = vadd.f32 %v4826, %v5306
      %v5345 = vld [vmem:[#allocation2 + $0x30] sm:$0xff]
      %v5346 = vld [vmem:[#allocation2 + $0x38] sm:$0xff]
      %v5347 = vld [vmem:[#allocation2 + $0x40] sm:$0xff]
      %v5348 = vld [vmem:[#allocation2 + $0x48] sm:$0xff]
      %v5349 = vld [vmem:[#allocation2 + $0x50] sm:$0xff]
      %v5350 = vld [vmem:[#allocation2 + $0x58] sm:$0xff]
      %v5351 = vld [vmem:[#allocation2 + $0x60] sm:$0xff]
      %v5352 = vld [vmem:[#allocation2 + $0x68] sm:$0xff]
      %v5353 = vld [vmem:[#allocation2 + $0x70] sm:$0xff]
      %v5354 = vld [vmem:[#allocation2 + $0x78] sm:$0xff]
      %v5355 = vld [vmem:[#allocation2 + $0x80] sm:$0xff]
      %v5356 = vld [vmem:[#allocation2 + $0x88] sm:$0xff]
      %v5357 = vld [vmem:[#allocation2 + $0x90] sm:$0xff]
      %v5358 = vld [vmem:[#allocation2 + $0x98] sm:$0xff]
      %v5359 = vld [vmem:[#allocation2 + $0xa0] sm:$0xff]
      %v5360 = vld [vmem:[#allocation2 + $0xa8] sm:$0xff]
      %v5361 = vld [vmem:[#allocation2 + $0xb0] sm:$0xff]
      %v5362 = vld [vmem:[#allocation2 + $0xb8] sm:$0xff]
      %v5363 = vld [vmem:[#allocation2 + $0xc0] sm:$0xff]
      %v5364 = vld [vmem:[#allocation2 + $0xc8] sm:$0xff]
      %v5365 = vld [vmem:[#allocation2 + $0xd0] sm:$0xff]
      %v5366 = vld [vmem:[#allocation2 + $0xd8] sm:$0xff]
      %v5367 = vld [vmem:[#allocation2 + $0xe0] sm:$0xff]
      %v5368 = vld [vmem:[#allocation2 + $0xe8] sm:$0xff]
      %v5369 = vld [vmem:[#allocation2 + $0xf0] sm:$0xff]
      %v5370 = vld [vmem:[#allocation2 + $0xf8] sm:$0xff]
      %v5371 = vld [vmem:[#allocation2 + $0x100] sm:$0xff]
      %v5372 = vld [vmem:[#allocation2 + $0x108] sm:$0xff]
      %v5373 = vld [vmem:[#allocation2 + $0x110] sm:$0xff]
      %v5374 = vld [vmem:[#allocation2 + $0x118] sm:$0xff]
      %v5375 = vld [vmem:[#allocation2 + $0x120] sm:$0xff]
      %v5376 = vld [vmem:[#allocation2 + $0x128] sm:$0xff]
      %v5377 = vld [vmem:[#allocation2 + $0x130] sm:$0xff]
      %v5378 = vld [vmem:[#allocation2 + $0x138] sm:$0xff]
      %v5379 = vld [vmem:[#allocation2 + $0x140] sm:$0xff]
      %v5380 = vld [vmem:[#allocation2 + $0x148] sm:$0xff]
      %v5381 = vld [vmem:[#allocation2 + $0x150] sm:$0xff]
      %v5382 = vld [vmem:[#allocation2 + $0x158] sm:$0xff]
      %v5383 = vld [vmem:[#allocation2 + $0x160] sm:$0xff]
      %v5384 = vld [vmem:[#allocation2 + $0x168] sm:$0xff]
      %v5385 = vld [vmem:[#allocation2 + $0x170] sm:$0xff]
      %v5386 = vld [vmem:[#allocation2 + $0x178] sm:$0xff]
      %v5387 = vld [vmem:[#allocation2 + $0x180] sm:$0xff]
      %v5388 = vld [vmem:[#allocation2 + $0x188] sm:$0xff]
      %v5389 = vld [vmem:[#allocation2 + $0x190] sm:$0xff]
      %v5390 = vld [vmem:[#allocation2 + $0x198] sm:$0xff]
      %v5391 = vld [vmem:[#allocation2 + $0x1a0] sm:$0xff]
      %v5392 = vld [vmem:[#allocation2 + $0x1a8] sm:$0xff]
      %s5393 = scalar_lea.vmem %s3, 24
      %v5394 = vld [vmem:[%s5393] sm:$0xf]
      %v5396 = vsel %vm2132, %v5345, 0
      %v5399 = vsel %vm2132, %v5346, 0
      %v5402 = vsel %vm2132, %v5347, 0
      %v5405 = vsel %vm2132, %v5348, 0
      %v5408 = vsel %vm2132, %v5349, 0
      %v5411 = vsel %vm2132, %v5350, 0
      %v5414 = vsel %vm2132, %v5351, 0
      %v5417 = vsel %vm2132, %v5352, 0
      %v5420 = vsel %vm2132, %v5353, 0
      %v5423 = vsel %vm2132, %v5354, 0
      %v5426 = vsel %vm2132, %v5355, 0
      %v5429 = vsel %vm2132, %v5356, 0
      %v5432 = vsel %vm2132, %v5357, 0
      %v5435 = vsel %vm2132, %v5358, 0
      %v5438 = vsel %vm2132, %v5359, 0
      %v5441 = vsel %vm2132, %v5360, 0
      %v5444 = vsel %vm2132, %v5361, 0
      %v5447 = vsel %vm2132, %v5362, 0
      %v5450 = vsel %vm2132, %v5363, 0
      %v5453 = vsel %vm2132, %v5364, 0
      %v5456 = vsel %vm2132, %v5365, 0
      %v5459 = vsel %vm2132, %v5366, 0
      %v5462 = vsel %vm2132, %v5367, 0
      %v5465 = vsel %vm2132, %v5368, 0
      %v5468 = vsel %vm2132, %v5369, 0
      %v5471 = vsel %vm2132, %v5370, 0
      %v5474 = vsel %vm2132, %v5371, 0
      %v5477 = vsel %vm2132, %v5372, 0
      %v5480 = vsel %vm2132, %v5373, 0
      %v5483 = vsel %vm2132, %v5374, 0
      %v5486 = vsel %vm2132, %v5375, 0
      %v5489 = vsel %vm2132, %v5376, 0
      %v5492 = vsel %vm2132, %v5377, 0
      %v5495 = vsel %vm2132, %v5378, 0
      %v5498 = vsel %vm2132, %v5379, 0
      %v5501 = vsel %vm2132, %v5380, 0
      %v5504 = vsel %vm2132, %v5381, 0
      %v5507 = vsel %vm2132, %v5382, 0
      %v5510 = vsel %vm2132, %v5383, 0
      %v5513 = vsel %vm2132, %v5384, 0
      %v5516 = vsel %vm2132, %v5385, 0
      %v5519 = vsel %vm2132, %v5386, 0
      %v5522 = vsel %vm2132, %v5387, 0
      %v5525 = vsel %vm2132, %v5388, 0
      %v5528 = vsel %vm2132, %v5389, 0
      %v5531 = vsel %vm2132, %v5390, 0
      %v5534 = vsel %vm2132, %v5391, 0
      %v5537 = vsel %vm2132, %v5392, 0
      %v5540 = vsel %vm2544, %v5394, 0
      %5542 = vmatprep.subr.mxu0 0.0
      %5543 = vmatpush1.msra.mxu0 0.0
      %5544 = vmatprep.subr.mxu0 0.0
      %5545 = vmatpush1.msra.mxu0 0.0
      %5546 = vmatprep.subr.mxu0 0.0
      %5547 = vmatpush1.msra.mxu0 0.0
      %5548 = vmatprep.subr.mxu0 0.0
      %5549 = vmatpush1.msra.mxu0 0.0
      %5550 = vmatprep.subr.mxu0 0.0
      %5551 = vmatpush1.msra.mxu0 0.0
      %5552 = vmatprep.subr.mxu0 0.0
      %5553 = vmatpush1.msra.mxu0 0.0
      %5554 = vmatprep.subr.mxu0 0.0
      %5555 = vmatpush1.msra.mxu0 0.0
      %5556 = vmatprep.subr.mxu0 0.0
      %5557 = vmatpush1.msra.mxu0 0.0
      %5558 = vmatprep.subr.mxu0 0.0
      %5559 = vmatpush1.msra.mxu0 0.0
      %5560 = vmatprep.subr.mxu0 0.0
      %5561 = vmatpush1.msra.mxu0 0.0
      %5562 = vmatprep.subr.mxu0 0.0
      %5563 = vmatpush1.msra.mxu0 0.0
      %5564 = vmatprep.subr.mxu0 0.0
      %5565 = vmatpush1.msra.mxu0 0.0
      %5566 = vmatprep.subr.mxu0 0.0
      %5567 = vmatpush1.msra.mxu0 0.0
      %5568 = vmatprep.subr.mxu0 0.0
      %5569 = vmatpush1.msra.mxu0 0.0
      %5570 = vmatprep.subr.mxu0 0.0
      %5571 = vmatpush1.msra.mxu0 0.0
      %5572 = vmatprep.subr.mxu0 0.0
      %5573 = vmatpush1.msra.mxu0 %v5540
      %5574 = vmatprep.subr.mxu0 0.0
      %5575 = vmatpush2.msra.mxu0 0.0
      %5576 = vmatprep.subr.mxu0 0.0
      %5577 = vmatpush2.msra.mxu0 0.0
      %5578 = vmatprep.subr.mxu0 0.0
      %5579 = vmatpush2.msra.mxu0 0.0
      %5580 = vmatprep.subr.mxu0 0.0
      %5581 = vmatpush2.msra.mxu0 0.0
      %5582 = vmatprep.subr.mxu0 0.0
      %5583 = vmatpush2.msra.mxu0 0.0
      %5584 = vmatprep.subr.mxu0 0.0
      %5585 = vmatpush2.msra.mxu0 0.0
      %5586 = vmatprep.subr.mxu0 0.0
      %5587 = vmatpush2.msra.mxu0 0.0
      %5588 = vmatprep.subr.mxu0 0.0
      %5589 = vmatpush2.msra.mxu0 0.0
      %5590 = vmatprep.subr.mxu0 0.0
      %5591 = vmatpush2.msra.mxu0 0.0
      %5592 = vmatprep.subr.mxu0 0.0
      %5593 = vmatpush2.msra.mxu0 0.0
      %5594 = vmatprep.subr.mxu0 0.0
      %5595 = vmatpush2.msra.mxu0 0.0
      %5596 = vmatprep.subr.mxu0 0.0
      %5597 = vmatpush2.msra.mxu0 0.0
      %5598 = vmatprep.subr.mxu0 0.0
      %5599 = vmatpush2.msra.mxu0 0.0
      %5600 = vmatprep.subr.mxu0 0.0
      %5601 = vmatpush2.msra.mxu0 0.0
      %5602 = vmatprep.subr.mxu0 0.0
      %5603 = vmatpush2.msra.mxu0 0.0
      %5604 = vmatprep.subr.mxu0 0.0
      %5605 = vmatpush2.msra.mxu0 0.0
      %5606 = vmatprep.mubr.f32.mxu0 0.0
      %5607 = vmatmul.mubr.f32.gmra.mxu0 %v5396
      %v5608 = vpop.f32.mrf.mxu0
      %v5609 = vadd.f32 0.0, %v5608
      %v5610 = vpop.f32.mrf.mxu0
      %5611 = vmatprep.mubr.f32.mxu0 0.0
      %5612 = vmatmul.mubr.f32.gmra.mxu0 %v5399
      %v5613 = vpop.f32.mrf.mxu0
      %v5614 = vadd.f32 0.0, %v5613
      %v5615 = vpop.f32.mrf.mxu0
      %5616 = vmatprep.mubr.f32.mxu0 0.0
      %5617 = vmatmul.mubr.f32.gmra.mxu0 %v5402
      %v5618 = vpop.f32.mrf.mxu0
      %v5619 = vpop.f32.mrf.mxu0
      %5620 = vmatprep.mubr.f32.mxu0 0.0
      %5621 = vmatmul.mubr.f32.gmra.mxu0 %v5405
      %v5622 = vpop.f32.mrf.mxu0
      %v5623 = vadd.f32 0.0, %v5622
      %v5624 = vpop.f32.mrf.mxu0
      %5625 = vmatprep.mubr.f32.mxu0 0.0
      %5626 = vmatmul.mubr.f32.gmra.mxu0 %v5408
      %v5627 = vpop.f32.mrf.mxu0
      %v5628 = vadd.f32 0.0, %v5627
      %v5629 = vpop.f32.mrf.mxu0
      %5630 = vmatprep.mubr.f32.mxu0 0.0
      %5631 = vmatmul.mubr.f32.gmra.mxu0 %v5411
      %v5632 = vpop.f32.mrf.mxu0
      %v5633 = vpop.f32.mrf.mxu0
      %5634 = vmatprep.mubr.f32.mxu0 0.0
      %5635 = vmatmul.mubr.f32.gmra.mxu0 %v5414
      %v5636 = vpop.f32.mrf.mxu0
      %v5637 = vadd.f32 0.0, %v5636
      %v5638 = vpop.f32.mrf.mxu0
      %5639 = vmatprep.mubr.f32.mxu0 0.0
      %5640 = vmatmul.mubr.f32.gmra.mxu0 %v5417
      %v5641 = vpop.f32.mrf.mxu0
      %v5642 = vadd.f32 0.0, %v5641
      %v5643 = vpop.f32.mrf.mxu0
      %5644 = vmatprep.mubr.f32.mxu0 0.0
      %5645 = vmatmul.mubr.f32.gmra.mxu0 %v5420
      %v5646 = vpop.f32.mrf.mxu0
      %v5647 = vpop.f32.mrf.mxu0
      %5648 = vmatprep.mubr.f32.mxu0 0.0
      %5649 = vmatmul.mubr.f32.gmra.mxu0 %v5423
      %v5650 = vpop.f32.mrf.mxu0
      %v5651 = vadd.f32 0.0, %v5650
      %v5652 = vpop.f32.mrf.mxu0
      %5653 = vmatprep.mubr.f32.mxu0 0.0
      %5654 = vmatmul.mubr.f32.gmra.mxu0 %v5426
      %v5655 = vpop.f32.mrf.mxu0
      %v5656 = vadd.f32 0.0, %v5655
      %v5657 = vpop.f32.mrf.mxu0
      %5658 = vmatprep.mubr.f32.mxu0 0.0
      %5659 = vmatmul.mubr.f32.gmra.mxu0 %v5429
      %v5660 = vpop.f32.mrf.mxu0
      %v5661 = vpop.f32.mrf.mxu0
      %5662 = vmatprep.mubr.f32.mxu0 0.0
      %5663 = vmatmul.mubr.f32.gmra.mxu0 %v5432
      %v5664 = vpop.f32.mrf.mxu0
      %v5665 = vadd.f32 0.0, %v5664
      %v5666 = vpop.f32.mrf.mxu0
      %5667 = vmatprep.mubr.f32.mxu0 0.0
      %5668 = vmatmul.mubr.f32.gmra.mxu0 %v5435
      %v5669 = vpop.f32.mrf.mxu0
      %v5670 = vadd.f32 0.0, %v5669
      %v5671 = vpop.f32.mrf.mxu0
      %5672 = vmatprep.mubr.f32.mxu0 0.0
      %5673 = vmatmul.mubr.f32.gmra.mxu0 %v5438
      %v5674 = vpop.f32.mrf.mxu0
      %v5675 = vpop.f32.mrf.mxu0
      %5676 = vmatprep.mubr.f32.mxu0 0.0
      %5677 = vmatmul.mubr.f32.gmra.mxu0 %v5441
      %v5678 = vpop.f32.mrf.mxu0
      %v5679 = vadd.f32 0.0, %v5678
      %v5680 = vpop.f32.mrf.mxu0
      %5681 = vmatprep.mubr.f32.mxu0 0.0
      %5682 = vmatmul.mubr.f32.gmra.mxu0 %v5444
      %v5683 = vpop.f32.mrf.mxu0
      %v5684 = vadd.f32 0.0, %v5683
      %v5685 = vpop.f32.mrf.mxu0
      %5686 = vmatprep.mubr.f32.mxu0 0.0
      %5687 = vmatmul.mubr.f32.gmra.mxu0 %v5447
      %v5688 = vpop.f32.mrf.mxu0
      %v5689 = vpop.f32.mrf.mxu0
      %5690 = vmatprep.mubr.f32.mxu0 0.0
      %5691 = vmatmul.mubr.f32.gmra.mxu0 %v5450
      %v5692 = vpop.f32.mrf.mxu0
      %v5693 = vadd.f32 0.0, %v5692
      %v5694 = vpop.f32.mrf.mxu0
      %5695 = vmatprep.mubr.f32.mxu0 0.0
      %5696 = vmatmul.mubr.f32.gmra.mxu0 %v5453
      %v5697 = vpop.f32.mrf.mxu0
      %v5698 = vadd.f32 0.0, %v5697
      %v5699 = vpop.f32.mrf.mxu0
      %5700 = vmatprep.mubr.f32.mxu0 0.0
      %5701 = vmatmul.mubr.f32.gmra.mxu0 %v5456
      %v5702 = vpop.f32.mrf.mxu0
      %v5703 = vpop.f32.mrf.mxu0
      %5704 = vmatprep.mubr.f32.mxu0 0.0
      %5705 = vmatmul.mubr.f32.gmra.mxu0 %v5459
      %v5706 = vpop.f32.mrf.mxu0
      %v5707 = vadd.f32 0.0, %v5706
      %v5708 = vpop.f32.mrf.mxu0
      %5709 = vmatprep.mubr.f32.mxu0 0.0
      %5710 = vmatmul.mubr.f32.gmra.mxu0 %v5462
      %v5711 = vpop.f32.mrf.mxu0
      %v5712 = vadd.f32 0.0, %v5711
      %v5713 = vpop.f32.mrf.mxu0
      %5714 = vmatprep.mubr.f32.mxu0 0.0
      %5715 = vmatmul.mubr.f32.gmra.mxu0 %v5465
      %v5716 = vpop.f32.mrf.mxu0
      %v5717 = vpop.f32.mrf.mxu0
      %5718 = vmatprep.mubr.f32.mxu0 0.0
      %5719 = vmatmul.mubr.f32.gmra.mxu0 %v5468
      %v5720 = vpop.f32.mrf.mxu0
      %v5721 = vadd.f32 0.0, %v5720
      %v5722 = vpop.f32.mrf.mxu0
      %5723 = vmatprep.mubr.f32.mxu0 0.0
      %5724 = vmatmul.mubr.f32.gmra.mxu0 %v5471
      %v5725 = vpop.f32.mrf.mxu0
      %v5726 = vadd.f32 0.0, %v5725
      %v5727 = vpop.f32.mrf.mxu0
      %5728 = vmatprep.mubr.f32.mxu0 0.0
      %5729 = vmatmul.mubr.f32.gmra.mxu0 %v5474
      %v5730 = vpop.f32.mrf.mxu0
      %v5731 = vpop.f32.mrf.mxu0
      %5732 = vmatprep.mubr.f32.mxu0 0.0
      %5733 = vmatmul.mubr.f32.gmra.mxu0 %v5477
      %v5734 = vpop.f32.mrf.mxu0
      %v5735 = vadd.f32 0.0, %v5734
      %v5736 = vpop.f32.mrf.mxu0
      %5737 = vmatprep.mubr.f32.mxu0 0.0
      %5738 = vmatmul.mubr.f32.gmra.mxu0 %v5480
      %v5739 = vpop.f32.mrf.mxu0
      %v5740 = vadd.f32 0.0, %v5739
      %v5741 = vpop.f32.mrf.mxu0
      %5742 = vmatprep.mubr.f32.mxu0 0.0
      %5743 = vmatmul.mubr.f32.gmra.mxu0 %v5483
      %v5744 = vpop.f32.mrf.mxu0
      %v5745 = vpop.f32.mrf.mxu0
      %5746 = vmatprep.mubr.f32.mxu0 0.0
      %5747 = vmatmul.mubr.f32.gmra.mxu0 %v5486
      %v5748 = vpop.f32.mrf.mxu0
      %v5749 = vadd.f32 0.0, %v5748
      %v5750 = vpop.f32.mrf.mxu0
      %5751 = vmatprep.mubr.f32.mxu0 0.0
      %5752 = vmatmul.mubr.f32.gmra.mxu0 %v5489
      %v5753 = vpop.f32.mrf.mxu0
      %v5754 = vadd.f32 0.0, %v5753
      %v5755 = vpop.f32.mrf.mxu0
      %5756 = vmatprep.mubr.f32.mxu0 0.0
      %5757 = vmatmul.mubr.f32.gmra.mxu0 %v5492
      %v5758 = vpop.f32.mrf.mxu0
      %v5759 = vpop.f32.mrf.mxu0
      %5760 = vmatprep.mubr.f32.mxu0 0.0
      %5761 = vmatmul.mubr.f32.gmra.mxu0 %v5495
      %v5762 = vpop.f32.mrf.mxu0
      %v5763 = vadd.f32 0.0, %v5762
      %v5764 = vpop.f32.mrf.mxu0
      %5765 = vmatprep.mubr.f32.mxu0 0.0
      %5766 = vmatmul.mubr.f32.gmra.mxu0 %v5498
      %v5767 = vpop.f32.mrf.mxu0
      %v5768 = vadd.f32 0.0, %v5767
      %v5769 = vpop.f32.mrf.mxu0
      %5770 = vmatprep.mubr.f32.mxu0 0.0
      %5771 = vmatmul.mubr.f32.gmra.mxu0 %v5501
      %v5772 = vpop.f32.mrf.mxu0
      %v5773 = vpop.f32.mrf.mxu0
      %5774 = vmatprep.mubr.f32.mxu0 0.0
      %5775 = vmatmul.mubr.f32.gmra.mxu0 %v5504
      %v5776 = vpop.f32.mrf.mxu0
      %v5777 = vadd.f32 0.0, %v5776
      %v5778 = vpop.f32.mrf.mxu0
      %5779 = vmatprep.mubr.f32.mxu0 0.0
      %5780 = vmatmul.mubr.f32.gmra.mxu0 %v5507
      %v5781 = vpop.f32.mrf.mxu0
      %v5782 = vadd.f32 0.0, %v5781
      %v5783 = vpop.f32.mrf.mxu0
      %5784 = vmatprep.mubr.f32.mxu0 0.0
      %5785 = vmatmul.mubr.f32.gmra.mxu0 %v5510
      %v5786 = vpop.f32.mrf.mxu0
      %v5787 = vpop.f32.mrf.mxu0
      %5788 = vmatprep.mubr.f32.mxu0 0.0
      %5789 = vmatmul.mubr.f32.gmra.mxu0 %v5513
      %v5790 = vpop.f32.mrf.mxu0
      %v5791 = vadd.f32 0.0, %v5790
      %v5792 = vpop.f32.mrf.mxu0
      %5793 = vmatprep.mubr.f32.mxu0 0.0
      %5794 = vmatmul.mubr.f32.gmra.mxu0 %v5516
      %v5795 = vpop.f32.mrf.mxu0
      %v5796 = vadd.f32 0.0, %v5795
      %v5797 = vpop.f32.mrf.mxu0
      %5798 = vmatprep.mubr.f32.mxu0 0.0
      %5799 = vmatmul.mubr.f32.gmra.mxu0 %v5519
      %v5800 = vpop.f32.mrf.mxu0
      %v5801 = vpop.f32.mrf.mxu0
      %5802 = vmatprep.mubr.f32.mxu0 0.0
      %5803 = vmatmul.mubr.f32.gmra.mxu0 %v5522
      %v5804 = vpop.f32.mrf.mxu0
      %v5805 = vadd.f32 0.0, %v5804
      %v5806 = vpop.f32.mrf.mxu0
      %5807 = vmatprep.mubr.f32.mxu0 0.0
      %5808 = vmatmul.mubr.f32.gmra.mxu0 %v5525
      %v5809 = vpop.f32.mrf.mxu0
      %v5810 = vadd.f32 0.0, %v5809
      %v5811 = vpop.f32.mrf.mxu0
      %5812 = vmatprep.mubr.f32.mxu0 0.0
      %5813 = vmatmul.mubr.f32.gmra.mxu0 %v5528
      %v5814 = vpop.f32.mrf.mxu0
      %v5815 = vpop.f32.mrf.mxu0
      %5816 = vmatprep.mubr.f32.mxu0 0.0
      %5817 = vmatmul.mubr.f32.gmra.mxu0 %v5531
      %v5818 = vpop.f32.mrf.mxu0
      %v5819 = vadd.f32 0.0, %v5818
      %v5820 = vpop.f32.mrf.mxu0
      %5821 = vmatprep.mubr.f32.mxu0 0.0
      %5822 = vmatmul.mubr.f32.gmra.mxu0 %v5534
      %v5823 = vpop.f32.mrf.mxu0
      %v5824 = vadd.f32 0.0, %v5823
      %v5825 = vpop.f32.mrf.mxu0
      %5826 = vmatprep.mubr.f32.mxu0 0.0
      %5827 = vmatmul.mubr.f32.gmra.mxu0 %v5537
      %v5828 = vpop.f32.mrf.mxu0
      %v5829 = vpop.f32.mrf.mxu0
      %5830 = vdwg.mxu0
      %v5831 = vadd.f32 %v5313, %v5609
      %v5832 = vadd.f32 %v5314, %v5614
      %v5833 = vadd.f32 %v5315, %v5623
      %v5834 = vadd.f32 %v5316, %v5628
      %v5835 = vadd.f32 %v5317, %v5637
      %v5836 = vadd.f32 %v5318, %v5642
      %v5837 = vadd.f32 %v5319, %v5651
      %v5838 = vadd.f32 %v5320, %v5656
      %v5839 = vadd.f32 %v5321, %v5665
      %v5840 = vadd.f32 %v5322, %v5670
      %v5841 = vadd.f32 %v5323, %v5679
      %v5842 = vadd.f32 %v5324, %v5684
      %v5843 = vadd.f32 %v5325, %v5693
      %v5844 = vadd.f32 %v5326, %v5698
      %v5845 = vadd.f32 %v5327, %v5707
      %v5846 = vadd.f32 %v5328, %v5712
      %v5847 = vadd.f32 %v5329, %v5721
      %v5848 = vadd.f32 %v5330, %v5726
      %v5849 = vadd.f32 %v5331, %v5735
      %v5850 = vadd.f32 %v5332, %v5740
      %v5851 = vadd.f32 %v5333, %v5749
      %v5852 = vadd.f32 %v5334, %v5754
      %v5853 = vadd.f32 %v5335, %v5763
      %v5854 = vadd.f32 %v5336, %v5768
      %v5855 = vadd.f32 %v5337, %v5777
      %v5856 = vadd.f32 %v5338, %v5782
      %v5857 = vadd.f32 %v5339, %v5791
      %v5858 = vadd.f32 %v5340, %v5796
      %v5859 = vadd.f32 %v5341, %v5805
      %v5860 = vadd.f32 %v5342, %v5810
      %v5861 = vadd.f32 %v5343, %v5819
      %v5862 = vadd.f32 %v5344, %v5824
      %v5863 = vld [vmem:[%s2190 + $0x30] sm:$0xff]
      %v5864 = vld [vmem:[%s2190 + $0x38] sm:$0xff]
      %v5865 = vld [vmem:[%s2190 + $0x40] sm:$0xff]
      %v5866 = vld [vmem:[%s2190 + $0x48] sm:$0xff]
      %v5867 = vld [vmem:[%s2190 + $0x50] sm:$0xff]
      %v5868 = vld [vmem:[%s2190 + $0x58] sm:$0xff]
      %v5869 = vld [vmem:[%s2190 + $0x60] sm:$0xff]
      %v5870 = vld [vmem:[%s2190 + $0x68] sm:$0xff]
      %v5871 = vld [vmem:[%s2190 + $0x70] sm:$0xff]
      %v5872 = vld [vmem:[%s2190 + $0x78] sm:$0xff]
      %v5873 = vld [vmem:[%s2190 + $0x80] sm:$0xff]
      %v5874 = vld [vmem:[%s2190 + $0x88] sm:$0xff]
      %v5875 = vld [vmem:[%s2190 + $0x90] sm:$0xff]
      %v5876 = vld [vmem:[%s2190 + $0x98] sm:$0xff]
      %v5877 = vld [vmem:[%s2190 + $0xa0] sm:$0xff]
      %v5878 = vld [vmem:[%s2190 + $0xa8] sm:$0xff]
      %v5879 = vld [vmem:[%s2190 + $0xb0] sm:$0xff]
      %v5880 = vld [vmem:[%s2190 + $0xb8] sm:$0xff]
      %v5881 = vld [vmem:[%s2190 + $0xc0] sm:$0xff]
      %v5882 = vld [vmem:[%s2190 + $0xc8] sm:$0xff]
      %v5883 = vld [vmem:[%s2190 + $0xd0] sm:$0xff]
      %v5884 = vld [vmem:[%s2190 + $0xd8] sm:$0xff]
      %v5885 = vld [vmem:[%s2190 + $0xe0] sm:$0xff]
      %v5886 = vld [vmem:[%s2190 + $0xe8] sm:$0xff]
      %v5887 = vld [vmem:[%s2190 + $0xf0] sm:$0xff]
      %v5888 = vld [vmem:[%s2190 + $0xf8] sm:$0xff]
      %v5889 = vld [vmem:[%s2190 + $0x100] sm:$0xff]
      %v5890 = vld [vmem:[%s2190 + $0x108] sm:$0xff]
      %v5891 = vld [vmem:[%s2190 + $0x110] sm:$0xff]
      %v5892 = vld [vmem:[%s2190 + $0x118] sm:$0xff]
      %v5893 = vld [vmem:[%s2190 + $0x120] sm:$0xff]
      %v5894 = vld [vmem:[%s2190 + $0x128] sm:$0xff]
      %v5895 = vld [vmem:[%s2190 + $0x130] sm:$0xff]
      %v5896 = vld [vmem:[%s2190 + $0x138] sm:$0xff]
      %v5897 = vld [vmem:[%s2190 + $0x140] sm:$0xff]
      %v5898 = vld [vmem:[%s2190 + $0x148] sm:$0xff]
      %v5899 = vld [vmem:[%s2190 + $0x150] sm:$0xff]
      %v5900 = vld [vmem:[%s2190 + $0x158] sm:$0xff]
      %v5901 = vld [vmem:[%s2190 + $0x160] sm:$0xff]
      %v5902 = vld [vmem:[%s2190 + $0x168] sm:$0xff]
      %v5903 = vld [vmem:[%s2190 + $0x170] sm:$0xff]
      %v5904 = vld [vmem:[%s2190 + $0x178] sm:$0xff]
      %v5905 = vld [vmem:[%s2190 + $0x180] sm:$0xff]
      %v5906 = vld [vmem:[%s2190 + $0x188] sm:$0xff]
      %v5907 = vld [vmem:[%s2190 + $0x190] sm:$0xff]
      %v5908 = vld [vmem:[%s2190 + $0x198] sm:$0xff]
      %v5909 = vld [vmem:[%s2190 + $0x1a0] sm:$0xff]
      %v5910 = vld [vmem:[%s2190 + $0x1a8] sm:$0xff]
      %s5911 = scalar_lea.vmem %s3, 28
      %v5912 = vld [vmem:[%s5911] sm:$0xf]
      %v5914 = vsel %vm2132, %v5863, 0
      %v5917 = vsel %vm2132, %v5864, 0
      %v5920 = vsel %vm2132, %v5865, 0
      %v5923 = vsel %vm2132, %v5866, 0
      %v5926 = vsel %vm2132, %v5867, 0
      %v5929 = vsel %vm2132, %v5868, 0
      %v5932 = vsel %vm2132, %v5869, 0
      %v5935 = vsel %vm2132, %v5870, 0
      %v5938 = vsel %vm2132, %v5871, 0
      %v5941 = vsel %vm2132, %v5872, 0
      %v5944 = vsel %vm2132, %v5873, 0
      %v5947 = vsel %vm2132, %v5874, 0
      %v5950 = vsel %vm2132, %v5875, 0
      %v5953 = vsel %vm2132, %v5876, 0
      %v5956 = vsel %vm2132, %v5877, 0
      %v5959 = vsel %vm2132, %v5878, 0
      %v5962 = vsel %vm2132, %v5879, 0
      %v5965 = vsel %vm2132, %v5880, 0
      %v5968 = vsel %vm2132, %v5881, 0
      %v5971 = vsel %vm2132, %v5882, 0
      %v5974 = vsel %vm2132, %v5883, 0
      %v5977 = vsel %vm2132, %v5884, 0
      %v5980 = vsel %vm2132, %v5885, 0
      %v5983 = vsel %vm2132, %v5886, 0
      %v5986 = vsel %vm2132, %v5887, 0
      %v5989 = vsel %vm2132, %v5888, 0
      %v5992 = vsel %vm2132, %v5889, 0
      %v5995 = vsel %vm2132, %v5890, 0
      %v5998 = vsel %vm2132, %v5891, 0
      %v6001 = vsel %vm2132, %v5892, 0
      %v6004 = vsel %vm2132, %v5893, 0
      %v6007 = vsel %vm2132, %v5894, 0
      %v6010 = vsel %vm2132, %v5895, 0
      %v6013 = vsel %vm2132, %v5896, 0
      %v6016 = vsel %vm2132, %v5897, 0
      %v6019 = vsel %vm2132, %v5898, 0
      %v6022 = vsel %vm2132, %v5899, 0
      %v6025 = vsel %vm2132, %v5900, 0
      %v6028 = vsel %vm2132, %v5901, 0
      %v6031 = vsel %vm2132, %v5902, 0
      %v6034 = vsel %vm2132, %v5903, 0
      %v6037 = vsel %vm2132, %v5904, 0
      %v6040 = vsel %vm2132, %v5905, 0
      %v6043 = vsel %vm2132, %v5906, 0
      %v6046 = vsel %vm2132, %v5907, 0
      %v6049 = vsel %vm2132, %v5908, 0
      %v6052 = vsel %vm2132, %v5909, 0
      %v6055 = vsel %vm2132, %v5910, 0
      %v6058 = vsel %vm2544, %v5912, 0
      %6060 = vmatprep.subr.mxu0 0.0
      %6061 = vmatpush1.msra.mxu0 0.0
      %6062 = vmatprep.subr.mxu0 0.0
      %6063 = vmatpush1.msra.mxu0 0.0
      %6064 = vmatprep.subr.mxu0 0.0
      %6065 = vmatpush1.msra.mxu0 0.0
      %6066 = vmatprep.subr.mxu0 0.0
      %6067 = vmatpush1.msra.mxu0 0.0
      %6068 = vmatprep.subr.mxu0 0.0
      %6069 = vmatpush1.msra.mxu0 0.0
      %6070 = vmatprep.subr.mxu0 0.0
      %6071 = vmatpush1.msra.mxu0 0.0
      %6072 = vmatprep.subr.mxu0 0.0
      %6073 = vmatpush1.msra.mxu0 0.0
      %6074 = vmatprep.subr.mxu0 0.0
      %6075 = vmatpush1.msra.mxu0 0.0
      %6076 = vmatprep.subr.mxu0 0.0
      %6077 = vmatpush1.msra.mxu0 0.0
      %6078 = vmatprep.subr.mxu0 0.0
      %6079 = vmatpush1.msra.mxu0 0.0
      %6080 = vmatprep.subr.mxu0 0.0
      %6081 = vmatpush1.msra.mxu0 0.0
      %6082 = vmatprep.subr.mxu0 0.0
      %6083 = vmatpush1.msra.mxu0 0.0
      %6084 = vmatprep.subr.mxu0 0.0
      %6085 = vmatpush1.msra.mxu0 0.0
      %6086 = vmatprep.subr.mxu0 0.0
      %6087 = vmatpush1.msra.mxu0 0.0
      %6088 = vmatprep.subr.mxu0 0.0
      %6089 = vmatpush1.msra.mxu0 0.0
      %6090 = vmatprep.subr.mxu0 0.0
      %6091 = vmatpush1.msra.mxu0 %v6058
      %6092 = vmatprep.subr.mxu0 0.0
      %6093 = vmatpush2.msra.mxu0 0.0
      %6094 = vmatprep.subr.mxu0 0.0
      %6095 = vmatpush2.msra.mxu0 0.0
      %6096 = vmatprep.subr.mxu0 0.0
      %6097 = vmatpush2.msra.mxu0 0.0
      %6098 = vmatprep.subr.mxu0 0.0
      %6099 = vmatpush2.msra.mxu0 0.0
      %6100 = vmatprep.subr.mxu0 0.0
      %6101 = vmatpush2.msra.mxu0 0.0
      %6102 = vmatprep.subr.mxu0 0.0
      %6103 = vmatpush2.msra.mxu0 0.0
      %6104 = vmatprep.subr.mxu0 0.0
      %6105 = vmatpush2.msra.mxu0 0.0
      %6106 = vmatprep.subr.mxu0 0.0
      %6107 = vmatpush2.msra.mxu0 0.0
      %6108 = vmatprep.subr.mxu0 0.0
      %6109 = vmatpush2.msra.mxu0 0.0
      %6110 = vmatprep.subr.mxu0 0.0
      %6111 = vmatpush2.msra.mxu0 0.0
      %6112 = vmatprep.subr.mxu0 0.0
      %6113 = vmatpush2.msra.mxu0 0.0
      %6114 = vmatprep.subr.mxu0 0.0
      %6115 = vmatpush2.msra.mxu0 0.0
      %6116 = vmatprep.subr.mxu0 0.0
      %6117 = vmatpush2.msra.mxu0 0.0
      %6118 = vmatprep.subr.mxu0 0.0
      %6119 = vmatpush2.msra.mxu0 0.0
      %6120 = vmatprep.subr.mxu0 0.0
      %6121 = vmatpush2.msra.mxu0 0.0
      %6122 = vmatprep.subr.mxu0 0.0
      %6123 = vmatpush2.msra.mxu0 0.0
      %6124 = vmatprep.mubr.f32.mxu0 0.0
      %6125 = vmatmul.mubr.f32.gmra.mxu0 %v5914
      %v6126 = vpop.f32.mrf.mxu0
      %v6127 = vadd.f32 0.0, %v6126
      %v6128 = vpop.f32.mrf.mxu0
      %6129 = vmatprep.mubr.f32.mxu0 0.0
      %6130 = vmatmul.mubr.f32.gmra.mxu0 %v5917
      %v6131 = vpop.f32.mrf.mxu0
      %v6132 = vadd.f32 0.0, %v6131
      %v6133 = vpop.f32.mrf.mxu0
      %6134 = vmatprep.mubr.f32.mxu0 0.0
      %6135 = vmatmul.mubr.f32.gmra.mxu0 %v5920
      %v6136 = vpop.f32.mrf.mxu0
      %v6137 = vpop.f32.mrf.mxu0
      %6138 = vmatprep.mubr.f32.mxu0 0.0
      %6139 = vmatmul.mubr.f32.gmra.mxu0 %v5923
      %v6140 = vpop.f32.mrf.mxu0
      %v6141 = vadd.f32 0.0, %v6140
      %v6142 = vpop.f32.mrf.mxu0
      %6143 = vmatprep.mubr.f32.mxu0 0.0
      %6144 = vmatmul.mubr.f32.gmra.mxu0 %v5926
      %v6145 = vpop.f32.mrf.mxu0
      %v6146 = vadd.f32 0.0, %v6145
      %v6147 = vpop.f32.mrf.mxu0
      %6148 = vmatprep.mubr.f32.mxu0 0.0
      %6149 = vmatmul.mubr.f32.gmra.mxu0 %v5929
      %v6150 = vpop.f32.mrf.mxu0
      %v6151 = vpop.f32.mrf.mxu0
      %6152 = vmatprep.mubr.f32.mxu0 0.0
      %6153 = vmatmul.mubr.f32.gmra.mxu0 %v5932
      %v6154 = vpop.f32.mrf.mxu0
      %v6155 = vadd.f32 0.0, %v6154
      %v6156 = vpop.f32.mrf.mxu0
      %6157 = vmatprep.mubr.f32.mxu0 0.0
      %6158 = vmatmul.mubr.f32.gmra.mxu0 %v5935
      %v6159 = vpop.f32.mrf.mxu0
      %v6160 = vadd.f32 0.0, %v6159
      %v6161 = vpop.f32.mrf.mxu0
      %6162 = vmatprep.mubr.f32.mxu0 0.0
      %6163 = vmatmul.mubr.f32.gmra.mxu0 %v5938
      %v6164 = vpop.f32.mrf.mxu0
      %v6165 = vpop.f32.mrf.mxu0
      %6166 = vmatprep.mubr.f32.mxu0 0.0
      %6167 = vmatmul.mubr.f32.gmra.mxu0 %v5941
      %v6168 = vpop.f32.mrf.mxu0
      %v6169 = vadd.f32 0.0, %v6168
      %v6170 = vpop.f32.mrf.mxu0
      %6171 = vmatprep.mubr.f32.mxu0 0.0
      %6172 = vmatmul.mubr.f32.gmra.mxu0 %v5944
      %v6173 = vpop.f32.mrf.mxu0
      %v6174 = vadd.f32 0.0, %v6173
      %v6175 = vpop.f32.mrf.mxu0
      %6176 = vmatprep.mubr.f32.mxu0 0.0
      %6177 = vmatmul.mubr.f32.gmra.mxu0 %v5947
      %v6178 = vpop.f32.mrf.mxu0
      %v6179 = vpop.f32.mrf.mxu0
      %6180 = vmatprep.mubr.f32.mxu0 0.0
      %6181 = vmatmul.mubr.f32.gmra.mxu0 %v5950
      %v6182 = vpop.f32.mrf.mxu0
      %v6183 = vadd.f32 0.0, %v6182
      %v6184 = vpop.f32.mrf.mxu0
      %6185 = vmatprep.mubr.f32.mxu0 0.0
      %6186 = vmatmul.mubr.f32.gmra.mxu0 %v5953
      %v6187 = vpop.f32.mrf.mxu0
      %v6188 = vadd.f32 0.0, %v6187
      %v6189 = vpop.f32.mrf.mxu0
      %6190 = vmatprep.mubr.f32.mxu0 0.0
      %6191 = vmatmul.mubr.f32.gmra.mxu0 %v5956
      %v6192 = vpop.f32.mrf.mxu0
      %v6193 = vpop.f32.mrf.mxu0
      %6194 = vmatprep.mubr.f32.mxu0 0.0
      %6195 = vmatmul.mubr.f32.gmra.mxu0 %v5959
      %v6196 = vpop.f32.mrf.mxu0
      %v6197 = vadd.f32 0.0, %v6196
      %v6198 = vpop.f32.mrf.mxu0
      %6199 = vmatprep.mubr.f32.mxu0 0.0
      %6200 = vmatmul.mubr.f32.gmra.mxu0 %v5962
      %v6201 = vpop.f32.mrf.mxu0
      %v6202 = vadd.f32 0.0, %v6201
      %v6203 = vpop.f32.mrf.mxu0
      %6204 = vmatprep.mubr.f32.mxu0 0.0
      %6205 = vmatmul.mubr.f32.gmra.mxu0 %v5965
      %v6206 = vpop.f32.mrf.mxu0
      %v6207 = vpop.f32.mrf.mxu0
      %6208 = vmatprep.mubr.f32.mxu0 0.0
      %6209 = vmatmul.mubr.f32.gmra.mxu0 %v5968
      %v6210 = vpop.f32.mrf.mxu0
      %v6211 = vadd.f32 0.0, %v6210
      %v6212 = vpop.f32.mrf.mxu0
      %6213 = vmatprep.mubr.f32.mxu0 0.0
      %6214 = vmatmul.mubr.f32.gmra.mxu0 %v5971
      %v6215 = vpop.f32.mrf.mxu0
      %v6216 = vadd.f32 0.0, %v6215
      %v6217 = vpop.f32.mrf.mxu0
      %6218 = vmatprep.mubr.f32.mxu0 0.0
      %6219 = vmatmul.mubr.f32.gmra.mxu0 %v5974
      %v6220 = vpop.f32.mrf.mxu0
      %v6221 = vpop.f32.mrf.mxu0
      %6222 = vmatprep.mubr.f32.mxu0 0.0
      %6223 = vmatmul.mubr.f32.gmra.mxu0 %v5977
      %v6224 = vpop.f32.mrf.mxu0
      %v6225 = vadd.f32 0.0, %v6224
      %v6226 = vpop.f32.mrf.mxu0
      %6227 = vmatprep.mubr.f32.mxu0 0.0
      %6228 = vmatmul.mubr.f32.gmra.mxu0 %v5980
      %v6229 = vpop.f32.mrf.mxu0
      %v6230 = vadd.f32 0.0, %v6229
      %v6231 = vpop.f32.mrf.mxu0
      %6232 = vmatprep.mubr.f32.mxu0 0.0
      %6233 = vmatmul.mubr.f32.gmra.mxu0 %v5983
      %v6234 = vpop.f32.mrf.mxu0
      %v6235 = vpop.f32.mrf.mxu0
      %6236 = vmatprep.mubr.f32.mxu0 0.0
      %6237 = vmatmul.mubr.f32.gmra.mxu0 %v5986
      %v6238 = vpop.f32.mrf.mxu0
      %v6239 = vadd.f32 0.0, %v6238
      %v6240 = vpop.f32.mrf.mxu0
      %6241 = vmatprep.mubr.f32.mxu0 0.0
      %6242 = vmatmul.mubr.f32.gmra.mxu0 %v5989
      %v6243 = vpop.f32.mrf.mxu0
      %v6244 = vadd.f32 0.0, %v6243
      %v6245 = vpop.f32.mrf.mxu0
      %6246 = vmatprep.mubr.f32.mxu0 0.0
      %6247 = vmatmul.mubr.f32.gmra.mxu0 %v5992
      %v6248 = vpop.f32.mrf.mxu0
      %v6249 = vpop.f32.mrf.mxu0
      %6250 = vmatprep.mubr.f32.mxu0 0.0
      %6251 = vmatmul.mubr.f32.gmra.mxu0 %v5995
      %v6252 = vpop.f32.mrf.mxu0
      %v6253 = vadd.f32 0.0, %v6252
      %v6254 = vpop.f32.mrf.mxu0
      %6255 = vmatprep.mubr.f32.mxu0 0.0
      %6256 = vmatmul.mubr.f32.gmra.mxu0 %v5998
      %v6257 = vpop.f32.mrf.mxu0
      %v6258 = vadd.f32 0.0, %v6257
      %v6259 = vpop.f32.mrf.mxu0
      %6260 = vmatprep.mubr.f32.mxu0 0.0
      %6261 = vmatmul.mubr.f32.gmra.mxu0 %v6001
      %v6262 = vpop.f32.mrf.mxu0
      %v6263 = vpop.f32.mrf.mxu0
      %6264 = vmatprep.mubr.f32.mxu0 0.0
      %6265 = vmatmul.mubr.f32.gmra.mxu0 %v6004
      %v6266 = vpop.f32.mrf.mxu0
      %v6267 = vadd.f32 0.0, %v6266
      %v6268 = vpop.f32.mrf.mxu0
      %6269 = vmatprep.mubr.f32.mxu0 0.0
      %6270 = vmatmul.mubr.f32.gmra.mxu0 %v6007
      %v6271 = vpop.f32.mrf.mxu0
      %v6272 = vadd.f32 0.0, %v6271
      %v6273 = vpop.f32.mrf.mxu0
      %6274 = vmatprep.mubr.f32.mxu0 0.0
      %6275 = vmatmul.mubr.f32.gmra.mxu0 %v6010
      %v6276 = vpop.f32.mrf.mxu0
      %v6277 = vpop.f32.mrf.mxu0
      %6278 = vmatprep.mubr.f32.mxu0 0.0
      %6279 = vmatmul.mubr.f32.gmra.mxu0 %v6013
      %v6280 = vpop.f32.mrf.mxu0
      %v6281 = vadd.f32 0.0, %v6280
      %v6282 = vpop.f32.mrf.mxu0
      %6283 = vmatprep.mubr.f32.mxu0 0.0
      %6284 = vmatmul.mubr.f32.gmra.mxu0 %v6016
      %v6285 = vpop.f32.mrf.mxu0
      %v6286 = vadd.f32 0.0, %v6285
      %v6287 = vpop.f32.mrf.mxu0
      %6288 = vmatprep.mubr.f32.mxu0 0.0
      %6289 = vmatmul.mubr.f32.gmra.mxu0 %v6019
      %v6290 = vpop.f32.mrf.mxu0
      %v6291 = vpop.f32.mrf.mxu0
      %6292 = vmatprep.mubr.f32.mxu0 0.0
      %6293 = vmatmul.mubr.f32.gmra.mxu0 %v6022
      %v6294 = vpop.f32.mrf.mxu0
      %v6295 = vadd.f32 0.0, %v6294
      %v6296 = vpop.f32.mrf.mxu0
      %6297 = vmatprep.mubr.f32.mxu0 0.0
      %6298 = vmatmul.mubr.f32.gmra.mxu0 %v6025
      %v6299 = vpop.f32.mrf.mxu0
      %v6300 = vadd.f32 0.0, %v6299
      %v6301 = vpop.f32.mrf.mxu0
      %6302 = vmatprep.mubr.f32.mxu0 0.0
      %6303 = vmatmul.mubr.f32.gmra.mxu0 %v6028
      %v6304 = vpop.f32.mrf.mxu0
      %v6305 = vpop.f32.mrf.mxu0
      %6306 = vmatprep.mubr.f32.mxu0 0.0
      %6307 = vmatmul.mubr.f32.gmra.mxu0 %v6031
      %v6308 = vpop.f32.mrf.mxu0
      %v6309 = vadd.f32 0.0, %v6308
      %v6310 = vpop.f32.mrf.mxu0
      %6311 = vmatprep.mubr.f32.mxu0 0.0
      %6312 = vmatmul.mubr.f32.gmra.mxu0 %v6034
      %v6313 = vpop.f32.mrf.mxu0
      %v6314 = vadd.f32 0.0, %v6313
      %v6315 = vpop.f32.mrf.mxu0
      %6316 = vmatprep.mubr.f32.mxu0 0.0
      %6317 = vmatmul.mubr.f32.gmra.mxu0 %v6037
      %v6318 = vpop.f32.mrf.mxu0
      %v6319 = vpop.f32.mrf.mxu0
      %6320 = vmatprep.mubr.f32.mxu0 0.0
      %6321 = vmatmul.mubr.f32.gmra.mxu0 %v6040
      %v6322 = vpop.f32.mrf.mxu0
      %v6323 = vadd.f32 0.0, %v6322
      %v6324 = vpop.f32.mrf.mxu0
      %6325 = vmatprep.mubr.f32.mxu0 0.0
      %6326 = vmatmul.mubr.f32.gmra.mxu0 %v6043
      %v6327 = vpop.f32.mrf.mxu0
      %v6328 = vadd.f32 0.0, %v6327
      %v6329 = vpop.f32.mrf.mxu0
      %6330 = vmatprep.mubr.f32.mxu0 0.0
      %6331 = vmatmul.mubr.f32.gmra.mxu0 %v6046
      %v6332 = vpop.f32.mrf.mxu0
      %v6333 = vpop.f32.mrf.mxu0
      %6334 = vmatprep.mubr.f32.mxu0 0.0
      %6335 = vmatmul.mubr.f32.gmra.mxu0 %v6049
      %v6336 = vpop.f32.mrf.mxu0
      %v6337 = vadd.f32 0.0, %v6336
      %v6338 = vpop.f32.mrf.mxu0
      %6339 = vmatprep.mubr.f32.mxu0 0.0
      %6340 = vmatmul.mubr.f32.gmra.mxu0 %v6052
      %v6341 = vpop.f32.mrf.mxu0
      %v6342 = vadd.f32 0.0, %v6341
      %v6343 = vpop.f32.mrf.mxu0
      %6344 = vmatprep.mubr.f32.mxu0 0.0
      %6345 = vmatmul.mubr.f32.gmra.mxu0 %v6055
      %v6346 = vpop.f32.mrf.mxu0
      %v6347 = vpop.f32.mrf.mxu0
      %6348 = vdwg.mxu0
      %v6349 = vadd.f32 %v5831, %v6127
      %v6350 = vadd.f32 %v5832, %v6132
      %v6351 = vadd.f32 %v5833, %v6141
      %v6352 = vadd.f32 %v5834, %v6146
      %v6353 = vadd.f32 %v5835, %v6155
      %v6354 = vadd.f32 %v5836, %v6160
      %v6355 = vadd.f32 %v5837, %v6169
      %v6356 = vadd.f32 %v5838, %v6174
      %v6357 = vadd.f32 %v5839, %v6183
      %v6358 = vadd.f32 %v5840, %v6188
      %v6359 = vadd.f32 %v5841, %v6197
      %v6360 = vadd.f32 %v5842, %v6202
      %v6361 = vadd.f32 %v5843, %v6211
      %v6362 = vadd.f32 %v5844, %v6216
      %v6363 = vadd.f32 %v5845, %v6225
      %v6364 = vadd.f32 %v5846, %v6230
      %v6365 = vadd.f32 %v5847, %v6239
      %v6366 = vadd.f32 %v5848, %v6244
      %v6367 = vadd.f32 %v5849, %v6253
      %v6368 = vadd.f32 %v5850, %v6258
      %v6369 = vadd.f32 %v5851, %v6267
      %v6370 = vadd.f32 %v5852, %v6272
      %v6371 = vadd.f32 %v5853, %v6281
      %v6372 = vadd.f32 %v5854, %v6286
      %v6373 = vadd.f32 %v5855, %v6295
      %v6374 = vadd.f32 %v5856, %v6300
      %v6375 = vadd.f32 %v5857, %v6309
      %v6376 = vadd.f32 %v5858, %v6314
      %v6377 = vadd.f32 %v5859, %v6323
      %v6378 = vadd.f32 %v5860, %v6328
      %v6379 = vadd.f32 %v5861, %v6337
      %v6380 = vadd.f32 %v5862, %v6342
      %v6381 = vld [vmem:[%s2245 + $0x30] sm:$0xff]
      %v6382 = vld [vmem:[%s2245 + $0x38] sm:$0xff]
      %v6383 = vld [vmem:[%s2245 + $0x40] sm:$0xff]
      %v6384 = vld [vmem:[%s2245 + $0x48] sm:$0xff]
      %v6385 = vld [vmem:[%s2245 + $0x50] sm:$0xff]
      %v6386 = vld [vmem:[%s2245 + $0x58] sm:$0xff]
      %v6387 = vld [vmem:[%s2245 + $0x60] sm:$0xff]
      %v6388 = vld [vmem:[%s2245 + $0x68] sm:$0xff]
      %v6389 = vld [vmem:[%s2245 + $0x70] sm:$0xff]
      %v6390 = vld [vmem:[%s2245 + $0x78] sm:$0xff]
      %v6391 = vld [vmem:[%s2245 + $0x80] sm:$0xff]
      %v6392 = vld [vmem:[%s2245 + $0x88] sm:$0xff]
      %v6393 = vld [vmem:[%s2245 + $0x90] sm:$0xff]
      %v6394 = vld [vmem:[%s2245 + $0x98] sm:$0xff]
      %v6395 = vld [vmem:[%s2245 + $0xa0] sm:$0xff]
      %v6396 = vld [vmem:[%s2245 + $0xa8] sm:$0xff]
      %v6397 = vld [vmem:[%s2245 + $0xb0] sm:$0xff]
      %v6398 = vld [vmem:[%s2245 + $0xb8] sm:$0xff]
      %v6399 = vld [vmem:[%s2245 + $0xc0] sm:$0xff]
      %v6400 = vld [vmem:[%s2245 + $0xc8] sm:$0xff]
      %v6401 = vld [vmem:[%s2245 + $0xd0] sm:$0xff]
      %v6402 = vld [vmem:[%s2245 + $0xd8] sm:$0xff]
      %v6403 = vld [vmem:[%s2245 + $0xe0] sm:$0xff]
      %v6404 = vld [vmem:[%s2245 + $0xe8] sm:$0xff]
      %v6405 = vld [vmem:[%s2245 + $0xf0] sm:$0xff]
      %v6406 = vld [vmem:[%s2245 + $0xf8] sm:$0xff]
      %v6407 = vld [vmem:[%s2245 + $0x100] sm:$0xff]
      %v6408 = vld [vmem:[%s2245 + $0x108] sm:$0xff]
      %v6409 = vld [vmem:[%s2245 + $0x110] sm:$0xff]
      %v6410 = vld [vmem:[%s2245 + $0x118] sm:$0xff]
      %v6411 = vld [vmem:[%s2245 + $0x120] sm:$0xff]
      %v6412 = vld [vmem:[%s2245 + $0x128] sm:$0xff]
      %v6413 = vld [vmem:[%s2245 + $0x130] sm:$0xff]
      %v6414 = vld [vmem:[%s2245 + $0x138] sm:$0xff]
      %v6415 = vld [vmem:[%s2245 + $0x140] sm:$0xff]
      %v6416 = vld [vmem:[%s2245 + $0x148] sm:$0xff]
      %v6417 = vld [vmem:[%s2245 + $0x150] sm:$0xff]
      %v6418 = vld [vmem:[%s2245 + $0x158] sm:$0xff]
      %v6419 = vld [vmem:[%s2245 + $0x160] sm:$0xff]
      %v6420 = vld [vmem:[%s2245 + $0x168] sm:$0xff]
      %v6421 = vld [vmem:[%s2245 + $0x170] sm:$0xff]
      %v6422 = vld [vmem:[%s2245 + $0x178] sm:$0xff]
      %v6423 = vld [vmem:[%s2245 + $0x180] sm:$0xff]
      %v6424 = vld [vmem:[%s2245 + $0x188] sm:$0xff]
      %v6425 = vld [vmem:[%s2245 + $0x190] sm:$0xff]
      %v6426 = vld [vmem:[%s2245 + $0x198] sm:$0xff]
      %v6427 = vld [vmem:[%s2245 + $0x1a0] sm:$0xff]
      %v6428 = vld [vmem:[%s2245 + $0x1a8] sm:$0xff]
      %s6429 = scalar_lea.vmem %s3, 32
      %v6430 = vld [vmem:[%s6429] sm:$0xf]
      %v6432 = vsel %vm2132, %v6381, 0
      %v6435 = vsel %vm2132, %v6382, 0
      %v6438 = vsel %vm2132, %v6383, 0
      %v6441 = vsel %vm2132, %v6384, 0
      %v6444 = vsel %vm2132, %v6385, 0
      %v6447 = vsel %vm2132, %v6386, 0
      %v6450 = vsel %vm2132, %v6387, 0
      %v6453 = vsel %vm2132, %v6388, 0
      %v6456 = vsel %vm2132, %v6389, 0
      %v6459 = vsel %vm2132, %v6390, 0
      %v6462 = vsel %vm2132, %v6391, 0
      %v6465 = vsel %vm2132, %v6392, 0
      %v6468 = vsel %vm2132, %v6393, 0
      %v6471 = vsel %vm2132, %v6394, 0
      %v6474 = vsel %vm2132, %v6395, 0
      %v6477 = vsel %vm2132, %v6396, 0
      %v6480 = vsel %vm2132, %v6397, 0
      %v6483 = vsel %vm2132, %v6398, 0
      %v6486 = vsel %vm2132, %v6399, 0
      %v6489 = vsel %vm2132, %v6400, 0
      %v6492 = vsel %vm2132, %v6401, 0
      %v6495 = vsel %vm2132, %v6402, 0
      %v6498 = vsel %vm2132, %v6403, 0
      %v6501 = vsel %vm2132, %v6404, 0
      %v6504 = vsel %vm2132, %v6405, 0
      %v6507 = vsel %vm2132, %v6406, 0
      %v6510 = vsel %vm2132, %v6407, 0
      %v6513 = vsel %vm2132, %v6408, 0
      %v6516 = vsel %vm2132, %v6409, 0
      %v6519 = vsel %vm2132, %v6410, 0
      %v6522 = vsel %vm2132, %v6411, 0
      %v6525 = vsel %vm2132, %v6412, 0
      %v6528 = vsel %vm2132, %v6413, 0
      %v6531 = vsel %vm2132, %v6414, 0
      %v6534 = vsel %vm2132, %v6415, 0
      %v6537 = vsel %vm2132, %v6416, 0
      %v6540 = vsel %vm2132, %v6417, 0
      %v6543 = vsel %vm2132, %v6418, 0
      %v6546 = vsel %vm2132, %v6419, 0
      %v6549 = vsel %vm2132, %v6420, 0
      %v6552 = vsel %vm2132, %v6421, 0
      %v6555 = vsel %vm2132, %v6422, 0
      %v6558 = vsel %vm2132, %v6423, 0
      %v6561 = vsel %vm2132, %v6424, 0
      %v6564 = vsel %vm2132, %v6425, 0
      %v6567 = vsel %vm2132, %v6426, 0
      %v6570 = vsel %vm2132, %v6427, 0
      %v6573 = vsel %vm2132, %v6428, 0
      %v6576 = vsel %vm2544, %v6430, 0
      %6578 = vmatprep.subr.mxu0 0.0
      %6579 = vmatpush1.msra.mxu0 0.0
      %6580 = vmatprep.subr.mxu0 0.0
      %6581 = vmatpush1.msra.mxu0 0.0
      %6582 = vmatprep.subr.mxu0 0.0
      %6583 = vmatpush1.msra.mxu0 0.0
      %6584 = vmatprep.subr.mxu0 0.0
      %6585 = vmatpush1.msra.mxu0 0.0
      %6586 = vmatprep.subr.mxu0 0.0
      %6587 = vmatpush1.msra.mxu0 0.0
      %6588 = vmatprep.subr.mxu0 0.0
      %6589 = vmatpush1.msra.mxu0 0.0
      %6590 = vmatprep.subr.mxu0 0.0
      %6591 = vmatpush1.msra.mxu0 0.0
      %6592 = vmatprep.subr.mxu0 0.0
      %6593 = vmatpush1.msra.mxu0 0.0
      %6594 = vmatprep.subr.mxu0 0.0
      %6595 = vmatpush1.msra.mxu0 0.0
      %6596 = vmatprep.subr.mxu0 0.0
      %6597 = vmatpush1.msra.mxu0 0.0
      %6598 = vmatprep.subr.mxu0 0.0
      %6599 = vmatpush1.msra.mxu0 0.0
      %6600 = vmatprep.subr.mxu0 0.0
      %6601 = vmatpush1.msra.mxu0 0.0
      %6602 = vmatprep.subr.mxu0 0.0
      %6603 = vmatpush1.msra.mxu0 0.0
      %6604 = vmatprep.subr.mxu0 0.0
      %6605 = vmatpush1.msra.mxu0 0.0
      %6606 = vmatprep.subr.mxu0 0.0
      %6607 = vmatpush1.msra.mxu0 0.0
      %6608 = vmatprep.subr.mxu0 0.0
      %6609 = vmatpush1.msra.mxu0 %v6576
      %6610 = vmatprep.subr.mxu0 0.0
      %6611 = vmatpush2.msra.mxu0 0.0
      %6612 = vmatprep.subr.mxu0 0.0
      %6613 = vmatpush2.msra.mxu0 0.0
      %6614 = vmatprep.subr.mxu0 0.0
      %6615 = vmatpush2.msra.mxu0 0.0
      %6616 = vmatprep.subr.mxu0 0.0
      %6617 = vmatpush2.msra.mxu0 0.0
      %6618 = vmatprep.subr.mxu0 0.0
      %6619 = vmatpush2.msra.mxu0 0.0
      %6620 = vmatprep.subr.mxu0 0.0
      %6621 = vmatpush2.msra.mxu0 0.0
      %6622 = vmatprep.subr.mxu0 0.0
      %6623 = vmatpush2.msra.mxu0 0.0
      %6624 = vmatprep.subr.mxu0 0.0
      %6625 = vmatpush2.msra.mxu0 0.0
      %6626 = vmatprep.subr.mxu0 0.0
      %6627 = vmatpush2.msra.mxu0 0.0
      %6628 = vmatprep.subr.mxu0 0.0
      %6629 = vmatpush2.msra.mxu0 0.0
      %6630 = vmatprep.subr.mxu0 0.0
      %6631 = vmatpush2.msra.mxu0 0.0
      %6632 = vmatprep.subr.mxu0 0.0
      %6633 = vmatpush2.msra.mxu0 0.0
      %6634 = vmatprep.subr.mxu0 0.0
      %6635 = vmatpush2.msra.mxu0 0.0
      %6636 = vmatprep.subr.mxu0 0.0
      %6637 = vmatpush2.msra.mxu0 0.0
      %6638 = vmatprep.subr.mxu0 0.0
      %6639 = vmatpush2.msra.mxu0 0.0
      %6640 = vmatprep.subr.mxu0 0.0
      %6641 = vmatpush2.msra.mxu0 0.0
      %6642 = vmatprep.mubr.f32.mxu0 0.0
      %6643 = vmatmul.mubr.f32.gmra.mxu0 %v6432
      %v6644 = vpop.f32.mrf.mxu0
      %v6645 = vadd.f32 0.0, %v6644
      %v6646 = vpop.f32.mrf.mxu0
      %6647 = vmatprep.mubr.f32.mxu0 0.0
      %6648 = vmatmul.mubr.f32.gmra.mxu0 %v6435
      %v6649 = vpop.f32.mrf.mxu0
      %v6650 = vadd.f32 0.0, %v6649
      %v6651 = vpop.f32.mrf.mxu0
      %6652 = vmatprep.mubr.f32.mxu0 0.0
      %6653 = vmatmul.mubr.f32.gmra.mxu0 %v6438
      %v6654 = vpop.f32.mrf.mxu0
      %v6655 = vpop.f32.mrf.mxu0
      %6656 = vmatprep.mubr.f32.mxu0 0.0
      %6657 = vmatmul.mubr.f32.gmra.mxu0 %v6441
      %v6658 = vpop.f32.mrf.mxu0
      %v6659 = vadd.f32 0.0, %v6658
      %v6660 = vpop.f32.mrf.mxu0
      %6661 = vmatprep.mubr.f32.mxu0 0.0
      %6662 = vmatmul.mubr.f32.gmra.mxu0 %v6444
      %v6663 = vpop.f32.mrf.mxu0
      %v6664 = vadd.f32 0.0, %v6663
      %v6665 = vpop.f32.mrf.mxu0
      %6666 = vmatprep.mubr.f32.mxu0 0.0
      %6667 = vmatmul.mubr.f32.gmra.mxu0 %v6447
      %v6668 = vpop.f32.mrf.mxu0
      %v6669 = vpop.f32.mrf.mxu0
      %6670 = vmatprep.mubr.f32.mxu0 0.0
      %6671 = vmatmul.mubr.f32.gmra.mxu0 %v6450
      %v6672 = vpop.f32.mrf.mxu0
      %v6673 = vadd.f32 0.0, %v6672
      %v6674 = vpop.f32.mrf.mxu0
      %6675 = vmatprep.mubr.f32.mxu0 0.0
      %6676 = vmatmul.mubr.f32.gmra.mxu0 %v6453
      %v6677 = vpop.f32.mrf.mxu0
      %v6678 = vadd.f32 0.0, %v6677
      %v6679 = vpop.f32.mrf.mxu0
      %6680 = vmatprep.mubr.f32.mxu0 0.0
      %6681 = vmatmul.mubr.f32.gmra.mxu0 %v6456
      %v6682 = vpop.f32.mrf.mxu0
      %v6683 = vpop.f32.mrf.mxu0
      %6684 = vmatprep.mubr.f32.mxu0 0.0
      %6685 = vmatmul.mubr.f32.gmra.mxu0 %v6459
      %v6686 = vpop.f32.mrf.mxu0
      %v6687 = vadd.f32 0.0, %v6686
      %v6688 = vpop.f32.mrf.mxu0
      %6689 = vmatprep.mubr.f32.mxu0 0.0
      %6690 = vmatmul.mubr.f32.gmra.mxu0 %v6462
      %v6691 = vpop.f32.mrf.mxu0
      %v6692 = vadd.f32 0.0, %v6691
      %v6693 = vpop.f32.mrf.mxu0
      %6694 = vmatprep.mubr.f32.mxu0 0.0
      %6695 = vmatmul.mubr.f32.gmra.mxu0 %v6465
      %v6696 = vpop.f32.mrf.mxu0
      %v6697 = vpop.f32.mrf.mxu0
      %6698 = vmatprep.mubr.f32.mxu0 0.0
      %6699 = vmatmul.mubr.f32.gmra.mxu0 %v6468
      %v6700 = vpop.f32.mrf.mxu0
      %v6701 = vadd.f32 0.0, %v6700
      %v6702 = vpop.f32.mrf.mxu0
      %6703 = vmatprep.mubr.f32.mxu0 0.0
      %6704 = vmatmul.mubr.f32.gmra.mxu0 %v6471
      %v6705 = vpop.f32.mrf.mxu0
      %v6706 = vadd.f32 0.0, %v6705
      %v6707 = vpop.f32.mrf.mxu0
      %6708 = vmatprep.mubr.f32.mxu0 0.0
      %6709 = vmatmul.mubr.f32.gmra.mxu0 %v6474
      %v6710 = vpop.f32.mrf.mxu0
      %v6711 = vpop.f32.mrf.mxu0
      %6712 = vmatprep.mubr.f32.mxu0 0.0
      %6713 = vmatmul.mubr.f32.gmra.mxu0 %v6477
      %v6714 = vpop.f32.mrf.mxu0
      %v6715 = vadd.f32 0.0, %v6714
      %v6716 = vpop.f32.mrf.mxu0
      %6717 = vmatprep.mubr.f32.mxu0 0.0
      %6718 = vmatmul.mubr.f32.gmra.mxu0 %v6480
      %v6719 = vpop.f32.mrf.mxu0
      %v6720 = vadd.f32 0.0, %v6719
      %v6721 = vpop.f32.mrf.mxu0
      %6722 = vmatprep.mubr.f32.mxu0 0.0
      %6723 = vmatmul.mubr.f32.gmra.mxu0 %v6483
      %v6724 = vpop.f32.mrf.mxu0
      %v6725 = vpop.f32.mrf.mxu0
      %6726 = vmatprep.mubr.f32.mxu0 0.0
      %6727 = vmatmul.mubr.f32.gmra.mxu0 %v6486
      %v6728 = vpop.f32.mrf.mxu0
      %v6729 = vadd.f32 0.0, %v6728
      %v6730 = vpop.f32.mrf.mxu0
      %6731 = vmatprep.mubr.f32.mxu0 0.0
      %6732 = vmatmul.mubr.f32.gmra.mxu0 %v6489
      %v6733 = vpop.f32.mrf.mxu0
      %v6734 = vadd.f32 0.0, %v6733
      %v6735 = vpop.f32.mrf.mxu0
      %6736 = vmatprep.mubr.f32.mxu0 0.0
      %6737 = vmatmul.mubr.f32.gmra.mxu0 %v6492
      %v6738 = vpop.f32.mrf.mxu0
      %v6739 = vpop.f32.mrf.mxu0
      %6740 = vmatprep.mubr.f32.mxu0 0.0
      %6741 = vmatmul.mubr.f32.gmra.mxu0 %v6495
      %v6742 = vpop.f32.mrf.mxu0
      %v6743 = vadd.f32 0.0, %v6742
      %v6744 = vpop.f32.mrf.mxu0
      %6745 = vmatprep.mubr.f32.mxu0 0.0
      %6746 = vmatmul.mubr.f32.gmra.mxu0 %v6498
      %v6747 = vpop.f32.mrf.mxu0
      %v6748 = vadd.f32 0.0, %v6747
      %v6749 = vpop.f32.mrf.mxu0
      %6750 = vmatprep.mubr.f32.mxu0 0.0
      %6751 = vmatmul.mubr.f32.gmra.mxu0 %v6501
      %v6752 = vpop.f32.mrf.mxu0
      %v6753 = vpop.f32.mrf.mxu0
      %6754 = vmatprep.mubr.f32.mxu0 0.0
      %6755 = vmatmul.mubr.f32.gmra.mxu0 %v6504
      %v6756 = vpop.f32.mrf.mxu0
      %v6757 = vadd.f32 0.0, %v6756
      %v6758 = vpop.f32.mrf.mxu0
      %6759 = vmatprep.mubr.f32.mxu0 0.0
      %6760 = vmatmul.mubr.f32.gmra.mxu0 %v6507
      %v6761 = vpop.f32.mrf.mxu0
      %v6762 = vadd.f32 0.0, %v6761
      %v6763 = vpop.f32.mrf.mxu0
      %6764 = vmatprep.mubr.f32.mxu0 0.0
      %6765 = vmatmul.mubr.f32.gmra.mxu0 %v6510
      %v6766 = vpop.f32.mrf.mxu0
      %v6767 = vpop.f32.mrf.mxu0
      %6768 = vmatprep.mubr.f32.mxu0 0.0
      %6769 = vmatmul.mubr.f32.gmra.mxu0 %v6513
      %v6770 = vpop.f32.mrf.mxu0
      %v6771 = vadd.f32 0.0, %v6770
      %v6772 = vpop.f32.mrf.mxu0
      %6773 = vmatprep.mubr.f32.mxu0 0.0
      %6774 = vmatmul.mubr.f32.gmra.mxu0 %v6516
      %v6775 = vpop.f32.mrf.mxu0
      %v6776 = vadd.f32 0.0, %v6775
      %v6777 = vpop.f32.mrf.mxu0
      %6778 = vmatprep.mubr.f32.mxu0 0.0
      %6779 = vmatmul.mubr.f32.gmra.mxu0 %v6519
      %v6780 = vpop.f32.mrf.mxu0
      %v6781 = vpop.f32.mrf.mxu0
      %6782 = vmatprep.mubr.f32.mxu0 0.0
      %6783 = vmatmul.mubr.f32.gmra.mxu0 %v6522
      %v6784 = vpop.f32.mrf.mxu0
      %v6785 = vadd.f32 0.0, %v6784
      %v6786 = vpop.f32.mrf.mxu0
      %6787 = vmatprep.mubr.f32.mxu0 0.0
      %6788 = vmatmul.mubr.f32.gmra.mxu0 %v6525
      %v6789 = vpop.f32.mrf.mxu0
      %v6790 = vadd.f32 0.0, %v6789
      %v6791 = vpop.f32.mrf.mxu0
      %6792 = vmatprep.mubr.f32.mxu0 0.0
      %6793 = vmatmul.mubr.f32.gmra.mxu0 %v6528
      %v6794 = vpop.f32.mrf.mxu0
      %v6795 = vpop.f32.mrf.mxu0
      %6796 = vmatprep.mubr.f32.mxu0 0.0
      %6797 = vmatmul.mubr.f32.gmra.mxu0 %v6531
      %v6798 = vpop.f32.mrf.mxu0
      %v6799 = vadd.f32 0.0, %v6798
      %v6800 = vpop.f32.mrf.mxu0
      %6801 = vmatprep.mubr.f32.mxu0 0.0
      %6802 = vmatmul.mubr.f32.gmra.mxu0 %v6534
      %v6803 = vpop.f32.mrf.mxu0
      %v6804 = vadd.f32 0.0, %v6803
      %v6805 = vpop.f32.mrf.mxu0
      %6806 = vmatprep.mubr.f32.mxu0 0.0
      %6807 = vmatmul.mubr.f32.gmra.mxu0 %v6537
      %v6808 = vpop.f32.mrf.mxu0
      %v6809 = vpop.f32.mrf.mxu0
      %6810 = vmatprep.mubr.f32.mxu0 0.0
      %6811 = vmatmul.mubr.f32.gmra.mxu0 %v6540
      %v6812 = vpop.f32.mrf.mxu0
      %v6813 = vadd.f32 0.0, %v6812
      %v6814 = vpop.f32.mrf.mxu0
      %6815 = vmatprep.mubr.f32.mxu0 0.0
      %6816 = vmatmul.mubr.f32.gmra.mxu0 %v6543
      %v6817 = vpop.f32.mrf.mxu0
      %v6818 = vadd.f32 0.0, %v6817
      %v6819 = vpop.f32.mrf.mxu0
      %6820 = vmatprep.mubr.f32.mxu0 0.0
      %6821 = vmatmul.mubr.f32.gmra.mxu0 %v6546
      %v6822 = vpop.f32.mrf.mxu0
      %v6823 = vpop.f32.mrf.mxu0
      %6824 = vmatprep.mubr.f32.mxu0 0.0
      %6825 = vmatmul.mubr.f32.gmra.mxu0 %v6549
      %v6826 = vpop.f32.mrf.mxu0
      %v6827 = vadd.f32 0.0, %v6826
      %v6828 = vpop.f32.mrf.mxu0
      %6829 = vmatprep.mubr.f32.mxu0 0.0
      %6830 = vmatmul.mubr.f32.gmra.mxu0 %v6552
      %v6831 = vpop.f32.mrf.mxu0
      %v6832 = vadd.f32 0.0, %v6831
      %v6833 = vpop.f32.mrf.mxu0
      %6834 = vmatprep.mubr.f32.mxu0 0.0
      %6835 = vmatmul.mubr.f32.gmra.mxu0 %v6555
      %v6836 = vpop.f32.mrf.mxu0
      %v6837 = vpop.f32.mrf.mxu0
      %6838 = vmatprep.mubr.f32.mxu0 0.0
      %6839 = vmatmul.mubr.f32.gmra.mxu0 %v6558
      %v6840 = vpop.f32.mrf.mxu0
      %v6841 = vadd.f32 0.0, %v6840
      %v6842 = vpop.f32.mrf.mxu0
      %6843 = vmatprep.mubr.f32.mxu0 0.0
      %6844 = vmatmul.mubr.f32.gmra.mxu0 %v6561
      %v6845 = vpop.f32.mrf.mxu0
      %v6846 = vadd.f32 0.0, %v6845
      %v6847 = vpop.f32.mrf.mxu0
      %6848 = vmatprep.mubr.f32.mxu0 0.0
      %6849 = vmatmul.mubr.f32.gmra.mxu0 %v6564
      %v6850 = vpop.f32.mrf.mxu0
      %v6851 = vpop.f32.mrf.mxu0
      %6852 = vmatprep.mubr.f32.mxu0 0.0
      %6853 = vmatmul.mubr.f32.gmra.mxu0 %v6567
      %v6854 = vpop.f32.mrf.mxu0
      %v6855 = vadd.f32 0.0, %v6854
      %v6856 = vpop.f32.mrf.mxu0
      %6857 = vmatprep.mubr.f32.mxu0 0.0
      %6858 = vmatmul.mubr.f32.gmra.mxu0 %v6570
      %v6859 = vpop.f32.mrf.mxu0
      %v6860 = vadd.f32 0.0, %v6859
      %v6861 = vpop.f32.mrf.mxu0
      %6862 = vmatprep.mubr.f32.mxu0 0.0
      %6863 = vmatmul.mubr.f32.gmra.mxu0 %v6573
      %v6864 = vpop.f32.mrf.mxu0
      %v6865 = vpop.f32.mrf.mxu0
      %6866 = vdwg.mxu0
      %v6867 = vadd.f32 %v6349, %v6645
      %v6868 = vadd.f32 %v6350, %v6650
      %v6869 = vadd.f32 %v6351, %v6659
      %v6870 = vadd.f32 %v6352, %v6664
      %v6871 = vadd.f32 %v6353, %v6673
      %v6872 = vadd.f32 %v6354, %v6678
      %v6873 = vadd.f32 %v6355, %v6687
      %v6874 = vadd.f32 %v6356, %v6692
      %v6875 = vadd.f32 %v6357, %v6701
      %v6876 = vadd.f32 %v6358, %v6706
      %v6877 = vadd.f32 %v6359, %v6715
      %v6878 = vadd.f32 %v6360, %v6720
      %v6879 = vadd.f32 %v6361, %v6729
      %v6880 = vadd.f32 %v6362, %v6734
      %v6881 = vadd.f32 %v6363, %v6743
      %v6882 = vadd.f32 %v6364, %v6748
      %v6883 = vadd.f32 %v6365, %v6757
      %v6884 = vadd.f32 %v6366, %v6762
      %v6885 = vadd.f32 %v6367, %v6771
      %v6886 = vadd.f32 %v6368, %v6776
      %v6887 = vadd.f32 %v6369, %v6785
      %v6888 = vadd.f32 %v6370, %v6790
      %v6889 = vadd.f32 %v6371, %v6799
      %v6890 = vadd.f32 %v6372, %v6804
      %v6891 = vadd.f32 %v6373, %v6813
      %v6892 = vadd.f32 %v6374, %v6818
      %v6893 = vadd.f32 %v6375, %v6827
      %v6894 = vadd.f32 %v6376, %v6832
      %v6895 = vadd.f32 %v6377, %v6841
      %v6896 = vadd.f32 %v6378, %v6846
      %v6897 = vadd.f32 %v6379, %v6855
      %v6898 = vadd.f32 %v6380, %v6860
      %v6899 = vld [vmem:[%s4] sm:$0x1]
      %v6901 = vlaneseq
      %v6902 = vshrl.u32 %v6901, 7
      %v6903 = vsub.s32 0, %v6902
      %v6904 = vrot.slane %v6899, %v6903
      %v6906 = vadd.f32 %v6867, %v6904
      %v6907 = vadd.f32 %v6868, %v6904
      %v6908 = vadd.f32 %v6869, %v6904
      %v6909 = vadd.f32 %v6870, %v6904
      %v6910 = vadd.f32 %v6871, %v6904
      %v6911 = vadd.f32 %v6872, %v6904
      %v6912 = vadd.f32 %v6873, %v6904
      %v6913 = vadd.f32 %v6874, %v6904
      %v6914 = vadd.f32 %v6875, %v6904
      %v6915 = vadd.f32 %v6876, %v6904
      %v6916 = vadd.f32 %v6877, %v6904
      %v6917 = vadd.f32 %v6878, %v6904
      %v6918 = vadd.f32 %v6879, %v6904
      %v6919 = vadd.f32 %v6880, %v6904
      %v6920 = vadd.f32 %v6881, %v6904
      %v6921 = vadd.f32 %v6882, %v6904
      %v6922 = vadd.f32 %v6883, %v6904
      %v6923 = vadd.f32 %v6884, %v6904
      %v6924 = vadd.f32 %v6885, %v6904
      %v6925 = vadd.f32 %v6886, %v6904
      %v6926 = vadd.f32 %v6887, %v6904
      %v6927 = vadd.f32 %v6888, %v6904
      %v6928 = vadd.f32 %v6889, %v6904
      %v6929 = vadd.f32 %v6890, %v6904
      %v6930 = vadd.f32 %v6891, %v6904
      %v6931 = vadd.f32 %v6892, %v6904
      %v6932 = vadd.f32 %v6893, %v6904
      %v6933 = vadd.f32 %v6894, %v6904
      %v6934 = vadd.f32 %v6895, %v6904
      %v6935 = vadd.f32 %v6896, %v6904
      %v6936 = vadd.f32 %v6897, %v6904
      %v6937 = vadd.f32 %v6898, %v6904
      %v6938 = vmax.f32 %v6906, 0.0
      %v6939 = vmax.f32 %v6907, 0.0
      %v6940 = vmax.f32 %v6908, 0.0
      %v6941 = vmax.f32 %v6909, 0.0
      %v6942 = vmax.f32 %v6910, 0.0
      %v6943 = vmax.f32 %v6911, 0.0
      %v6944 = vmax.f32 %v6912, 0.0
      %v6945 = vmax.f32 %v6913, 0.0
      %v6946 = vmax.f32 %v6914, 0.0
      %v6947 = vmax.f32 %v6915, 0.0
      %v6948 = vmax.f32 %v6916, 0.0
      %v6949 = vmax.f32 %v6917, 0.0
      %v6950 = vmax.f32 %v6918, 0.0
      %v6951 = vmax.f32 %v6919, 0.0
      %v6952 = vmax.f32 %v6920, 0.0
      %v6953 = vmax.f32 %v6921, 0.0
      %v6954 = vmax.f32 %v6922, 0.0
      %v6955 = vmax.f32 %v6923, 0.0
      %v6956 = vmax.f32 %v6924, 0.0
      %v6957 = vmax.f32 %v6925, 0.0
      %v6958 = vmax.f32 %v6926, 0.0
      %v6959 = vmax.f32 %v6927, 0.0
      %v6960 = vmax.f32 %v6928, 0.0
      %v6961 = vmax.f32 %v6929, 0.0
      %v6962 = vmax.f32 %v6930, 0.0
      %v6963 = vmax.f32 %v6931, 0.0
      %v6964 = vmax.f32 %v6932, 0.0
      %v6965 = vmax.f32 %v6933, 0.0
      %v6966 = vmax.f32 %v6934, 0.0
      %v6967 = vmax.f32 %v6935, 0.0
      %v6968 = vmax.f32 %v6936, 0.0
      %v6969 = vmax.f32 %v6937, 0.0
      %6970 = vst.msk [vmem:[%s224] sm:$0xff] %vm2132, %v6938
      %6971 = vst.msk [vmem:[%s224 + $0x8] sm:$0xff] %vm2132, %v6939
      %6972 = vst.msk [vmem:[%s224 + $0x10] sm:$0xff] %vm2132, %v6940
      %6973 = vst.msk [vmem:[%s224 + $0x18] sm:$0xff] %vm2132, %v6941
      %6974 = vst.msk [vmem:[%s224 + $0x20] sm:$0xff] %vm2132, %v6942
      %6975 = vst.msk [vmem:[%s224 + $0x28] sm:$0xff] %vm2132, %v6943
      %6976 = vst.msk [vmem:[%s224 + $0x30] sm:$0xff] %vm2132, %v6944
      %6977 = vst.msk [vmem:[%s224 + $0x38] sm:$0xff] %vm2132, %v6945
      %6978 = vst.msk [vmem:[%s224 + $0x40] sm:$0xff] %vm2132, %v6946
      %6979 = vst.msk [vmem:[%s224 + $0x48] sm:$0xff] %vm2132, %v6947
      %6980 = vst.msk [vmem:[%s224 + $0x50] sm:$0xff] %vm2132, %v6948
      %6981 = vst.msk [vmem:[%s224 + $0x58] sm:$0xff] %vm2132, %v6949
      %6982 = vst.msk [vmem:[%s224 + $0x60] sm:$0xff] %vm2132, %v6950
      %6983 = vst.msk [vmem:[%s224 + $0x68] sm:$0xff] %vm2132, %v6951
      %6984 = vst.msk [vmem:[%s224 + $0x70] sm:$0xff] %vm2132, %v6952
      %6985 = vst.msk [vmem:[%s224 + $0x78] sm:$0xff] %vm2132, %v6953
      %6986 = vst.msk [vmem:[%s224 + $0x80] sm:$0xff] %vm2132, %v6954
      %6987 = vst.msk [vmem:[%s224 + $0x88] sm:$0xff] %vm2132, %v6955
      %6988 = vst.msk [vmem:[%s224 + $0x90] sm:$0xff] %vm2132, %v6956
      %6989 = vst.msk [vmem:[%s224 + $0x98] sm:$0xff] %vm2132, %v6957
      %6990 = vst.msk [vmem:[%s224 + $0xa0] sm:$0xff] %vm2132, %v6958
      %6991 = vst.msk [vmem:[%s224 + $0xa8] sm:$0xff] %vm2132, %v6959
      %6992 = vst.msk [vmem:[%s224 + $0xb0] sm:$0xff] %vm2132, %v6960
      %6993 = vst.msk [vmem:[%s224 + $0xb8] sm:$0xff] %vm2132, %v6961
      %6994 = vst.msk [vmem:[%s224 + $0xc0] sm:$0xff] %vm2132, %v6962
      %6995 = vst.msk [vmem:[%s224 + $0xc8] sm:$0xff] %vm2132, %v6963
      %6996 = vst.msk [vmem:[%s224 + $0xd0] sm:$0xff] %vm2132, %v6964
      %6997 = vst.msk [vmem:[%s224 + $0xd8] sm:$0xff] %vm2132, %v6965
      %6998 = vst.msk [vmem:[%s224 + $0xe0] sm:$0xff] %vm2132, %v6966
      %6999 = vst.msk [vmem:[%s224 + $0xe8] sm:$0xff] %vm2132, %v6967
      %7000 = vst.msk [vmem:[%s224 + $0xf0] sm:$0xff] %vm2132, %v6968
      %7001 = vst.msk [vmem:[%s224 + $0xf8] sm:$0xff] %vm2132, %v6969
      %p7002 = scmp.lt.s32.totalorder %s16, 1
      %s7003 = scalar_select %p7002, %s16, 1
      %s7004 = smul.addr %s7003, 32
      %s7005 = smul.addr %s7004, 8
      %s7006 = scalar_lea.vmem %s5, %s7005
      // Predicated region
      $region41: #{tpu_custom_call.1} parent=39 // pred_check
        %p7007 = pneg %p144
      $region42: #{tpu_custom_call.1} parent=39 // pred_check_branch
        %7009 = sbr.rel (%p7007) target = $region44
      $region43: #{tpu_custom_call.1} parent=39 // pred_region
        _
      $region44: #{tpu_custom_call.1} parent=39 // pred_fallthru
        _
    $region40: #{tpu_custom_call.1} parent=5 // pred_fallthru
      _
    %p7010 = scmp.le.s32.totalorder 2, %s11
    // Predicated region
    $region45: #{tpu_custom_call.1} parent=5 // pred_check
      %p7011 = pneg %p7010
    $region46: #{tpu_custom_call.1} parent=5 // pred_check_branch
      %7013 = sbr.rel (%p7011) target = $region48
    $region47: #{tpu_custom_call.1} parent=5 // pred_region
      %s7014 = ssub.s32 %s11, 2
      // Predicated region
      $region49: #{tpu_custom_call.1} parent=47 // pred_check
        %p7015 = pneg %p150
      $region50: #{tpu_custom_call.1} parent=47 // pred_check_branch
        %7017 = sbr.rel (%p7015) target = $region52
      $region51: #{tpu_custom_call.1} parent=47 // pred_region
        %p7018 = scmp.lt.s32.totalorder %s17, 1
        %s7019 = scalar_select %p7018, %s17, 1
        %s7020 = smul.addr %s7019, 32
        %s7021 = smul.addr %s7020, 8
        %s7022 = scalar_lea.vmem %s5, %s7021
      $region52: #{tpu_custom_call.1} parent=47 // pred_fallthru
        _
    $region48: #{tpu_custom_call.1} parent=5 // pred_fallthru
      _
  $region6: #{tpu_custom_call.1} parent=0 // loop_footer
    %s15 = sadd.s32 1, %s11
  $region7: #{tpu_custom_call.1} parent=0 // loop_footer_branch
    %10 = sbr.rel target = $region3
  $region8: #{tpu_custom_call.1} parent=0 // loop_exit
    _

</llo_original>
